<compile_context>
chip_gen: v5e
topology: v5e:2x2
jax: 0.10.0
libtpu: 0.0.40
codegen_flags: <defaults>
</compile_context>

<pallas_src>
import jax
import jax.numpy as jnp
from jax.experimental import pallas as pl
from jax.experimental.pallas import tpu as pltpu


def _ceil_to(v, m):
    return ((v + m - 1) // m) * m


def _conv_out(h, k, p):
    return h + 2 * p - k + 1  # stride 1


def digit_classifier_forward(params, x_nchw):
    n, cin, h, w = x_nchw.shape

    k1, p1, c1 = 5, 4, 8
    k2, p2, c2 = 5, 2, 16
    k3, p3, c3 = 3, 1, 32

    # ---- static shape bookkeeping (Python ints at trace time) ----
    # Activations live flattened as (rows, C) per sample; the row pitch wp_l is
    # rounded up to a multiple of 8 (sublane aligned); extra columns stay zero.
    hp1 = h + 2 * p1;  wr1 = w + 2 * p1;  wp1 = _ceil_to(wr1, 8)
    ho1 = hp1 - k1 + 1; wo1 = wr1 - k1 + 1
    hq1, wq1 = ho1 // 2, wo1 // 2                       # pool1 output (floor mode)
    b1 = hp1 * wp1; off1 = (k1 - 1) * wp1 + (k1 - 1); r1 = b1 - off1

    hp2 = hq1 + 2 * p2; wr2 = wq1 + 2 * p2; wp2 = _ceil_to(wr2, 8)
    ho2 = hp2 - k2 + 1; wo2 = wr2 - k2 + 1
    hq2, wq2 = ho2 // 2, wo2 // 2
    b2 = hp2 * wp2; off2 = (k2 - 1) * wp2 + (k2 - 1); r2 = b2 - off2

    hp3 = hq2 + 2 * p3; wr3 = wq2 + 2 * p3; wp3 = _ceil_to(wr3, 8)
    ho3 = hp3 - k3 + 1; wo3 = wr3 - k3 + 1
    hq3, wq3 = ho3 // 2, wo3 // 2
    b3 = hp3 * wp3; off3 = (k3 - 1) * wp3 + (k3 - 1); r3 = b3 - off3

    pcnt = hq3 * wq3
    feat = c3 * pcnt
    classes = params["wfc2"].shape[1]
    K1, K2, K3 = k1 * k1 * cin, k2 * k2 * c1, k3 * k3 * c2
    CHUNK = 256   # conv row-chunk (multiple of 8); everything here is tiny

    # Trace-time sanity: every valid conv output row is inside the accumulator and
    # every im2col read stays inside the per-sample block (garbage rows excluded
    # downstream by the pooling index math).
    for (ho_, wo_, wp_, r_, off_, b_) in ((ho1, wo1, wp1, r1, off1, b1),
                                          (ho2, wo2, wp2, r2, off2, b2),
                                          (ho3, wo3, wp3, r3, off3, b3)):
        assert (ho_ - 1) * wp_ + (wo_ - 1) < r_, "valid conv rows exceed accumulator"
        assert r_ + off_ <= b_, "im2col read would leave the per-sample block"
    assert params["wfc1"].shape == (feat, feat), (params["wfc1"].shape, feat)

    # ---- one-time layout plumbing outside the kernel (tiny tensors) ----
    x = jnp.transpose(x_nchw, (0, 2, 3, 1)).astype(jnp.float32)      # NCHW -> NHWC
    x = jnp.pad(x, ((0, 0), (p1, p1), (p1, p1 + (wp1 - wr1)), (0, 0)))
    x1 = x.reshape(n, b1, cin)                                       # per-sample flat slab

    w1 = params["w1"].astype(jnp.float32).reshape(K1, c1)            # HWIO -> (K, Cout)
    w2 = params["w2"].astype(jnp.float32).reshape(K2, c2)
    w3 = params["w3"].astype(jnp.float32).reshape(K3, c3)
    bb1 = params["b1"].astype(jnp.float32).reshape(1, c1)
    bb2 = params["b2"].astype(jnp.float32).reshape(1, c2)
    bb3 = params["b3"].astype(jnp.float32).reshape(1, c3)

    # fc1 weight rows regrouped: torch flatten index c*pcnt + p  ->  lane index p*c3 + c
    wfc1_r = params["wfc1"].astype(jnp.float32).reshape(c3, pcnt, feat)
    wfc1_r = wfc1_r.transpose(1, 0, 2).reshape(feat, feat)
    bfc1 = params["bfc1"].astype(jnp.float32).reshape(1, feat)
    wfc2 = params["wfc2"].astype(jnp.float32)
    bfc2 = params["bfc2"].astype(jnp.float32).reshape(1, classes)

    # ---- the fused per-sample kernel ----
    def kernel(x_ref, w1_ref, b1_ref, w2_ref, b2_ref, w3_ref, b3_ref,
               wfc1_ref, bfc1_ref, wfc2_ref, bfc2_ref,
               out_ref,
               acc1_ref, a2_ref, acc2_ref, a3_ref, acc3_ref):

        def conv(load_rows, w_ref, dst_ref, kh, kw, pitch, rows):
            # One lane-dense matmul per row chunk: im2col built in registers by
            # concatenating the KH*KW shifted row-slices along the lane axis.
            w_mat = w_ref[...]
            r0 = 0
            while r0 < rows:                      # static Python loop, few chunks
                sz = min(CHUNK, rows - r0)
                cols = jnp.concatenate(
                    [load_rows(r0 + i * pitch + j, sz)
                     for i in range(kh) for j in range(kw)], axis=1)
                dst_ref[pl.ds(r0, sz), :] = jnp.dot(
                    cols, w_mat, preferred_element_type=jnp.float32)
                r0 += sz

        def pool_rows(src_ref, row0, width, pitch):
            # 2x2 / stride-2 maxpool of one pooled output row via strided reads.
            tl = src_ref[pl.ds(row0, width, stride=2), :]
            tr = src_ref[pl.ds(row0 + 1, width, stride=2), :]
            bl = src_ref[pl.ds(row0 + pitch, width, stride=2), :]
            br = src_ref[pl.ds(row0 + pitch + 1, width, stride=2), :]
            return jnp.maximum(jnp.maximum(tl, tr), jnp.maximum(bl, br))

        # Padded inputs of conv2/conv3 must be zero (conv padding); scratch persists
        # across grid steps, so re-zero each step.
        a2_ref[...] = jnp.zeros_like(a2_ref)
        a3_ref[...] = jnp.zeros_like(a3_ref)

        # stage 1: conv1 -> (bias + ReLU + pool fused) -> padded conv2 input
        conv(lambda o, s: x_ref[0, pl.ds(o, s), :], w1_ref, acc1_ref, k1, k1, wp1, r1)
        for hp in range(hq1):
            m = jnp.maximum(pool_rows(acc1_ref, 2 * hp * wp1, wq1, wp1) + b1_ref[...], 0.0)
            a2_ref[pl.ds((hp + p2) * wp2 + p2, wq1), :] = m

        # stage 2
        conv(lambda o, s: a2_ref[pl.ds(o, s), :], w2_ref, acc2_ref, k2, k2, wp2, r2)
        for hp in range(hq2):
            m = jnp.maximum(pool_rows(acc2_ref, 2 * hp * wp2, wq2, wp2) + b2_ref[...], 0.0)
            a3_ref[pl.ds((hp + p3) * wp3 + p3, wq2), :] = m

        # stage 3: conv3 -> pool3 -> flatten (lane order p*C3 + c, matching wfc1_r)
        conv(lambda o, s: a3_ref[pl.ds(o, s), :], w3_ref, acc3_ref, k3, k3, wp3, r3)
        pieces = []
        for hp in range(hq3):
            m = jnp.maximum(pool_rows(acc3_ref, 2 * hp * wp3, wq3, wp3) + b3_ref[...], 0.0)
            for wp_ in range(wq3):
                pieces.append(m[wp_:wp_ + 1, :])          # (1, C3), position p = hp*wq3+wp_
        feat_row = jnp.concatenate(pieces, axis=1)         # (1, feat)

        # fc1 + fc2: two lane-dense matmuls (contraction K = feat = 128)
        h1 = jnp.maximum(
            jnp.dot(feat_row, wfc1_ref[...], preferred_element_type=jnp.float32)
            + bfc1_ref[...], 0.0)
        out_ref[0] = jnp.dot(h1, wfc2_ref[...],
                             preferred_element_type=jnp.float32) + bfc2_ref[...]

    def whole(arr):
        nd = arr.ndim
        return pl.BlockSpec(arr.shape, lambda b, _nd=nd: (0,) * _nd,
                            memory_space=pltpu.MemorySpace.VMEM)

    flops = 2 * n * (r1 * K1 * c1 + r2 * K2 * c2 + r3 * K3 * c3
                     + feat * feat + feat * classes)
    bytes_accessed = 4 * (n * b1 * cin + K1 * c1 + K2 * c2 + K3 * c3
                          + feat * feat + feat * classes
                          + c1 + c2 + c3 + feat + classes + n * classes)

    out = pl.pallas_call(
        kernel,
        out_shape=jax.ShapeDtypeStruct((n, 1, classes), jnp.float32),
        grid_spec=pltpu.PrefetchScalarGridSpec(
            num_scalar_prefetch=0,
            grid=(n,),
            in_specs=[
                pl.BlockSpec((1, b1, cin), lambda b: (b, 0, 0),
                             memory_space=pltpu.MemorySpace.VMEM),
                whole(w1), whole(bb1), whole(w2), whole(bb2), whole(w3), whole(bb3),
                whole(wfc1_r), whole(bfc1), whole(wfc2), whole(bfc2),
            ],
            out_specs=pl.BlockSpec((1, 1, classes), lambda b: (b, 0, 0),
                                   memory_space=pltpu.MemorySpace.VMEM),
            scratch_shapes=[
                pltpu.VMEM((r1, c1), jnp.float32),   # conv1 accumulator (flat rows)
                pltpu.VMEM((b2, c1), jnp.float32),   # padded conv2 input
                pltpu.VMEM((r2, c2), jnp.float32),   # conv2 accumulator
                pltpu.VMEM((b3, c2), jnp.float32),   # padded conv3 input
                pltpu.VMEM((r3, c3), jnp.float32),   # conv3 accumulator
            ]),
        compiler_params=pltpu.CompilerParams(dimension_semantics=("parallel",)),
        cost_estimate=pl.CostEstimate(flops=flops, transcendentals=0,
                                      bytes_accessed=bytes_accessed),
    )(x1, w1, bb1, w2, bb2, w3, bb3, wfc1_r, bfc1, wfc2, bfc2)
    return out.reshape(n, classes)


# ---------------------------------------------------------------------------
# Parameters (same layout/semantics as before: conv weights HWIO, fc as (in, out))
# ---------------------------------------------------------------------------
def init_params(key, input_height, input_width, input_channels, class_count):
    ks = jax.random.split(key, 10)

    def winit(shape, k, fan_in):
        return jax.random.normal(k, shape, jnp.float32) / jnp.sqrt(float(fan_in))

    p = {
        "w1": winit((5, 5, input_channels, 8), ks[0], 5 * 5 * input_channels),
        "b1": winit((8,), ks[1], 5 * 5 * input_channels),
        "w2": winit((5, 5, 8, 16), ks[2], 5 * 5 * 8),
        "b2": winit((16,), ks[3], 5 * 5 * 8),
        "w3": winit((3, 3, 16, 32), ks[4], 3 * 3 * 16),
        "b3": winit((32,), ks[5], 3 * 3 * 16),
    }
    hh = _conv_out(input_height, 5, 4) // 2
    ww = _conv_out(input_width, 5, 4) // 2
    hh = _conv_out(hh, 5, 2) // 2
    ww = _conv_out(ww, 5, 2) // 2
    hh = _conv_out(hh, 3, 1) // 2
    ww = _conv_out(ww, 3, 1) // 2
    f = 32 * hh * ww  # flatten size (matches torch _get_flattened_size)
    p["wfc1"] = winit((f, f), ks[6], f)              # stored as (in, out) == torch weight.T
    p["bfc1"] = winit((f,), ks[7], f)
    p["wfc2"] = winit((f, class_count), ks[8], f)
    p["bfc2"] = winit((class_count,), ks[9], f)
    return p


# ---------------------------------------------------------------------------
if __name__ == "__main__":
    INPUT_H, INPUT_W, INPUT_C, CLASSES, BATCH = 16, 16, 4, 10, 2

    key = jax.random.PRNGKey(0)
    k_params, k_x = jax.random.split(key)
    params = init_params(k_params, INPUT_H, INPUT_W, INPUT_C, CLASSES)
    x = jax.random.normal(k_x, (BATCH, INPUT_C, INPUT_H, INPUT_W), jnp.float32)

    fwd = jax.jit(digit_classifier_forward)
    logits = jax.block_until_ready(fwd(params, x))

    assert logits.shape == (BATCH, CLASSES), logits.shape
    assert bool(jnp.all(jnp.isfinite(logits)))
    print("KERNEL_OK")
</pallas_src>

<mosaic_0001>
module attributes {stable_mosaic.version = 11 : i64} {
  func.func @kernel(%arg0: i32, %arg1: memref<1x576x4xf32, #tpu.memory_space<vmem>>, %arg2: memref<100x8xf32, #tpu.memory_space<vmem>>, %arg3: memref<1x8xf32, #tpu.memory_space<vmem>>, %arg4: memref<200x16xf32, #tpu.memory_space<vmem>>, %arg5: memref<1x16xf32, #tpu.memory_space<vmem>>, %arg6: memref<144x32xf32, #tpu.memory_space<vmem>>, %arg7: memref<1x32xf32, #tpu.memory_space<vmem>>, %arg8: memref<128x128xf32, #tpu.memory_space<vmem>>, %arg9: memref<1x128xf32, #tpu.memory_space<vmem>>, %arg10: memref<128x10xf32, #tpu.memory_space<vmem>>, %arg11: memref<1x10xf32, #tpu.memory_space<vmem>>, %arg12: memref<1x1x10xf32, #tpu.memory_space<vmem>>, %arg13: memref<476x8xf32, #tpu.memory_space<vmem>>, %arg14: memref<224x8xf32, #tpu.memory_space<vmem>>, %arg15: memref<156x16xf32, #tpu.memory_space<vmem>>, %arg16: memref<56x16xf32, #tpu.memory_space<vmem>>, %arg17: memref<38x32xf32, #tpu.memory_space<vmem>>) attributes {dimension_semantics = [#tpu.dimension_semantics<parallel>], iteration_bounds = array<i64: 2>, scalar_prefetch = 0 : i64, scratch_operands = 5 : i64, tpu.core_type = #tpu.core_type<tc>, window_params = [{transform_indices = @transform_0, window_bounds = array<i64: 1, 576, 4>}, {pipeline_mode = #tpu.pipeline_mode<synchronous>, transform_indices = @transform_1, window_bounds = array<i64: 100, 8>}, {pipeline_mode = #tpu.pipeline_mode<synchronous>, transform_indices = @transform_2, window_bounds = array<i64: 1, 8>}, {pipeline_mode = #tpu.pipeline_mode<synchronous>, transform_indices = @transform_3, window_bounds = array<i64: 200, 16>}, {pipeline_mode = #tpu.pipeline_mode<synchronous>, transform_indices = @transform_4, window_bounds = array<i64: 1, 16>}, {pipeline_mode = #tpu.pipeline_mode<synchronous>, transform_indices = @transform_5, window_bounds = array<i64: 144, 32>}, {pipeline_mode = #tpu.pipeline_mode<synchronous>, transform_indices = @transform_6, window_bounds = array<i64: 1, 32>}, {pipeline_mode = #tpu.pipeline_mode<synchronous>, transform_indices = @transform_7, window_bounds = array<i64: 128, 128>}, {pipeline_mode = #tpu.pipeline_mode<synchronous>, transform_indices = @transform_8, window_bounds = array<i64: 1, 128>}, {pipeline_mode = #tpu.pipeline_mode<synchronous>, transform_indices = @transform_9, window_bounds = array<i64: 128, 10>}, {pipeline_mode = #tpu.pipeline_mode<synchronous>, transform_indices = @transform_10, window_bounds = array<i64: 1, 10>}, {transform_indices = @transform_11, window_bounds = array<i64: 1, 1, 10>}]} {
    %cst = arith.constant 0.000000e+00 : f32
    %0 = vector.broadcast %cst : f32 to vector<224x8xf32>
    %c0 = arith.constant 0 : index
    %c0_0 = arith.constant 0 : index
    %1 = vector.load %arg14[%c0, %c0_0] : memref<224x8xf32, #tpu.memory_space<vmem>>, vector<224x8xf32>
    tpu.vector_store %arg14[%c0, %c0_0], %0 {strides = array<i32>} : memref<224x8xf32, #tpu.memory_space<vmem>>, vector<224x8xf32>,
    %cst_1 = arith.constant 0.000000e+00 : f32
    %2 = vector.broadcast %cst_1 : f32 to vector<56x16xf32>
    %c0_2 = arith.constant 0 : index
    %c0_3 = arith.constant 0 : index
    %3 = vector.load %arg16[%c0_2, %c0_3] : memref<56x16xf32, #tpu.memory_space<vmem>>, vector<56x16xf32>
    tpu.vector_store %arg16[%c0_2, %c0_3], %2 {strides = array<i32>} : memref<56x16xf32, #tpu.memory_space<vmem>>, vector<56x16xf32>,
    %c0_4 = arith.constant 0 : index
    %c0_5 = arith.constant 0 : index
    %4 = vector.load %arg2[%c0_4, %c0_5] : memref<100x8xf32, #tpu.memory_space<vmem>>, vector<100x8xf32>
    %c0_6 = arith.constant 0 : index
    %c0_7 = arith.constant 0 : index
    %c0_8 = arith.constant 0 : index
    %5 = vector.load %arg1[%c0_6, %c0_7, %c0_8] : memref<1x576x4xf32, #tpu.memory_space<vmem>>, vector<1x256x4xf32>
    %6 = vector.shape_cast %5 : vector<1x256x4xf32> to vector<256x4xf32>
    %c0_9 = arith.constant 0 : index
    %c1 = arith.constant 1 : index
    %c0_10 = arith.constant 0 : index
    %7 = vector.load %arg1[%c0_9, %c1, %c0_10] : memref<1x576x4xf32, #tpu.memory_space<vmem>>, vector<1x256x4xf32>
    %8 = vector.shape_cast %7 : vector<1x256x4xf32> to vector<256x4xf32>
    %c0_11 = arith.constant 0 : index
    %c2 = arith.constant 2 : index
    %c0_12 = arith.constant 0 : index
    %9 = vector.load %arg1[%c0_11, %c2, %c0_12] : memref<1x576x4xf32, #tpu.memory_space<vmem>>, vector<1x256x4xf32>
    %10 = vector.shape_cast %9 : vector<1x256x4xf32> to vector<256x4xf32>
    %c0_13 = arith.constant 0 : index
    %c3 = arith.constant 3 : index
    %c0_14 = arith.constant 0 : index
    %11 = vector.load %arg1[%c0_13, %c3, %c0_14] : memref<1x576x4xf32, #tpu.memory_space<vmem>>, vector<1x256x4xf32>
    %12 = vector.shape_cast %11 : vector<1x256x4xf32> to vector<256x4xf32>
    %c0_15 = arith.constant 0 : index
    %c4 = arith.constant 4 : index
    %c0_16 = arith.constant 0 : index
    %13 = vector.load %arg1[%c0_15, %c4, %c0_16] : memref<1x576x4xf32, #tpu.memory_space<vmem>>, vector<1x256x4xf32>
    %14 = vector.shape_cast %13 : vector<1x256x4xf32> to vector<256x4xf32>
    %c0_17 = arith.constant 0 : index
    %c24 = arith.constant 24 : index
    %c0_18 = arith.constant 0 : index
    %15 = vector.load %arg1[%c0_17, %c24, %c0_18] : memref<1x576x4xf32, #tpu.memory_space<vmem>>, vector<1x256x4xf32>
    %16 = vector.shape_cast %15 : vector<1x256x4xf32> to vector<256x4xf32>
    %c0_19 = arith.constant 0 : index
    %c25 = arith.constant 25 : index
    %c0_20 = arith.constant 0 : index
    %17 = vector.load %arg1[%c0_19, %c25, %c0_20] : memref<1x576x4xf32, #tpu.memory_space<vmem>>, vector<1x256x4xf32>
    %18 = vector.shape_cast %17 : vector<1x256x4xf32> to vector<256x4xf32>
    %c0_21 = arith.constant 0 : index
    %c26 = arith.constant 26 : index
    %c0_22 = arith.constant 0 : index
    %19 = vector.load %arg1[%c0_21, %c26, %c0_22] : memref<1x576x4xf32, #tpu.memory_space<vmem>>, vector<1x256x4xf32>
    %20 = vector.shape_cast %19 : vector<1x256x4xf32> to vector<256x4xf32>
    %c0_23 = arith.constant 0 : index
    %c27 = arith.constant 27 : index
    %c0_24 = arith.constant 0 : index
    %21 = vector.load %arg1[%c0_23, %c27, %c0_24] : memref<1x576x4xf32, #tpu.memory_space<vmem>>, vector<1x256x4xf32>
    %22 = vector.shape_cast %21 : vector<1x256x4xf32> to vector<256x4xf32>
    %c0_25 = arith.constant 0 : index
    %c28 = arith.constant 28 : index
    %c0_26 = arith.constant 0 : index
    %23 = vector.load %arg1[%c0_25, %c28, %c0_26] : memref<1x576x4xf32, #tpu.memory_space<vmem>>, vector<1x256x4xf32>
    %24 = vector.shape_cast %23 : vector<1x256x4xf32> to vector<256x4xf32>
    %c0_27 = arith.constant 0 : index
    %c48 = arith.constant 48 : index
    %c0_28 = arith.constant 0 : index
    %25 = vector.load %arg1[%c0_27, %c48, %c0_28] : memref<1x576x4xf32, #tpu.memory_space<vmem>>, vector<1x256x4xf32>
    %26 = vector.shape_cast %25 : vector<1x256x4xf32> to vector<256x4xf32>
    %c0_29 = arith.constant 0 : index
    %c49 = arith.constant 49 : index
    %c0_30 = arith.constant 0 : index
    %27 = vector.load %arg1[%c0_29, %c49, %c0_30] : memref<1x576x4xf32, #tpu.memory_space<vmem>>, vector<1x256x4xf32>
    %28 = vector.shape_cast %27 : vector<1x256x4xf32> to vector<256x4xf32>
    %c0_31 = arith.constant 0 : index
    %c50 = arith.constant 50 : index
    %c0_32 = arith.constant 0 : index
    %29 = vector.load %arg1[%c0_31, %c50, %c0_32] : memref<1x576x4xf32, #tpu.memory_space<vmem>>, vector<1x256x4xf32>
    %30 = vector.shape_cast %29 : vector<1x256x4xf32> to vector<256x4xf32>
    %c0_33 = arith.constant 0 : index
    %c51 = arith.constant 51 : index
    %c0_34 = arith.constant 0 : index
    %31 = vector.load %arg1[%c0_33, %c51, %c0_34] : memref<1x576x4xf32, #tpu.memory_space<vmem>>, vector<1x256x4xf32>
    %32 = vector.shape_cast %31 : vector<1x256x4xf32> to vector<256x4xf32>
    %c0_35 = arith.constant 0 : index
    %c52 = arith.constant 52 : index
    %c0_36 = arith.constant 0 : index
    %33 = vector.load %arg1[%c0_35, %c52, %c0_36] : memref<1x576x4xf32, #tpu.memory_space<vmem>>, vector<1x256x4xf32>
    %34 = vector.shape_cast %33 : vector<1x256x4xf32> to vector<256x4xf32>
    %c0_37 = arith.constant 0 : index
    %c72 = arith.constant 72 : index
    %c0_38 = arith.constant 0 : index
    %35 = vector.load %arg1[%c0_37, %c72, %c0_38] : memref<1x576x4xf32, #tpu.memory_space<vmem>>, vector<1x256x4xf32>
    %36 = vector.shape_cast %35 : vector<1x256x4xf32> to vector<256x4xf32>
    %c0_39 = arith.constant 0 : index
    %c73 = arith.constant 73 : index
    %c0_40 = arith.constant 0 : index
    %37 = vector.load %arg1[%c0_39, %c73, %c0_40] : memref<1x576x4xf32, #tpu.memory_space<vmem>>, vector<1x256x4xf32>
    %38 = vector.shape_cast %37 : vector<1x256x4xf32> to vector<256x4xf32>
    %c0_41 = arith.constant 0 : index
    %c74 = arith.constant 74 : index
    %c0_42 = arith.constant 0 : index
    %39 = vector.load %arg1[%c0_41, %c74, %c0_42] : memref<1x576x4xf32, #tpu.memory_space<vmem>>, vector<1x256x4xf32>
    %40 = vector.shape_cast %39 : vector<1x256x4xf32> to vector<256x4xf32>
    %c0_43 = arith.constant 0 : index
    %c75 = arith.constant 75 : index
    %c0_44 = arith.constant 0 : index
    %41 = vector.load %arg1[%c0_43, %c75, %c0_44] : memref<1x576x4xf32, #tpu.memory_space<vmem>>, vector<1x256x4xf32>
    %42 = vector.shape_cast %41 : vector<1x256x4xf32> to vector<256x4xf32>
    %c0_45 = arith.constant 0 : index
    %c76 = arith.constant 76 : index
    %c0_46 = arith.constant 0 : index
    %43 = vector.load %arg1[%c0_45, %c76, %c0_46] : memref<1x576x4xf32, #tpu.memory_space<vmem>>, vector<1x256x4xf32>
    %44 = vector.shape_cast %43 : vector<1x256x4xf32> to vector<256x4xf32>
    %c0_47 = arith.constant 0 : index
    %c96 = arith.constant 96 : index
    %c0_48 = arith.constant 0 : index
    %45 = vector.load %arg1[%c0_47, %c96, %c0_48] : memref<1x576x4xf32, #tpu.memory_space<vmem>>, vector<1x256x4xf32>
    %46 = vector.shape_cast %45 : vector<1x256x4xf32> to vector<256x4xf32>
    %c0_49 = arith.constant 0 : index
    %c97 = arith.constant 97 : index
    %c0_50 = arith.constant 0 : index
    %47 = vector.load %arg1[%c0_49, %c97, %c0_50] : memref<1x576x4xf32, #tpu.memory_space<vmem>>, vector<1x256x4xf32>
    %48 = vector.shape_cast %47 : vector<1x256x4xf32> to vector<256x4xf32>
    %c0_51 = arith.constant 0 : index
    %c98 = arith.constant 98 : index
    %c0_52 = arith.constant 0 : index
    %49 = vector.load %arg1[%c0_51, %c98, %c0_52] : memref<1x576x4xf32, #tpu.memory_space<vmem>>, vector<1x256x4xf32>
    %50 = vector.shape_cast %49 : vector<1x256x4xf32> to vector<256x4xf32>
    %c0_53 = arith.constant 0 : index
    %c99 = arith.constant 99 : index
    %c0_54 = arith.constant 0 : index
    %51 = vector.load %arg1[%c0_53, %c99, %c0_54] : memref<1x576x4xf32, #tpu.memory_space<vmem>>, vector<1x256x4xf32>
    %52 = vector.shape_cast %51 : vector<1x256x4xf32> to vector<256x4xf32>
    %c0_55 = arith.constant 0 : index
    %c100 = arith.constant 100 : index
    %c0_56 = arith.constant 0 : index
    %53 = vector.load %arg1[%c0_55, %c100, %c0_56] : memref<1x576x4xf32, #tpu.memory_space<vmem>>, vector<1x256x4xf32>
    %54 = vector.shape_cast %53 : vector<1x256x4xf32> to vector<256x4xf32>
    %55 = tpu.concatenate %6, %8, %10, %12, %14, %16, %18, %20, %22, %24, %26, %28, %30, %32, %34, %36 in 1 : vector<256x4xf32>, vector<256x4xf32>, vector<256x4xf32>, vector<256x4xf32>, vector<256x4xf32>, vector<256x4xf32>, vector<256x4xf32>, vector<256x4xf32>, vector<256x4xf32>, vector<256x4xf32>, vector<256x4xf32>, vector<256x4xf32>, vector<256x4xf32>, vector<256x4xf32>, vector<256x4xf32>, vector<256x4xf32> -> vector<256x64xf32>
    %56 = tpu.concatenate %38, %40, %42, %44, %46, %48, %50, %52, %54 in 1 : vector<256x4xf32>, vector<256x4xf32>, vector<256x4xf32>, vector<256x4xf32>, vector<256x4xf32>, vector<256x4xf32>, vector<256x4xf32>, vector<256x4xf32>, vector<256x4xf32> -> vector<256x36xf32>
    %57 = tpu.concatenate %55, %56 in 1 : vector<256x64xf32>, vector<256x36xf32> -> vector<256x100xf32>
    %cst_57 = arith.constant dense<0.000000e+00> : vector<256x8xf32>
    %58 = tpu.matmul %57, %4, %cst_57 {dimension_numbers = #tpu.dot_dimension_numbers<[1], [0], [0], [1], [0, 0, 1, 1], [], []>} : vector<256x100xf32>, vector<100x8xf32>, vector<256x8xf32> -> vector<256x8xf32>
    %c0_58 = arith.constant 0 : index
    %c0_59 = arith.constant 0 : index
    %59 = vector.load %arg13[%c0_58, %c0_59] : memref<476x8xf32, #tpu.memory_space<vmem>>, vector<256x8xf32>
    tpu.vector_store %arg13[%c0_58, %c0_59], %58 {strides = array<i32>} : memref<476x8xf32, #tpu.memory_space<vmem>>, vector<256x8xf32>,
    %c0_60 = arith.constant 0 : index
    %c256 = arith.constant 256 : index
    %c0_61 = arith.constant 0 : index
    %60 = vector.load %arg1[%c0_60, %c256, %c0_61] : memref<1x576x4xf32, #tpu.memory_space<vmem>>, vector<1x220x4xf32>
    %61 = vector.shape_cast %60 : vector<1x220x4xf32> to vector<220x4xf32>
    %c0_62 = arith.constant 0 : index
    %c257 = arith.constant 257 : index
    %c0_63 = arith.constant 0 : index
    %62 = vector.load %arg1[%c0_62, %c257, %c0_63] : memref<1x576x4xf32, #tpu.memory_space<vmem>>, vector<1x220x4xf32>
    %63 = vector.shape_cast %62 : vector<1x220x4xf32> to vector<220x4xf32>
    %c0_64 = arith.constant 0 : index
    %c258 = arith.constant 258 : index
    %c0_65 = arith.constant 0 : index
    %64 = vector.load %arg1[%c0_64, %c258, %c0_65] : memref<1x576x4xf32, #tpu.memory_space<vmem>>, vector<1x220x4xf32>
    %65 = vector.shape_cast %64 : vector<1x220x4xf32> to vector<220x4xf32>
    %c0_66 = arith.constant 0 : index
    %c259 = arith.constant 259 : index
    %c0_67 = arith.constant 0 : index
    %66 = vector.load %arg1[%c0_66, %c259, %c0_67] : memref<1x576x4xf32, #tpu.memory_space<vmem>>, vector<1x220x4xf32>
    %67 = vector.shape_cast %66 : vector<1x220x4xf32> to vector<220x4xf32>
    %c0_68 = arith.constant 0 : index
    %c260 = arith.constant 260 : index
    %c0_69 = arith.constant 0 : index
    %68 = vector.load %arg1[%c0_68, %c260, %c0_69] : memref<1x576x4xf32, #tpu.memory_space<vmem>>, vector<1x220x4xf32>
    %69 = vector.shape_cast %68 : vector<1x220x4xf32> to vector<220x4xf32>
    %c0_70 = arith.constant 0 : index
    %c280 = arith.constant 280 : index
    %c0_71 = arith.constant 0 : index
    %70 = vector.load %arg1[%c0_70, %c280, %c0_71] : memref<1x576x4xf32, #tpu.memory_space<vmem>>, vector<1x220x4xf32>
    %71 = vector.shape_cast %70 : vector<1x220x4xf32> to vector<220x4xf32>
    %c0_72 = arith.constant 0 : index
    %c281 = arith.constant 281 : index
    %c0_73 = arith.constant 0 : index
    %72 = vector.load %arg1[%c0_72, %c281, %c0_73] : memref<1x576x4xf32, #tpu.memory_space<vmem>>, vector<1x220x4xf32>
    %73 = vector.shape_cast %72 : vector<1x220x4xf32> to vector<220x4xf32>
    %c0_74 = arith.constant 0 : index
    %c282 = arith.constant 282 : index
    %c0_75 = arith.constant 0 : index
    %74 = vector.load %arg1[%c0_74, %c282, %c0_75] : memref<1x576x4xf32, #tpu.memory_space<vmem>>, vector<1x220x4xf32>
    %75 = vector.shape_cast %74 : vector<1x220x4xf32> to vector<220x4xf32>
    %c0_76 = arith.constant 0 : index
    %c283 = arith.constant 283 : index
    %c0_77 = arith.constant 0 : index
    %76 = vector.load %arg1[%c0_76, %c283, %c0_77] : memref<1x576x4xf32, #tpu.memory_space<vmem>>, vector<1x220x4xf32>
    %77 = vector.shape_cast %76 : vector<1x220x4xf32> to vector<220x4xf32>
    %c0_78 = arith.constant 0 : index
    %c284 = arith.constant 284 : index
    %c0_79 = arith.constant 0 : index
    %78 = vector.load %arg1[%c0_78, %c284, %c0_79] : memref<1x576x4xf32, #tpu.memory_space<vmem>>, vector<1x220x4xf32>
    %79 = vector.shape_cast %78 : vector<1x220x4xf32> to vector<220x4xf32>
    %c0_80 = arith.constant 0 : index
    %c304 = arith.constant 304 : index
    %c0_81 = arith.constant 0 : index
    %80 = vector.load %arg1[%c0_80, %c304, %c0_81] : memref<1x576x4xf32, #tpu.memory_space<vmem>>, vector<1x220x4xf32>
    %81 = vector.shape_cast %80 : vector<1x220x4xf32> to vector<220x4xf32>
    %c0_82 = arith.constant 0 : index
    %c305 = arith.constant 305 : index
    %c0_83 = arith.constant 0 : index
    %82 = vector.load %arg1[%c0_82, %c305, %c0_83] : memref<1x576x4xf32, #tpu.memory_space<vmem>>, vector<1x220x4xf32>
    %83 = vector.shape_cast %82 : vector<1x220x4xf32> to vector<220x4xf32>
    %c0_84 = arith.constant 0 : index
    %c306 = arith.constant 306 : index
    %c0_85 = arith.constant 0 : index
    %84 = vector.load %arg1[%c0_84, %c306, %c0_85] : memref<1x576x4xf32, #tpu.memory_space<vmem>>, vector<1x220x4xf32>
    %85 = vector.shape_cast %84 : vector<1x220x4xf32> to vector<220x4xf32>
    %c0_86 = arith.constant 0 : index
    %c307 = arith.constant 307 : index
    %c0_87 = arith.constant 0 : index
    %86 = vector.load %arg1[%c0_86, %c307, %c0_87] : memref<1x576x4xf32, #tpu.memory_space<vmem>>, vector<1x220x4xf32>
    %87 = vector.shape_cast %86 : vector<1x220x4xf32> to vector<220x4xf32>
    %c0_88 = arith.constant 0 : index
    %c308 = arith.constant 308 : index
    %c0_89 = arith.constant 0 : index
    %88 = vector.load %arg1[%c0_88, %c308, %c0_89] : memref<1x576x4xf32, #tpu.memory_space<vmem>>, vector<1x220x4xf32>
    %89 = vector.shape_cast %88 : vector<1x220x4xf32> to vector<220x4xf32>
    %c0_90 = arith.constant 0 : index
    %c328 = arith.constant 328 : index
    %c0_91 = arith.constant 0 : index
    %90 = vector.load %arg1[%c0_90, %c328, %c0_91] : memref<1x576x4xf32, #tpu.memory_space<vmem>>, vector<1x220x4xf32>
    %91 = vector.shape_cast %90 : vector<1x220x4xf32> to vector<220x4xf32>
    %c0_92 = arith.constant 0 : index
    %c329 = arith.constant 329 : index
    %c0_93 = arith.constant 0 : index
    %92 = vector.load %arg1[%c0_92, %c329, %c0_93] : memref<1x576x4xf32, #tpu.memory_space<vmem>>, vector<1x220x4xf32>
    %93 = vector.shape_cast %92 : vector<1x220x4xf32> to vector<220x4xf32>
    %c0_94 = arith.constant 0 : index
    %c330 = arith.constant 330 : index
    %c0_95 = arith.constant 0 : index
    %94 = vector.load %arg1[%c0_94, %c330, %c0_95] : memref<1x576x4xf32, #tpu.memory_space<vmem>>, vector<1x220x4xf32>
    %95 = vector.shape_cast %94 : vector<1x220x4xf32> to vector<220x4xf32>
    %c0_96 = arith.constant 0 : index
    %c331 = arith.constant 331 : index
    %c0_97 = arith.constant 0 : index
    %96 = vector.load %arg1[%c0_96, %c331, %c0_97] : memref<1x576x4xf32, #tpu.memory_space<vmem>>, vector<1x220x4xf32>
    %97 = vector.shape_cast %96 : vector<1x220x4xf32> to vector<220x4xf32>
    %c0_98 = arith.constant 0 : index
    %c332 = arith.constant 332 : index
    %c0_99 = arith.constant 0 : index
    %98 = vector.load %arg1[%c0_98, %c332, %c0_99] : memref<1x576x4xf32, #tpu.memory_space<vmem>>, vector<1x220x4xf32>
    %99 = vector.shape_cast %98 : vector<1x220x4xf32> to vector<220x4xf32>
    %c0_100 = arith.constant 0 : index
    %c352 = arith.constant 352 : index
    %c0_101 = arith.constant 0 : index
    %100 = vector.load %arg1[%c0_100, %c352, %c0_101] : memref<1x576x4xf32, #tpu.memory_space<vmem>>, vector<1x220x4xf32>
    %101 = vector.shape_cast %100 : vector<1x220x4xf32> to vector<220x4xf32>
    %c0_102 = arith.constant 0 : index
    %c353 = arith.constant 353 : index
    %c0_103 = arith.constant 0 : index
    %102 = vector.load %arg1[%c0_102, %c353, %c0_103] : memref<1x576x4xf32, #tpu.memory_space<vmem>>, vector<1x220x4xf32>
    %103 = vector.shape_cast %102 : vector<1x220x4xf32> to vector<220x4xf32>
    %c0_104 = arith.constant 0 : index
    %c354 = arith.constant 354 : index
    %c0_105 = arith.constant 0 : index
    %104 = vector.load %arg1[%c0_104, %c354, %c0_105] : memref<1x576x4xf32, #tpu.memory_space<vmem>>, vector<1x220x4xf32>
    %105 = vector.shape_cast %104 : vector<1x220x4xf32> to vector<220x4xf32>
    %c0_106 = arith.constant 0 : index
    %c355 = arith.constant 355 : index
    %c0_107 = arith.constant 0 : index
    %106 = vector.load %arg1[%c0_106, %c355, %c0_107] : memref<1x576x4xf32, #tpu.memory_space<vmem>>, vector<1x220x4xf32>
    %107 = vector.shape_cast %106 : vector<1x220x4xf32> to vector<220x4xf32>
    %c0_108 = arith.constant 0 : index
    %c356 = arith.constant 356 : index
    %c0_109 = arith.constant 0 : index
    %108 = vector.load %arg1[%c0_108, %c356, %c0_109] : memref<1x576x4xf32, #tpu.memory_space<vmem>>, vector<1x220x4xf32>
    %109 = vector.shape_cast %108 : vector<1x220x4xf32> to vector<220x4xf32>
    %110 = tpu.concatenate %61, %63, %65, %67, %69, %71, %73, %75, %77, %79, %81, %83, %85, %87, %89, %91 in 1 : vector<220x4xf32>, vector<220x4xf32>, vector<220x4xf32>, vector<220x4xf32>, vector<220x4xf32>, vector<220x4xf32>, vector<220x4xf32>, vector<220x4xf32>, vector<220x4xf32>, vector<220x4xf32>, vector<220x4xf32>, vector<220x4xf32>, vector<220x4xf32>, vector<220x4xf32>, vector<220x4xf32>, vector<220x4xf32> -> vector<220x64xf32>
    %111 = tpu.concatenate %93, %95, %97, %99, %101, %103, %105, %107, %109 in 1 : vector<220x4xf32>, vector<220x4xf32>, vector<220x4xf32>, vector<220x4xf32>, vector<220x4xf32>, vector<220x4xf32>, vector<220x4xf32>, vector<220x4xf32>, vector<220x4xf32> -> vector<220x36xf32>
    %112 = tpu.concatenate %110, %111 in 1 : vector<220x64xf32>, vector<220x36xf32> -> vector<220x100xf32>
    %cst_110 = arith.constant dense<0.000000e+00> : vector<220x8xf32>
    %113 = tpu.matmul %112, %4, %cst_110 {dimension_numbers = #tpu.dot_dimension_numbers<[1], [0], [0], [1], [0, 0, 1, 1], [], []>} : vector<220x100xf32>, vector<100x8xf32>, vector<220x8xf32> -> vector<220x8xf32>
    %c256_111 = arith.constant 256 : index
    %c0_112 = arith.constant 0 : index
    %114 = vector.load %arg13[%c256_111, %c0_112] : memref<476x8xf32, #tpu.memory_space<vmem>>, vector<220x8xf32>
    tpu.vector_store %arg13[%c256_111, %c0_112], %113 {strides = array<i32>} : memref<476x8xf32, #tpu.memory_space<vmem>>, vector<220x8xf32>,
    %c0_113 = arith.constant 0 : index
    %c0_114 = arith.constant 0 : index
    %115 = tpu.strided_load %arg13[%c0_113, %c0_114] {strides = array<i32: 2, 1>} : memref<476x8xf32, #tpu.memory_space<vmem>>, vector<10x8xf32>
    %c1_115 = arith.constant 1 : index
    %c0_116 = arith.constant 0 : index
    %116 = tpu.strided_load %arg13[%c1_115, %c0_116] {strides = array<i32: 2, 1>} : memref<476x8xf32, #tpu.memory_space<vmem>>, vector<10x8xf32>
    %c24_117 = arith.constant 24 : index
    %c0_118 = arith.constant 0 : index
    %117 = tpu.strided_load %arg13[%c24_117, %c0_118] {strides = array<i32: 2, 1>} : memref<476x8xf32, #tpu.memory_space<vmem>>, vector<10x8xf32>
    %c25_119 = arith.constant 25 : index
    %c0_120 = arith.constant 0 : index
    %118 = tpu.strided_load %arg13[%c25_119, %c0_120] {strides = array<i32: 2, 1>} : memref<476x8xf32, #tpu.memory_space<vmem>>, vector<10x8xf32>
    %119 = arith.maximumf %115, %116 : vector<10x8xf32>
    %120 = arith.maximumf %117, %118 : vector<10x8xf32>
    %121 = arith.maximumf %119, %120 : vector<10x8xf32>
    %c0_121 = arith.constant 0 : index
    %c0_122 = arith.constant 0 : index
    %122 = vector.load %arg3[%c0_121, %c0_122] : memref<1x8xf32, #tpu.memory_space<vmem>>, vector<1x8xf32>
    %123 = vector.broadcast %122 : vector<1x8xf32> to vector<10x8xf32>
    %124 = arith.addf %121, %123 : vector<10x8xf32>
    %cst_123 = arith.constant 0.000000e+00 : f32
    %125 = vector.broadcast %cst_123 : f32 to vector<10x8xf32>
    %126 = arith.maximumf %124, %125 : vector<10x8xf32>
    %c34 = arith.constant 34 : index
    %c0_124 = arith.constant 0 : index
    %127 = vector.load %arg14[%c34, %c0_124] : memref<224x8xf32, #tpu.memory_space<vmem>>, vector<10x8xf32>
    tpu.vector_store %arg14[%c34, %c0_124], %126 {strides = array<i32>} : memref<224x8xf32, #tpu.memory_space<vmem>>, vector<10x8xf32>,
    %c48_125 = arith.constant 48 : index
    %c0_126 = arith.constant 0 : index
    %128 = tpu.strided_load %arg13[%c48_125, %c0_126] {strides = array<i32: 2, 1>} : memref<476x8xf32, #tpu.memory_space<vmem>>, vector<10x8xf32>
    %c49_127 = arith.constant 49 : index
    %c0_128 = arith.constant 0 : index
    %129 = tpu.strided_load %arg13[%c49_127, %c0_128] {strides = array<i32: 2, 1>} : memref<476x8xf32, #tpu.memory_space<vmem>>, vector<10x8xf32>
    %c72_129 = arith.constant 72 : index
    %c0_130 = arith.constant 0 : index
    %130 = tpu.strided_load %arg13[%c72_129, %c0_130] {strides = array<i32: 2, 1>} : memref<476x8xf32, #tpu.memory_space<vmem>>, vector<10x8xf32>
    %c73_131 = arith.constant 73 : index
    %c0_132 = arith.constant 0 : index
    %131 = tpu.strided_load %arg13[%c73_131, %c0_132] {strides = array<i32: 2, 1>} : memref<476x8xf32, #tpu.memory_space<vmem>>, vector<10x8xf32>
    %132 = arith.maximumf %128, %129 : vector<10x8xf32>
    %133 = arith.maximumf %130, %131 : vector<10x8xf32>
    %134 = arith.maximumf %132, %133 : vector<10x8xf32>
    %c0_133 = arith.constant 0 : index
    %c0_134 = arith.constant 0 : index
    %135 = vector.load %arg3[%c0_133, %c0_134] : memref<1x8xf32, #tpu.memory_space<vmem>>, vector<1x8xf32>
    %136 = vector.broadcast %135 : vector<1x8xf32> to vector<10x8xf32>
    %137 = arith.addf %134, %136 : vector<10x8xf32>
    %cst_135 = arith.constant 0.000000e+00 : f32
    %138 = vector.broadcast %cst_135 : f32 to vector<10x8xf32>
    %139 = arith.maximumf %137, %138 : vector<10x8xf32>
    %c50_136 = arith.constant 50 : index
    %c0_137 = arith.constant 0 : index
    %140 = vector.load %arg14[%c50_136, %c0_137] : memref<224x8xf32, #tpu.memory_space<vmem>>, vector<10x8xf32>
    tpu.vector_store %arg14[%c50_136, %c0_137], %139 {strides = array<i32>} : memref<224x8xf32, #tpu.memory_space<vmem>>, vector<10x8xf32>,
    %c96_138 = arith.constant 96 : index
    %c0_139 = arith.constant 0 : index
    %141 = tpu.strided_load %arg13[%c96_138, %c0_139] {strides = array<i32: 2, 1>} : memref<476x8xf32, #tpu.memory_space<vmem>>, vector<10x8xf32>
    %c97_140 = arith.constant 97 : index
    %c0_141 = arith.constant 0 : index
    %142 = tpu.strided_load %arg13[%c97_140, %c0_141] {strides = array<i32: 2, 1>} : memref<476x8xf32, #tpu.memory_space<vmem>>, vector<10x8xf32>
    %c120 = arith.constant 120 : index
    %c0_142 = arith.constant 0 : index
    %143 = tpu.strided_load %arg13[%c120, %c0_142] {strides = array<i32: 2, 1>} : memref<476x8xf32, #tpu.memory_space<vmem>>, vector<10x8xf32>
    %c121 = arith.constant 121 : index
    %c0_143 = arith.constant 0 : index
    %144 = tpu.strided_load %arg13[%c121, %c0_143] {strides = array<i32: 2, 1>} : memref<476x8xf32, #tpu.memory_space<vmem>>, vector<10x8xf32>
    %145 = arith.maximumf %141, %142 : vector<10x8xf32>
    %146 = arith.maximumf %143, %144 : vector<10x8xf32>
    %147 = arith.maximumf %145, %146 : vector<10x8xf32>
    %c0_144 = arith.constant 0 : index
    %c0_145 = arith.constant 0 : index
    %148 = vector.load %arg3[%c0_144, %c0_145] : memref<1x8xf32, #tpu.memory_space<vmem>>, vector<1x8xf32>
    %149 = vector.broadcast %148 : vector<1x8xf32> to vector<10x8xf32>
    %150 = arith.addf %147, %149 : vector<10x8xf32>
    %cst_146 = arith.constant 0.000000e+00 : f32
    %151 = vector.broadcast %cst_146 : f32 to vector<10x8xf32>
    %152 = arith.maximumf %150, %151 : vector<10x8xf32>
    %c66 = arith.constant 66 : index
    %c0_147 = arith.constant 0 : index
    %153 = vector.load %arg14[%c66, %c0_147] : memref<224x8xf32, #tpu.memory_space<vmem>>, vector<10x8xf32>
    tpu.vector_store %arg14[%c66, %c0_147], %152 {strides = array<i32>} : memref<224x8xf32, #tpu.memory_space<vmem>>, vector<10x8xf32>,
    %c144 = arith.constant 144 : index
    %c0_148 = arith.constant 0 : index
    %154 = tpu.strided_load %arg13[%c144, %c0_148] {strides = array<i32: 2, 1>} : memref<476x8xf32, #tpu.memory_space<vmem>>, vector<10x8xf32>
    %c145 = arith.constant 145 : index
    %c0_149 = arith.constant 0 : index
    %155 = tpu.strided_load %arg13[%c145, %c0_149] {strides = array<i32: 2, 1>} : memref<476x8xf32, #tpu.memory_space<vmem>>, vector<10x8xf32>
    %c168 = arith.constant 168 : index
    %c0_150 = arith.constant 0 : index
    %156 = tpu.strided_load %arg13[%c168, %c0_150] {strides = array<i32: 2, 1>} : memref<476x8xf32, #tpu.memory_space<vmem>>, vector<10x8xf32>
    %c169 = arith.constant 169 : index
    %c0_151 = arith.constant 0 : index
    %157 = tpu.strided_load %arg13[%c169, %c0_151] {strides = array<i32: 2, 1>} : memref<476x8xf32, #tpu.memory_space<vmem>>, vector<10x8xf32>
    %158 = arith.maximumf %154, %155 : vector<10x8xf32>
    %159 = arith.maximumf %156, %157 : vector<10x8xf32>
    %160 = arith.maximumf %158, %159 : vector<10x8xf32>
    %c0_152 = arith.constant 0 : index
    %c0_153 = arith.constant 0 : index
    %161 = vector.load %arg3[%c0_152, %c0_153] : memref<1x8xf32, #tpu.memory_space<vmem>>, vector<1x8xf32>
    %162 = vector.broadcast %161 : vector<1x8xf32> to vector<10x8xf32>
    %163 = arith.addf %160, %162 : vector<10x8xf32>
    %cst_154 = arith.constant 0.000000e+00 : f32
    %164 = vector.broadcast %cst_154 : f32 to vector<10x8xf32>
    %165 = arith.maximumf %163, %164 : vector<10x8xf32>
    %c82 = arith.constant 82 : index
    %c0_155 = arith.constant 0 : index
    %166 = vector.load %arg14[%c82, %c0_155] : memref<224x8xf32, #tpu.memory_space<vmem>>, vector<10x8xf32>
    tpu.vector_store %arg14[%c82, %c0_155], %165 {strides = array<i32>} : memref<224x8xf32, #tpu.memory_space<vmem>>, vector<10x8xf32>,
    %c192 = arith.constant 192 : index
    %c0_156 = arith.constant 0 : index
    %167 = tpu.strided_load %arg13[%c192, %c0_156] {strides = array<i32: 2, 1>} : memref<476x8xf32, #tpu.memory_space<vmem>>, vector<10x8xf32>
    %c193 = arith.constant 193 : index
    %c0_157 = arith.constant 0 : index
    %168 = tpu.strided_load %arg13[%c193, %c0_157] {strides = array<i32: 2, 1>} : memref<476x8xf32, #tpu.memory_space<vmem>>, vector<10x8xf32>
    %c216 = arith.constant 216 : index
    %c0_158 = arith.constant 0 : index
    %169 = tpu.strided_load %arg13[%c216, %c0_158] {strides = array<i32: 2, 1>} : memref<476x8xf32, #tpu.memory_space<vmem>>, vector<10x8xf32>
    %c217 = arith.constant 217 : index
    %c0_159 = arith.constant 0 : index
    %170 = tpu.strided_load %arg13[%c217, %c0_159] {strides = array<i32: 2, 1>} : memref<476x8xf32, #tpu.memory_space<vmem>>, vector<10x8xf32>
    %171 = arith.maximumf %167, %168 : vector<10x8xf32>
    %172 = arith.maximumf %169, %170 : vector<10x8xf32>
    %173 = arith.maximumf %171, %172 : vector<10x8xf32>
    %c0_160 = arith.constant 0 : index
    %c0_161 = arith.constant 0 : index
    %174 = vector.load %arg3[%c0_160, %c0_161] : memref<1x8xf32, #tpu.memory_space<vmem>>, vector<1x8xf32>
    %175 = vector.broadcast %174 : vector<1x8xf32> to vector<10x8xf32>
    %176 = arith.addf %173, %175 : vector<10x8xf32>
    %cst_162 = arith.constant 0.000000e+00 : f32
    %177 = vector.broadcast %cst_162 : f32 to vector<10x8xf32>
    %178 = arith.maximumf %176, %177 : vector<10x8xf32>
    %c98_163 = arith.constant 98 : index
    %c0_164 = arith.constant 0 : index
    %179 = vector.load %arg14[%c98_163, %c0_164] : memref<224x8xf32, #tpu.memory_space<vmem>>, vector<10x8xf32>
    tpu.vector_store %arg14[%c98_163, %c0_164], %178 {strides = array<i32>} : memref<224x8xf32, #tpu.memory_space<vmem>>, vector<10x8xf32>,
    %c240 = arith.constant 240 : index
    %c0_165 = arith.constant 0 : index
    %180 = tpu.strided_load %arg13[%c240, %c0_165] {strides = array<i32: 2, 1>} : memref<476x8xf32, #tpu.memory_space<vmem>>, vector<10x8xf32>
    %c241 = arith.constant 241 : index
    %c0_166 = arith.constant 0 : index
    %181 = tpu.strided_load %arg13[%c241, %c0_166] {strides = array<i32: 2, 1>} : memref<476x8xf32, #tpu.memory_space<vmem>>, vector<10x8xf32>
    %c264 = arith.constant 264 : index
    %c0_167 = arith.constant 0 : index
    %182 = tpu.strided_load %arg13[%c264, %c0_167] {strides = array<i32: 2, 1>} : memref<476x8xf32, #tpu.memory_space<vmem>>, vector<10x8xf32>
    %c265 = arith.constant 265 : index
    %c0_168 = arith.constant 0 : index
    %183 = tpu.strided_load %arg13[%c265, %c0_168] {strides = array<i32: 2, 1>} : memref<476x8xf32, #tpu.memory_space<vmem>>, vector<10x8xf32>
    %184 = arith.maximumf %180, %181 : vector<10x8xf32>
    %185 = arith.maximumf %182, %183 : vector<10x8xf32>
    %186 = arith.maximumf %184, %185 : vector<10x8xf32>
    %c0_169 = arith.constant 0 : index
    %c0_170 = arith.constant 0 : index
    %187 = vector.load %arg3[%c0_169, %c0_170] : memref<1x8xf32, #tpu.memory_space<vmem>>, vector<1x8xf32>
    %188 = vector.broadcast %187 : vector<1x8xf32> to vector<10x8xf32>
    %189 = arith.addf %186, %188 : vector<10x8xf32>
    %cst_171 = arith.constant 0.000000e+00 : f32
    %190 = vector.broadcast %cst_171 : f32 to vector<10x8xf32>
    %191 = arith.maximumf %189, %190 : vector<10x8xf32>
    %c114 = arith.constant 114 : index
    %c0_172 = arith.constant 0 : index
    %192 = vector.load %arg14[%c114, %c0_172] : memref<224x8xf32, #tpu.memory_space<vmem>>, vector<10x8xf32>
    tpu.vector_store %arg14[%c114, %c0_172], %191 {strides = array<i32>} : memref<224x8xf32, #tpu.memory_space<vmem>>, vector<10x8xf32>,
    %c288 = arith.constant 288 : index
    %c0_173 = arith.constant 0 : index
    %193 = tpu.strided_load %arg13[%c288, %c0_173] {strides = array<i32: 2, 1>} : memref<476x8xf32, #tpu.memory_space<vmem>>, vector<10x8xf32>
    %c289 = arith.constant 289 : index
    %c0_174 = arith.constant 0 : index
    %194 = tpu.strided_load %arg13[%c289, %c0_174] {strides = array<i32: 2, 1>} : memref<476x8xf32, #tpu.memory_space<vmem>>, vector<10x8xf32>
    %c312 = arith.constant 312 : index
    %c0_175 = arith.constant 0 : index
    %195 = tpu.strided_load %arg13[%c312, %c0_175] {strides = array<i32: 2, 1>} : memref<476x8xf32, #tpu.memory_space<vmem>>, vector<10x8xf32>
    %c313 = arith.constant 313 : index
    %c0_176 = arith.constant 0 : index
    %196 = tpu.strided_load %arg13[%c313, %c0_176] {strides = array<i32: 2, 1>} : memref<476x8xf32, #tpu.memory_space<vmem>>, vector<10x8xf32>
    %197 = arith.maximumf %193, %194 : vector<10x8xf32>
    %198 = arith.maximumf %195, %196 : vector<10x8xf32>
    %199 = arith.maximumf %197, %198 : vector<10x8xf32>
    %c0_177 = arith.constant 0 : index
    %c0_178 = arith.constant 0 : index
    %200 = vector.load %arg3[%c0_177, %c0_178] : memref<1x8xf32, #tpu.memory_space<vmem>>, vector<1x8xf32>
    %201 = vector.broadcast %200 : vector<1x8xf32> to vector<10x8xf32>
    %202 = arith.addf %199, %201 : vector<10x8xf32>
    %cst_179 = arith.constant 0.000000e+00 : f32
    %203 = vector.broadcast %cst_179 : f32 to vector<10x8xf32>
    %204 = arith.maximumf %202, %203 : vector<10x8xf32>
    %c130 = arith.constant 130 : index
    %c0_180 = arith.constant 0 : index
    %205 = vector.load %arg14[%c130, %c0_180] : memref<224x8xf32, #tpu.memory_space<vmem>>, vector<10x8xf32>
    tpu.vector_store %arg14[%c130, %c0_180], %204 {strides = array<i32>} : memref<224x8xf32, #tpu.memory_space<vmem>>, vector<10x8xf32>,
    %c336 = arith.constant 336 : index
    %c0_181 = arith.constant 0 : index
    %206 = tpu.strided_load %arg13[%c336, %c0_181] {strides = array<i32: 2, 1>} : memref<476x8xf32, #tpu.memory_space<vmem>>, vector<10x8xf32>
    %c337 = arith.constant 337 : index
    %c0_182 = arith.constant 0 : index
    %207 = tpu.strided_load %arg13[%c337, %c0_182] {strides = array<i32: 2, 1>} : memref<476x8xf32, #tpu.memory_space<vmem>>, vector<10x8xf32>
    %c360 = arith.constant 360 : index
    %c0_183 = arith.constant 0 : index
    %208 = tpu.strided_load %arg13[%c360, %c0_183] {strides = array<i32: 2, 1>} : memref<476x8xf32, #tpu.memory_space<vmem>>, vector<10x8xf32>
    %c361 = arith.constant 361 : index
    %c0_184 = arith.constant 0 : index
    %209 = tpu.strided_load %arg13[%c361, %c0_184] {strides = array<i32: 2, 1>} : memref<476x8xf32, #tpu.memory_space<vmem>>, vector<10x8xf32>
    %210 = arith.maximumf %206, %207 : vector<10x8xf32>
    %211 = arith.maximumf %208, %209 : vector<10x8xf32>
    %212 = arith.maximumf %210, %211 : vector<10x8xf32>
    %c0_185 = arith.constant 0 : index
    %c0_186 = arith.constant 0 : index
    %213 = vector.load %arg3[%c0_185, %c0_186] : memref<1x8xf32, #tpu.memory_space<vmem>>, vector<1x8xf32>
    %214 = vector.broadcast %213 : vector<1x8xf32> to vector<10x8xf32>
    %215 = arith.addf %212, %214 : vector<10x8xf32>
    %cst_187 = arith.constant 0.000000e+00 : f32
    %216 = vector.broadcast %cst_187 : f32 to vector<10x8xf32>
    %217 = arith.maximumf %215, %216 : vector<10x8xf32>
    %c146 = arith.constant 146 : index
    %c0_188 = arith.constant 0 : index
    %218 = vector.load %arg14[%c146, %c0_188] : memref<224x8xf32, #tpu.memory_space<vmem>>, vector<10x8xf32>
    tpu.vector_store %arg14[%c146, %c0_188], %217 {strides = array<i32>} : memref<224x8xf32, #tpu.memory_space<vmem>>, vector<10x8xf32>,
    %c384 = arith.constant 384 : index
    %c0_189 = arith.constant 0 : index
    %219 = tpu.strided_load %arg13[%c384, %c0_189] {strides = array<i32: 2, 1>} : memref<476x8xf32, #tpu.memory_space<vmem>>, vector<10x8xf32>
    %c385 = arith.constant 385 : index
    %c0_190 = arith.constant 0 : index
    %220 = tpu.strided_load %arg13[%c385, %c0_190] {strides = array<i32: 2, 1>} : memref<476x8xf32, #tpu.memory_space<vmem>>, vector<10x8xf32>
    %c408 = arith.constant 408 : index
    %c0_191 = arith.constant 0 : index
    %221 = tpu.strided_load %arg13[%c408, %c0_191] {strides = array<i32: 2, 1>} : memref<476x8xf32, #tpu.memory_space<vmem>>, vector<10x8xf32>
    %c409 = arith.constant 409 : index
    %c0_192 = arith.constant 0 : index
    %222 = tpu.strided_load %arg13[%c409, %c0_192] {strides = array<i32: 2, 1>} : memref<476x8xf32, #tpu.memory_space<vmem>>, vector<10x8xf32>
    %223 = arith.maximumf %219, %220 : vector<10x8xf32>
    %224 = arith.maximumf %221, %222 : vector<10x8xf32>
    %225 = arith.maximumf %223, %224 : vector<10x8xf32>
    %c0_193 = arith.constant 0 : index
    %c0_194 = arith.constant 0 : index
    %226 = vector.load %arg3[%c0_193, %c0_194] : memref<1x8xf32, #tpu.memory_space<vmem>>, vector<1x8xf32>
    %227 = vector.broadcast %226 : vector<1x8xf32> to vector<10x8xf32>
    %228 = arith.addf %225, %227 : vector<10x8xf32>
    %cst_195 = arith.constant 0.000000e+00 : f32
    %229 = vector.broadcast %cst_195 : f32 to vector<10x8xf32>
    %230 = arith.maximumf %228, %229 : vector<10x8xf32>
    %c162 = arith.constant 162 : index
    %c0_196 = arith.constant 0 : index
    %231 = vector.load %arg14[%c162, %c0_196] : memref<224x8xf32, #tpu.memory_space<vmem>>, vector<10x8xf32>
    tpu.vector_store %arg14[%c162, %c0_196], %230 {strides = array<i32>} : memref<224x8xf32, #tpu.memory_space<vmem>>, vector<10x8xf32>,
    %c432 = arith.constant 432 : index
    %c0_197 = arith.constant 0 : index
    %232 = tpu.strided_load %arg13[%c432, %c0_197] {strides = array<i32: 2, 1>} : memref<476x8xf32, #tpu.memory_space<vmem>>, vector<10x8xf32>
    %c433 = arith.constant 433 : index
    %c0_198 = arith.constant 0 : index
    %233 = tpu.strided_load %arg13[%c433, %c0_198] {strides = array<i32: 2, 1>} : memref<476x8xf32, #tpu.memory_space<vmem>>, vector<10x8xf32>
    %c456 = arith.constant 456 : index
    %c0_199 = arith.constant 0 : index
    %234 = tpu.strided_load %arg13[%c456, %c0_199] {strides = array<i32: 2, 1>} : memref<476x8xf32, #tpu.memory_space<vmem>>, vector<10x8xf32>
    %c457 = arith.constant 457 : index
    %c0_200 = arith.constant 0 : index
    %235 = tpu.strided_load %arg13[%c457, %c0_200] {strides = array<i32: 2, 1>} : memref<476x8xf32, #tpu.memory_space<vmem>>, vector<10x8xf32>
    %236 = arith.maximumf %232, %233 : vector<10x8xf32>
    %237 = arith.maximumf %234, %235 : vector<10x8xf32>
    %238 = arith.maximumf %236, %237 : vector<10x8xf32>
    %c0_201 = arith.constant 0 : index
    %c0_202 = arith.constant 0 : index
    %239 = vector.load %arg3[%c0_201, %c0_202] : memref<1x8xf32, #tpu.memory_space<vmem>>, vector<1x8xf32>
    %240 = vector.broadcast %239 : vector<1x8xf32> to vector<10x8xf32>
    %241 = arith.addf %238, %240 : vector<10x8xf32>
    %cst_203 = arith.constant 0.000000e+00 : f32
    %242 = vector.broadcast %cst_203 : f32 to vector<10x8xf32>
    %243 = arith.maximumf %241, %242 : vector<10x8xf32>
    %c178 = arith.constant 178 : index
    %c0_204 = arith.constant 0 : index
    %244 = vector.load %arg14[%c178, %c0_204] : memref<224x8xf32, #tpu.memory_space<vmem>>, vector<10x8xf32>
    tpu.vector_store %arg14[%c178, %c0_204], %243 {strides = array<i32>} : memref<224x8xf32, #tpu.memory_space<vmem>>, vector<10x8xf32>,
    %c0_205 = arith.constant 0 : index
    %c0_206 = arith.constant 0 : index
    %245 = vector.load %arg4[%c0_205, %c0_206] : memref<200x16xf32, #tpu.memory_space<vmem>>, vector<200x16xf32>
    %c0_207 = arith.constant 0 : index
    %c0_208 = arith.constant 0 : index
    %246 = vector.load %arg14[%c0_207, %c0_208] : memref<224x8xf32, #tpu.memory_space<vmem>>, vector<156x8xf32>
    %c1_209 = arith.constant 1 : index
    %c0_210 = arith.constant 0 : index
    %247 = vector.load %arg14[%c1_209, %c0_210] : memref<224x8xf32, #tpu.memory_space<vmem>>, vector<156x8xf32>
    %c2_211 = arith.constant 2 : index
    %c0_212 = arith.constant 0 : index
    %248 = vector.load %arg14[%c2_211, %c0_212] : memref<224x8xf32, #tpu.memory_space<vmem>>, vector<156x8xf32>
    %c3_213 = arith.constant 3 : index
    %c0_214 = arith.constant 0 : index
    %249 = vector.load %arg14[%c3_213, %c0_214] : memref<224x8xf32, #tpu.memory_space<vmem>>, vector<156x8xf32>
    %c4_215 = arith.constant 4 : index
    %c0_216 = arith.constant 0 : index
    %250 = vector.load %arg14[%c4_215, %c0_216] : memref<224x8xf32, #tpu.memory_space<vmem>>, vector<156x8xf32>
    %c16 = arith.constant 16 : index
    %c0_217 = arith.constant 0 : index
    %251 = vector.load %arg14[%c16, %c0_217] : memref<224x8xf32, #tpu.memory_space<vmem>>, vector<156x8xf32>
    %c17 = arith.constant 17 : index
    %c0_218 = arith.constant 0 : index
    %252 = vector.load %arg14[%c17, %c0_218] : memref<224x8xf32, #tpu.memory_space<vmem>>, vector<156x8xf32>
    %c18 = arith.constant 18 : index
    %c0_219 = arith.constant 0 : index
    %253 = vector.load %arg14[%c18, %c0_219] : memref<224x8xf32, #tpu.memory_space<vmem>>, vector<156x8xf32>
    %c19 = arith.constant 19 : index
    %c0_220 = arith.constant 0 : index
    %254 = vector.load %arg14[%c19, %c0_220] : memref<224x8xf32, #tpu.memory_space<vmem>>, vector<156x8xf32>
    %c20 = arith.constant 20 : index
    %c0_221 = arith.constant 0 : index
    %255 = vector.load %arg14[%c20, %c0_221] : memref<224x8xf32, #tpu.memory_space<vmem>>, vector<156x8xf32>
    %c32 = arith.constant 32 : index
    %c0_222 = arith.constant 0 : index
    %256 = vector.load %arg14[%c32, %c0_222] : memref<224x8xf32, #tpu.memory_space<vmem>>, vector<156x8xf32>
    %c33 = arith.constant 33 : index
    %c0_223 = arith.constant 0 : index
    %257 = vector.load %arg14[%c33, %c0_223] : memref<224x8xf32, #tpu.memory_space<vmem>>, vector<156x8xf32>
    %c34_224 = arith.constant 34 : index
    %c0_225 = arith.constant 0 : index
    %258 = vector.load %arg14[%c34_224, %c0_225] : memref<224x8xf32, #tpu.memory_space<vmem>>, vector<156x8xf32>
    %c35 = arith.constant 35 : index
    %c0_226 = arith.constant 0 : index
    %259 = vector.load %arg14[%c35, %c0_226] : memref<224x8xf32, #tpu.memory_space<vmem>>, vector<156x8xf32>
    %c36 = arith.constant 36 : index
    %c0_227 = arith.constant 0 : index
    %260 = vector.load %arg14[%c36, %c0_227] : memref<224x8xf32, #tpu.memory_space<vmem>>, vector<156x8xf32>
    %c48_228 = arith.constant 48 : index
    %c0_229 = arith.constant 0 : index
    %261 = vector.load %arg14[%c48_228, %c0_229] : memref<224x8xf32, #tpu.memory_space<vmem>>, vector<156x8xf32>
    %c49_230 = arith.constant 49 : index
    %c0_231 = arith.constant 0 : index
    %262 = vector.load %arg14[%c49_230, %c0_231] : memref<224x8xf32, #tpu.memory_space<vmem>>, vector<156x8xf32>
    %c50_232 = arith.constant 50 : index
    %c0_233 = arith.constant 0 : index
    %263 = vector.load %arg14[%c50_232, %c0_233] : memref<224x8xf32, #tpu.memory_space<vmem>>, vector<156x8xf32>
    %c51_234 = arith.constant 51 : index
    %c0_235 = arith.constant 0 : index
    %264 = vector.load %arg14[%c51_234, %c0_235] : memref<224x8xf32, #tpu.memory_space<vmem>>, vector<156x8xf32>
    %c52_236 = arith.constant 52 : index
    %c0_237 = arith.constant 0 : index
    %265 = vector.load %arg14[%c52_236, %c0_237] : memref<224x8xf32, #tpu.memory_space<vmem>>, vector<156x8xf32>
    %c64 = arith.constant 64 : index
    %c0_238 = arith.constant 0 : index
    %266 = vector.load %arg14[%c64, %c0_238] : memref<224x8xf32, #tpu.memory_space<vmem>>, vector<156x8xf32>
    %c65 = arith.constant 65 : index
    %c0_239 = arith.constant 0 : index
    %267 = vector.load %arg14[%c65, %c0_239] : memref<224x8xf32, #tpu.memory_space<vmem>>, vector<156x8xf32>
    %c66_240 = arith.constant 66 : index
    %c0_241 = arith.constant 0 : index
    %268 = vector.load %arg14[%c66_240, %c0_241] : memref<224x8xf32, #tpu.memory_space<vmem>>, vector<156x8xf32>
    %c67 = arith.constant 67 : index
    %c0_242 = arith.constant 0 : index
    %269 = vector.load %arg14[%c67, %c0_242] : memref<224x8xf32, #tpu.memory_space<vmem>>, vector<156x8xf32>
    %c68 = arith.constant 68 : index
    %c0_243 = arith.constant 0 : index
    %270 = vector.load %arg14[%c68, %c0_243] : memref<224x8xf32, #tpu.memory_space<vmem>>, vector<156x8xf32>
    %271 = tpu.concatenate %246, %247, %248, %249, %250, %251, %252, %253, %254, %255, %256, %257, %258, %259, %260, %261 in 1 : vector<156x8xf32>, vector<156x8xf32>, vector<156x8xf32>, vector<156x8xf32>, vector<156x8xf32>, vector<156x8xf32>, vector<156x8xf32>, vector<156x8xf32>, vector<156x8xf32>, vector<156x8xf32>, vector<156x8xf32>, vector<156x8xf32>, vector<156x8xf32>, vector<156x8xf32>, vector<156x8xf32>, vector<156x8xf32> -> vector<156x128xf32>
    %272 = tpu.concatenate %262, %263, %264, %265, %266, %267, %268, %269, %270 in 1 : vector<156x8xf32>, vector<156x8xf32>, vector<156x8xf32>, vector<156x8xf32>, vector<156x8xf32>, vector<156x8xf32>, vector<156x8xf32>, vector<156x8xf32>, vector<156x8xf32> -> vector<156x72xf32>
    %273 = tpu.concatenate %271, %272 in 1 : vector<156x128xf32>, vector<156x72xf32> -> vector<156x200xf32>
    %cst_244 = arith.constant dense<0.000000e+00> : vector<156x16xf32>
    %274 = tpu.matmul %273, %245, %cst_244 {dimension_numbers = #tpu.dot_dimension_numbers<[1], [0], [0], [1], [0, 0, 1, 1], [], []>} : vector<156x200xf32>, vector<200x16xf32>, vector<156x16xf32> -> vector<156x16xf32>
    %c0_245 = arith.constant 0 : index
    %c0_246 = arith.constant 0 : index
    %275 = vector.load %arg15[%c0_245, %c0_246] : memref<156x16xf32, #tpu.memory_space<vmem>>, vector<156x16xf32>
    tpu.vector_store %arg15[%c0_245, %c0_246], %274 {strides = array<i32>} : memref<156x16xf32, #tpu.memory_space<vmem>>, vector<156x16xf32>,
    %c0_247 = arith.constant 0 : index
    %c0_248 = arith.constant 0 : index
    %276 = tpu.strided_load %arg15[%c0_247, %c0_248] {strides = array<i32: 2, 1>} : memref<156x16xf32, #tpu.memory_space<vmem>>, vector<5x16xf32>
    %c1_249 = arith.constant 1 : index
    %c0_250 = arith.constant 0 : index
    %277 = tpu.strided_load %arg15[%c1_249, %c0_250] {strides = array<i32: 2, 1>} : memref<156x16xf32, #tpu.memory_space<vmem>>, vector<5x16xf32>
    %c16_251 = arith.constant 16 : index
    %c0_252 = arith.constant 0 : index
    %278 = tpu.strided_load %arg15[%c16_251, %c0_252] {strides = array<i32: 2, 1>} : memref<156x16xf32, #tpu.memory_space<vmem>>, vector<5x16xf32>
    %c17_253 = arith.constant 17 : index
    %c0_254 = arith.constant 0 : index
    %279 = tpu.strided_load %arg15[%c17_253, %c0_254] {strides = array<i32: 2, 1>} : memref<156x16xf32, #tpu.memory_space<vmem>>, vector<5x16xf32>
    %280 = arith.maximumf %276, %277 : vector<5x16xf32>
    %281 = arith.maximumf %278, %279 : vector<5x16xf32>
    %282 = arith.maximumf %280, %281 : vector<5x16xf32>
    %c0_255 = arith.constant 0 : index
    %c0_256 = arith.constant 0 : index
    %283 = vector.load %arg5[%c0_255, %c0_256] : memref<1x16xf32, #tpu.memory_space<vmem>>, vector<1x16xf32>
    %284 = vector.broadcast %283 : vector<1x16xf32> to vector<5x16xf32>
    %285 = arith.addf %282, %284 : vector<5x16xf32>
    %cst_257 = arith.constant 0.000000e+00 : f32
    %286 = vector.broadcast %cst_257 : f32 to vector<5x16xf32>
    %287 = arith.maximumf %285, %286 : vector<5x16xf32>
    %c9 = arith.constant 9 : index
    %c0_258 = arith.constant 0 : index
    %288 = vector.load %arg16[%c9, %c0_258] : memref<56x16xf32, #tpu.memory_space<vmem>>, vector<5x16xf32>
    tpu.vector_store %arg16[%c9, %c0_258], %287 {strides = array<i32>} : memref<56x16xf32, #tpu.memory_space<vmem>>, vector<5x16xf32>,
    %c32_259 = arith.constant 32 : index
    %c0_260 = arith.constant 0 : index
    %289 = tpu.strided_load %arg15[%c32_259, %c0_260] {strides = array<i32: 2, 1>} : memref<156x16xf32, #tpu.memory_space<vmem>>, vector<5x16xf32>
    %c33_261 = arith.constant 33 : index
    %c0_262 = arith.constant 0 : index
    %290 = tpu.strided_load %arg15[%c33_261, %c0_262] {strides = array<i32: 2, 1>} : memref<156x16xf32, #tpu.memory_space<vmem>>, vector<5x16xf32>
    %c48_263 = arith.constant 48 : index
    %c0_264 = arith.constant 0 : index
    %291 = tpu.strided_load %arg15[%c48_263, %c0_264] {strides = array<i32: 2, 1>} : memref<156x16xf32, #tpu.memory_space<vmem>>, vector<5x16xf32>
    %c49_265 = arith.constant 49 : index
    %c0_266 = arith.constant 0 : index
    %292 = tpu.strided_load %arg15[%c49_265, %c0_266] {strides = array<i32: 2, 1>} : memref<156x16xf32, #tpu.memory_space<vmem>>, vector<5x16xf32>
    %293 = arith.maximumf %289, %290 : vector<5x16xf32>
    %294 = arith.maximumf %291, %292 : vector<5x16xf32>
    %295 = arith.maximumf %293, %294 : vector<5x16xf32>
    %c0_267 = arith.constant 0 : index
    %c0_268 = arith.constant 0 : index
    %296 = vector.load %arg5[%c0_267, %c0_268] : memref<1x16xf32, #tpu.memory_space<vmem>>, vector<1x16xf32>
    %297 = vector.broadcast %296 : vector<1x16xf32> to vector<5x16xf32>
    %298 = arith.addf %295, %297 : vector<5x16xf32>
    %cst_269 = arith.constant 0.000000e+00 : f32
    %299 = vector.broadcast %cst_269 : f32 to vector<5x16xf32>
    %300 = arith.maximumf %298, %299 : vector<5x16xf32>
    %c17_270 = arith.constant 17 : index
    %c0_271 = arith.constant 0 : index
    %301 = vector.load %arg16[%c17_270, %c0_271] : memref<56x16xf32, #tpu.memory_space<vmem>>, vector<5x16xf32>
    tpu.vector_store %arg16[%c17_270, %c0_271], %300 {strides = array<i32>} : memref<56x16xf32, #tpu.memory_space<vmem>>, vector<5x16xf32>,
    %c64_272 = arith.constant 64 : index
    %c0_273 = arith.constant 0 : index
    %302 = tpu.strided_load %arg15[%c64_272, %c0_273] {strides = array<i32: 2, 1>} : memref<156x16xf32, #tpu.memory_space<vmem>>, vector<5x16xf32>
    %c65_274 = arith.constant 65 : index
    %c0_275 = arith.constant 0 : index
    %303 = tpu.strided_load %arg15[%c65_274, %c0_275] {strides = array<i32: 2, 1>} : memref<156x16xf32, #tpu.memory_space<vmem>>, vector<5x16xf32>
    %c80 = arith.constant 80 : index
    %c0_276 = arith.constant 0 : index
    %304 = tpu.strided_load %arg15[%c80, %c0_276] {strides = array<i32: 2, 1>} : memref<156x16xf32, #tpu.memory_space<vmem>>, vector<5x16xf32>
    %c81 = arith.constant 81 : index
    %c0_277 = arith.constant 0 : index
    %305 = tpu.strided_load %arg15[%c81, %c0_277] {strides = array<i32: 2, 1>} : memref<156x16xf32, #tpu.memory_space<vmem>>, vector<5x16xf32>
    %306 = arith.maximumf %302, %303 : vector<5x16xf32>
    %307 = arith.maximumf %304, %305 : vector<5x16xf32>
    %308 = arith.maximumf %306, %307 : vector<5x16xf32>
    %c0_278 = arith.constant 0 : index
    %c0_279 = arith.constant 0 : index
    %309 = vector.load %arg5[%c0_278, %c0_279] : memref<1x16xf32, #tpu.memory_space<vmem>>, vector<1x16xf32>
    %310 = vector.broadcast %309 : vector<1x16xf32> to vector<5x16xf32>
    %311 = arith.addf %308, %310 : vector<5x16xf32>
    %cst_280 = arith.constant 0.000000e+00 : f32
    %312 = vector.broadcast %cst_280 : f32 to vector<5x16xf32>
    %313 = arith.maximumf %311, %312 : vector<5x16xf32>
    %c25_281 = arith.constant 25 : index
    %c0_282 = arith.constant 0 : index
    %314 = vector.load %arg16[%c25_281, %c0_282] : memref<56x16xf32, #tpu.memory_space<vmem>>, vector<5x16xf32>
    tpu.vector_store %arg16[%c25_281, %c0_282], %313 {strides = array<i32>} : memref<56x16xf32, #tpu.memory_space<vmem>>, vector<5x16xf32>,
    %c96_283 = arith.constant 96 : index
    %c0_284 = arith.constant 0 : index
    %315 = tpu.strided_load %arg15[%c96_283, %c0_284] {strides = array<i32: 2, 1>} : memref<156x16xf32, #tpu.memory_space<vmem>>, vector<5x16xf32>
    %c97_285 = arith.constant 97 : index
    %c0_286 = arith.constant 0 : index
    %316 = tpu.strided_load %arg15[%c97_285, %c0_286] {strides = array<i32: 2, 1>} : memref<156x16xf32, #tpu.memory_space<vmem>>, vector<5x16xf32>
    %c112 = arith.constant 112 : index
    %c0_287 = arith.constant 0 : index
    %317 = tpu.strided_load %arg15[%c112, %c0_287] {strides = array<i32: 2, 1>} : memref<156x16xf32, #tpu.memory_space<vmem>>, vector<5x16xf32>
    %c113 = arith.constant 113 : index
    %c0_288 = arith.constant 0 : index
    %318 = tpu.strided_load %arg15[%c113, %c0_288] {strides = array<i32: 2, 1>} : memref<156x16xf32, #tpu.memory_space<vmem>>, vector<5x16xf32>
    %319 = arith.maximumf %315, %316 : vector<5x16xf32>
    %320 = arith.maximumf %317, %318 : vector<5x16xf32>
    %321 = arith.maximumf %319, %320 : vector<5x16xf32>
    %c0_289 = arith.constant 0 : index
    %c0_290 = arith.constant 0 : index
    %322 = vector.load %arg5[%c0_289, %c0_290] : memref<1x16xf32, #tpu.memory_space<vmem>>, vector<1x16xf32>
    %323 = vector.broadcast %322 : vector<1x16xf32> to vector<5x16xf32>
    %324 = arith.addf %321, %323 : vector<5x16xf32>
    %cst_291 = arith.constant 0.000000e+00 : f32
    %325 = vector.broadcast %cst_291 : f32 to vector<5x16xf32>
    %326 = arith.maximumf %324, %325 : vector<5x16xf32>
    %c33_292 = arith.constant 33 : index
    %c0_293 = arith.constant 0 : index
    %327 = vector.load %arg16[%c33_292, %c0_293] : memref<56x16xf32, #tpu.memory_space<vmem>>, vector<5x16xf32>
    tpu.vector_store %arg16[%c33_292, %c0_293], %326 {strides = array<i32>} : memref<56x16xf32, #tpu.memory_space<vmem>>, vector<5x16xf32>,
    %c128 = arith.constant 128 : index
    %c0_294 = arith.constant 0 : index
    %328 = tpu.strided_load %arg15[%c128, %c0_294] {strides = array<i32: 2, 1>} : memref<156x16xf32, #tpu.memory_space<vmem>>, vector<5x16xf32>
    %c129 = arith.constant 129 : index
    %c0_295 = arith.constant 0 : index
    %329 = tpu.strided_load %arg15[%c129, %c0_295] {strides = array<i32: 2, 1>} : memref<156x16xf32, #tpu.memory_space<vmem>>, vector<5x16xf32>
    %c144_296 = arith.constant 144 : index
    %c0_297 = arith.constant 0 : index
    %330 = tpu.strided_load %arg15[%c144_296, %c0_297] {strides = array<i32: 2, 1>} : memref<156x16xf32, #tpu.memory_space<vmem>>, vector<5x16xf32>
    %c145_298 = arith.constant 145 : index
    %c0_299 = arith.constant 0 : index
    %331 = tpu.strided_load %arg15[%c145_298, %c0_299] {strides = array<i32: 2, 1>} : memref<156x16xf32, #tpu.memory_space<vmem>>, vector<5x16xf32>
    %332 = arith.maximumf %328, %329 : vector<5x16xf32>
    %333 = arith.maximumf %330, %331 : vector<5x16xf32>
    %334 = arith.maximumf %332, %333 : vector<5x16xf32>
    %c0_300 = arith.constant 0 : index
    %c0_301 = arith.constant 0 : index
    %335 = vector.load %arg5[%c0_300, %c0_301] : memref<1x16xf32, #tpu.memory_space<vmem>>, vector<1x16xf32>
    %336 = vector.broadcast %335 : vector<1x16xf32> to vector<5x16xf32>
    %337 = arith.addf %334, %336 : vector<5x16xf32>
    %cst_302 = arith.constant 0.000000e+00 : f32
    %338 = vector.broadcast %cst_302 : f32 to vector<5x16xf32>
    %339 = arith.maximumf %337, %338 : vector<5x16xf32>
    %c41 = arith.constant 41 : index
    %c0_303 = arith.constant 0 : index
    %340 = vector.load %arg16[%c41, %c0_303] : memref<56x16xf32, #tpu.memory_space<vmem>>, vector<5x16xf32>
    tpu.vector_store %arg16[%c41, %c0_303], %339 {strides = array<i32>} : memref<56x16xf32, #tpu.memory_space<vmem>>, vector<5x16xf32>,
    %c0_304 = arith.constant 0 : index
    %c0_305 = arith.constant 0 : index
    %341 = vector.load %arg6[%c0_304, %c0_305] : memref<144x32xf32, #tpu.memory_space<vmem>>, vector<144x32xf32>
    %c0_306 = arith.constant 0 : index
    %c0_307 = arith.constant 0 : index
    %342 = vector.load %arg16[%c0_306, %c0_307] : memref<56x16xf32, #tpu.memory_space<vmem>>, vector<38x16xf32>
    %c1_308 = arith.constant 1 : index
    %c0_309 = arith.constant 0 : index
    %343 = vector.load %arg16[%c1_308, %c0_309] : memref<56x16xf32, #tpu.memory_space<vmem>>, vector<38x16xf32>
    %c2_310 = arith.constant 2 : index
    %c0_311 = arith.constant 0 : index
    %344 = vector.load %arg16[%c2_310, %c0_311] : memref<56x16xf32, #tpu.memory_space<vmem>>, vector<38x16xf32>
    %c8 = arith.constant 8 : index
    %c0_312 = arith.constant 0 : index
    %345 = vector.load %arg16[%c8, %c0_312] : memref<56x16xf32, #tpu.memory_space<vmem>>, vector<38x16xf32>
    %c9_313 = arith.constant 9 : index
    %c0_314 = arith.constant 0 : index
    %346 = vector.load %arg16[%c9_313, %c0_314] : memref<56x16xf32, #tpu.memory_space<vmem>>, vector<38x16xf32>
    %c10 = arith.constant 10 : index
    %c0_315 = arith.constant 0 : index
    %347 = vector.load %arg16[%c10, %c0_315] : memref<56x16xf32, #tpu.memory_space<vmem>>, vector<38x16xf32>
    %c16_316 = arith.constant 16 : index
    %c0_317 = arith.constant 0 : index
    %348 = vector.load %arg16[%c16_316, %c0_317] : memref<56x16xf32, #tpu.memory_space<vmem>>, vector<38x16xf32>
    %c17_318 = arith.constant 17 : index
    %c0_319 = arith.constant 0 : index
    %349 = vector.load %arg16[%c17_318, %c0_319] : memref<56x16xf32, #tpu.memory_space<vmem>>, vector<38x16xf32>
    %c18_320 = arith.constant 18 : index
    %c0_321 = arith.constant 0 : index
    %350 = vector.load %arg16[%c18_320, %c0_321] : memref<56x16xf32, #tpu.memory_space<vmem>>, vector<38x16xf32>
    %351 = tpu.concatenate %342, %343, %344, %345, %346, %347, %348, %349, %350 in 1 : vector<38x16xf32>, vector<38x16xf32>, vector<38x16xf32>, vector<38x16xf32>, vector<38x16xf32>, vector<38x16xf32>, vector<38x16xf32>, vector<38x16xf32>, vector<38x16xf32> -> vector<38x144xf32>
    %cst_322 = arith.constant dense<0.000000e+00> : vector<38x32xf32>
    %352 = tpu.matmul %351, %341, %cst_322 {dimension_numbers = #tpu.dot_dimension_numbers<[1], [0], [0], [1], [0, 0, 1, 1], [], []>} : vector<38x144xf32>, vector<144x32xf32>, vector<38x32xf32> -> vector<38x32xf32>
    %c0_323 = arith.constant 0 : index
    %c0_324 = arith.constant 0 : index
    %353 = vector.load %arg17[%c0_323, %c0_324] : memref<38x32xf32, #tpu.memory_space<vmem>>, vector<38x32xf32>
    tpu.vector_store %arg17[%c0_323, %c0_324], %352 {strides = array<i32>} : memref<38x32xf32, #tpu.memory_space<vmem>>, vector<38x32xf32>,
    %c0_325 = arith.constant 0 : index
    %c0_326 = arith.constant 0 : index
    %354 = tpu.strided_load %arg17[%c0_325, %c0_326] {strides = array<i32: 2, 1>} : memref<38x32xf32, #tpu.memory_space<vmem>>, vector<2x32xf32>
    %c1_327 = arith.constant 1 : index
    %c0_328 = arith.constant 0 : index
    %355 = tpu.strided_load %arg17[%c1_327, %c0_328] {strides = array<i32: 2, 1>} : memref<38x32xf32, #tpu.memory_space<vmem>>, vector<2x32xf32>
    %c8_329 = arith.constant 8 : index
    %c0_330 = arith.constant 0 : index
    %356 = tpu.strided_load %arg17[%c8_329, %c0_330] {strides = array<i32: 2, 1>} : memref<38x32xf32, #tpu.memory_space<vmem>>, vector<2x32xf32>
    %c9_331 = arith.constant 9 : index
    %c0_332 = arith.constant 0 : index
    %357 = tpu.strided_load %arg17[%c9_331, %c0_332] {strides = array<i32: 2, 1>} : memref<38x32xf32, #tpu.memory_space<vmem>>, vector<2x32xf32>
    %358 = arith.maximumf %354, %355 : vector<2x32xf32>
    %359 = arith.maximumf %356, %357 : vector<2x32xf32>
    %360 = arith.maximumf %358, %359 : vector<2x32xf32>
    %c0_333 = arith.constant 0 : index
    %c0_334 = arith.constant 0 : index
    %361 = vector.load %arg7[%c0_333, %c0_334] : memref<1x32xf32, #tpu.memory_space<vmem>>, vector<1x32xf32>
    %362 = vector.broadcast %361 : vector<1x32xf32> to vector<2x32xf32>
    %363 = arith.addf %360, %362 : vector<2x32xf32>
    %cst_335 = arith.constant 0.000000e+00 : f32
    %364 = vector.broadcast %cst_335 : f32 to vector<2x32xf32>
    %365 = arith.maximumf %363, %364 : vector<2x32xf32>
    %366 = vector.extract_strided_slice %365 {offsets = [0, 0], sizes = [1, 32], strides = [1, 1]} : vector<2x32xf32> to vector<1x32xf32>
    %367 = vector.extract_strided_slice %365 {offsets = [1, 0], sizes = [1, 32], strides = [1, 1]} : vector<2x32xf32> to vector<1x32xf32>
    %c16_336 = arith.constant 16 : index
    %c0_337 = arith.constant 0 : index
    %368 = tpu.strided_load %arg17[%c16_336, %c0_337] {strides = array<i32: 2, 1>} : memref<38x32xf32, #tpu.memory_space<vmem>>, vector<2x32xf32>
    %c17_338 = arith.constant 17 : index
    %c0_339 = arith.constant 0 : index
    %369 = tpu.strided_load %arg17[%c17_338, %c0_339] {strides = array<i32: 2, 1>} : memref<38x32xf32, #tpu.memory_space<vmem>>, vector<2x32xf32>
    %c24_340 = arith.constant 24 : index
    %c0_341 = arith.constant 0 : index
    %370 = tpu.strided_load %arg17[%c24_340, %c0_341] {strides = array<i32: 2, 1>} : memref<38x32xf32, #tpu.memory_space<vmem>>, vector<2x32xf32>
    %c25_342 = arith.constant 25 : index
    %c0_343 = arith.constant 0 : index
    %371 = tpu.strided_load %arg17[%c25_342, %c0_343] {strides = array<i32: 2, 1>} : memref<38x32xf32, #tpu.memory_space<vmem>>, vector<2x32xf32>
    %372 = arith.maximumf %368, %369 : vector<2x32xf32>
    %373 = arith.maximumf %370, %371 : vector<2x32xf32>
    %374 = arith.maximumf %372, %373 : vector<2x32xf32>
    %c0_344 = arith.constant 0 : index
    %c0_345 = arith.constant 0 : index
    %375 = vector.load %arg7[%c0_344, %c0_345] : memref<1x32xf32, #tpu.memory_space<vmem>>, vector<1x32xf32>
    %376 = vector.broadcast %375 : vector<1x32xf32> to vector<2x32xf32>
    %377 = arith.addf %374, %376 : vector<2x32xf32>
    %cst_346 = arith.constant 0.000000e+00 : f32
    %378 = vector.broadcast %cst_346 : f32 to vector<2x32xf32>
    %379 = arith.maximumf %377, %378 : vector<2x32xf32>
    %380 = vector.extract_strided_slice %379 {offsets = [0, 0], sizes = [1, 32], strides = [1, 1]} : vector<2x32xf32> to vector<1x32xf32>
    %381 = vector.extract_strided_slice %379 {offsets = [1, 0], sizes = [1, 32], strides = [1, 1]} : vector<2x32xf32> to vector<1x32xf32>
    %382 = tpu.concatenate %366, %367, %380, %381 in 1 : vector<1x32xf32>, vector<1x32xf32>, vector<1x32xf32>, vector<1x32xf32> -> vector<1x128xf32>
    %c0_347 = arith.constant 0 : index
    %c0_348 = arith.constant 0 : index
    %383 = vector.load %arg8[%c0_347, %c0_348] : memref<128x128xf32, #tpu.memory_space<vmem>>, vector<128x128xf32>
    %cst_349 = arith.constant dense<0.000000e+00> : vector<1x128xf32>
    %384 = tpu.matmul %382, %383, %cst_349 {dimension_numbers = #tpu.dot_dimension_numbers<[1], [0], [0], [1], [0, 0, 1, 1], [], []>} : vector<1x128xf32>, vector<128x128xf32>, vector<1x128xf32> -> vector<1x128xf32>
    %c0_350 = arith.constant 0 : index
    %c0_351 = arith.constant 0 : index
    %385 = vector.load %arg9[%c0_350, %c0_351] : memref<1x128xf32, #tpu.memory_space<vmem>>, vector<1x128xf32>
    %386 = arith.addf %384, %385 : vector<1x128xf32>
    %cst_352 = arith.constant 0.000000e+00 : f32
    %387 = vector.broadcast %cst_352 : f32 to vector<1x128xf32>
    %388 = arith.maximumf %386, %387 : vector<1x128xf32>
    %c0_353 = arith.constant 0 : index
    %c0_354 = arith.constant 0 : index
    %389 = vector.load %arg10[%c0_353, %c0_354] : memref<128x10xf32, #tpu.memory_space<vmem>>, vector<128x10xf32>
    %cst_355 = arith.constant dense<0.000000e+00> : vector<1x10xf32>
    %390 = tpu.matmul %388, %389, %cst_355 {dimension_numbers = #tpu.dot_dimension_numbers<[1], [0], [0], [1], [0, 0, 1, 1], [], []>} : vector<1x128xf32>, vector<128x10xf32>, vector<1x10xf32> -> vector<1x10xf32>
    %c0_356 = arith.constant 0 : index
    %c0_357 = arith.constant 0 : index
    %391 = vector.load %arg11[%c0_356, %c0_357] : memref<1x10xf32, #tpu.memory_space<vmem>>, vector<1x10xf32>
    %392 = arith.addf %390, %391 : vector<1x10xf32>
    %c0_358 = arith.constant 0 : index
    %c0_359 = arith.constant 0 : index
    %c0_360 = arith.constant 0 : index
    %393 = vector.load %arg12[%c0_358, %c0_359, %c0_360] : memref<1x1x10xf32, #tpu.memory_space<vmem>>, vector<1x1x10xf32>
    %394 = vector.shape_cast %393 : vector<1x1x10xf32> to vector<1x10xf32>
    %395 = vector.shape_cast %392 : vector<1x10xf32> to vector<1x1x10xf32>
    tpu.vector_store %arg12[%c0_358, %c0_359, %c0_360], %395 {strides = array<i32>} : memref<1x1x10xf32, #tpu.memory_space<vmem>>, vector<1x1x10xf32>,
    return
  }
  func.func @transform_0(%arg0: i32) -> (i32, i32, i32) {
    %c0_i32 = arith.constant 0 : i32
    %c0_i32_0 = arith.constant 0 : i32
    %c0_i32_1 = arith.constant 0 : i32
    return %arg0, %c0_i32, %c0_i32_0 : i32, i32, i32
  }
  func.func @transform_1(%arg0: i32) -> (i32, i32) {
    %c0_i32 = arith.constant 0 : i32
    %c0_i32_0 = arith.constant 0 : i32
    %c0_i32_1 = arith.constant 0 : i32
    return %c0_i32, %c0_i32_0 : i32, i32
  }
  func.func @transform_2(%arg0: i32) -> (i32, i32) {
    %c0_i32 = arith.constant 0 : i32
    %c0_i32_0 = arith.constant 0 : i32
    %c0_i32_1 = arith.constant 0 : i32
    return %c0_i32, %c0_i32_0 : i32, i32
  }
  func.func @transform_3(%arg0: i32) -> (i32, i32) {
    %c0_i32 = arith.constant 0 : i32
    %c0_i32_0 = arith.constant 0 : i32
    %c0_i32_1 = arith.constant 0 : i32
    return %c0_i32, %c0_i32_0 : i32, i32
  }
  func.func @transform_4(%arg0: i32) -> (i32, i32) {
    %c0_i32 = arith.constant 0 : i32
    %c0_i32_0 = arith.constant 0 : i32
    %c0_i32_1 = arith.constant 0 : i32
    return %c0_i32, %c0_i32_0 : i32, i32
  }
  func.func @transform_5(%arg0: i32) -> (i32, i32) {
    %c0_i32 = arith.constant 0 : i32
    %c0_i32_0 = arith.constant 0 : i32
    %c0_i32_1 = arith.constant 0 : i32
    return %c0_i32, %c0_i32_0 : i32, i32
  }
  func.func @transform_6(%arg0: i32) -> (i32, i32) {
    %c0_i32 = arith.constant 0 : i32
    %c0_i32_0 = arith.constant 0 : i32
    %c0_i32_1 = arith.constant 0 : i32
    return %c0_i32, %c0_i32_0 : i32, i32
  }
  func.func @transform_7(%arg0: i32) -> (i32, i32) {
    %c0_i32 = arith.constant 0 : i32
    %c0_i32_0 = arith.constant 0 : i32
    %c0_i32_1 = arith.constant 0 : i32
    return %c0_i32, %c0_i32_0 : i32, i32
  }
  func.func @transform_8(%arg0: i32) -> (i32, i32) {
    %c0_i32 = arith.constant 0 : i32
    %c0_i32_0 = arith.constant 0 : i32
    %c0_i32_1 = arith.constant 0 : i32
    return %c0_i32, %c0_i32_0 : i32, i32
  }
  func.func @transform_9(%arg0: i32) -> (i32, i32) {
    %c0_i32 = arith.constant 0 : i32
    %c0_i32_0 = arith.constant 0 : i32
    %c0_i32_1 = arith.constant 0 : i32
    return %c0_i32, %c0_i32_0 : i32, i32
  }
  func.func @transform_10(%arg0: i32) -> (i32, i32) {
    %c0_i32 = arith.constant 0 : i32
    %c0_i32_0 = arith.constant 0 : i32
    %c0_i32_1 = arith.constant 0 : i32
    return %c0_i32, %c0_i32_0 : i32, i32
  }
  func.func @transform_11(%arg0: i32) -> (i32, i32, i32) {
    %c0_i32 = arith.constant 0 : i32
    %c0_i32_0 = arith.constant 0 : i32
    %c0_i32_1 = arith.constant 0 : i32
    return %arg0, %c0_i32, %c0_i32_0 : i32, i32, i32
  }
}

</mosaic_0001>

<llo_original>
// kernel: digit_classifier_forward.1
$region0: #{digit_classifier_forward.1}
  #allocation0 [shape = 'u32[]', space=smem, size = 0x4, offset = 0x4, fixed_abs, tag = 'smem constant byte address 0x4 - core index']
  #allocation1 [shape = 'u32[72,128]{1,0:T(1,128)}', space=vmem, size = 0x9000, scoped, tag = 'internal scratch']
  #allocation2 [shape = 'f32[476,8]{1,0:T(8,128)}', space=vmem, size = 0x3c000, scoped, tag = 'scratch operand']
  #allocation3 [shape = 'f32[224,8]{1,0:T(8,128)}', space=vmem, size = 0x1c000, scoped, tag = 'scratch operand']
  #allocation4 [shape = 'f32[156,16]{1,0:T(8,128)}', space=vmem, size = 0x14000, scoped, tag = 'scratch operand']
  #allocation5 [shape = 'f32[56,16]{1,0:T(8,128)}', space=vmem, size = 0x7000, scoped, tag = 'scratch operand']
  #allocation6 [shape = 'f32[38,32]{1,0:T(8,128)}', space=vmem, size = 0x5000, scoped, tag = 'scratch operand']
  %s0 = inlined_call_operand.vmem [shape: f32[2,576,4], index: 0, kind: input, shape index: {}]
  %s1 = inlined_call_operand.vmem [shape: f32[100,8], index: 1, kind: input, shape index: {}]
  %s2 = inlined_call_operand.vmem [shape: f32[1,8], index: 2, kind: input, shape index: {}]
  %s3 = inlined_call_operand.vmem [shape: f32[200,16], index: 3, kind: input, shape index: {}]
  %s4 = inlined_call_operand.vmem [shape: f32[1,16], index: 4, kind: input, shape index: {}]
  %s5 = inlined_call_operand.vmem [shape: f32[144,32], index: 5, kind: input, shape index: {}]
  %s6 = inlined_call_operand.vmem [shape: f32[1,32], index: 6, kind: input, shape index: {}]
  %s7 = inlined_call_operand.vmem [shape: f32[128,128], index: 7, kind: input, shape index: {}]
  %s8 = inlined_call_operand.vmem [shape: f32[1,128], index: 8, kind: input, shape index: {}]
  %s9 = inlined_call_operand.vmem [shape: f32[128,10], index: 9, kind: input, shape index: {}]
  %s10 = inlined_call_operand.vmem [shape: f32[1,10], index: 10, kind: input, shape index: {}]
  %s11 = inlined_call_operand.hbm [shape: f32[2,1,10], index: 11, kind: output, shape index: {}]
  %s12 = sld [smem:[#allocation0]]
  $region77: #{digit_classifier_forward.1} parent=0
    _
  %s14 = ssub.s32 1, %s12
  %s15 = scalar_select 0, %s14, %s12
  $region1: #{digit_classifier_forward.1} parent=0
    #allocation7 [shape = 'u8[1024]{0}', space=vmem, size = 0x400, scoped, tag = 'output window, operand 0']
    #allocation8 [shape = 's32[2]{0}', space=sflag, size = 0x8, scoped, tag = 'scoped memory for digit_classifier_forward.1']
    %16 = vsyncpa [#allocation8], 0
    %s17 = scalar_lea.sflag [#allocation8], 1
    %18 = vsyncpa %s17, 0
    loop: start=0, step=1, limit=4
    $region2: #{digit_classifier_forward.1} parent=1 // loop_pre_header
      _
    $region3: #{digit_classifier_forward.1} parent=1 // loop_header
      %s20 = sphi 0, %s24
      %p21 = scmp.ge.s32.totalorder %s20, 4
      %s30 = sphi 0, %s32
      %s33 = sphi 0, %s30
      %s34 = sphi 0, %s33
      %s50 = sphi 0, %s34
      %s54 = sphi 0, %s54
      %s56 = sphi 0, %s54
      %s57 = sphi 0, %s56
      %s71 = sphi 0, %s57
      %s75 = sphi 0, %s75
      %s77 = sphi 0, %s75
      %s78 = sphi 0, %s77
      %s92 = sphi 0, %s78
      %s96 = sphi 0, %s96
      %s98 = sphi 0, %s96
      %s99 = sphi 0, %s98
      %s113 = sphi 0, %s99
      %s117 = sphi 0, %s117
      %s119 = sphi 0, %s117
      %s120 = sphi 0, %s119
      %s134 = sphi 0, %s120
      %s138 = sphi 0, %s138
      %s140 = sphi 0, %s138
      %s141 = sphi 0, %s140
      %s155 = sphi 0, %s141
      %s159 = sphi 0, %s159
      %s161 = sphi 0, %s159
      %s162 = sphi 0, %s161
      %s176 = sphi 0, %s162
      %s180 = sphi 0, %s180
      %s182 = sphi 0, %s180
      %s183 = sphi 0, %s182
      %s197 = sphi 0, %s183
      %s201 = sphi 0, %s201
      %s203 = sphi 0, %s201
      %s204 = sphi 0, %s203
      %s218 = sphi 0, %s204
      %s222 = sphi 0, %s222
      %s224 = sphi 0, %s222
      %s225 = sphi 0, %s224
      %s239 = sphi 0, %s225
      %s243 = sphi 0, %s243
      %s245 = sphi 0, %s243
      %s246 = sphi 0, %s245
      %s260 = sphi 0, %s246
      %s266 = sphi 0, %s268
      %s269 = sphi 0, %s266
      %s270 = sphi 0, %s269
      %s286 = sphi 0, %s270
    $region4: #{digit_classifier_forward.1} parent=1 // loop_header_branch
      %23 = sbr.rel (%p21) target = $region8
    $region5: #{digit_classifier_forward.1} parent=1 // loop_body
      %s25 = ssub.s32 %s20, 1
      %s26 = ssub.s32 %s20, 2
      %s27 = sadd.s32 %s20, 1
      %s28 = ssub.s32 %s20, %s27
      %p29 = scmp.eq.s32.totalorder %s28, 0
      %s31 = sadd.s32 %s30, 1
      %s32 = scalar_select %p29, %s30, %s31
      %p35 = pneg %p29
      %p36 = scmp.eq.s32.totalorder %s20, 1
      %p37 = por %p35, %p36
      %p38 = scmp.ne.s32.totalorder %s30, %s33
      %p39 = scmp.eq.s32.totalorder %s20, 0
      %p40 = por %p38, %p39
      %p41 = scmp.ne.s32.totalorder %s30, %s33
      %p42 = scmp.eq.s32.totalorder %s25, 1
      %p43 = por %p41, %p42
      %p44 = scmp.ne.s32.totalorder %s33, %s34
      %p45 = scmp.eq.s32.totalorder %s25, 0
      %p46 = por %p44, %p45
      %p47 = scmp.ne.s32.totalorder %s33, %s34
      %p48 = scmp.eq.s32.totalorder %s26, 1
      %p49 = por %p47, %p48
      %p51 = scmp.ne.s32.totalorder %s34, %s50
      %p52 = scmp.eq.s32.totalorder %s26, 0
      %p53 = por %p51, %p52
      %s55 = sadd.s32 %s54, 1
      %p58 = scmp.eq.s32.totalorder %s20, 1
      %p59 = scmp.ne.s32.totalorder %s54, %s56
      %p60 = scmp.eq.s32.totalorder %s20, 0
      %p61 = por %p59, %p60
      %p62 = scmp.ne.s32.totalorder %s54, %s56
      %p63 = scmp.eq.s32.totalorder %s25, 1
      %p64 = por %p62, %p63
      %p65 = scmp.ne.s32.totalorder %s56, %s57
      %p66 = scmp.eq.s32.totalorder %s25, 0
      %p67 = por %p65, %p66
      %p68 = scmp.ne.s32.totalorder %s56, %s57
      %p69 = scmp.eq.s32.totalorder %s26, 1
      %p70 = por %p68, %p69
      %p72 = scmp.ne.s32.totalorder %s57, %s71
      %p73 = scmp.eq.s32.totalorder %s26, 0
      %p74 = por %p72, %p73
      %s76 = sadd.s32 %s75, 1
      %p79 = scmp.eq.s32.totalorder %s20, 1
      %p80 = scmp.ne.s32.totalorder %s75, %s77
      %p81 = scmp.eq.s32.totalorder %s20, 0
      %p82 = por %p80, %p81
      %p83 = scmp.ne.s32.totalorder %s75, %s77
      %p84 = scmp.eq.s32.totalorder %s25, 1
      %p85 = por %p83, %p84
      %p86 = scmp.ne.s32.totalorder %s77, %s78
      %p87 = scmp.eq.s32.totalorder %s25, 0
      %p88 = por %p86, %p87
      %p89 = scmp.ne.s32.totalorder %s77, %s78
      %p90 = scmp.eq.s32.totalorder %s26, 1
      %p91 = por %p89, %p90
      %p93 = scmp.ne.s32.totalorder %s78, %s92
      %p94 = scmp.eq.s32.totalorder %s26, 0
      %p95 = por %p93, %p94
      %s97 = sadd.s32 %s96, 1
      %p100 = scmp.eq.s32.totalorder %s20, 1
      %p101 = scmp.ne.s32.totalorder %s96, %s98
      %p102 = scmp.eq.s32.totalorder %s20, 0
      %p103 = por %p101, %p102
      %p104 = scmp.ne.s32.totalorder %s96, %s98
      %p105 = scmp.eq.s32.totalorder %s25, 1
      %p106 = por %p104, %p105
      %p107 = scmp.ne.s32.totalorder %s98, %s99
      %p108 = scmp.eq.s32.totalorder %s25, 0
      %p109 = por %p107, %p108
      %p110 = scmp.ne.s32.totalorder %s98, %s99
      %p111 = scmp.eq.s32.totalorder %s26, 1
      %p112 = por %p110, %p111
      %p114 = scmp.ne.s32.totalorder %s99, %s113
      %p115 = scmp.eq.s32.totalorder %s26, 0
      %p116 = por %p114, %p115
      %s118 = sadd.s32 %s117, 1
      %p121 = scmp.eq.s32.totalorder %s20, 1
      %p122 = scmp.ne.s32.totalorder %s117, %s119
      %p123 = scmp.eq.s32.totalorder %s20, 0
      %p124 = por %p122, %p123
      %p125 = scmp.ne.s32.totalorder %s117, %s119
      %p126 = scmp.eq.s32.totalorder %s25, 1
      %p127 = por %p125, %p126
      %p128 = scmp.ne.s32.totalorder %s119, %s120
      %p129 = scmp.eq.s32.totalorder %s25, 0
      %p130 = por %p128, %p129
      %p131 = scmp.ne.s32.totalorder %s119, %s120
      %p132 = scmp.eq.s32.totalorder %s26, 1
      %p133 = por %p131, %p132
      %p135 = scmp.ne.s32.totalorder %s120, %s134
      %p136 = scmp.eq.s32.totalorder %s26, 0
      %p137 = por %p135, %p136
      %s139 = sadd.s32 %s138, 1
      %p142 = scmp.eq.s32.totalorder %s20, 1
      %p143 = scmp.ne.s32.totalorder %s138, %s140
      %p144 = scmp.eq.s32.totalorder %s20, 0
      %p145 = por %p143, %p144
      %p146 = scmp.ne.s32.totalorder %s138, %s140
      %p147 = scmp.eq.s32.totalorder %s25, 1
      %p148 = por %p146, %p147
      %p149 = scmp.ne.s32.totalorder %s140, %s141
      %p150 = scmp.eq.s32.totalorder %s25, 0
      %p151 = por %p149, %p150
      %p152 = scmp.ne.s32.totalorder %s140, %s141
      %p153 = scmp.eq.s32.totalorder %s26, 1
      %p154 = por %p152, %p153
      %p156 = scmp.ne.s32.totalorder %s141, %s155
      %p157 = scmp.eq.s32.totalorder %s26, 0
      %p158 = por %p156, %p157
      %s160 = sadd.s32 %s159, 1
      %p163 = scmp.eq.s32.totalorder %s20, 1
      %p164 = scmp.ne.s32.totalorder %s159, %s161
      %p165 = scmp.eq.s32.totalorder %s20, 0
      %p166 = por %p164, %p165
      %p167 = scmp.ne.s32.totalorder %s159, %s161
      %p168 = scmp.eq.s32.totalorder %s25, 1
      %p169 = por %p167, %p168
      %p170 = scmp.ne.s32.totalorder %s161, %s162
      %p171 = scmp.eq.s32.totalorder %s25, 0
      %p172 = por %p170, %p171
      %p173 = scmp.ne.s32.totalorder %s161, %s162
      %p174 = scmp.eq.s32.totalorder %s26, 1
      %p175 = por %p173, %p174
      %p177 = scmp.ne.s32.totalorder %s162, %s176
      %p178 = scmp.eq.s32.totalorder %s26, 0
      %p179 = por %p177, %p178
      %s181 = sadd.s32 %s180, 1
      %p184 = scmp.eq.s32.totalorder %s20, 1
      %p185 = scmp.ne.s32.totalorder %s180, %s182
      %p186 = scmp.eq.s32.totalorder %s20, 0
      %p187 = por %p185, %p186
      %p188 = scmp.ne.s32.totalorder %s180, %s182
      %p189 = scmp.eq.s32.totalorder %s25, 1
      %p190 = por %p188, %p189
      %p191 = scmp.ne.s32.totalorder %s182, %s183
      %p192 = scmp.eq.s32.totalorder %s25, 0
      %p193 = por %p191, %p192
      %p194 = scmp.ne.s32.totalorder %s182, %s183
      %p195 = scmp.eq.s32.totalorder %s26, 1
      %p196 = por %p194, %p195
      %p198 = scmp.ne.s32.totalorder %s183, %s197
      %p199 = scmp.eq.s32.totalorder %s26, 0
      %p200 = por %p198, %p199
      %s202 = sadd.s32 %s201, 1
      %p205 = scmp.eq.s32.totalorder %s20, 1
      %p206 = scmp.ne.s32.totalorder %s201, %s203
      %p207 = scmp.eq.s32.totalorder %s20, 0
      %p208 = por %p206, %p207
      %p209 = scmp.ne.s32.totalorder %s201, %s203
      %p210 = scmp.eq.s32.totalorder %s25, 1
      %p211 = por %p209, %p210
      %p212 = scmp.ne.s32.totalorder %s203, %s204
      %p213 = scmp.eq.s32.totalorder %s25, 0
      %p214 = por %p212, %p213
      %p215 = scmp.ne.s32.totalorder %s203, %s204
      %p216 = scmp.eq.s32.totalorder %s26, 1
      %p217 = por %p215, %p216
      %p219 = scmp.ne.s32.totalorder %s204, %s218
      %p220 = scmp.eq.s32.totalorder %s26, 0
      %p221 = por %p219, %p220
      %s223 = sadd.s32 %s222, 1
      %p226 = scmp.eq.s32.totalorder %s20, 1
      %p227 = scmp.ne.s32.totalorder %s222, %s224
      %p228 = scmp.eq.s32.totalorder %s20, 0
      %p229 = por %p227, %p228
      %p230 = scmp.ne.s32.totalorder %s222, %s224
      %p231 = scmp.eq.s32.totalorder %s25, 1
      %p232 = por %p230, %p231
      %p233 = scmp.ne.s32.totalorder %s224, %s225
      %p234 = scmp.eq.s32.totalorder %s25, 0
      %p235 = por %p233, %p234
      %p236 = scmp.ne.s32.totalorder %s224, %s225
      %p237 = scmp.eq.s32.totalorder %s26, 1
      %p238 = por %p236, %p237
      %p240 = scmp.ne.s32.totalorder %s225, %s239
      %p241 = scmp.eq.s32.totalorder %s26, 0
      %p242 = por %p240, %p241
      %s244 = sadd.s32 %s243, 1
      %p247 = scmp.eq.s32.totalorder %s20, 1
      %p248 = scmp.ne.s32.totalorder %s243, %s245
      %p249 = scmp.eq.s32.totalorder %s20, 0
      %p250 = por %p248, %p249
      %p251 = scmp.ne.s32.totalorder %s243, %s245
      %p252 = scmp.eq.s32.totalorder %s25, 1
      %p253 = por %p251, %p252
      %p254 = scmp.ne.s32.totalorder %s245, %s246
      %p255 = scmp.eq.s32.totalorder %s25, 0
      %p256 = por %p254, %p255
      %p257 = scmp.ne.s32.totalorder %s245, %s246
      %p258 = scmp.eq.s32.totalorder %s26, 1
      %p259 = por %p257, %p258
      %p261 = scmp.ne.s32.totalorder %s246, %s260
      %p262 = scmp.eq.s32.totalorder %s26, 0
      %p263 = por %p261, %p262
      %s264 = ssub.s32 %s20, %s27
      %p265 = scmp.eq.s32.totalorder %s264, 0
      %s267 = sadd.s32 %s266, 1
      %s268 = scalar_select %p265, %s266, %s267
      %p271 = pneg %p265
      %p272 = scmp.eq.s32.totalorder %s20, 1
      %p273 = por %p271, %p272
      %p274 = scmp.ne.s32.totalorder %s266, %s269
      %p275 = scmp.eq.s32.totalorder %s20, 0
      %p276 = por %p274, %p275
      %p277 = scmp.ne.s32.totalorder %s266, %s269
      %p278 = scmp.eq.s32.totalorder %s25, 1
      %p279 = por %p277, %p278
      %p280 = scmp.ne.s32.totalorder %s269, %s270
      %p281 = scmp.eq.s32.totalorder %s25, 0
      %p282 = por %p280, %p281
      %p283 = scmp.ne.s32.totalorder %s269, %s270
      %p284 = scmp.eq.s32.totalorder %s26, 1
      %p285 = por %p283, %p284
      %p287 = scmp.ne.s32.totalorder %s270, %s286
      %p288 = scmp.eq.s32.totalorder %s26, 0
      %p289 = por %p287, %p288
      %p290 = scmp.le.s32.totalorder 1, %s20
      %p291 = scmp.lt.s32.totalorder %s20, 3
      %p292 = pnand %p290, %p291
      %p293 = pneg %p292
      // Predicated region
      $region9: #{digit_classifier_forward.1} parent=5 // pred_check
        _
      $region10: #{digit_classifier_forward.1} parent=5 // pred_check_branch
        %295 = sbr.rel (%p292) target = $region12
      $region11: #{digit_classifier_forward.1} parent=5 // pred_region
        %s296 = ssub.s32 %s20, 1
        // Predicated region
        $region13: #{digit_classifier_forward.1} parent=11 // pred_check
          %p297 = pneg %p67
        $region14: #{digit_classifier_forward.1} parent=11 // pred_check_branch
          %299 = sbr.rel (%p297) target = $region16
        $region15: #{digit_classifier_forward.1} parent=11 // pred_region
          _
        $region16: #{digit_classifier_forward.1} parent=11 // pred_fallthru
          _
        // Predicated region
        $region17: #{digit_classifier_forward.1} parent=11 // pred_check
          %p300 = pneg %p88
        $region18: #{digit_classifier_forward.1} parent=11 // pred_check_branch
          %302 = sbr.rel (%p300) target = $region20
        $region19: #{digit_classifier_forward.1} parent=11 // pred_region
          _
        $region20: #{digit_classifier_forward.1} parent=11 // pred_fallthru
          _
        // Predicated region
        $region21: #{digit_classifier_forward.1} parent=11 // pred_check
          %p303 = pneg %p109
        $region22: #{digit_classifier_forward.1} parent=11 // pred_check_branch
          %305 = sbr.rel (%p303) target = $region24
        $region23: #{digit_classifier_forward.1} parent=11 // pred_region
          _
        $region24: #{digit_classifier_forward.1} parent=11 // pred_fallthru
          _
        // Predicated region
        $region25: #{digit_classifier_forward.1} parent=11 // pred_check
          %p306 = pneg %p130
        $region26: #{digit_classifier_forward.1} parent=11 // pred_check_branch
          %308 = sbr.rel (%p306) target = $region28
        $region27: #{digit_classifier_forward.1} parent=11 // pred_region
          _
        $region28: #{digit_classifier_forward.1} parent=11 // pred_fallthru
          _
        // Predicated region
        $region29: #{digit_classifier_forward.1} parent=11 // pred_check
          %p309 = pneg %p151
        $region30: #{digit_classifier_forward.1} parent=11 // pred_check_branch
          %311 = sbr.rel (%p309) target = $region32
        $region31: #{digit_classifier_forward.1} parent=11 // pred_region
          _
        $region32: #{digit_classifier_forward.1} parent=11 // pred_fallthru
          _
        // Predicated region
        $region33: #{digit_classifier_forward.1} parent=11 // pred_check
          %p312 = pneg %p172
        $region34: #{digit_classifier_forward.1} parent=11 // pred_check_branch
          %314 = sbr.rel (%p312) target = $region36
        $region35: #{digit_classifier_forward.1} parent=11 // pred_region
          _
        $region36: #{digit_classifier_forward.1} parent=11 // pred_fallthru
          _
        // Predicated region
        $region37: #{digit_classifier_forward.1} parent=11 // pred_check
          %p315 = pneg %p193
        $region38: #{digit_classifier_forward.1} parent=11 // pred_check_branch
          %317 = sbr.rel (%p315) target = $region40
        $region39: #{digit_classifier_forward.1} parent=11 // pred_region
          _
        $region40: #{digit_classifier_forward.1} parent=11 // pred_fallthru
          _
        // Predicated region
        $region41: #{digit_classifier_forward.1} parent=11 // pred_check
          %p318 = pneg %p214
        $region42: #{digit_classifier_forward.1} parent=11 // pred_check_branch
          %320 = sbr.rel (%p318) target = $region44
        $region43: #{digit_classifier_forward.1} parent=11 // pred_region
          _
        $region44: #{digit_classifier_forward.1} parent=11 // pred_fallthru
          _
        // Predicated region
        $region45: #{digit_classifier_forward.1} parent=11 // pred_check
          %p321 = pneg %p235
        $region46: #{digit_classifier_forward.1} parent=11 // pred_check_branch
          %323 = sbr.rel (%p321) target = $region48
        $region47: #{digit_classifier_forward.1} parent=11 // pred_region
          _
        $region48: #{digit_classifier_forward.1} parent=11 // pred_fallthru
          _
        // Predicated region
        $region49: #{digit_classifier_forward.1} parent=11 // pred_check
          %p324 = pneg %p256
        $region50: #{digit_classifier_forward.1} parent=11 // pred_check_branch
          %326 = sbr.rel (%p324) target = $region52
        $region51: #{digit_classifier_forward.1} parent=11 // pred_region
          _
        $region52: #{digit_classifier_forward.1} parent=11 // pred_fallthru
          _
      $region12: #{digit_classifier_forward.1} parent=5 // pred_fallthru
        _
      %p327 = scmp.lt.s32.totalorder %s20, 2
      // Predicated region
      $region53: #{digit_classifier_forward.1} parent=5 // pred_check
        %p328 = pneg %p327
      $region54: #{digit_classifier_forward.1} parent=5 // pred_check_branch
        %330 = sbr.rel (%p328) target = $region56
      $region55: #{digit_classifier_forward.1} parent=5 // pred_region
        // Predicated region
        $region57: #{digit_classifier_forward.1} parent=55 // pred_check
          %p331 = pneg %p40
        $region58: #{digit_classifier_forward.1} parent=55 // pred_check_branch
          %333 = sbr.rel (%p331) target = $region60
        $region59: #{digit_classifier_forward.1} parent=55 // pred_region
          %p334 = scmp.lt.s32.totalorder %s20, 1
          %s335 = scalar_select %p334, %s20, 1
          %s336 = smul.addr %s335, 72
          %s337 = smul.addr %s336, 8
          %s338 = scalar_lea.vmem %s0, %s337
        $region60: #{digit_classifier_forward.1} parent=55 // pred_fallthru
          _
      $region56: #{digit_classifier_forward.1} parent=5 // pred_fallthru
        _
      %p339 = scmp.le.s32.totalorder 1, %s20
      %p340 = scmp.lt.s32.totalorder %s20, 3
      %p341 = pnand %p339, %p340
      %p342 = pneg %p341
      // Predicated region
      $region61: #{digit_classifier_forward.1} parent=5 // pred_check
        _
      $region62: #{digit_classifier_forward.1} parent=5 // pred_check_branch
        %344 = sbr.rel (%p341) target = $region64
      $region63: #{digit_classifier_forward.1} parent=5 // pred_region
        %s345 = ssub.s32 %s20, 1
        %p346 = scmp.lt.s32.totalorder %s25, 1
        %s347 = scalar_select %p346, %s25, 1
        %s348 = smul.addr %s347, 72
        %s349 = smul.addr %s348, 8
        %s350 = scalar_lea.vmem %s0, %s349
        %p351 = pneg %p46
        %p352 = pneg %p43
        %p353 = pneg %p67
        %p354 = pneg %p64
        %p355 = pneg %p88
        %p356 = pneg %p85
        %p357 = pneg %p109
        %p358 = pneg %p106
        %p359 = pneg %p130
        %p360 = pneg %p127
        %p361 = pneg %p151
        %p362 = pneg %p148
        %p363 = pneg %p172
        %p364 = pneg %p169
        %p365 = pneg %p193
        %p366 = pneg %p190
        %p367 = pneg %p214
        %p368 = pneg %p211
        %p369 = pneg %p235
        %p370 = pneg %p232
        %p371 = pneg %p256
        %p372 = pneg %p253
        %p373 = pneg %p282
        %p374 = pneg %p279
        %s375 = sand.u32 %s269, 1
        %s376 = scalar_lea.sflag [#allocation8], %s375
        %s377 = sand.u32 %s269, 1
        %s378 = scalar_lea.vmem [#allocation7], %s377
        %p379 = scmp.lt.s32.totalorder %s25, 1
        %s380 = scalar_select %p379, %s25, 1
        %s381 = smul.addr %s380, 72
        %s382 = smul.addr %s381, 8
        %s383 = scalar_lea.vmem %s0, %s382
        %vm384 = vcmask 64512
        %385 = vst.msk [vmem:[#allocation3] sm:$0xff] %vm384, 0.0
        %386 = vst.msk [vmem:[#allocation3 + $0x8] sm:$0xff] %vm384, 0.0
        %387 = vst.msk [vmem:[#allocation3 + $0x10] sm:$0xff] %vm384, 0.0
        %388 = vst.msk [vmem:[#allocation3 + $0x18] sm:$0xff] %vm384, 0.0
        %389 = vst.msk [vmem:[#allocation3 + $0x20] sm:$0xff] %vm384, 0.0
        %390 = vst.msk [vmem:[#allocation3 + $0x28] sm:$0xff] %vm384, 0.0
        %391 = vst.msk [vmem:[#allocation3 + $0x30] sm:$0xff] %vm384, 0.0
        %392 = vst.msk [vmem:[#allocation3 + $0x38] sm:$0xff] %vm384, 0.0
        %393 = vst.msk [vmem:[#allocation3 + $0x40] sm:$0xff] %vm384, 0.0
        %394 = vst.msk [vmem:[#allocation3 + $0x48] sm:$0xff] %vm384, 0.0
        %395 = vst.msk [vmem:[#allocation3 + $0x50] sm:$0xff] %vm384, 0.0
        %396 = vst.msk [vmem:[#allocation3 + $0x58] sm:$0xff] %vm384, 0.0
        %397 = vst.msk [vmem:[#allocation3 + $0x60] sm:$0xff] %vm384, 0.0
        %398 = vst.msk [vmem:[#allocation3 + $0x68] sm:$0xff] %vm384, 0.0
        %399 = vst.msk [vmem:[#allocation3 + $0x70] sm:$0xff] %vm384, 0.0
        %400 = vst.msk [vmem:[#allocation3 + $0x78] sm:$0xff] %vm384, 0.0
        %401 = vst.msk [vmem:[#allocation3 + $0x80] sm:$0xff] %vm384, 0.0
        %402 = vst.msk [vmem:[#allocation3 + $0x88] sm:$0xff] %vm384, 0.0
        %403 = vst.msk [vmem:[#allocation3 + $0x90] sm:$0xff] %vm384, 0.0
        %404 = vst.msk [vmem:[#allocation3 + $0x98] sm:$0xff] %vm384, 0.0
        %405 = vst.msk [vmem:[#allocation3 + $0xa0] sm:$0xff] %vm384, 0.0
        %406 = vst.msk [vmem:[#allocation3 + $0xa8] sm:$0xff] %vm384, 0.0
        %407 = vst.msk [vmem:[#allocation3 + $0xb0] sm:$0xff] %vm384, 0.0
        %408 = vst.msk [vmem:[#allocation3 + $0xb8] sm:$0xff] %vm384, 0.0
        %409 = vst.msk [vmem:[#allocation3 + $0xc0] sm:$0xff] %vm384, 0.0
        %410 = vst.msk [vmem:[#allocation3 + $0xc8] sm:$0xff] %vm384, 0.0
        %411 = vst.msk [vmem:[#allocation3 + $0xd0] sm:$0xff] %vm384, 0.0
        %412 = vst.msk [vmem:[#allocation3 + $0xd8] sm:$0xff] %vm384, 0.0
        %vm413 = vcmask 130048
        %414 = vst.msk [vmem:[#allocation5] sm:$0xff] %vm413, 0.0
        %415 = vst.msk [vmem:[#allocation5 + $0x8] sm:$0xff] %vm413, 0.0
        %416 = vst.msk [vmem:[#allocation5 + $0x10] sm:$0xff] %vm413, 0.0
        %417 = vst.msk [vmem:[#allocation5 + $0x18] sm:$0xff] %vm413, 0.0
        %418 = vst.msk [vmem:[#allocation5 + $0x20] sm:$0xff] %vm413, 0.0
        %419 = vst.msk [vmem:[#allocation5 + $0x28] sm:$0xff] %vm413, 0.0
        %420 = vst.msk [vmem:[#allocation5 + $0x30] sm:$0xff] %vm413, 0.0
        %v421 = vld [vmem:[%s1] sm:$0xff]
        %v422 = vld [vmem:[%s1 + $0x8] sm:$0xff]
        %v423 = vld [vmem:[%s1 + $0x10] sm:$0xff]
        %v424 = vld [vmem:[%s1 + $0x18] sm:$0xff]
        %v425 = vld [vmem:[%s1 + $0x20] sm:$0xff]
        %v426 = vld [vmem:[%s1 + $0x28] sm:$0xff]
        %v427 = vld [vmem:[%s1 + $0x30] sm:$0xff]
        %v428 = vld [vmem:[%s1 + $0x38] sm:$0xff]
        %v429 = vld [vmem:[%s1 + $0x40] sm:$0xff]
        %v430 = vld [vmem:[%s1 + $0x48] sm:$0xff]
        %v431 = vld [vmem:[%s1 + $0x50] sm:$0xff]
        %v432 = vld [vmem:[%s1 + $0x58] sm:$0xff]
        %v433 = vld [vmem:[%s1 + $0x60] sm:$0xf]
        %v434 = vld [vmem:[%s383] sm:$0xff]
        %v435 = vld [vmem:[%s383 + $0x8] sm:$0xff]
        %v436 = vld [vmem:[%s383 + $0x10] sm:$0xff]
        %v437 = vld [vmem:[%s383 + $0x18] sm:$0xff]
        %v438 = vld [vmem:[%s383 + $0x20] sm:$0xff]
        %v439 = vld [vmem:[%s383 + $0x28] sm:$0xff]
        %v440 = vld [vmem:[%s383 + $0x30] sm:$0xff]
        %v441 = vld [vmem:[%s383 + $0x38] sm:$0xff]
        %v442 = vld [vmem:[%s383 + $0x40] sm:$0xff]
        %v443 = vld [vmem:[%s383 + $0x48] sm:$0xff]
        %v444 = vld [vmem:[%s383 + $0x50] sm:$0xff]
        %v445 = vld [vmem:[%s383 + $0x58] sm:$0xff]
        %v446 = vld [vmem:[%s383 + $0x60] sm:$0xff]
        %v447 = vld [vmem:[%s383 + $0x68] sm:$0xff]
        %v448 = vld [vmem:[%s383 + $0x70] sm:$0xff]
        %v449 = vld [vmem:[%s383 + $0x78] sm:$0xff]
        %v450 = vld [vmem:[%s383 + $0x80] sm:$0xff]
        %v451 = vld [vmem:[%s383 + $0x88] sm:$0xff]
        %v452 = vld [vmem:[%s383 + $0x90] sm:$0xff]
        %v453 = vld [vmem:[%s383 + $0x98] sm:$0xff]
        %v454 = vld [vmem:[%s383 + $0xa0] sm:$0xff]
        %v455 = vld [vmem:[%s383 + $0xa8] sm:$0xff]
        %v456 = vld [vmem:[%s383 + $0xb0] sm:$0xff]
        %v457 = vld [vmem:[%s383 + $0xb8] sm:$0xff]
        %v458 = vld [vmem:[%s383 + $0xc0] sm:$0xff]
        %v459 = vld [vmem:[%s383 + $0xc8] sm:$0xff]
        %v460 = vld [vmem:[%s383 + $0xd0] sm:$0xff]
        %v461 = vld [vmem:[%s383 + $0xd8] sm:$0xff]
        %v462 = vld [vmem:[%s383 + $0xe0] sm:$0xff]
        %v463 = vld [vmem:[%s383 + $0xe8] sm:$0xff]
        %v464 = vld [vmem:[%s383 + $0xf0] sm:$0xff]
        %v465 = vld [vmem:[%s383 + $0xf8] sm:$0xff]
        %v466 = vld [vmem:[%s383 + $0x1] sm:$0xff]
        %v467 = vld [vmem:[%s383 + $0x9] sm:$0xff]
        %v468 = vld [vmem:[%s383 + $0x11] sm:$0xff]
        %v469 = vld [vmem:[%s383 + $0x19] sm:$0xff]
        %v470 = vld [vmem:[%s383 + $0x21] sm:$0xff]
        %v471 = vld [vmem:[%s383 + $0x29] sm:$0xff]
        %v472 = vld [vmem:[%s383 + $0x31] sm:$0xff]
        %v473 = vld [vmem:[%s383 + $0x39] sm:$0xff]
        %v474 = vld [vmem:[%s383 + $0x41] sm:$0xff]
        %v475 = vld [vmem:[%s383 + $0x49] sm:$0xff]
        %v476 = vld [vmem:[%s383 + $0x51] sm:$0xff]
        %v477 = vld [vmem:[%s383 + $0x59] sm:$0xff]
        %v478 = vld [vmem:[%s383 + $0x61] sm:$0xff]
        %v479 = vld [vmem:[%s383 + $0x69] sm:$0xff]
        %v480 = vld [vmem:[%s383 + $0x71] sm:$0xff]
        %v481 = vld [vmem:[%s383 + $0x79] sm:$0xff]
        %v482 = vld [vmem:[%s383 + $0x81] sm:$0xff]
        %v483 = vld [vmem:[%s383 + $0x89] sm:$0xff]
        %v484 = vld [vmem:[%s383 + $0x91] sm:$0xff]
        %v485 = vld [vmem:[%s383 + $0x99] sm:$0xff]
        %v486 = vld [vmem:[%s383 + $0xa1] sm:$0xff]
        %v487 = vld [vmem:[%s383 + $0xa9] sm:$0xff]
        %v488 = vld [vmem:[%s383 + $0xb1] sm:$0xff]
        %v489 = vld [vmem:[%s383 + $0xb9] sm:$0xff]
        %v490 = vld [vmem:[%s383 + $0xc1] sm:$0xff]
        %v491 = vld [vmem:[%s383 + $0xc9] sm:$0xff]
        %v492 = vld [vmem:[%s383 + $0xd1] sm:$0xff]
        %v493 = vld [vmem:[%s383 + $0xd9] sm:$0xff]
        %v494 = vld [vmem:[%s383 + $0xe1] sm:$0xff]
        %v495 = vld [vmem:[%s383 + $0xe9] sm:$0xff]
        %v496 = vld [vmem:[%s383 + $0xf1] sm:$0xff]
        %v497 = vld [vmem:[%s383 + $0xf9] sm:$0xff]
        %v498 = vld [vmem:[%s383 + $0x2] sm:$0xff]
        %v499 = vld [vmem:[%s383 + $0xa] sm:$0xff]
        %v500 = vld [vmem:[%s383 + $0x12] sm:$0xff]
        %v501 = vld [vmem:[%s383 + $0x1a] sm:$0xff]
        %v502 = vld [vmem:[%s383 + $0x22] sm:$0xff]
        %v503 = vld [vmem:[%s383 + $0x2a] sm:$0xff]
        %v504 = vld [vmem:[%s383 + $0x32] sm:$0xff]
        %v505 = vld [vmem:[%s383 + $0x3a] sm:$0xff]
        %v506 = vld [vmem:[%s383 + $0x42] sm:$0xff]
        %v507 = vld [vmem:[%s383 + $0x4a] sm:$0xff]
        %v508 = vld [vmem:[%s383 + $0x52] sm:$0xff]
        %v509 = vld [vmem:[%s383 + $0x5a] sm:$0xff]
        %v510 = vld [vmem:[%s383 + $0x62] sm:$0xff]
        %v511 = vld [vmem:[%s383 + $0x6a] sm:$0xff]
        %v512 = vld [vmem:[%s383 + $0x72] sm:$0xff]
        %v513 = vld [vmem:[%s383 + $0x7a] sm:$0xff]
        %v514 = vld [vmem:[%s383 + $0x82] sm:$0xff]
        %v515 = vld [vmem:[%s383 + $0x8a] sm:$0xff]
        %v516 = vld [vmem:[%s383 + $0x92] sm:$0xff]
        %v517 = vld [vmem:[%s383 + $0x9a] sm:$0xff]
        %v518 = vld [vmem:[%s383 + $0xa2] sm:$0xff]
        %v519 = vld [vmem:[%s383 + $0xaa] sm:$0xff]
        %v520 = vld [vmem:[%s383 + $0xb2] sm:$0xff]
        %v521 = vld [vmem:[%s383 + $0xba] sm:$0xff]
        %v522 = vld [vmem:[%s383 + $0xc2] sm:$0xff]
        %v523 = vld [vmem:[%s383 + $0xca] sm:$0xff]
        %v524 = vld [vmem:[%s383 + $0xd2] sm:$0xff]
        %v525 = vld [vmem:[%s383 + $0xda] sm:$0xff]
        %v526 = vld [vmem:[%s383 + $0xe2] sm:$0xff]
        %v527 = vld [vmem:[%s383 + $0xea] sm:$0xff]
        %v528 = vld [vmem:[%s383 + $0xf2] sm:$0xff]
        %v529 = vld [vmem:[%s383 + $0xfa] sm:$0xff]
        %v530 = vld [vmem:[%s383 + $0x3] sm:$0xff]
        %v531 = vld [vmem:[%s383 + $0xb] sm:$0xff]
        %v532 = vld [vmem:[%s383 + $0x13] sm:$0xff]
        %v533 = vld [vmem:[%s383 + $0x1b] sm:$0xff]
        %v534 = vld [vmem:[%s383 + $0x23] sm:$0xff]
        %v535 = vld [vmem:[%s383 + $0x2b] sm:$0xff]
        %v536 = vld [vmem:[%s383 + $0x33] sm:$0xff]
        %v537 = vld [vmem:[%s383 + $0x3b] sm:$0xff]
        %v538 = vld [vmem:[%s383 + $0x43] sm:$0xff]
        %v539 = vld [vmem:[%s383 + $0x4b] sm:$0xff]
        %v540 = vld [vmem:[%s383 + $0x53] sm:$0xff]
        %v541 = vld [vmem:[%s383 + $0x5b] sm:$0xff]
        %v542 = vld [vmem:[%s383 + $0x63] sm:$0xff]
        %v543 = vld [vmem:[%s383 + $0x6b] sm:$0xff]
        %v544 = vld [vmem:[%s383 + $0x73] sm:$0xff]
        %v545 = vld [vmem:[%s383 + $0x7b] sm:$0xff]
        %v546 = vld [vmem:[%s383 + $0x83] sm:$0xff]
        %v547 = vld [vmem:[%s383 + $0x8b] sm:$0xff]
        %v548 = vld [vmem:[%s383 + $0x93] sm:$0xff]
        %v549 = vld [vmem:[%s383 + $0x9b] sm:$0xff]
        %v550 = vld [vmem:[%s383 + $0xa3] sm:$0xff]
        %v551 = vld [vmem:[%s383 + $0xab] sm:$0xff]
        %v552 = vld [vmem:[%s383 + $0xb3] sm:$0xff]
        %v553 = vld [vmem:[%s383 + $0xbb] sm:$0xff]
        %v554 = vld [vmem:[%s383 + $0xc3] sm:$0xff]
        %v555 = vld [vmem:[%s383 + $0xcb] sm:$0xff]
        %v556 = vld [vmem:[%s383 + $0xd3] sm:$0xff]
        %v557 = vld [vmem:[%s383 + $0xdb] sm:$0xff]
        %v558 = vld [vmem:[%s383 + $0xe3] sm:$0xff]
        %v559 = vld [vmem:[%s383 + $0xeb] sm:$0xff]
        %v560 = vld [vmem:[%s383 + $0xf3] sm:$0xff]
        %v561 = vld [vmem:[%s383 + $0xfb] sm:$0xff]
        %v562 = vld [vmem:[%s383 + $0x4] sm:$0xff]
        %v563 = vld [vmem:[%s383 + $0xc] sm:$0xff]
        %v564 = vld [vmem:[%s383 + $0x14] sm:$0xff]
        %v565 = vld [vmem:[%s383 + $0x1c] sm:$0xff]
        %v566 = vld [vmem:[%s383 + $0x24] sm:$0xff]
        %v567 = vld [vmem:[%s383 + $0x2c] sm:$0xff]
        %v568 = vld [vmem:[%s383 + $0x34] sm:$0xff]
        %v569 = vld [vmem:[%s383 + $0x3c] sm:$0xff]
        %v570 = vld [vmem:[%s383 + $0x44] sm:$0xff]
        %v571 = vld [vmem:[%s383 + $0x4c] sm:$0xff]
        %v572 = vld [vmem:[%s383 + $0x54] sm:$0xff]
        %v573 = vld [vmem:[%s383 + $0x5c] sm:$0xff]
        %v574 = vld [vmem:[%s383 + $0x64] sm:$0xff]
        %v575 = vld [vmem:[%s383 + $0x6c] sm:$0xff]
        %v576 = vld [vmem:[%s383 + $0x74] sm:$0xff]
        %v577 = vld [vmem:[%s383 + $0x7c] sm:$0xff]
        %v578 = vld [vmem:[%s383 + $0x84] sm:$0xff]
        %v579 = vld [vmem:[%s383 + $0x8c] sm:$0xff]
        %v580 = vld [vmem:[%s383 + $0x94] sm:$0xff]
        %v581 = vld [vmem:[%s383 + $0x9c] sm:$0xff]
        %v582 = vld [vmem:[%s383 + $0xa4] sm:$0xff]
        %v583 = vld [vmem:[%s383 + $0xac] sm:$0xff]
        %v584 = vld [vmem:[%s383 + $0xb4] sm:$0xff]
        %v585 = vld [vmem:[%s383 + $0xbc] sm:$0xff]
        %v586 = vld [vmem:[%s383 + $0xc4] sm:$0xff]
        %v587 = vld [vmem:[%s383 + $0xcc] sm:$0xff]
        %v588 = vld [vmem:[%s383 + $0xd4] sm:$0xff]
        %v589 = vld [vmem:[%s383 + $0xdc] sm:$0xff]
        %v590 = vld [vmem:[%s383 + $0xe4] sm:$0xff]
        %v591 = vld [vmem:[%s383 + $0xec] sm:$0xff]
        %v592 = vld [vmem:[%s383 + $0xf4] sm:$0xff]
        %v593 = vld [vmem:[%s383 + $0xfc] sm:$0xff]
        %v594 = vld [vmem:[%s383 + $0x100] sm:$0xff]
        %v595 = vld [vmem:[%s383 + $0x108] sm:$0xff]
        %v596 = vld [vmem:[%s383 + $0x110] sm:$0xff]
        %v597 = vld [vmem:[%s383 + $0x101] sm:$0xff]
        %v598 = vld [vmem:[%s383 + $0x109] sm:$0xff]
        %v599 = vld [vmem:[%s383 + $0x111] sm:$0xff]
        %v600 = vld [vmem:[%s383 + $0x102] sm:$0xff]
        %v601 = vld [vmem:[%s383 + $0x10a] sm:$0xff]
        %v602 = vld [vmem:[%s383 + $0x112] sm:$0xff]
        %v603 = vld [vmem:[%s383 + $0x103] sm:$0xff]
        %v604 = vld [vmem:[%s383 + $0x10b] sm:$0xff]
        %v605 = vld [vmem:[%s383 + $0x113] sm:$0xff]
        %v606 = vld [vmem:[%s383 + $0x104] sm:$0xff]
        %v607 = vld [vmem:[%s383 + $0x10c] sm:$0xff]
        %v608 = vld [vmem:[%s383 + $0x114] sm:$0xff]
        %v609 = vld [vmem:[%s383 + $0x118] sm:$0xff]
        %v610 = vld [vmem:[%s383 + $0x120] sm:$0xff]
        %v611 = vld [vmem:[%s383 + $0x128] sm:$0xff]
        %v612 = vld [vmem:[%s383 + $0x119] sm:$0xff]
        %v613 = vld [vmem:[%s383 + $0x121] sm:$0xff]
        %v614 = vld [vmem:[%s383 + $0x129] sm:$0xff]
        %v615 = vld [vmem:[%s383 + $0x11a] sm:$0xff]
        %v616 = vld [vmem:[%s383 + $0x122] sm:$0xff]
        %v617 = vld [vmem:[%s383 + $0x12a] sm:$0xff]
        %v618 = vld [vmem:[%s383 + $0x11b] sm:$0xff]
        %v619 = vld [vmem:[%s383 + $0x123] sm:$0xff]
        %v620 = vld [vmem:[%s383 + $0x12b] sm:$0xff]
        %v621 = vld [vmem:[%s383 + $0x11c] sm:$0xff]
        %v622 = vld [vmem:[%s383 + $0x124] sm:$0xff]
        %v623 = vld [vmem:[%s383 + $0x12c] sm:$0xff]
        %v624 = vld [vmem:[%s383 + $0x130] sm:$0xff]
        %v625 = vld [vmem:[%s383 + $0x138] sm:$0xff]
        %v626 = vld [vmem:[%s383 + $0x140] sm:$0xff]
        %v627 = vld [vmem:[%s383 + $0x131] sm:$0xff]
        %v628 = vld [vmem:[%s383 + $0x139] sm:$0xff]
        %v629 = vld [vmem:[%s383 + $0x141] sm:$0xff]
        %v630 = vld [vmem:[%s383 + $0x132] sm:$0xff]
        %v631 = vld [vmem:[%s383 + $0x13a] sm:$0xff]
        %v632 = vld [vmem:[%s383 + $0x142] sm:$0xff]
        %v633 = vld [vmem:[%s383 + $0x133] sm:$0xff]
        %v634 = vld [vmem:[%s383 + $0x13b] sm:$0xff]
        %v635 = vld [vmem:[%s383 + $0x143] sm:$0xff]
        %v636 = vld [vmem:[%s383 + $0x134] sm:$0xff]
        %v637 = vld [vmem:[%s383 + $0x13c] sm:$0xff]
        %v638 = vld [vmem:[%s383 + $0x144] sm:$0xff]
        %v639 = vld [vmem:[%s383 + $0x148] sm:$0xff]
        %v640 = vld [vmem:[%s383 + $0x150] sm:$0xff]
        %v641 = vld [vmem:[%s383 + $0x158] sm:$0xff]
        %v642 = vld [vmem:[%s383 + $0x149] sm:$0xff]
        %v643 = vld [vmem:[%s383 + $0x151] sm:$0xff]
        %v644 = vld [vmem:[%s383 + $0x159] sm:$0xff]
        %v645 = vld [vmem:[%s383 + $0x14a] sm:$0xff]
        %v646 = vld [vmem:[%s383 + $0x152] sm:$0xff]
        %v647 = vld [vmem:[%s383 + $0x15a] sm:$0xff]
        %v648 = vld [vmem:[%s383 + $0x14b] sm:$0xff]
        %v649 = vld [vmem:[%s383 + $0x153] sm:$0xff]
        %v650 = vld [vmem:[%s383 + $0x15b] sm:$0xff]
        %v651 = vld [vmem:[%s383 + $0x14c] sm:$0xff]
        %v652 = vld [vmem:[%s383 + $0x154] sm:$0xff]
        %v653 = vld [vmem:[%s383 + $0x15c] sm:$0xff]
        %686 = vrot.lane.b32.xlu0 %v466, 4
        %v687 = vpop.permute.xlu0 %686
        %688 = vrot.lane.b32.xlu0 %v467, 4
        %v689 = vpop.permute.xlu0 %688
        %690 = vrot.lane.b32.xlu0 %v468, 4
        %v691 = vpop.permute.xlu0 %690
        %692 = vrot.lane.b32.xlu0 %v469, 4
        %v693 = vpop.permute.xlu0 %692
        %694 = vrot.lane.b32.xlu0 %v470, 4
        %v695 = vpop.permute.xlu0 %694
        %696 = vrot.lane.b32.xlu0 %v471, 4
        %v697 = vpop.permute.xlu0 %696
        %698 = vrot.lane.b32.xlu0 %v472, 4
        %v699 = vpop.permute.xlu0 %698
        %700 = vrot.lane.b32.xlu0 %v473, 4
        %v701 = vpop.permute.xlu0 %700
        %702 = vrot.lane.b32.xlu0 %v474, 4
        %v703 = vpop.permute.xlu0 %702
        %704 = vrot.lane.b32.xlu0 %v475, 4
        %v705 = vpop.permute.xlu0 %704
        %706 = vrot.lane.b32.xlu0 %v476, 4
        %v707 = vpop.permute.xlu0 %706
        %708 = vrot.lane.b32.xlu0 %v477, 4
        %v709 = vpop.permute.xlu0 %708
        %710 = vrot.lane.b32.xlu0 %v478, 4
        %v711 = vpop.permute.xlu0 %710
        %712 = vrot.lane.b32.xlu0 %v479, 4
        %v713 = vpop.permute.xlu0 %712
        %714 = vrot.lane.b32.xlu0 %v480, 4
        %v715 = vpop.permute.xlu0 %714
        %716 = vrot.lane.b32.xlu0 %v481, 4
        %v717 = vpop.permute.xlu0 %716
        %718 = vrot.lane.b32.xlu0 %v482, 4
        %v719 = vpop.permute.xlu0 %718
        %720 = vrot.lane.b32.xlu0 %v483, 4
        %v721 = vpop.permute.xlu0 %720
        %722 = vrot.lane.b32.xlu0 %v484, 4
        %v723 = vpop.permute.xlu0 %722
        %724 = vrot.lane.b32.xlu0 %v485, 4
        %v725 = vpop.permute.xlu0 %724
        %726 = vrot.lane.b32.xlu0 %v486, 4
        %v727 = vpop.permute.xlu0 %726
        %728 = vrot.lane.b32.xlu0 %v487, 4
        %v729 = vpop.permute.xlu0 %728
        %730 = vrot.lane.b32.xlu0 %v488, 4
        %v731 = vpop.permute.xlu0 %730
        %732 = vrot.lane.b32.xlu0 %v489, 4
        %v733 = vpop.permute.xlu0 %732
        %734 = vrot.lane.b32.xlu0 %v490, 4
        %v735 = vpop.permute.xlu0 %734
        %736 = vrot.lane.b32.xlu0 %v491, 4
        %v737 = vpop.permute.xlu0 %736
        %738 = vrot.lane.b32.xlu0 %v492, 4
        %v739 = vpop.permute.xlu0 %738
        %740 = vrot.lane.b32.xlu0 %v493, 4
        %v741 = vpop.permute.xlu0 %740
        %742 = vrot.lane.b32.xlu0 %v494, 4
        %v743 = vpop.permute.xlu0 %742
        %744 = vrot.lane.b32.xlu0 %v495, 4
        %v745 = vpop.permute.xlu0 %744
        %746 = vrot.lane.b32.xlu0 %v496, 4
        %v747 = vpop.permute.xlu0 %746
        %748 = vrot.lane.b32.xlu0 %v497, 4
        %v749 = vpop.permute.xlu0 %748
        %814 = vrot.lane.b32.xlu0 %v498, 8
        %v815 = vpop.permute.xlu0 %814
        %816 = vrot.lane.b32.xlu0 %v499, 8
        %v817 = vpop.permute.xlu0 %816
        %818 = vrot.lane.b32.xlu0 %v500, 8
        %v819 = vpop.permute.xlu0 %818
        %820 = vrot.lane.b32.xlu0 %v501, 8
        %v821 = vpop.permute.xlu0 %820
        %822 = vrot.lane.b32.xlu0 %v502, 8
        %v823 = vpop.permute.xlu0 %822
        %824 = vrot.lane.b32.xlu0 %v503, 8
        %v825 = vpop.permute.xlu0 %824
        %826 = vrot.lane.b32.xlu0 %v504, 8
        %v827 = vpop.permute.xlu0 %826
        %828 = vrot.lane.b32.xlu0 %v505, 8
        %v829 = vpop.permute.xlu0 %828
        %830 = vrot.lane.b32.xlu0 %v506, 8
        %v831 = vpop.permute.xlu0 %830
        %832 = vrot.lane.b32.xlu0 %v507, 8
        %v833 = vpop.permute.xlu0 %832
        %834 = vrot.lane.b32.xlu0 %v508, 8
        %v835 = vpop.permute.xlu0 %834
        %836 = vrot.lane.b32.xlu0 %v509, 8
        %v837 = vpop.permute.xlu0 %836
        %838 = vrot.lane.b32.xlu0 %v510, 8
        %v839 = vpop.permute.xlu0 %838
        %840 = vrot.lane.b32.xlu0 %v511, 8
        %v841 = vpop.permute.xlu0 %840
        %842 = vrot.lane.b32.xlu0 %v512, 8
        %v843 = vpop.permute.xlu0 %842
        %844 = vrot.lane.b32.xlu0 %v513, 8
        %v845 = vpop.permute.xlu0 %844
        %846 = vrot.lane.b32.xlu0 %v514, 8
        %v847 = vpop.permute.xlu0 %846
        %848 = vrot.lane.b32.xlu0 %v515, 8
        %v849 = vpop.permute.xlu0 %848
        %850 = vrot.lane.b32.xlu0 %v516, 8
        %v851 = vpop.permute.xlu0 %850
        %852 = vrot.lane.b32.xlu0 %v517, 8
        %v853 = vpop.permute.xlu0 %852
        %854 = vrot.lane.b32.xlu0 %v518, 8
        %v855 = vpop.permute.xlu0 %854
        %856 = vrot.lane.b32.xlu0 %v519, 8
        %v857 = vpop.permute.xlu0 %856
        %858 = vrot.lane.b32.xlu0 %v520, 8
        %v859 = vpop.permute.xlu0 %858
        %860 = vrot.lane.b32.xlu0 %v521, 8
        %v861 = vpop.permute.xlu0 %860
        %862 = vrot.lane.b32.xlu0 %v522, 8
        %v863 = vpop.permute.xlu0 %862
        %864 = vrot.lane.b32.xlu0 %v523, 8
        %v865 = vpop.permute.xlu0 %864
        %866 = vrot.lane.b32.xlu0 %v524, 8
        %v867 = vpop.permute.xlu0 %866
        %868 = vrot.lane.b32.xlu0 %v525, 8
        %v869 = vpop.permute.xlu0 %868
        %870 = vrot.lane.b32.xlu0 %v526, 8
        %v871 = vpop.permute.xlu0 %870
        %872 = vrot.lane.b32.xlu0 %v527, 8
        %v873 = vpop.permute.xlu0 %872
        %874 = vrot.lane.b32.xlu0 %v528, 8
        %v875 = vpop.permute.xlu0 %874
        %876 = vrot.lane.b32.xlu0 %v529, 8
        %v877 = vpop.permute.xlu0 %876
        %942 = vrot.lane.b32.xlu0 %v530, 12
        %v943 = vpop.permute.xlu0 %942
        %944 = vrot.lane.b32.xlu0 %v531, 12
        %v945 = vpop.permute.xlu0 %944
        %946 = vrot.lane.b32.xlu0 %v532, 12
        %v947 = vpop.permute.xlu0 %946
        %948 = vrot.lane.b32.xlu0 %v533, 12
        %v949 = vpop.permute.xlu0 %948
        %950 = vrot.lane.b32.xlu0 %v534, 12
        %v951 = vpop.permute.xlu0 %950
        %952 = vrot.lane.b32.xlu0 %v535, 12
        %v953 = vpop.permute.xlu0 %952
        %954 = vrot.lane.b32.xlu0 %v536, 12
        %v955 = vpop.permute.xlu0 %954
        %956 = vrot.lane.b32.xlu0 %v537, 12
        %v957 = vpop.permute.xlu0 %956
        %958 = vrot.lane.b32.xlu0 %v538, 12
        %v959 = vpop.permute.xlu0 %958
        %960 = vrot.lane.b32.xlu0 %v539, 12
        %v961 = vpop.permute.xlu0 %960
        %962 = vrot.lane.b32.xlu0 %v540, 12
        %v963 = vpop.permute.xlu0 %962
        %964 = vrot.lane.b32.xlu0 %v541, 12
        %v965 = vpop.permute.xlu0 %964
        %966 = vrot.lane.b32.xlu0 %v542, 12
        %v967 = vpop.permute.xlu0 %966
        %968 = vrot.lane.b32.xlu0 %v543, 12
        %v969 = vpop.permute.xlu0 %968
        %970 = vrot.lane.b32.xlu0 %v544, 12
        %v971 = vpop.permute.xlu0 %970
        %972 = vrot.lane.b32.xlu0 %v545, 12
        %v973 = vpop.permute.xlu0 %972
        %974 = vrot.lane.b32.xlu0 %v546, 12
        %v975 = vpop.permute.xlu0 %974
        %976 = vrot.lane.b32.xlu0 %v547, 12
        %v977 = vpop.permute.xlu0 %976
        %978 = vrot.lane.b32.xlu0 %v548, 12
        %v979 = vpop.permute.xlu0 %978
        %980 = vrot.lane.b32.xlu0 %v549, 12
        %v981 = vpop.permute.xlu0 %980
        %982 = vrot.lane.b32.xlu0 %v550, 12
        %v983 = vpop.permute.xlu0 %982
        %984 = vrot.lane.b32.xlu0 %v551, 12
        %v985 = vpop.permute.xlu0 %984
        %986 = vrot.lane.b32.xlu0 %v552, 12
        %v987 = vpop.permute.xlu0 %986
        %988 = vrot.lane.b32.xlu0 %v553, 12
        %v989 = vpop.permute.xlu0 %988
        %990 = vrot.lane.b32.xlu0 %v554, 12
        %v991 = vpop.permute.xlu0 %990
        %992 = vrot.lane.b32.xlu0 %v555, 12
        %v993 = vpop.permute.xlu0 %992
        %994 = vrot.lane.b32.xlu0 %v556, 12
        %v995 = vpop.permute.xlu0 %994
        %996 = vrot.lane.b32.xlu0 %v557, 12
        %v997 = vpop.permute.xlu0 %996
        %998 = vrot.lane.b32.xlu0 %v558, 12
        %v999 = vpop.permute.xlu0 %998
        %1000 = vrot.lane.b32.xlu0 %v559, 12
        %v1001 = vpop.permute.xlu0 %1000
        %1002 = vrot.lane.b32.xlu0 %v560, 12
        %v1003 = vpop.permute.xlu0 %1002
        %1004 = vrot.lane.b32.xlu0 %v561, 12
        %v1005 = vpop.permute.xlu0 %1004
        %1070 = vrot.lane.b32.xlu0 %v562, 16
        %v1071 = vpop.permute.xlu0 %1070
        %1072 = vrot.lane.b32.xlu0 %v563, 16
        %v1073 = vpop.permute.xlu0 %1072
        %1074 = vrot.lane.b32.xlu0 %v564, 16
        %v1075 = vpop.permute.xlu0 %1074
        %1076 = vrot.lane.b32.xlu0 %v565, 16
        %v1077 = vpop.permute.xlu0 %1076
        %1078 = vrot.lane.b32.xlu0 %v566, 16
        %v1079 = vpop.permute.xlu0 %1078
        %1080 = vrot.lane.b32.xlu0 %v567, 16
        %v1081 = vpop.permute.xlu0 %1080
        %1082 = vrot.lane.b32.xlu0 %v568, 16
        %v1083 = vpop.permute.xlu0 %1082
        %1084 = vrot.lane.b32.xlu0 %v569, 16
        %v1085 = vpop.permute.xlu0 %1084
        %1086 = vrot.lane.b32.xlu0 %v570, 16
        %v1087 = vpop.permute.xlu0 %1086
        %1088 = vrot.lane.b32.xlu0 %v571, 16
        %v1089 = vpop.permute.xlu0 %1088
        %1090 = vrot.lane.b32.xlu0 %v572, 16
        %v1091 = vpop.permute.xlu0 %1090
        %1092 = vrot.lane.b32.xlu0 %v573, 16
        %v1093 = vpop.permute.xlu0 %1092
        %1094 = vrot.lane.b32.xlu0 %v574, 16
        %v1095 = vpop.permute.xlu0 %1094
        %1096 = vrot.lane.b32.xlu0 %v575, 16
        %v1097 = vpop.permute.xlu0 %1096
        %1098 = vrot.lane.b32.xlu0 %v576, 16
        %v1099 = vpop.permute.xlu0 %1098
        %1100 = vrot.lane.b32.xlu0 %v577, 16
        %v1101 = vpop.permute.xlu0 %1100
        %1102 = vrot.lane.b32.xlu0 %v578, 16
        %v1103 = vpop.permute.xlu0 %1102
        %1104 = vrot.lane.b32.xlu0 %v579, 16
        %v1105 = vpop.permute.xlu0 %1104
        %1106 = vrot.lane.b32.xlu0 %v580, 16
        %v1107 = vpop.permute.xlu0 %1106
        %1108 = vrot.lane.b32.xlu0 %v581, 16
        %v1109 = vpop.permute.xlu0 %1108
        %1110 = vrot.lane.b32.xlu0 %v582, 16
        %v1111 = vpop.permute.xlu0 %1110
        %1112 = vrot.lane.b32.xlu0 %v583, 16
        %v1113 = vpop.permute.xlu0 %1112
        %1114 = vrot.lane.b32.xlu0 %v584, 16
        %v1115 = vpop.permute.xlu0 %1114
        %1116 = vrot.lane.b32.xlu0 %v585, 16
        %v1117 = vpop.permute.xlu0 %1116
        %1118 = vrot.lane.b32.xlu0 %v586, 16
        %v1119 = vpop.permute.xlu0 %1118
        %1120 = vrot.lane.b32.xlu0 %v587, 16
        %v1121 = vpop.permute.xlu0 %1120
        %1122 = vrot.lane.b32.xlu0 %v588, 16
        %v1123 = vpop.permute.xlu0 %1122
        %1124 = vrot.lane.b32.xlu0 %v589, 16
        %v1125 = vpop.permute.xlu0 %1124
        %1126 = vrot.lane.b32.xlu0 %v590, 16
        %v1127 = vpop.permute.xlu0 %1126
        %1128 = vrot.lane.b32.xlu0 %v591, 16
        %v1129 = vpop.permute.xlu0 %1128
        %1130 = vrot.lane.b32.xlu0 %v592, 16
        %v1131 = vpop.permute.xlu0 %1130
        %1132 = vrot.lane.b32.xlu0 %v593, 16
        %v1133 = vpop.permute.xlu0 %1132
        %1198 = vrot.lane.b32.xlu0 %v437, 20
        %v1199 = vpop.permute.xlu0 %1198
        %1200 = vrot.lane.b32.xlu0 %v438, 20
        %v1201 = vpop.permute.xlu0 %1200
        %1202 = vrot.lane.b32.xlu0 %v439, 20
        %v1203 = vpop.permute.xlu0 %1202
        %1204 = vrot.lane.b32.xlu0 %v440, 20
        %v1205 = vpop.permute.xlu0 %1204
        %1206 = vrot.lane.b32.xlu0 %v441, 20
        %v1207 = vpop.permute.xlu0 %1206
        %1208 = vrot.lane.b32.xlu0 %v442, 20
        %v1209 = vpop.permute.xlu0 %1208
        %1210 = vrot.lane.b32.xlu0 %v443, 20
        %v1211 = vpop.permute.xlu0 %1210
        %1212 = vrot.lane.b32.xlu0 %v444, 20
        %v1213 = vpop.permute.xlu0 %1212
        %1214 = vrot.lane.b32.xlu0 %v445, 20
        %v1215 = vpop.permute.xlu0 %1214
        %1216 = vrot.lane.b32.xlu0 %v446, 20
        %v1217 = vpop.permute.xlu0 %1216
        %1218 = vrot.lane.b32.xlu0 %v447, 20
        %v1219 = vpop.permute.xlu0 %1218
        %1220 = vrot.lane.b32.xlu0 %v448, 20
        %v1221 = vpop.permute.xlu0 %1220
        %1222 = vrot.lane.b32.xlu0 %v449, 20
        %v1223 = vpop.permute.xlu0 %1222
        %1224 = vrot.lane.b32.xlu0 %v450, 20
        %v1225 = vpop.permute.xlu0 %1224
        %1226 = vrot.lane.b32.xlu0 %v451, 20
        %v1227 = vpop.permute.xlu0 %1226
        %1228 = vrot.lane.b32.xlu0 %v452, 20
        %v1229 = vpop.permute.xlu0 %1228
        %1230 = vrot.lane.b32.xlu0 %v453, 20
        %v1231 = vpop.permute.xlu0 %1230
        %1232 = vrot.lane.b32.xlu0 %v454, 20
        %v1233 = vpop.permute.xlu0 %1232
        %1234 = vrot.lane.b32.xlu0 %v455, 20
        %v1235 = vpop.permute.xlu0 %1234
        %1236 = vrot.lane.b32.xlu0 %v456, 20
        %v1237 = vpop.permute.xlu0 %1236
        %1238 = vrot.lane.b32.xlu0 %v457, 20
        %v1239 = vpop.permute.xlu0 %1238
        %1240 = vrot.lane.b32.xlu0 %v458, 20
        %v1241 = vpop.permute.xlu0 %1240
        %1242 = vrot.lane.b32.xlu0 %v459, 20
        %v1243 = vpop.permute.xlu0 %1242
        %1244 = vrot.lane.b32.xlu0 %v460, 20
        %v1245 = vpop.permute.xlu0 %1244
        %1246 = vrot.lane.b32.xlu0 %v461, 20
        %v1247 = vpop.permute.xlu0 %1246
        %1248 = vrot.lane.b32.xlu0 %v462, 20
        %v1249 = vpop.permute.xlu0 %1248
        %1250 = vrot.lane.b32.xlu0 %v463, 20
        %v1251 = vpop.permute.xlu0 %1250
        %1252 = vrot.lane.b32.xlu0 %v464, 20
        %v1253 = vpop.permute.xlu0 %1252
        %1254 = vrot.lane.b32.xlu0 %v465, 20
        %v1255 = vpop.permute.xlu0 %1254
        %1256 = vrot.lane.b32.xlu0 %v594, 20
        %v1257 = vpop.permute.xlu0 %1256
        %1258 = vrot.lane.b32.xlu0 %v595, 20
        %v1259 = vpop.permute.xlu0 %1258
        %1260 = vrot.lane.b32.xlu0 %v596, 20
        %v1261 = vpop.permute.xlu0 %1260
        %1297 = vrot.lane.b32.xlu0 %v469, 24
        %v1298 = vpop.permute.xlu0 %1297
        %1299 = vrot.lane.b32.xlu0 %v470, 24
        %v1300 = vpop.permute.xlu0 %1299
        %1301 = vrot.lane.b32.xlu0 %v471, 24
        %v1302 = vpop.permute.xlu0 %1301
        %1303 = vrot.lane.b32.xlu0 %v472, 24
        %v1304 = vpop.permute.xlu0 %1303
        %1305 = vrot.lane.b32.xlu0 %v473, 24
        %v1306 = vpop.permute.xlu0 %1305
        %1307 = vrot.lane.b32.xlu0 %v474, 24
        %v1308 = vpop.permute.xlu0 %1307
        %1309 = vrot.lane.b32.xlu0 %v475, 24
        %v1310 = vpop.permute.xlu0 %1309
        %1311 = vrot.lane.b32.xlu0 %v476, 24
        %v1312 = vpop.permute.xlu0 %1311
        %1313 = vrot.lane.b32.xlu0 %v477, 24
        %v1314 = vpop.permute.xlu0 %1313
        %1315 = vrot.lane.b32.xlu0 %v478, 24
        %v1316 = vpop.permute.xlu0 %1315
        %1317 = vrot.lane.b32.xlu0 %v479, 24
        %v1318 = vpop.permute.xlu0 %1317
        %1319 = vrot.lane.b32.xlu0 %v480, 24
        %v1320 = vpop.permute.xlu0 %1319
        %1321 = vrot.lane.b32.xlu0 %v481, 24
        %v1322 = vpop.permute.xlu0 %1321
        %1323 = vrot.lane.b32.xlu0 %v482, 24
        %v1324 = vpop.permute.xlu0 %1323
        %1325 = vrot.lane.b32.xlu0 %v483, 24
        %v1326 = vpop.permute.xlu0 %1325
        %1327 = vrot.lane.b32.xlu0 %v484, 24
        %v1328 = vpop.permute.xlu0 %1327
        %1329 = vrot.lane.b32.xlu0 %v485, 24
        %v1330 = vpop.permute.xlu0 %1329
        %1331 = vrot.lane.b32.xlu0 %v486, 24
        %v1332 = vpop.permute.xlu0 %1331
        %1333 = vrot.lane.b32.xlu0 %v487, 24
        %v1334 = vpop.permute.xlu0 %1333
        %1335 = vrot.lane.b32.xlu0 %v488, 24
        %v1336 = vpop.permute.xlu0 %1335
        %1337 = vrot.lane.b32.xlu0 %v489, 24
        %v1338 = vpop.permute.xlu0 %1337
        %1339 = vrot.lane.b32.xlu0 %v490, 24
        %v1340 = vpop.permute.xlu0 %1339
        %1341 = vrot.lane.b32.xlu0 %v491, 24
        %v1342 = vpop.permute.xlu0 %1341
        %1343 = vrot.lane.b32.xlu0 %v492, 24
        %v1344 = vpop.permute.xlu0 %1343
        %1345 = vrot.lane.b32.xlu0 %v493, 24
        %v1346 = vpop.permute.xlu0 %1345
        %1347 = vrot.lane.b32.xlu0 %v494, 24
        %v1348 = vpop.permute.xlu0 %1347
        %1349 = vrot.lane.b32.xlu0 %v495, 24
        %v1350 = vpop.permute.xlu0 %1349
        %1351 = vrot.lane.b32.xlu0 %v496, 24
        %v1352 = vpop.permute.xlu0 %1351
        %1353 = vrot.lane.b32.xlu0 %v497, 24
        %v1354 = vpop.permute.xlu0 %1353
        %1355 = vrot.lane.b32.xlu0 %v597, 24
        %v1356 = vpop.permute.xlu0 %1355
        %1357 = vrot.lane.b32.xlu0 %v598, 24
        %v1358 = vpop.permute.xlu0 %1357
        %1359 = vrot.lane.b32.xlu0 %v599, 24
        %v1360 = vpop.permute.xlu0 %1359
        %1396 = vrot.lane.b32.xlu0 %v501, 28
        %v1397 = vpop.permute.xlu0 %1396
        %1398 = vrot.lane.b32.xlu0 %v502, 28
        %v1399 = vpop.permute.xlu0 %1398
        %1400 = vrot.lane.b32.xlu0 %v503, 28
        %v1401 = vpop.permute.xlu0 %1400
        %1402 = vrot.lane.b32.xlu0 %v504, 28
        %v1403 = vpop.permute.xlu0 %1402
        %1404 = vrot.lane.b32.xlu0 %v505, 28
        %v1405 = vpop.permute.xlu0 %1404
        %1406 = vrot.lane.b32.xlu0 %v506, 28
        %v1407 = vpop.permute.xlu0 %1406
        %1408 = vrot.lane.b32.xlu0 %v507, 28
        %v1409 = vpop.permute.xlu0 %1408
        %1410 = vrot.lane.b32.xlu0 %v508, 28
        %v1411 = vpop.permute.xlu0 %1410
        %1412 = vrot.lane.b32.xlu0 %v509, 28
        %v1413 = vpop.permute.xlu0 %1412
        %1414 = vrot.lane.b32.xlu0 %v510, 28
        %v1415 = vpop.permute.xlu0 %1414
        %1416 = vrot.lane.b32.xlu0 %v511, 28
        %v1417 = vpop.permute.xlu0 %1416
        %1418 = vrot.lane.b32.xlu0 %v512, 28
        %v1419 = vpop.permute.xlu0 %1418
        %1420 = vrot.lane.b32.xlu0 %v513, 28
        %v1421 = vpop.permute.xlu0 %1420
        %1422 = vrot.lane.b32.xlu0 %v514, 28
        %v1423 = vpop.permute.xlu0 %1422
        %1424 = vrot.lane.b32.xlu0 %v515, 28
        %v1425 = vpop.permute.xlu0 %1424
        %1426 = vrot.lane.b32.xlu0 %v516, 28
        %v1427 = vpop.permute.xlu0 %1426
        %1428 = vrot.lane.b32.xlu0 %v517, 28
        %v1429 = vpop.permute.xlu0 %1428
        %1430 = vrot.lane.b32.xlu0 %v518, 28
        %v1431 = vpop.permute.xlu0 %1430
        %1432 = vrot.lane.b32.xlu0 %v519, 28
        %v1433 = vpop.permute.xlu0 %1432
        %1434 = vrot.lane.b32.xlu0 %v520, 28
        %v1435 = vpop.permute.xlu0 %1434
        %1436 = vrot.lane.b32.xlu0 %v521, 28
        %v1437 = vpop.permute.xlu0 %1436
        %1438 = vrot.lane.b32.xlu0 %v522, 28
        %v1439 = vpop.permute.xlu0 %1438
        %1440 = vrot.lane.b32.xlu0 %v523, 28
        %v1441 = vpop.permute.xlu0 %1440
        %1442 = vrot.lane.b32.xlu0 %v524, 28
        %v1443 = vpop.permute.xlu0 %1442
        %1444 = vrot.lane.b32.xlu0 %v525, 28
        %v1445 = vpop.permute.xlu0 %1444
        %1446 = vrot.lane.b32.xlu0 %v526, 28
        %v1447 = vpop.permute.xlu0 %1446
        %1448 = vrot.lane.b32.xlu0 %v527, 28
        %v1449 = vpop.permute.xlu0 %1448
        %1450 = vrot.lane.b32.xlu0 %v528, 28
        %v1451 = vpop.permute.xlu0 %1450
        %1452 = vrot.lane.b32.xlu0 %v529, 28
        %v1453 = vpop.permute.xlu0 %1452
        %1454 = vrot.lane.b32.xlu0 %v600, 28
        %v1455 = vpop.permute.xlu0 %1454
        %1456 = vrot.lane.b32.xlu0 %v601, 28
        %v1457 = vpop.permute.xlu0 %1456
        %1458 = vrot.lane.b32.xlu0 %v602, 28
        %v1459 = vpop.permute.xlu0 %1458
        %1495 = vrot.lane.b32.xlu0 %v533, 32
        %v1496 = vpop.permute.xlu0 %1495
        %1497 = vrot.lane.b32.xlu0 %v534, 32
        %v1498 = vpop.permute.xlu0 %1497
        %1499 = vrot.lane.b32.xlu0 %v535, 32
        %v1500 = vpop.permute.xlu0 %1499
        %1501 = vrot.lane.b32.xlu0 %v536, 32
        %v1502 = vpop.permute.xlu0 %1501
        %1503 = vrot.lane.b32.xlu0 %v537, 32
        %v1504 = vpop.permute.xlu0 %1503
        %1505 = vrot.lane.b32.xlu0 %v538, 32
        %v1506 = vpop.permute.xlu0 %1505
        %1507 = vrot.lane.b32.xlu0 %v539, 32
        %v1508 = vpop.permute.xlu0 %1507
        %1509 = vrot.lane.b32.xlu0 %v540, 32
        %v1510 = vpop.permute.xlu0 %1509
        %1511 = vrot.lane.b32.xlu0 %v541, 32
        %v1512 = vpop.permute.xlu0 %1511
        %1513 = vrot.lane.b32.xlu0 %v542, 32
        %v1514 = vpop.permute.xlu0 %1513
        %1515 = vrot.lane.b32.xlu0 %v543, 32
        %v1516 = vpop.permute.xlu0 %1515
        %1517 = vrot.lane.b32.xlu0 %v544, 32
        %v1518 = vpop.permute.xlu0 %1517
        %1519 = vrot.lane.b32.xlu0 %v545, 32
        %v1520 = vpop.permute.xlu0 %1519
        %1521 = vrot.lane.b32.xlu0 %v546, 32
        %v1522 = vpop.permute.xlu0 %1521
        %1523 = vrot.lane.b32.xlu0 %v547, 32
        %v1524 = vpop.permute.xlu0 %1523
        %1525 = vrot.lane.b32.xlu0 %v548, 32
        %v1526 = vpop.permute.xlu0 %1525
        %1527 = vrot.lane.b32.xlu0 %v549, 32
        %v1528 = vpop.permute.xlu0 %1527
        %1529 = vrot.lane.b32.xlu0 %v550, 32
        %v1530 = vpop.permute.xlu0 %1529
        %1531 = vrot.lane.b32.xlu0 %v551, 32
        %v1532 = vpop.permute.xlu0 %1531
        %1533 = vrot.lane.b32.xlu0 %v552, 32
        %v1534 = vpop.permute.xlu0 %1533
        %1535 = vrot.lane.b32.xlu0 %v553, 32
        %v1536 = vpop.permute.xlu0 %1535
        %1537 = vrot.lane.b32.xlu0 %v554, 32
        %v1538 = vpop.permute.xlu0 %1537
        %1539 = vrot.lane.b32.xlu0 %v555, 32
        %v1540 = vpop.permute.xlu0 %1539
        %1541 = vrot.lane.b32.xlu0 %v556, 32
        %v1542 = vpop.permute.xlu0 %1541
        %1543 = vrot.lane.b32.xlu0 %v557, 32
        %v1544 = vpop.permute.xlu0 %1543
        %1545 = vrot.lane.b32.xlu0 %v558, 32
        %v1546 = vpop.permute.xlu0 %1545
        %1547 = vrot.lane.b32.xlu0 %v559, 32
        %v1548 = vpop.permute.xlu0 %1547
        %1549 = vrot.lane.b32.xlu0 %v560, 32
        %v1550 = vpop.permute.xlu0 %1549
        %1551 = vrot.lane.b32.xlu0 %v561, 32
        %v1552 = vpop.permute.xlu0 %1551
        %1553 = vrot.lane.b32.xlu0 %v603, 32
        %v1554 = vpop.permute.xlu0 %1553
        %1555 = vrot.lane.b32.xlu0 %v604, 32
        %v1556 = vpop.permute.xlu0 %1555
        %1557 = vrot.lane.b32.xlu0 %v605, 32
        %v1558 = vpop.permute.xlu0 %1557
        %1594 = vrot.lane.b32.xlu0 %v565, 36
        %v1595 = vpop.permute.xlu0 %1594
        %1596 = vrot.lane.b32.xlu0 %v566, 36
        %v1597 = vpop.permute.xlu0 %1596
        %1598 = vrot.lane.b32.xlu0 %v567, 36
        %v1599 = vpop.permute.xlu0 %1598
        %1600 = vrot.lane.b32.xlu0 %v568, 36
        %v1601 = vpop.permute.xlu0 %1600
        %1602 = vrot.lane.b32.xlu0 %v569, 36
        %v1603 = vpop.permute.xlu0 %1602
        %1604 = vrot.lane.b32.xlu0 %v570, 36
        %v1605 = vpop.permute.xlu0 %1604
        %1606 = vrot.lane.b32.xlu0 %v571, 36
        %v1607 = vpop.permute.xlu0 %1606
        %1608 = vrot.lane.b32.xlu0 %v572, 36
        %v1609 = vpop.permute.xlu0 %1608
        %1610 = vrot.lane.b32.xlu0 %v573, 36
        %v1611 = vpop.permute.xlu0 %1610
        %1612 = vrot.lane.b32.xlu0 %v574, 36
        %v1613 = vpop.permute.xlu0 %1612
        %1614 = vrot.lane.b32.xlu0 %v575, 36
        %v1615 = vpop.permute.xlu0 %1614
        %1616 = vrot.lane.b32.xlu0 %v576, 36
        %v1617 = vpop.permute.xlu0 %1616
        %1618 = vrot.lane.b32.xlu0 %v577, 36
        %v1619 = vpop.permute.xlu0 %1618
        %1620 = vrot.lane.b32.xlu0 %v578, 36
        %v1621 = vpop.permute.xlu0 %1620
        %1622 = vrot.lane.b32.xlu0 %v579, 36
        %v1623 = vpop.permute.xlu0 %1622
        %1624 = vrot.lane.b32.xlu0 %v580, 36
        %v1625 = vpop.permute.xlu0 %1624
        %1626 = vrot.lane.b32.xlu0 %v581, 36
        %v1627 = vpop.permute.xlu0 %1626
        %1628 = vrot.lane.b32.xlu0 %v582, 36
        %v1629 = vpop.permute.xlu0 %1628
        %1630 = vrot.lane.b32.xlu0 %v583, 36
        %v1631 = vpop.permute.xlu0 %1630
        %1632 = vrot.lane.b32.xlu0 %v584, 36
        %v1633 = vpop.permute.xlu0 %1632
        %1634 = vrot.lane.b32.xlu0 %v585, 36
        %v1635 = vpop.permute.xlu0 %1634
        %1636 = vrot.lane.b32.xlu0 %v586, 36
        %v1637 = vpop.permute.xlu0 %1636
        %1638 = vrot.lane.b32.xlu0 %v587, 36
        %v1639 = vpop.permute.xlu0 %1638
        %1640 = vrot.lane.b32.xlu0 %v588, 36
        %v1641 = vpop.permute.xlu0 %1640
        %1642 = vrot.lane.b32.xlu0 %v589, 36
        %v1643 = vpop.permute.xlu0 %1642
        %1644 = vrot.lane.b32.xlu0 %v590, 36
        %v1645 = vpop.permute.xlu0 %1644
        %1646 = vrot.lane.b32.xlu0 %v591, 36
        %v1647 = vpop.permute.xlu0 %1646
        %1648 = vrot.lane.b32.xlu0 %v592, 36
        %v1649 = vpop.permute.xlu0 %1648
        %1650 = vrot.lane.b32.xlu0 %v593, 36
        %v1651 = vpop.permute.xlu0 %1650
        %1652 = vrot.lane.b32.xlu0 %v606, 36
        %v1653 = vpop.permute.xlu0 %1652
        %1654 = vrot.lane.b32.xlu0 %v607, 36
        %v1655 = vpop.permute.xlu0 %1654
        %1656 = vrot.lane.b32.xlu0 %v608, 36
        %v1657 = vpop.permute.xlu0 %1656
        %1693 = vrot.lane.b32.xlu0 %v440, 40
        %v1694 = vpop.permute.xlu0 %1693
        %1695 = vrot.lane.b32.xlu0 %v441, 40
        %v1696 = vpop.permute.xlu0 %1695
        %1697 = vrot.lane.b32.xlu0 %v442, 40
        %v1698 = vpop.permute.xlu0 %1697
        %1699 = vrot.lane.b32.xlu0 %v443, 40
        %v1700 = vpop.permute.xlu0 %1699
        %1701 = vrot.lane.b32.xlu0 %v444, 40
        %v1702 = vpop.permute.xlu0 %1701
        %1703 = vrot.lane.b32.xlu0 %v445, 40
        %v1704 = vpop.permute.xlu0 %1703
        %1705 = vrot.lane.b32.xlu0 %v446, 40
        %v1706 = vpop.permute.xlu0 %1705
        %1707 = vrot.lane.b32.xlu0 %v447, 40
        %v1708 = vpop.permute.xlu0 %1707
        %1709 = vrot.lane.b32.xlu0 %v448, 40
        %v1710 = vpop.permute.xlu0 %1709
        %1711 = vrot.lane.b32.xlu0 %v449, 40
        %v1712 = vpop.permute.xlu0 %1711
        %1713 = vrot.lane.b32.xlu0 %v450, 40
        %v1714 = vpop.permute.xlu0 %1713
        %1715 = vrot.lane.b32.xlu0 %v451, 40
        %v1716 = vpop.permute.xlu0 %1715
        %1717 = vrot.lane.b32.xlu0 %v452, 40
        %v1718 = vpop.permute.xlu0 %1717
        %1719 = vrot.lane.b32.xlu0 %v453, 40
        %v1720 = vpop.permute.xlu0 %1719
        %1721 = vrot.lane.b32.xlu0 %v454, 40
        %v1722 = vpop.permute.xlu0 %1721
        %1723 = vrot.lane.b32.xlu0 %v455, 40
        %v1724 = vpop.permute.xlu0 %1723
        %1725 = vrot.lane.b32.xlu0 %v456, 40
        %v1726 = vpop.permute.xlu0 %1725
        %1727 = vrot.lane.b32.xlu0 %v457, 40
        %v1728 = vpop.permute.xlu0 %1727
        %1729 = vrot.lane.b32.xlu0 %v458, 40
        %v1730 = vpop.permute.xlu0 %1729
        %1731 = vrot.lane.b32.xlu0 %v459, 40
        %v1732 = vpop.permute.xlu0 %1731
        %1733 = vrot.lane.b32.xlu0 %v460, 40
        %v1734 = vpop.permute.xlu0 %1733
        %1735 = vrot.lane.b32.xlu0 %v461, 40
        %v1736 = vpop.permute.xlu0 %1735
        %1737 = vrot.lane.b32.xlu0 %v462, 40
        %v1738 = vpop.permute.xlu0 %1737
        %1739 = vrot.lane.b32.xlu0 %v463, 40
        %v1740 = vpop.permute.xlu0 %1739
        %1741 = vrot.lane.b32.xlu0 %v464, 40
        %v1742 = vpop.permute.xlu0 %1741
        %1743 = vrot.lane.b32.xlu0 %v465, 40
        %v1744 = vpop.permute.xlu0 %1743
        %1745 = vrot.lane.b32.xlu0 %v594, 40
        %v1746 = vpop.permute.xlu0 %1745
        %1747 = vrot.lane.b32.xlu0 %v595, 40
        %v1748 = vpop.permute.xlu0 %1747
        %1749 = vrot.lane.b32.xlu0 %v596, 40
        %v1750 = vpop.permute.xlu0 %1749
        %1751 = vrot.lane.b32.xlu0 %v609, 40
        %v1752 = vpop.permute.xlu0 %1751
        %1753 = vrot.lane.b32.xlu0 %v610, 40
        %v1754 = vpop.permute.xlu0 %1753
        %1755 = vrot.lane.b32.xlu0 %v611, 40
        %v1756 = vpop.permute.xlu0 %1755
        %1792 = vrot.lane.b32.xlu0 %v472, 44
        %v1793 = vpop.permute.xlu0 %1792
        %1794 = vrot.lane.b32.xlu0 %v473, 44
        %v1795 = vpop.permute.xlu0 %1794
        %1796 = vrot.lane.b32.xlu0 %v474, 44
        %v1797 = vpop.permute.xlu0 %1796
        %1798 = vrot.lane.b32.xlu0 %v475, 44
        %v1799 = vpop.permute.xlu0 %1798
        %1800 = vrot.lane.b32.xlu0 %v476, 44
        %v1801 = vpop.permute.xlu0 %1800
        %1802 = vrot.lane.b32.xlu0 %v477, 44
        %v1803 = vpop.permute.xlu0 %1802
        %1804 = vrot.lane.b32.xlu0 %v478, 44
        %v1805 = vpop.permute.xlu0 %1804
        %1806 = vrot.lane.b32.xlu0 %v479, 44
        %v1807 = vpop.permute.xlu0 %1806
        %1808 = vrot.lane.b32.xlu0 %v480, 44
        %v1809 = vpop.permute.xlu0 %1808
        %1810 = vrot.lane.b32.xlu0 %v481, 44
        %v1811 = vpop.permute.xlu0 %1810
        %1812 = vrot.lane.b32.xlu0 %v482, 44
        %v1813 = vpop.permute.xlu0 %1812
        %1814 = vrot.lane.b32.xlu0 %v483, 44
        %v1815 = vpop.permute.xlu0 %1814
        %1816 = vrot.lane.b32.xlu0 %v484, 44
        %v1817 = vpop.permute.xlu0 %1816
        %1818 = vrot.lane.b32.xlu0 %v485, 44
        %v1819 = vpop.permute.xlu0 %1818
        %1820 = vrot.lane.b32.xlu0 %v486, 44
        %v1821 = vpop.permute.xlu0 %1820
        %1822 = vrot.lane.b32.xlu0 %v487, 44
        %v1823 = vpop.permute.xlu0 %1822
        %1824 = vrot.lane.b32.xlu0 %v488, 44
        %v1825 = vpop.permute.xlu0 %1824
        %1826 = vrot.lane.b32.xlu0 %v489, 44
        %v1827 = vpop.permute.xlu0 %1826
        %1828 = vrot.lane.b32.xlu0 %v490, 44
        %v1829 = vpop.permute.xlu0 %1828
        %1830 = vrot.lane.b32.xlu0 %v491, 44
        %v1831 = vpop.permute.xlu0 %1830
        %1832 = vrot.lane.b32.xlu0 %v492, 44
        %v1833 = vpop.permute.xlu0 %1832
        %1834 = vrot.lane.b32.xlu0 %v493, 44
        %v1835 = vpop.permute.xlu0 %1834
        %1836 = vrot.lane.b32.xlu0 %v494, 44
        %v1837 = vpop.permute.xlu0 %1836
        %1838 = vrot.lane.b32.xlu0 %v495, 44
        %v1839 = vpop.permute.xlu0 %1838
        %1840 = vrot.lane.b32.xlu0 %v496, 44
        %v1841 = vpop.permute.xlu0 %1840
        %1842 = vrot.lane.b32.xlu0 %v497, 44
        %v1843 = vpop.permute.xlu0 %1842
        %1844 = vrot.lane.b32.xlu0 %v597, 44
        %v1845 = vpop.permute.xlu0 %1844
        %1846 = vrot.lane.b32.xlu0 %v598, 44
        %v1847 = vpop.permute.xlu0 %1846
        %1848 = vrot.lane.b32.xlu0 %v599, 44
        %v1849 = vpop.permute.xlu0 %1848
        %1850 = vrot.lane.b32.xlu0 %v612, 44
        %v1851 = vpop.permute.xlu0 %1850
        %1852 = vrot.lane.b32.xlu0 %v613, 44
        %v1853 = vpop.permute.xlu0 %1852
        %1854 = vrot.lane.b32.xlu0 %v614, 44
        %v1855 = vpop.permute.xlu0 %1854
        %1891 = vrot.lane.b32.xlu0 %v504, 48
        %v1892 = vpop.permute.xlu0 %1891
        %1893 = vrot.lane.b32.xlu0 %v505, 48
        %v1894 = vpop.permute.xlu0 %1893
        %1895 = vrot.lane.b32.xlu0 %v506, 48
        %v1896 = vpop.permute.xlu0 %1895
        %1897 = vrot.lane.b32.xlu0 %v507, 48
        %v1898 = vpop.permute.xlu0 %1897
        %1899 = vrot.lane.b32.xlu0 %v508, 48
        %v1900 = vpop.permute.xlu0 %1899
        %1901 = vrot.lane.b32.xlu0 %v509, 48
        %v1902 = vpop.permute.xlu0 %1901
        %1903 = vrot.lane.b32.xlu0 %v510, 48
        %v1904 = vpop.permute.xlu0 %1903
        %1905 = vrot.lane.b32.xlu0 %v511, 48
        %v1906 = vpop.permute.xlu0 %1905
        %1907 = vrot.lane.b32.xlu0 %v512, 48
        %v1908 = vpop.permute.xlu0 %1907
        %1909 = vrot.lane.b32.xlu0 %v513, 48
        %v1910 = vpop.permute.xlu0 %1909
        %1911 = vrot.lane.b32.xlu0 %v514, 48
        %v1912 = vpop.permute.xlu0 %1911
        %1913 = vrot.lane.b32.xlu0 %v515, 48
        %v1914 = vpop.permute.xlu0 %1913
        %1915 = vrot.lane.b32.xlu0 %v516, 48
        %v1916 = vpop.permute.xlu0 %1915
        %1917 = vrot.lane.b32.xlu0 %v517, 48
        %v1918 = vpop.permute.xlu0 %1917
        %1919 = vrot.lane.b32.xlu0 %v518, 48
        %v1920 = vpop.permute.xlu0 %1919
        %1921 = vrot.lane.b32.xlu0 %v519, 48
        %v1922 = vpop.permute.xlu0 %1921
        %1923 = vrot.lane.b32.xlu0 %v520, 48
        %v1924 = vpop.permute.xlu0 %1923
        %1925 = vrot.lane.b32.xlu0 %v521, 48
        %v1926 = vpop.permute.xlu0 %1925
        %1927 = vrot.lane.b32.xlu0 %v522, 48
        %v1928 = vpop.permute.xlu0 %1927
        %1929 = vrot.lane.b32.xlu0 %v523, 48
        %v1930 = vpop.permute.xlu0 %1929
        %1931 = vrot.lane.b32.xlu0 %v524, 48
        %v1932 = vpop.permute.xlu0 %1931
        %1933 = vrot.lane.b32.xlu0 %v525, 48
        %v1934 = vpop.permute.xlu0 %1933
        %1935 = vrot.lane.b32.xlu0 %v526, 48
        %v1936 = vpop.permute.xlu0 %1935
        %1937 = vrot.lane.b32.xlu0 %v527, 48
        %v1938 = vpop.permute.xlu0 %1937
        %1939 = vrot.lane.b32.xlu0 %v528, 48
        %v1940 = vpop.permute.xlu0 %1939
        %1941 = vrot.lane.b32.xlu0 %v529, 48
        %v1942 = vpop.permute.xlu0 %1941
        %1943 = vrot.lane.b32.xlu0 %v600, 48
        %v1944 = vpop.permute.xlu0 %1943
        %1945 = vrot.lane.b32.xlu0 %v601, 48
        %v1946 = vpop.permute.xlu0 %1945
        %1947 = vrot.lane.b32.xlu0 %v602, 48
        %v1948 = vpop.permute.xlu0 %1947
        %1949 = vrot.lane.b32.xlu0 %v615, 48
        %v1950 = vpop.permute.xlu0 %1949
        %1951 = vrot.lane.b32.xlu0 %v616, 48
        %v1952 = vpop.permute.xlu0 %1951
        %1953 = vrot.lane.b32.xlu0 %v617, 48
        %v1954 = vpop.permute.xlu0 %1953
        %1990 = vrot.lane.b32.xlu0 %v536, 52
        %v1991 = vpop.permute.xlu0 %1990
        %1992 = vrot.lane.b32.xlu0 %v537, 52
        %v1993 = vpop.permute.xlu0 %1992
        %1994 = vrot.lane.b32.xlu0 %v538, 52
        %v1995 = vpop.permute.xlu0 %1994
        %1996 = vrot.lane.b32.xlu0 %v539, 52
        %v1997 = vpop.permute.xlu0 %1996
        %1998 = vrot.lane.b32.xlu0 %v540, 52
        %v1999 = vpop.permute.xlu0 %1998
        %2000 = vrot.lane.b32.xlu0 %v541, 52
        %v2001 = vpop.permute.xlu0 %2000
        %2002 = vrot.lane.b32.xlu0 %v542, 52
        %v2003 = vpop.permute.xlu0 %2002
        %2004 = vrot.lane.b32.xlu0 %v543, 52
        %v2005 = vpop.permute.xlu0 %2004
        %2006 = vrot.lane.b32.xlu0 %v544, 52
        %v2007 = vpop.permute.xlu0 %2006
        %2008 = vrot.lane.b32.xlu0 %v545, 52
        %v2009 = vpop.permute.xlu0 %2008
        %2010 = vrot.lane.b32.xlu0 %v546, 52
        %v2011 = vpop.permute.xlu0 %2010
        %2012 = vrot.lane.b32.xlu0 %v547, 52
        %v2013 = vpop.permute.xlu0 %2012
        %2014 = vrot.lane.b32.xlu0 %v548, 52
        %v2015 = vpop.permute.xlu0 %2014
        %2016 = vrot.lane.b32.xlu0 %v549, 52
        %v2017 = vpop.permute.xlu0 %2016
        %2018 = vrot.lane.b32.xlu0 %v550, 52
        %v2019 = vpop.permute.xlu0 %2018
        %2020 = vrot.lane.b32.xlu0 %v551, 52
        %v2021 = vpop.permute.xlu0 %2020
        %2022 = vrot.lane.b32.xlu0 %v552, 52
        %v2023 = vpop.permute.xlu0 %2022
        %2024 = vrot.lane.b32.xlu0 %v553, 52
        %v2025 = vpop.permute.xlu0 %2024
        %2026 = vrot.lane.b32.xlu0 %v554, 52
        %v2027 = vpop.permute.xlu0 %2026
        %2028 = vrot.lane.b32.xlu0 %v555, 52
        %v2029 = vpop.permute.xlu0 %2028
        %2030 = vrot.lane.b32.xlu0 %v556, 52
        %v2031 = vpop.permute.xlu0 %2030
        %2032 = vrot.lane.b32.xlu0 %v557, 52
        %v2033 = vpop.permute.xlu0 %2032
        %2034 = vrot.lane.b32.xlu0 %v558, 52
        %v2035 = vpop.permute.xlu0 %2034
        %2036 = vrot.lane.b32.xlu0 %v559, 52
        %v2037 = vpop.permute.xlu0 %2036
        %2038 = vrot.lane.b32.xlu0 %v560, 52
        %v2039 = vpop.permute.xlu0 %2038
        %2040 = vrot.lane.b32.xlu0 %v561, 52
        %v2041 = vpop.permute.xlu0 %2040
        %2042 = vrot.lane.b32.xlu0 %v603, 52
        %v2043 = vpop.permute.xlu0 %2042
        %2044 = vrot.lane.b32.xlu0 %v604, 52
        %v2045 = vpop.permute.xlu0 %2044
        %2046 = vrot.lane.b32.xlu0 %v605, 52
        %v2047 = vpop.permute.xlu0 %2046
        %2048 = vrot.lane.b32.xlu0 %v618, 52
        %v2049 = vpop.permute.xlu0 %2048
        %2050 = vrot.lane.b32.xlu0 %v619, 52
        %v2051 = vpop.permute.xlu0 %2050
        %2052 = vrot.lane.b32.xlu0 %v620, 52
        %v2053 = vpop.permute.xlu0 %2052
        %2089 = vrot.lane.b32.xlu0 %v568, 56
        %v2090 = vpop.permute.xlu0 %2089
        %2091 = vrot.lane.b32.xlu0 %v569, 56
        %v2092 = vpop.permute.xlu0 %2091
        %2093 = vrot.lane.b32.xlu0 %v570, 56
        %v2094 = vpop.permute.xlu0 %2093
        %2095 = vrot.lane.b32.xlu0 %v571, 56
        %v2096 = vpop.permute.xlu0 %2095
        %2097 = vrot.lane.b32.xlu0 %v572, 56
        %v2098 = vpop.permute.xlu0 %2097
        %2099 = vrot.lane.b32.xlu0 %v573, 56
        %v2100 = vpop.permute.xlu0 %2099
        %2101 = vrot.lane.b32.xlu0 %v574, 56
        %v2102 = vpop.permute.xlu0 %2101
        %2103 = vrot.lane.b32.xlu0 %v575, 56
        %v2104 = vpop.permute.xlu0 %2103
        %2105 = vrot.lane.b32.xlu0 %v576, 56
        %v2106 = vpop.permute.xlu0 %2105
        %2107 = vrot.lane.b32.xlu0 %v577, 56
        %v2108 = vpop.permute.xlu0 %2107
        %2109 = vrot.lane.b32.xlu0 %v578, 56
        %v2110 = vpop.permute.xlu0 %2109
        %2111 = vrot.lane.b32.xlu0 %v579, 56
        %v2112 = vpop.permute.xlu0 %2111
        %2113 = vrot.lane.b32.xlu0 %v580, 56
        %v2114 = vpop.permute.xlu0 %2113
        %2115 = vrot.lane.b32.xlu0 %v581, 56
        %v2116 = vpop.permute.xlu0 %2115
        %2117 = vrot.lane.b32.xlu0 %v582, 56
        %v2118 = vpop.permute.xlu0 %2117
        %2119 = vrot.lane.b32.xlu0 %v583, 56
        %v2120 = vpop.permute.xlu0 %2119
        %2121 = vrot.lane.b32.xlu0 %v584, 56
        %v2122 = vpop.permute.xlu0 %2121
        %2123 = vrot.lane.b32.xlu0 %v585, 56
        %v2124 = vpop.permute.xlu0 %2123
        %2125 = vrot.lane.b32.xlu0 %v586, 56
        %v2126 = vpop.permute.xlu0 %2125
        %2127 = vrot.lane.b32.xlu0 %v587, 56
        %v2128 = vpop.permute.xlu0 %2127
        %2129 = vrot.lane.b32.xlu0 %v588, 56
        %v2130 = vpop.permute.xlu0 %2129
        %2131 = vrot.lane.b32.xlu0 %v589, 56
        %v2132 = vpop.permute.xlu0 %2131
        %2133 = vrot.lane.b32.xlu0 %v590, 56
        %v2134 = vpop.permute.xlu0 %2133
        %2135 = vrot.lane.b32.xlu0 %v591, 56
        %v2136 = vpop.permute.xlu0 %2135
        %2137 = vrot.lane.b32.xlu0 %v592, 56
        %v2138 = vpop.permute.xlu0 %2137
        %2139 = vrot.lane.b32.xlu0 %v593, 56
        %v2140 = vpop.permute.xlu0 %2139
        %2141 = vrot.lane.b32.xlu0 %v606, 56
        %v2142 = vpop.permute.xlu0 %2141
        %2143 = vrot.lane.b32.xlu0 %v607, 56
        %v2144 = vpop.permute.xlu0 %2143
        %2145 = vrot.lane.b32.xlu0 %v608, 56
        %v2146 = vpop.permute.xlu0 %2145
        %2147 = vrot.lane.b32.xlu0 %v621, 56
        %v2148 = vpop.permute.xlu0 %2147
        %2149 = vrot.lane.b32.xlu0 %v622, 56
        %v2150 = vpop.permute.xlu0 %2149
        %2151 = vrot.lane.b32.xlu0 %v623, 56
        %v2152 = vpop.permute.xlu0 %2151
        %2188 = vrot.lane.b32.xlu0 %v443, 60
        %v2189 = vpop.permute.xlu0 %2188
        %2190 = vrot.lane.b32.xlu0 %v444, 60
        %v2191 = vpop.permute.xlu0 %2190
        %2192 = vrot.lane.b32.xlu0 %v445, 60
        %v2193 = vpop.permute.xlu0 %2192
        %2194 = vrot.lane.b32.xlu0 %v446, 60
        %v2195 = vpop.permute.xlu0 %2194
        %2196 = vrot.lane.b32.xlu0 %v447, 60
        %v2197 = vpop.permute.xlu0 %2196
        %2198 = vrot.lane.b32.xlu0 %v448, 60
        %v2199 = vpop.permute.xlu0 %2198
        %2200 = vrot.lane.b32.xlu0 %v449, 60
        %v2201 = vpop.permute.xlu0 %2200
        %2202 = vrot.lane.b32.xlu0 %v450, 60
        %v2203 = vpop.permute.xlu0 %2202
        %2204 = vrot.lane.b32.xlu0 %v451, 60
        %v2205 = vpop.permute.xlu0 %2204
        %2206 = vrot.lane.b32.xlu0 %v452, 60
        %v2207 = vpop.permute.xlu0 %2206
        %2208 = vrot.lane.b32.xlu0 %v453, 60
        %v2209 = vpop.permute.xlu0 %2208
        %2210 = vrot.lane.b32.xlu0 %v454, 60
        %v2211 = vpop.permute.xlu0 %2210
        %2212 = vrot.lane.b32.xlu0 %v455, 60
        %v2213 = vpop.permute.xlu0 %2212
        %2214 = vrot.lane.b32.xlu0 %v456, 60
        %v2215 = vpop.permute.xlu0 %2214
        %2216 = vrot.lane.b32.xlu0 %v457, 60
        %v2217 = vpop.permute.xlu0 %2216
        %2218 = vrot.lane.b32.xlu0 %v458, 60
        %v2219 = vpop.permute.xlu0 %2218
        %2220 = vrot.lane.b32.xlu0 %v459, 60
        %v2221 = vpop.permute.xlu0 %2220
        %2222 = vrot.lane.b32.xlu0 %v460, 60
        %v2223 = vpop.permute.xlu0 %2222
        %2224 = vrot.lane.b32.xlu0 %v461, 60
        %v2225 = vpop.permute.xlu0 %2224
        %2226 = vrot.lane.b32.xlu0 %v462, 60
        %v2227 = vpop.permute.xlu0 %2226
        %2228 = vrot.lane.b32.xlu0 %v463, 60
        %v2229 = vpop.permute.xlu0 %2228
        %2230 = vrot.lane.b32.xlu0 %v464, 60
        %v2231 = vpop.permute.xlu0 %2230
        %2232 = vrot.lane.b32.xlu0 %v465, 60
        %v2233 = vpop.permute.xlu0 %2232
        %2234 = vrot.lane.b32.xlu0 %v594, 60
        %v2235 = vpop.permute.xlu0 %2234
        %2236 = vrot.lane.b32.xlu0 %v595, 60
        %v2237 = vpop.permute.xlu0 %2236
        %2238 = vrot.lane.b32.xlu0 %v596, 60
        %v2239 = vpop.permute.xlu0 %2238
        %2240 = vrot.lane.b32.xlu0 %v609, 60
        %v2241 = vpop.permute.xlu0 %2240
        %2242 = vrot.lane.b32.xlu0 %v610, 60
        %v2243 = vpop.permute.xlu0 %2242
        %2244 = vrot.lane.b32.xlu0 %v611, 60
        %v2245 = vpop.permute.xlu0 %2244
        %2246 = vrot.lane.b32.xlu0 %v624, 60
        %v2247 = vpop.permute.xlu0 %2246
        %2248 = vrot.lane.b32.xlu0 %v625, 60
        %v2249 = vpop.permute.xlu0 %2248
        %2250 = vrot.lane.b32.xlu0 %v626, 60
        %v2251 = vpop.permute.xlu0 %2250
        %vm2284 = vcmask 31744
        %v2285 = vsel %vm2284, %v434, %v687
        %v2286 = vsel %vm2284, %v435, %v689
        %v2287 = vsel %vm2284, %v436, %v691
        %v2288 = vsel %vm2284, %v437, %v693
        %v2289 = vsel %vm2284, %v438, %v695
        %v2290 = vsel %vm2284, %v439, %v697
        %v2291 = vsel %vm2284, %v440, %v699
        %v2292 = vsel %vm2284, %v441, %v701
        %v2293 = vsel %vm2284, %v442, %v703
        %v2294 = vsel %vm2284, %v443, %v705
        %v2295 = vsel %vm2284, %v444, %v707
        %v2296 = vsel %vm2284, %v445, %v709
        %v2297 = vsel %vm2284, %v446, %v711
        %v2298 = vsel %vm2284, %v447, %v713
        %v2299 = vsel %vm2284, %v448, %v715
        %v2300 = vsel %vm2284, %v449, %v717
        %v2301 = vsel %vm2284, %v450, %v719
        %v2302 = vsel %vm2284, %v451, %v721
        %v2303 = vsel %vm2284, %v452, %v723
        %v2304 = vsel %vm2284, %v453, %v725
        %v2305 = vsel %vm2284, %v454, %v727
        %v2306 = vsel %vm2284, %v455, %v729
        %v2307 = vsel %vm2284, %v456, %v731
        %v2308 = vsel %vm2284, %v457, %v733
        %v2309 = vsel %vm2284, %v458, %v735
        %v2310 = vsel %vm2284, %v459, %v737
        %v2311 = vsel %vm2284, %v460, %v739
        %v2312 = vsel %vm2284, %v461, %v741
        %v2313 = vsel %vm2284, %v462, %v743
        %v2314 = vsel %vm2284, %v463, %v745
        %v2315 = vsel %vm2284, %v464, %v747
        %v2316 = vsel %vm2284, %v465, %v749
        %v2317 = vsel %vm384, %v2285, %v815
        %v2318 = vsel %vm384, %v2286, %v817
        %v2319 = vsel %vm384, %v2287, %v819
        %v2320 = vsel %vm384, %v2288, %v821
        %v2321 = vsel %vm384, %v2289, %v823
        %v2322 = vsel %vm384, %v2290, %v825
        %v2323 = vsel %vm384, %v2291, %v827
        %v2324 = vsel %vm384, %v2292, %v829
        %v2325 = vsel %vm384, %v2293, %v831
        %v2326 = vsel %vm384, %v2294, %v833
        %v2327 = vsel %vm384, %v2295, %v835
        %v2328 = vsel %vm384, %v2296, %v837
        %v2329 = vsel %vm384, %v2297, %v839
        %v2330 = vsel %vm384, %v2298, %v841
        %v2331 = vsel %vm384, %v2299, %v843
        %v2332 = vsel %vm384, %v2300, %v845
        %v2333 = vsel %vm384, %v2301, %v847
        %v2334 = vsel %vm384, %v2302, %v849
        %v2335 = vsel %vm384, %v2303, %v851
        %v2336 = vsel %vm384, %v2304, %v853
        %v2337 = vsel %vm384, %v2305, %v855
        %v2338 = vsel %vm384, %v2306, %v857
        %v2339 = vsel %vm384, %v2307, %v859
        %v2340 = vsel %vm384, %v2308, %v861
        %v2341 = vsel %vm384, %v2309, %v863
        %v2342 = vsel %vm384, %v2310, %v865
        %v2343 = vsel %vm384, %v2311, %v867
        %v2344 = vsel %vm384, %v2312, %v869
        %v2345 = vsel %vm384, %v2313, %v871
        %v2346 = vsel %vm384, %v2314, %v873
        %v2347 = vsel %vm384, %v2315, %v875
        %v2348 = vsel %vm384, %v2316, %v877
        %vm2349 = vcmask 97280
        %v2350 = vsel %vm2349, %v2317, %v943
        %v2351 = vsel %vm2349, %v2318, %v945
        %v2352 = vsel %vm2349, %v2319, %v947
        %v2353 = vsel %vm2349, %v2320, %v949
        %v2354 = vsel %vm2349, %v2321, %v951
        %v2355 = vsel %vm2349, %v2322, %v953
        %v2356 = vsel %vm2349, %v2323, %v955
        %v2357 = vsel %vm2349, %v2324, %v957
        %v2358 = vsel %vm2349, %v2325, %v959
        %v2359 = vsel %vm2349, %v2326, %v961
        %v2360 = vsel %vm2349, %v2327, %v963
        %v2361 = vsel %vm2349, %v2328, %v965
        %v2362 = vsel %vm2349, %v2329, %v967
        %v2363 = vsel %vm2349, %v2330, %v969
        %v2364 = vsel %vm2349, %v2331, %v971
        %v2365 = vsel %vm2349, %v2332, %v973
        %v2366 = vsel %vm2349, %v2333, %v975
        %v2367 = vsel %vm2349, %v2334, %v977
        %v2368 = vsel %vm2349, %v2335, %v979
        %v2369 = vsel %vm2349, %v2336, %v981
        %v2370 = vsel %vm2349, %v2337, %v983
        %v2371 = vsel %vm2349, %v2338, %v985
        %v2372 = vsel %vm2349, %v2339, %v987
        %v2373 = vsel %vm2349, %v2340, %v989
        %v2374 = vsel %vm2349, %v2341, %v991
        %v2375 = vsel %vm2349, %v2342, %v993
        %v2376 = vsel %vm2349, %v2343, %v995
        %v2377 = vsel %vm2349, %v2344, %v997
        %v2378 = vsel %vm2349, %v2345, %v999
        %v2379 = vsel %vm2349, %v2346, %v1001
        %v2380 = vsel %vm2349, %v2347, %v1003
        %v2381 = vsel %vm2349, %v2348, %v1005
        %v2382 = vsel %vm413, %v2350, %v1071
        %v2383 = vsel %vm413, %v2351, %v1073
        %v2384 = vsel %vm413, %v2352, %v1075
        %v2385 = vsel %vm413, %v2353, %v1077
        %v2386 = vsel %vm413, %v2354, %v1079
        %v2387 = vsel %vm413, %v2355, %v1081
        %v2388 = vsel %vm413, %v2356, %v1083
        %v2389 = vsel %vm413, %v2357, %v1085
        %v2390 = vsel %vm413, %v2358, %v1087
        %v2391 = vsel %vm413, %v2359, %v1089
        %v2392 = vsel %vm413, %v2360, %v1091
        %v2393 = vsel %vm413, %v2361, %v1093
        %v2394 = vsel %vm413, %v2362, %v1095
        %v2395 = vsel %vm413, %v2363, %v1097
        %v2396 = vsel %vm413, %v2364, %v1099
        %v2397 = vsel %vm413, %v2365, %v1101
        %v2398 = vsel %vm413, %v2366, %v1103
        %v2399 = vsel %vm413, %v2367, %v1105
        %v2400 = vsel %vm413, %v2368, %v1107
        %v2401 = vsel %vm413, %v2369, %v1109
        %v2402 = vsel %vm413, %v2370, %v1111
        %v2403 = vsel %vm413, %v2371, %v1113
        %v2404 = vsel %vm413, %v2372, %v1115
        %v2405 = vsel %vm413, %v2373, %v1117
        %v2406 = vsel %vm413, %v2374, %v1119
        %v2407 = vsel %vm413, %v2375, %v1121
        %v2408 = vsel %vm413, %v2376, %v1123
        %v2409 = vsel %vm413, %v2377, %v1125
        %v2410 = vsel %vm413, %v2378, %v1127
        %v2411 = vsel %vm413, %v2379, %v1129
        %v2412 = vsel %vm413, %v2380, %v1131
        %v2413 = vsel %vm413, %v2381, %v1133
        %vm2414 = vcmask 162816
        %v2415 = vsel %vm2414, %v2382, %v1199
        %v2416 = vsel %vm2414, %v2383, %v1201
        %v2417 = vsel %vm2414, %v2384, %v1203
        %v2418 = vsel %vm2414, %v2385, %v1205
        %v2419 = vsel %vm2414, %v2386, %v1207
        %v2420 = vsel %vm2414, %v2387, %v1209
        %v2421 = vsel %vm2414, %v2388, %v1211
        %v2422 = vsel %vm2414, %v2389, %v1213
        %v2423 = vsel %vm2414, %v2390, %v1215
        %v2424 = vsel %vm2414, %v2391, %v1217
        %v2425 = vsel %vm2414, %v2392, %v1219
        %v2426 = vsel %vm2414, %v2393, %v1221
        %v2427 = vsel %vm2414, %v2394, %v1223
        %v2428 = vsel %vm2414, %v2395, %v1225
        %v2429 = vsel %vm2414, %v2396, %v1227
        %v2430 = vsel %vm2414, %v2397, %v1229
        %v2431 = vsel %vm2414, %v2398, %v1231
        %v2432 = vsel %vm2414, %v2399, %v1233
        %v2433 = vsel %vm2414, %v2400, %v1235
        %v2434 = vsel %vm2414, %v2401, %v1237
        %v2435 = vsel %vm2414, %v2402, %v1239
        %v2436 = vsel %vm2414, %v2403, %v1241
        %v2437 = vsel %vm2414, %v2404, %v1243
        %v2438 = vsel %vm2414, %v2405, %v1245
        %v2439 = vsel %vm2414, %v2406, %v1247
        %v2440 = vsel %vm2414, %v2407, %v1249
        %v2441 = vsel %vm2414, %v2408, %v1251
        %v2442 = vsel %vm2414, %v2409, %v1253
        %v2443 = vsel %vm2414, %v2410, %v1255
        %v2444 = vsel %vm2414, %v2411, %v1257
        %v2445 = vsel %vm2414, %v2412, %v1259
        %v2446 = vsel %vm2414, %v2413, %v1261
        %vm2447 = vcmask 195584
        %v2448 = vsel %vm2447, %v2415, %v1298
        %v2449 = vsel %vm2447, %v2416, %v1300
        %v2450 = vsel %vm2447, %v2417, %v1302
        %v2451 = vsel %vm2447, %v2418, %v1304
        %v2452 = vsel %vm2447, %v2419, %v1306
        %v2453 = vsel %vm2447, %v2420, %v1308
        %v2454 = vsel %vm2447, %v2421, %v1310
        %v2455 = vsel %vm2447, %v2422, %v1312
        %v2456 = vsel %vm2447, %v2423, %v1314
        %v2457 = vsel %vm2447, %v2424, %v1316
        %v2458 = vsel %vm2447, %v2425, %v1318
        %v2459 = vsel %vm2447, %v2426, %v1320
        %v2460 = vsel %vm2447, %v2427, %v1322
        %v2461 = vsel %vm2447, %v2428, %v1324
        %v2462 = vsel %vm2447, %v2429, %v1326
        %v2463 = vsel %vm2447, %v2430, %v1328
        %v2464 = vsel %vm2447, %v2431, %v1330
        %v2465 = vsel %vm2447, %v2432, %v1332
        %v2466 = vsel %vm2447, %v2433, %v1334
        %v2467 = vsel %vm2447, %v2434, %v1336
        %v2468 = vsel %vm2447, %v2435, %v1338
        %v2469 = vsel %vm2447, %v2436, %v1340
        %v2470 = vsel %vm2447, %v2437, %v1342
        %v2471 = vsel %vm2447, %v2438, %v1344
        %v2472 = vsel %vm2447, %v2439, %v1346
        %v2473 = vsel %vm2447, %v2440, %v1348
        %v2474 = vsel %vm2447, %v2441, %v1350
        %v2475 = vsel %vm2447, %v2442, %v1352
        %v2476 = vsel %vm2447, %v2443, %v1354
        %v2477 = vsel %vm2447, %v2444, %v1356
        %v2478 = vsel %vm2447, %v2445, %v1358
        %v2479 = vsel %vm2447, %v2446, %v1360
        %vm2480 = vcmask 228352
        %v2481 = vsel %vm2480, %v2448, %v1397
        %v2482 = vsel %vm2480, %v2449, %v1399
        %v2483 = vsel %vm2480, %v2450, %v1401
        %v2484 = vsel %vm2480, %v2451, %v1403
        %v2485 = vsel %vm2480, %v2452, %v1405
        %v2486 = vsel %vm2480, %v2453, %v1407
        %v2487 = vsel %vm2480, %v2454, %v1409
        %v2488 = vsel %vm2480, %v2455, %v1411
        %v2489 = vsel %vm2480, %v2456, %v1413
        %v2490 = vsel %vm2480, %v2457, %v1415
        %v2491 = vsel %vm2480, %v2458, %v1417
        %v2492 = vsel %vm2480, %v2459, %v1419
        %v2493 = vsel %vm2480, %v2460, %v1421
        %v2494 = vsel %vm2480, %v2461, %v1423
        %v2495 = vsel %vm2480, %v2462, %v1425
        %v2496 = vsel %vm2480, %v2463, %v1427
        %v2497 = vsel %vm2480, %v2464, %v1429
        %v2498 = vsel %vm2480, %v2465, %v1431
        %v2499 = vsel %vm2480, %v2466, %v1433
        %v2500 = vsel %vm2480, %v2467, %v1435
        %v2501 = vsel %vm2480, %v2468, %v1437
        %v2502 = vsel %vm2480, %v2469, %v1439
        %v2503 = vsel %vm2480, %v2470, %v1441
        %v2504 = vsel %vm2480, %v2471, %v1443
        %v2505 = vsel %vm2480, %v2472, %v1445
        %v2506 = vsel %vm2480, %v2473, %v1447
        %v2507 = vsel %vm2480, %v2474, %v1449
        %v2508 = vsel %vm2480, %v2475, %v1451
        %v2509 = vsel %vm2480, %v2476, %v1453
        %v2510 = vsel %vm2480, %v2477, %v1455
        %v2511 = vsel %vm2480, %v2478, %v1457
        %v2512 = vsel %vm2480, %v2479, %v1459
        %vm2513 = vcmask 261120
        %v2514 = vsel %vm2513, %v2481, %v1496
        %v2515 = vsel %vm2513, %v2482, %v1498
        %v2516 = vsel %vm2513, %v2483, %v1500
        %v2517 = vsel %vm2513, %v2484, %v1502
        %v2518 = vsel %vm2513, %v2485, %v1504
        %v2519 = vsel %vm2513, %v2486, %v1506
        %v2520 = vsel %vm2513, %v2487, %v1508
        %v2521 = vsel %vm2513, %v2488, %v1510
        %v2522 = vsel %vm2513, %v2489, %v1512
        %v2523 = vsel %vm2513, %v2490, %v1514
        %v2524 = vsel %vm2513, %v2491, %v1516
        %v2525 = vsel %vm2513, %v2492, %v1518
        %v2526 = vsel %vm2513, %v2493, %v1520
        %v2527 = vsel %vm2513, %v2494, %v1522
        %v2528 = vsel %vm2513, %v2495, %v1524
        %v2529 = vsel %vm2513, %v2496, %v1526
        %v2530 = vsel %vm2513, %v2497, %v1528
        %v2531 = vsel %vm2513, %v2498, %v1530
        %v2532 = vsel %vm2513, %v2499, %v1532
        %v2533 = vsel %vm2513, %v2500, %v1534
        %v2534 = vsel %vm2513, %v2501, %v1536
        %v2535 = vsel %vm2513, %v2502, %v1538
        %v2536 = vsel %vm2513, %v2503, %v1540
        %v2537 = vsel %vm2513, %v2504, %v1542
        %v2538 = vsel %vm2513, %v2505, %v1544
        %v2539 = vsel %vm2513, %v2506, %v1546
        %v2540 = vsel %vm2513, %v2507, %v1548
        %v2541 = vsel %vm2513, %v2508, %v1550
        %v2542 = vsel %vm2513, %v2509, %v1552
        %v2543 = vsel %vm2513, %v2510, %v1554
        %v2544 = vsel %vm2513, %v2511, %v1556
        %v2545 = vsel %vm2513, %v2512, %v1558
        %vm2546 = vcmask 293888
        %v2547 = vsel %vm2546, %v2514, %v1595
        %v2548 = vsel %vm2546, %v2515, %v1597
        %v2549 = vsel %vm2546, %v2516, %v1599
        %v2550 = vsel %vm2546, %v2517, %v1601
        %v2551 = vsel %vm2546, %v2518, %v1603
        %v2552 = vsel %vm2546, %v2519, %v1605
        %v2553 = vsel %vm2546, %v2520, %v1607
        %v2554 = vsel %vm2546, %v2521, %v1609
        %v2555 = vsel %vm2546, %v2522, %v1611
        %v2556 = vsel %vm2546, %v2523, %v1613
        %v2557 = vsel %vm2546, %v2524, %v1615
        %v2558 = vsel %vm2546, %v2525, %v1617
        %v2559 = vsel %vm2546, %v2526, %v1619
        %v2560 = vsel %vm2546, %v2527, %v1621
        %v2561 = vsel %vm2546, %v2528, %v1623
        %v2562 = vsel %vm2546, %v2529, %v1625
        %v2563 = vsel %vm2546, %v2530, %v1627
        %v2564 = vsel %vm2546, %v2531, %v1629
        %v2565 = vsel %vm2546, %v2532, %v1631
        %v2566 = vsel %vm2546, %v2533, %v1633
        %v2567 = vsel %vm2546, %v2534, %v1635
        %v2568 = vsel %vm2546, %v2535, %v1637
        %v2569 = vsel %vm2546, %v2536, %v1639
        %v2570 = vsel %vm2546, %v2537, %v1641
        %v2571 = vsel %vm2546, %v2538, %v1643
        %v2572 = vsel %vm2546, %v2539, %v1645
        %v2573 = vsel %vm2546, %v2540, %v1647
        %v2574 = vsel %vm2546, %v2541, %v1649
        %v2575 = vsel %vm2546, %v2542, %v1651
        %v2576 = vsel %vm2546, %v2543, %v1653
        %v2577 = vsel %vm2546, %v2544, %v1655
        %v2578 = vsel %vm2546, %v2545, %v1657
        %vm2579 = vcmask 326656
        %v2580 = vsel %vm2579, %v2547, %v1694
        %v2581 = vsel %vm2579, %v2548, %v1696
        %v2582 = vsel %vm2579, %v2549, %v1698
        %v2583 = vsel %vm2579, %v2550, %v1700
        %v2584 = vsel %vm2579, %v2551, %v1702
        %v2585 = vsel %vm2579, %v2552, %v1704
        %v2586 = vsel %vm2579, %v2553, %v1706
        %v2587 = vsel %vm2579, %v2554, %v1708
        %v2588 = vsel %vm2579, %v2555, %v1710
        %v2589 = vsel %vm2579, %v2556, %v1712
        %v2590 = vsel %vm2579, %v2557, %v1714
        %v2591 = vsel %vm2579, %v2558, %v1716
        %v2592 = vsel %vm2579, %v2559, %v1718
        %v2593 = vsel %vm2579, %v2560, %v1720
        %v2594 = vsel %vm2579, %v2561, %v1722
        %v2595 = vsel %vm2579, %v2562, %v1724
        %v2596 = vsel %vm2579, %v2563, %v1726
        %v2597 = vsel %vm2579, %v2564, %v1728
        %v2598 = vsel %vm2579, %v2565, %v1730
        %v2599 = vsel %vm2579, %v2566, %v1732
        %v2600 = vsel %vm2579, %v2567, %v1734
        %v2601 = vsel %vm2579, %v2568, %v1736
        %v2602 = vsel %vm2579, %v2569, %v1738
        %v2603 = vsel %vm2579, %v2570, %v1740
        %v2604 = vsel %vm2579, %v2571, %v1742
        %v2605 = vsel %vm2579, %v2572, %v1744
        %v2606 = vsel %vm2579, %v2573, %v1746
        %v2607 = vsel %vm2579, %v2574, %v1748
        %v2608 = vsel %vm2579, %v2575, %v1750
        %v2609 = vsel %vm2579, %v2576, %v1752
        %v2610 = vsel %vm2579, %v2577, %v1754
        %v2611 = vsel %vm2579, %v2578, %v1756
        %vm2612 = vcmask 359424
        %v2613 = vsel %vm2612, %v2580, %v1793
        %v2614 = vsel %vm2612, %v2581, %v1795
        %v2615 = vsel %vm2612, %v2582, %v1797
        %v2616 = vsel %vm2612, %v2583, %v1799
        %v2617 = vsel %vm2612, %v2584, %v1801
        %v2618 = vsel %vm2612, %v2585, %v1803
        %v2619 = vsel %vm2612, %v2586, %v1805
        %v2620 = vsel %vm2612, %v2587, %v1807
        %v2621 = vsel %vm2612, %v2588, %v1809
        %v2622 = vsel %vm2612, %v2589, %v1811
        %v2623 = vsel %vm2612, %v2590, %v1813
        %v2624 = vsel %vm2612, %v2591, %v1815
        %v2625 = vsel %vm2612, %v2592, %v1817
        %v2626 = vsel %vm2612, %v2593, %v1819
        %v2627 = vsel %vm2612, %v2594, %v1821
        %v2628 = vsel %vm2612, %v2595, %v1823
        %v2629 = vsel %vm2612, %v2596, %v1825
        %v2630 = vsel %vm2612, %v2597, %v1827
        %v2631 = vsel %vm2612, %v2598, %v1829
        %v2632 = vsel %vm2612, %v2599, %v1831
        %v2633 = vsel %vm2612, %v2600, %v1833
        %v2634 = vsel %vm2612, %v2601, %v1835
        %v2635 = vsel %vm2612, %v2602, %v1837
        %v2636 = vsel %vm2612, %v2603, %v1839
        %v2637 = vsel %vm2612, %v2604, %v1841
        %v2638 = vsel %vm2612, %v2605, %v1843
        %v2639 = vsel %vm2612, %v2606, %v1845
        %v2640 = vsel %vm2612, %v2607, %v1847
        %v2641 = vsel %vm2612, %v2608, %v1849
        %v2642 = vsel %vm2612, %v2609, %v1851
        %v2643 = vsel %vm2612, %v2610, %v1853
        %v2644 = vsel %vm2612, %v2611, %v1855
        %vm2645 = vcmask 392192
        %v2646 = vsel %vm2645, %v2613, %v1892
        %v2647 = vsel %vm2645, %v2614, %v1894
        %v2648 = vsel %vm2645, %v2615, %v1896
        %v2649 = vsel %vm2645, %v2616, %v1898
        %v2650 = vsel %vm2645, %v2617, %v1900
        %v2651 = vsel %vm2645, %v2618, %v1902
        %v2652 = vsel %vm2645, %v2619, %v1904
        %v2653 = vsel %vm2645, %v2620, %v1906
        %v2654 = vsel %vm2645, %v2621, %v1908
        %v2655 = vsel %vm2645, %v2622, %v1910
        %v2656 = vsel %vm2645, %v2623, %v1912
        %v2657 = vsel %vm2645, %v2624, %v1914
        %v2658 = vsel %vm2645, %v2625, %v1916
        %v2659 = vsel %vm2645, %v2626, %v1918
        %v2660 = vsel %vm2645, %v2627, %v1920
        %v2661 = vsel %vm2645, %v2628, %v1922
        %v2662 = vsel %vm2645, %v2629, %v1924
        %v2663 = vsel %vm2645, %v2630, %v1926
        %v2664 = vsel %vm2645, %v2631, %v1928
        %v2665 = vsel %vm2645, %v2632, %v1930
        %v2666 = vsel %vm2645, %v2633, %v1932
        %v2667 = vsel %vm2645, %v2634, %v1934
        %v2668 = vsel %vm2645, %v2635, %v1936
        %v2669 = vsel %vm2645, %v2636, %v1938
        %v2670 = vsel %vm2645, %v2637, %v1940
        %v2671 = vsel %vm2645, %v2638, %v1942
        %v2672 = vsel %vm2645, %v2639, %v1944
        %v2673 = vsel %vm2645, %v2640, %v1946
        %v2674 = vsel %vm2645, %v2641, %v1948
        %v2675 = vsel %vm2645, %v2642, %v1950
        %v2676 = vsel %vm2645, %v2643, %v1952
        %v2677 = vsel %vm2645, %v2644, %v1954
        %vm2678 = vcmask 424960
        %v2679 = vsel %vm2678, %v2646, %v1991
        %v2680 = vsel %vm2678, %v2647, %v1993
        %v2681 = vsel %vm2678, %v2648, %v1995
        %v2682 = vsel %vm2678, %v2649, %v1997
        %v2683 = vsel %vm2678, %v2650, %v1999
        %v2684 = vsel %vm2678, %v2651, %v2001
        %v2685 = vsel %vm2678, %v2652, %v2003
        %v2686 = vsel %vm2678, %v2653, %v2005
        %v2687 = vsel %vm2678, %v2654, %v2007
        %v2688 = vsel %vm2678, %v2655, %v2009
        %v2689 = vsel %vm2678, %v2656, %v2011
        %v2690 = vsel %vm2678, %v2657, %v2013
        %v2691 = vsel %vm2678, %v2658, %v2015
        %v2692 = vsel %vm2678, %v2659, %v2017
        %v2693 = vsel %vm2678, %v2660, %v2019
        %v2694 = vsel %vm2678, %v2661, %v2021
        %v2695 = vsel %vm2678, %v2662, %v2023
        %v2696 = vsel %vm2678, %v2663, %v2025
        %v2697 = vsel %vm2678, %v2664, %v2027
        %v2698 = vsel %vm2678, %v2665, %v2029
        %v2699 = vsel %vm2678, %v2666, %v2031
        %v2700 = vsel %vm2678, %v2667, %v2033
        %v2701 = vsel %vm2678, %v2668, %v2035
        %v2702 = vsel %vm2678, %v2669, %v2037
        %v2703 = vsel %vm2678, %v2670, %v2039
        %v2704 = vsel %vm2678, %v2671, %v2041
        %v2705 = vsel %vm2678, %v2672, %v2043
        %v2706 = vsel %vm2678, %v2673, %v2045
        %v2707 = vsel %vm2678, %v2674, %v2047
        %v2708 = vsel %vm2678, %v2675, %v2049
        %v2709 = vsel %vm2678, %v2676, %v2051
        %v2710 = vsel %vm2678, %v2677, %v2053
        %vm2711 = vcmask 457728
        %v2712 = vsel %vm2711, %v2679, %v2090
        %v2713 = vsel %vm2711, %v2680, %v2092
        %v2714 = vsel %vm2711, %v2681, %v2094
        %v2715 = vsel %vm2711, %v2682, %v2096
        %v2716 = vsel %vm2711, %v2683, %v2098
        %v2717 = vsel %vm2711, %v2684, %v2100
        %v2718 = vsel %vm2711, %v2685, %v2102
        %v2719 = vsel %vm2711, %v2686, %v2104
        %v2720 = vsel %vm2711, %v2687, %v2106
        %v2721 = vsel %vm2711, %v2688, %v2108
        %v2722 = vsel %vm2711, %v2689, %v2110
        %v2723 = vsel %vm2711, %v2690, %v2112
        %v2724 = vsel %vm2711, %v2691, %v2114
        %v2725 = vsel %vm2711, %v2692, %v2116
        %v2726 = vsel %vm2711, %v2693, %v2118
        %v2727 = vsel %vm2711, %v2694, %v2120
        %v2728 = vsel %vm2711, %v2695, %v2122
        %v2729 = vsel %vm2711, %v2696, %v2124
        %v2730 = vsel %vm2711, %v2697, %v2126
        %v2731 = vsel %vm2711, %v2698, %v2128
        %v2732 = vsel %vm2711, %v2699, %v2130
        %v2733 = vsel %vm2711, %v2700, %v2132
        %v2734 = vsel %vm2711, %v2701, %v2134
        %v2735 = vsel %vm2711, %v2702, %v2136
        %v2736 = vsel %vm2711, %v2703, %v2138
        %v2737 = vsel %vm2711, %v2704, %v2140
        %v2738 = vsel %vm2711, %v2705, %v2142
        %v2739 = vsel %vm2711, %v2706, %v2144
        %v2740 = vsel %vm2711, %v2707, %v2146
        %v2741 = vsel %vm2711, %v2708, %v2148
        %v2742 = vsel %vm2711, %v2709, %v2150
        %v2743 = vsel %vm2711, %v2710, %v2152
        %vm2744 = vcmask 490496
        %v2745 = vsel %vm2744, %v2712, %v2189
        %v2746 = vsel %vm2744, %v2713, %v2191
        %v2747 = vsel %vm2744, %v2714, %v2193
        %v2748 = vsel %vm2744, %v2715, %v2195
        %v2749 = vsel %vm2744, %v2716, %v2197
        %v2750 = vsel %vm2744, %v2717, %v2199
        %v2751 = vsel %vm2744, %v2718, %v2201
        %v2752 = vsel %vm2744, %v2719, %v2203
        %v2753 = vsel %vm2744, %v2720, %v2205
        %v2754 = vsel %vm2744, %v2721, %v2207
        %v2755 = vsel %vm2744, %v2722, %v2209
        %v2756 = vsel %vm2744, %v2723, %v2211
        %v2757 = vsel %vm2744, %v2724, %v2213
        %v2758 = vsel %vm2744, %v2725, %v2215
        %v2759 = vsel %vm2744, %v2726, %v2217
        %v2760 = vsel %vm2744, %v2727, %v2219
        %v2761 = vsel %vm2744, %v2728, %v2221
        %v2762 = vsel %vm2744, %v2729, %v2223
        %v2763 = vsel %vm2744, %v2730, %v2225
        %v2764 = vsel %vm2744, %v2731, %v2227
        %v2765 = vsel %vm2744, %v2732, %v2229
        %v2766 = vsel %vm2744, %v2733, %v2231
        %v2767 = vsel %vm2744, %v2734, %v2233
        %v2768 = vsel %vm2744, %v2735, %v2235
        %v2769 = vsel %vm2744, %v2736, %v2237
        %v2770 = vsel %vm2744, %v2737, %v2239
        %v2771 = vsel %vm2744, %v2738, %v2241
        %v2772 = vsel %vm2744, %v2739, %v2243
        %v2773 = vsel %vm2744, %v2740, %v2245
        %v2774 = vsel %vm2744, %v2741, %v2247
        %v2775 = vsel %vm2744, %v2742, %v2249
        %v2776 = vsel %vm2744, %v2743, %v2251
        %2780 = vrot.lane.b32.xlu0 %v507, 4
        %v2781 = vpop.permute.xlu0 %2780
        %2782 = vrot.lane.b32.xlu0 %v508, 4
        %v2783 = vpop.permute.xlu0 %2782
        %2784 = vrot.lane.b32.xlu0 %v509, 4
        %v2785 = vpop.permute.xlu0 %2784
        %2786 = vrot.lane.b32.xlu0 %v510, 4
        %v2787 = vpop.permute.xlu0 %2786
        %2788 = vrot.lane.b32.xlu0 %v511, 4
        %v2789 = vpop.permute.xlu0 %2788
        %2790 = vrot.lane.b32.xlu0 %v512, 4
        %v2791 = vpop.permute.xlu0 %2790
        %2792 = vrot.lane.b32.xlu0 %v513, 4
        %v2793 = vpop.permute.xlu0 %2792
        %2794 = vrot.lane.b32.xlu0 %v514, 4
        %v2795 = vpop.permute.xlu0 %2794
        %2796 = vrot.lane.b32.xlu0 %v515, 4
        %v2797 = vpop.permute.xlu0 %2796
        %2798 = vrot.lane.b32.xlu0 %v516, 4
        %v2799 = vpop.permute.xlu0 %2798
        %2800 = vrot.lane.b32.xlu0 %v517, 4
        %v2801 = vpop.permute.xlu0 %2800
        %2802 = vrot.lane.b32.xlu0 %v518, 4
        %v2803 = vpop.permute.xlu0 %2802
        %2804 = vrot.lane.b32.xlu0 %v519, 4
        %v2805 = vpop.permute.xlu0 %2804
        %2806 = vrot.lane.b32.xlu0 %v520, 4
        %v2807 = vpop.permute.xlu0 %2806
        %2808 = vrot.lane.b32.xlu0 %v521, 4
        %v2809 = vpop.permute.xlu0 %2808
        %2810 = vrot.lane.b32.xlu0 %v522, 4
        %v2811 = vpop.permute.xlu0 %2810
        %2812 = vrot.lane.b32.xlu0 %v523, 4
        %v2813 = vpop.permute.xlu0 %2812
        %2814 = vrot.lane.b32.xlu0 %v524, 4
        %v2815 = vpop.permute.xlu0 %2814
        %2816 = vrot.lane.b32.xlu0 %v525, 4
        %v2817 = vpop.permute.xlu0 %2816
        %2818 = vrot.lane.b32.xlu0 %v526, 4
        %v2819 = vpop.permute.xlu0 %2818
        %2820 = vrot.lane.b32.xlu0 %v527, 4
        %v2821 = vpop.permute.xlu0 %2820
        %2822 = vrot.lane.b32.xlu0 %v528, 4
        %v2823 = vpop.permute.xlu0 %2822
        %2824 = vrot.lane.b32.xlu0 %v529, 4
        %v2825 = vpop.permute.xlu0 %2824
        %2826 = vrot.lane.b32.xlu0 %v600, 4
        %v2827 = vpop.permute.xlu0 %2826
        %2828 = vrot.lane.b32.xlu0 %v601, 4
        %v2829 = vpop.permute.xlu0 %2828
        %2830 = vrot.lane.b32.xlu0 %v602, 4
        %v2831 = vpop.permute.xlu0 %2830
        %2832 = vrot.lane.b32.xlu0 %v615, 4
        %v2833 = vpop.permute.xlu0 %2832
        %2834 = vrot.lane.b32.xlu0 %v616, 4
        %v2835 = vpop.permute.xlu0 %2834
        %2836 = vrot.lane.b32.xlu0 %v617, 4
        %v2837 = vpop.permute.xlu0 %2836
        %2838 = vrot.lane.b32.xlu0 %v630, 4
        %v2839 = vpop.permute.xlu0 %2838
        %2840 = vrot.lane.b32.xlu0 %v631, 4
        %v2841 = vpop.permute.xlu0 %2840
        %2842 = vrot.lane.b32.xlu0 %v632, 4
        %v2843 = vpop.permute.xlu0 %2842
        %2879 = vrot.lane.b32.xlu0 %v539, 8
        %v2880 = vpop.permute.xlu0 %2879
        %2881 = vrot.lane.b32.xlu0 %v540, 8
        %v2882 = vpop.permute.xlu0 %2881
        %2883 = vrot.lane.b32.xlu0 %v541, 8
        %v2884 = vpop.permute.xlu0 %2883
        %2885 = vrot.lane.b32.xlu0 %v542, 8
        %v2886 = vpop.permute.xlu0 %2885
        %2887 = vrot.lane.b32.xlu0 %v543, 8
        %v2888 = vpop.permute.xlu0 %2887
        %2889 = vrot.lane.b32.xlu0 %v544, 8
        %v2890 = vpop.permute.xlu0 %2889
        %2891 = vrot.lane.b32.xlu0 %v545, 8
        %v2892 = vpop.permute.xlu0 %2891
        %2893 = vrot.lane.b32.xlu0 %v546, 8
        %v2894 = vpop.permute.xlu0 %2893
        %2895 = vrot.lane.b32.xlu0 %v547, 8
        %v2896 = vpop.permute.xlu0 %2895
        %2897 = vrot.lane.b32.xlu0 %v548, 8
        %v2898 = vpop.permute.xlu0 %2897
        %2899 = vrot.lane.b32.xlu0 %v549, 8
        %v2900 = vpop.permute.xlu0 %2899
        %2901 = vrot.lane.b32.xlu0 %v550, 8
        %v2902 = vpop.permute.xlu0 %2901
        %2903 = vrot.lane.b32.xlu0 %v551, 8
        %v2904 = vpop.permute.xlu0 %2903
        %2905 = vrot.lane.b32.xlu0 %v552, 8
        %v2906 = vpop.permute.xlu0 %2905
        %2907 = vrot.lane.b32.xlu0 %v553, 8
        %v2908 = vpop.permute.xlu0 %2907
        %2909 = vrot.lane.b32.xlu0 %v554, 8
        %v2910 = vpop.permute.xlu0 %2909
        %2911 = vrot.lane.b32.xlu0 %v555, 8
        %v2912 = vpop.permute.xlu0 %2911
        %2913 = vrot.lane.b32.xlu0 %v556, 8
        %v2914 = vpop.permute.xlu0 %2913
        %2915 = vrot.lane.b32.xlu0 %v557, 8
        %v2916 = vpop.permute.xlu0 %2915
        %2917 = vrot.lane.b32.xlu0 %v558, 8
        %v2918 = vpop.permute.xlu0 %2917
        %2919 = vrot.lane.b32.xlu0 %v559, 8
        %v2920 = vpop.permute.xlu0 %2919
        %2921 = vrot.lane.b32.xlu0 %v560, 8
        %v2922 = vpop.permute.xlu0 %2921
        %2923 = vrot.lane.b32.xlu0 %v561, 8
        %v2924 = vpop.permute.xlu0 %2923
        %2925 = vrot.lane.b32.xlu0 %v603, 8
        %v2926 = vpop.permute.xlu0 %2925
        %2927 = vrot.lane.b32.xlu0 %v604, 8
        %v2928 = vpop.permute.xlu0 %2927
        %2929 = vrot.lane.b32.xlu0 %v605, 8
        %v2930 = vpop.permute.xlu0 %2929
        %2931 = vrot.lane.b32.xlu0 %v618, 8
        %v2932 = vpop.permute.xlu0 %2931
        %2933 = vrot.lane.b32.xlu0 %v619, 8
        %v2934 = vpop.permute.xlu0 %2933
        %2935 = vrot.lane.b32.xlu0 %v620, 8
        %v2936 = vpop.permute.xlu0 %2935
        %2937 = vrot.lane.b32.xlu0 %v633, 8
        %v2938 = vpop.permute.xlu0 %2937
        %2939 = vrot.lane.b32.xlu0 %v634, 8
        %v2940 = vpop.permute.xlu0 %2939
        %2941 = vrot.lane.b32.xlu0 %v635, 8
        %v2942 = vpop.permute.xlu0 %2941
        %2978 = vrot.lane.b32.xlu0 %v571, 12
        %v2979 = vpop.permute.xlu0 %2978
        %2980 = vrot.lane.b32.xlu0 %v572, 12
        %v2981 = vpop.permute.xlu0 %2980
        %2982 = vrot.lane.b32.xlu0 %v573, 12
        %v2983 = vpop.permute.xlu0 %2982
        %2984 = vrot.lane.b32.xlu0 %v574, 12
        %v2985 = vpop.permute.xlu0 %2984
        %2986 = vrot.lane.b32.xlu0 %v575, 12
        %v2987 = vpop.permute.xlu0 %2986
        %2988 = vrot.lane.b32.xlu0 %v576, 12
        %v2989 = vpop.permute.xlu0 %2988
        %2990 = vrot.lane.b32.xlu0 %v577, 12
        %v2991 = vpop.permute.xlu0 %2990
        %2992 = vrot.lane.b32.xlu0 %v578, 12
        %v2993 = vpop.permute.xlu0 %2992
        %2994 = vrot.lane.b32.xlu0 %v579, 12
        %v2995 = vpop.permute.xlu0 %2994
        %2996 = vrot.lane.b32.xlu0 %v580, 12
        %v2997 = vpop.permute.xlu0 %2996
        %2998 = vrot.lane.b32.xlu0 %v581, 12
        %v2999 = vpop.permute.xlu0 %2998
        %3000 = vrot.lane.b32.xlu0 %v582, 12
        %v3001 = vpop.permute.xlu0 %3000
        %3002 = vrot.lane.b32.xlu0 %v583, 12
        %v3003 = vpop.permute.xlu0 %3002
        %3004 = vrot.lane.b32.xlu0 %v584, 12
        %v3005 = vpop.permute.xlu0 %3004
        %3006 = vrot.lane.b32.xlu0 %v585, 12
        %v3007 = vpop.permute.xlu0 %3006
        %3008 = vrot.lane.b32.xlu0 %v586, 12
        %v3009 = vpop.permute.xlu0 %3008
        %3010 = vrot.lane.b32.xlu0 %v587, 12
        %v3011 = vpop.permute.xlu0 %3010
        %3012 = vrot.lane.b32.xlu0 %v588, 12
        %v3013 = vpop.permute.xlu0 %3012
        %3014 = vrot.lane.b32.xlu0 %v589, 12
        %v3015 = vpop.permute.xlu0 %3014
        %3016 = vrot.lane.b32.xlu0 %v590, 12
        %v3017 = vpop.permute.xlu0 %3016
        %3018 = vrot.lane.b32.xlu0 %v591, 12
        %v3019 = vpop.permute.xlu0 %3018
        %3020 = vrot.lane.b32.xlu0 %v592, 12
        %v3021 = vpop.permute.xlu0 %3020
        %3022 = vrot.lane.b32.xlu0 %v593, 12
        %v3023 = vpop.permute.xlu0 %3022
        %3024 = vrot.lane.b32.xlu0 %v606, 12
        %v3025 = vpop.permute.xlu0 %3024
        %3026 = vrot.lane.b32.xlu0 %v607, 12
        %v3027 = vpop.permute.xlu0 %3026
        %3028 = vrot.lane.b32.xlu0 %v608, 12
        %v3029 = vpop.permute.xlu0 %3028
        %3030 = vrot.lane.b32.xlu0 %v621, 12
        %v3031 = vpop.permute.xlu0 %3030
        %3032 = vrot.lane.b32.xlu0 %v622, 12
        %v3033 = vpop.permute.xlu0 %3032
        %3034 = vrot.lane.b32.xlu0 %v623, 12
        %v3035 = vpop.permute.xlu0 %3034
        %3036 = vrot.lane.b32.xlu0 %v636, 12
        %v3037 = vpop.permute.xlu0 %3036
        %3038 = vrot.lane.b32.xlu0 %v637, 12
        %v3039 = vpop.permute.xlu0 %3038
        %3040 = vrot.lane.b32.xlu0 %v638, 12
        %v3041 = vpop.permute.xlu0 %3040
        %3077 = vrot.lane.b32.xlu0 %v446, 16
        %v3078 = vpop.permute.xlu0 %3077
        %3079 = vrot.lane.b32.xlu0 %v447, 16
        %v3080 = vpop.permute.xlu0 %3079
        %3081 = vrot.lane.b32.xlu0 %v448, 16
        %v3082 = vpop.permute.xlu0 %3081
        %3083 = vrot.lane.b32.xlu0 %v449, 16
        %v3084 = vpop.permute.xlu0 %3083
        %3085 = vrot.lane.b32.xlu0 %v450, 16
        %v3086 = vpop.permute.xlu0 %3085
        %3087 = vrot.lane.b32.xlu0 %v451, 16
        %v3088 = vpop.permute.xlu0 %3087
        %3089 = vrot.lane.b32.xlu0 %v452, 16
        %v3090 = vpop.permute.xlu0 %3089
        %3091 = vrot.lane.b32.xlu0 %v453, 16
        %v3092 = vpop.permute.xlu0 %3091
        %3093 = vrot.lane.b32.xlu0 %v454, 16
        %v3094 = vpop.permute.xlu0 %3093
        %3095 = vrot.lane.b32.xlu0 %v455, 16
        %v3096 = vpop.permute.xlu0 %3095
        %3097 = vrot.lane.b32.xlu0 %v456, 16
        %v3098 = vpop.permute.xlu0 %3097
        %3099 = vrot.lane.b32.xlu0 %v457, 16
        %v3100 = vpop.permute.xlu0 %3099
        %3101 = vrot.lane.b32.xlu0 %v458, 16
        %v3102 = vpop.permute.xlu0 %3101
        %3103 = vrot.lane.b32.xlu0 %v459, 16
        %v3104 = vpop.permute.xlu0 %3103
        %3105 = vrot.lane.b32.xlu0 %v460, 16
        %v3106 = vpop.permute.xlu0 %3105
        %3107 = vrot.lane.b32.xlu0 %v461, 16
        %v3108 = vpop.permute.xlu0 %3107
        %3109 = vrot.lane.b32.xlu0 %v462, 16
        %v3110 = vpop.permute.xlu0 %3109
        %3111 = vrot.lane.b32.xlu0 %v463, 16
        %v3112 = vpop.permute.xlu0 %3111
        %3113 = vrot.lane.b32.xlu0 %v464, 16
        %v3114 = vpop.permute.xlu0 %3113
        %3115 = vrot.lane.b32.xlu0 %v465, 16
        %v3116 = vpop.permute.xlu0 %3115
        %3117 = vrot.lane.b32.xlu0 %v594, 16
        %v3118 = vpop.permute.xlu0 %3117
        %3119 = vrot.lane.b32.xlu0 %v595, 16
        %v3120 = vpop.permute.xlu0 %3119
        %3121 = vrot.lane.b32.xlu0 %v596, 16
        %v3122 = vpop.permute.xlu0 %3121
        %3123 = vrot.lane.b32.xlu0 %v609, 16
        %v3124 = vpop.permute.xlu0 %3123
        %3125 = vrot.lane.b32.xlu0 %v610, 16
        %v3126 = vpop.permute.xlu0 %3125
        %3127 = vrot.lane.b32.xlu0 %v611, 16
        %v3128 = vpop.permute.xlu0 %3127
        %3129 = vrot.lane.b32.xlu0 %v624, 16
        %v3130 = vpop.permute.xlu0 %3129
        %3131 = vrot.lane.b32.xlu0 %v625, 16
        %v3132 = vpop.permute.xlu0 %3131
        %3133 = vrot.lane.b32.xlu0 %v626, 16
        %v3134 = vpop.permute.xlu0 %3133
        %3135 = vrot.lane.b32.xlu0 %v639, 16
        %v3136 = vpop.permute.xlu0 %3135
        %3137 = vrot.lane.b32.xlu0 %v640, 16
        %v3138 = vpop.permute.xlu0 %3137
        %3139 = vrot.lane.b32.xlu0 %v641, 16
        %v3140 = vpop.permute.xlu0 %3139
        %3179 = vrot.lane.b32.xlu0 %v478, 20
        %v3180 = vpop.permute.xlu0 %3179
        %3181 = vrot.lane.b32.xlu0 %v479, 20
        %v3182 = vpop.permute.xlu0 %3181
        %3183 = vrot.lane.b32.xlu0 %v480, 20
        %v3184 = vpop.permute.xlu0 %3183
        %3185 = vrot.lane.b32.xlu0 %v481, 20
        %v3186 = vpop.permute.xlu0 %3185
        %3187 = vrot.lane.b32.xlu0 %v482, 20
        %v3188 = vpop.permute.xlu0 %3187
        %3189 = vrot.lane.b32.xlu0 %v483, 20
        %v3190 = vpop.permute.xlu0 %3189
        %3191 = vrot.lane.b32.xlu0 %v484, 20
        %v3192 = vpop.permute.xlu0 %3191
        %3193 = vrot.lane.b32.xlu0 %v485, 20
        %v3194 = vpop.permute.xlu0 %3193
        %3195 = vrot.lane.b32.xlu0 %v486, 20
        %v3196 = vpop.permute.xlu0 %3195
        %3197 = vrot.lane.b32.xlu0 %v487, 20
        %v3198 = vpop.permute.xlu0 %3197
        %3199 = vrot.lane.b32.xlu0 %v488, 20
        %v3200 = vpop.permute.xlu0 %3199
        %3201 = vrot.lane.b32.xlu0 %v489, 20
        %v3202 = vpop.permute.xlu0 %3201
        %3203 = vrot.lane.b32.xlu0 %v490, 20
        %v3204 = vpop.permute.xlu0 %3203
        %3205 = vrot.lane.b32.xlu0 %v491, 20
        %v3206 = vpop.permute.xlu0 %3205
        %3207 = vrot.lane.b32.xlu0 %v492, 20
        %v3208 = vpop.permute.xlu0 %3207
        %3209 = vrot.lane.b32.xlu0 %v493, 20
        %v3210 = vpop.permute.xlu0 %3209
        %3211 = vrot.lane.b32.xlu0 %v494, 20
        %v3212 = vpop.permute.xlu0 %3211
        %3213 = vrot.lane.b32.xlu0 %v495, 20
        %v3214 = vpop.permute.xlu0 %3213
        %3215 = vrot.lane.b32.xlu0 %v496, 20
        %v3216 = vpop.permute.xlu0 %3215
        %3217 = vrot.lane.b32.xlu0 %v497, 20
        %v3218 = vpop.permute.xlu0 %3217
        %3219 = vrot.lane.b32.xlu0 %v597, 20
        %v3220 = vpop.permute.xlu0 %3219
        %3221 = vrot.lane.b32.xlu0 %v598, 20
        %v3222 = vpop.permute.xlu0 %3221
        %3223 = vrot.lane.b32.xlu0 %v599, 20
        %v3224 = vpop.permute.xlu0 %3223
        %3225 = vrot.lane.b32.xlu0 %v612, 20
        %v3226 = vpop.permute.xlu0 %3225
        %3227 = vrot.lane.b32.xlu0 %v613, 20
        %v3228 = vpop.permute.xlu0 %3227
        %3229 = vrot.lane.b32.xlu0 %v614, 20
        %v3230 = vpop.permute.xlu0 %3229
        %3231 = vrot.lane.b32.xlu0 %v627, 20
        %v3232 = vpop.permute.xlu0 %3231
        %3233 = vrot.lane.b32.xlu0 %v628, 20
        %v3234 = vpop.permute.xlu0 %3233
        %3235 = vrot.lane.b32.xlu0 %v629, 20
        %v3236 = vpop.permute.xlu0 %3235
        %3237 = vrot.lane.b32.xlu0 %v642, 20
        %v3238 = vpop.permute.xlu0 %3237
        %3239 = vrot.lane.b32.xlu0 %v643, 20
        %v3240 = vpop.permute.xlu0 %3239
        %3241 = vrot.lane.b32.xlu0 %v644, 20
        %v3242 = vpop.permute.xlu0 %3241
        %3278 = vrot.lane.b32.xlu0 %v510, 24
        %v3279 = vpop.permute.xlu0 %3278
        %3280 = vrot.lane.b32.xlu0 %v511, 24
        %v3281 = vpop.permute.xlu0 %3280
        %3282 = vrot.lane.b32.xlu0 %v512, 24
        %v3283 = vpop.permute.xlu0 %3282
        %3284 = vrot.lane.b32.xlu0 %v513, 24
        %v3285 = vpop.permute.xlu0 %3284
        %3286 = vrot.lane.b32.xlu0 %v514, 24
        %v3287 = vpop.permute.xlu0 %3286
        %3288 = vrot.lane.b32.xlu0 %v515, 24
        %v3289 = vpop.permute.xlu0 %3288
        %3290 = vrot.lane.b32.xlu0 %v516, 24
        %v3291 = vpop.permute.xlu0 %3290
        %3292 = vrot.lane.b32.xlu0 %v517, 24
        %v3293 = vpop.permute.xlu0 %3292
        %3294 = vrot.lane.b32.xlu0 %v518, 24
        %v3295 = vpop.permute.xlu0 %3294
        %3296 = vrot.lane.b32.xlu0 %v519, 24
        %v3297 = vpop.permute.xlu0 %3296
        %3298 = vrot.lane.b32.xlu0 %v520, 24
        %v3299 = vpop.permute.xlu0 %3298
        %3300 = vrot.lane.b32.xlu0 %v521, 24
        %v3301 = vpop.permute.xlu0 %3300
        %3302 = vrot.lane.b32.xlu0 %v522, 24
        %v3303 = vpop.permute.xlu0 %3302
        %3304 = vrot.lane.b32.xlu0 %v523, 24
        %v3305 = vpop.permute.xlu0 %3304
        %3306 = vrot.lane.b32.xlu0 %v524, 24
        %v3307 = vpop.permute.xlu0 %3306
        %3308 = vrot.lane.b32.xlu0 %v525, 24
        %v3309 = vpop.permute.xlu0 %3308
        %3310 = vrot.lane.b32.xlu0 %v526, 24
        %v3311 = vpop.permute.xlu0 %3310
        %3312 = vrot.lane.b32.xlu0 %v527, 24
        %v3313 = vpop.permute.xlu0 %3312
        %3314 = vrot.lane.b32.xlu0 %v528, 24
        %v3315 = vpop.permute.xlu0 %3314
        %3316 = vrot.lane.b32.xlu0 %v529, 24
        %v3317 = vpop.permute.xlu0 %3316
        %3318 = vrot.lane.b32.xlu0 %v600, 24
        %v3319 = vpop.permute.xlu0 %3318
        %3320 = vrot.lane.b32.xlu0 %v601, 24
        %v3321 = vpop.permute.xlu0 %3320
        %3322 = vrot.lane.b32.xlu0 %v602, 24
        %v3323 = vpop.permute.xlu0 %3322
        %3324 = vrot.lane.b32.xlu0 %v615, 24
        %v3325 = vpop.permute.xlu0 %3324
        %3326 = vrot.lane.b32.xlu0 %v616, 24
        %v3327 = vpop.permute.xlu0 %3326
        %3328 = vrot.lane.b32.xlu0 %v617, 24
        %v3329 = vpop.permute.xlu0 %3328
        %3330 = vrot.lane.b32.xlu0 %v630, 24
        %v3331 = vpop.permute.xlu0 %3330
        %3332 = vrot.lane.b32.xlu0 %v631, 24
        %v3333 = vpop.permute.xlu0 %3332
        %3334 = vrot.lane.b32.xlu0 %v632, 24
        %v3335 = vpop.permute.xlu0 %3334
        %3336 = vrot.lane.b32.xlu0 %v645, 24
        %v3337 = vpop.permute.xlu0 %3336
        %3338 = vrot.lane.b32.xlu0 %v646, 24
        %v3339 = vpop.permute.xlu0 %3338
        %3340 = vrot.lane.b32.xlu0 %v647, 24
        %v3341 = vpop.permute.xlu0 %3340
        %3377 = vrot.lane.b32.xlu0 %v542, 28
        %v3378 = vpop.permute.xlu0 %3377
        %3379 = vrot.lane.b32.xlu0 %v543, 28
        %v3380 = vpop.permute.xlu0 %3379
        %3381 = vrot.lane.b32.xlu0 %v544, 28
        %v3382 = vpop.permute.xlu0 %3381
        %3383 = vrot.lane.b32.xlu0 %v545, 28
        %v3384 = vpop.permute.xlu0 %3383
        %3385 = vrot.lane.b32.xlu0 %v546, 28
        %v3386 = vpop.permute.xlu0 %3385
        %3387 = vrot.lane.b32.xlu0 %v547, 28
        %v3388 = vpop.permute.xlu0 %3387
        %3389 = vrot.lane.b32.xlu0 %v548, 28
        %v3390 = vpop.permute.xlu0 %3389
        %3391 = vrot.lane.b32.xlu0 %v549, 28
        %v3392 = vpop.permute.xlu0 %3391
        %3393 = vrot.lane.b32.xlu0 %v550, 28
        %v3394 = vpop.permute.xlu0 %3393
        %3395 = vrot.lane.b32.xlu0 %v551, 28
        %v3396 = vpop.permute.xlu0 %3395
        %3397 = vrot.lane.b32.xlu0 %v552, 28
        %v3398 = vpop.permute.xlu0 %3397
        %3399 = vrot.lane.b32.xlu0 %v553, 28
        %v3400 = vpop.permute.xlu0 %3399
        %3401 = vrot.lane.b32.xlu0 %v554, 28
        %v3402 = vpop.permute.xlu0 %3401
        %3403 = vrot.lane.b32.xlu0 %v555, 28
        %v3404 = vpop.permute.xlu0 %3403
        %3405 = vrot.lane.b32.xlu0 %v556, 28
        %v3406 = vpop.permute.xlu0 %3405
        %3407 = vrot.lane.b32.xlu0 %v557, 28
        %v3408 = vpop.permute.xlu0 %3407
        %3409 = vrot.lane.b32.xlu0 %v558, 28
        %v3410 = vpop.permute.xlu0 %3409
        %3411 = vrot.lane.b32.xlu0 %v559, 28
        %v3412 = vpop.permute.xlu0 %3411
        %3413 = vrot.lane.b32.xlu0 %v560, 28
        %v3414 = vpop.permute.xlu0 %3413
        %3415 = vrot.lane.b32.xlu0 %v561, 28
        %v3416 = vpop.permute.xlu0 %3415
        %3417 = vrot.lane.b32.xlu0 %v603, 28
        %v3418 = vpop.permute.xlu0 %3417
        %3419 = vrot.lane.b32.xlu0 %v604, 28
        %v3420 = vpop.permute.xlu0 %3419
        %3421 = vrot.lane.b32.xlu0 %v605, 28
        %v3422 = vpop.permute.xlu0 %3421
        %3423 = vrot.lane.b32.xlu0 %v618, 28
        %v3424 = vpop.permute.xlu0 %3423
        %3425 = vrot.lane.b32.xlu0 %v619, 28
        %v3426 = vpop.permute.xlu0 %3425
        %3427 = vrot.lane.b32.xlu0 %v620, 28
        %v3428 = vpop.permute.xlu0 %3427
        %3429 = vrot.lane.b32.xlu0 %v633, 28
        %v3430 = vpop.permute.xlu0 %3429
        %3431 = vrot.lane.b32.xlu0 %v634, 28
        %v3432 = vpop.permute.xlu0 %3431
        %3433 = vrot.lane.b32.xlu0 %v635, 28
        %v3434 = vpop.permute.xlu0 %3433
        %3435 = vrot.lane.b32.xlu0 %v648, 28
        %v3436 = vpop.permute.xlu0 %3435
        %3437 = vrot.lane.b32.xlu0 %v649, 28
        %v3438 = vpop.permute.xlu0 %3437
        %3439 = vrot.lane.b32.xlu0 %v650, 28
        %v3440 = vpop.permute.xlu0 %3439
        %3476 = vrot.lane.b32.xlu0 %v574, 32
        %v3477 = vpop.permute.xlu0 %3476
        %3478 = vrot.lane.b32.xlu0 %v575, 32
        %v3479 = vpop.permute.xlu0 %3478
        %3480 = vrot.lane.b32.xlu0 %v576, 32
        %v3481 = vpop.permute.xlu0 %3480
        %3482 = vrot.lane.b32.xlu0 %v577, 32
        %v3483 = vpop.permute.xlu0 %3482
        %3484 = vrot.lane.b32.xlu0 %v578, 32
        %v3485 = vpop.permute.xlu0 %3484
        %3486 = vrot.lane.b32.xlu0 %v579, 32
        %v3487 = vpop.permute.xlu0 %3486
        %3488 = vrot.lane.b32.xlu0 %v580, 32
        %v3489 = vpop.permute.xlu0 %3488
        %3490 = vrot.lane.b32.xlu0 %v581, 32
        %v3491 = vpop.permute.xlu0 %3490
        %3492 = vrot.lane.b32.xlu0 %v582, 32
        %v3493 = vpop.permute.xlu0 %3492
        %3494 = vrot.lane.b32.xlu0 %v583, 32
        %v3495 = vpop.permute.xlu0 %3494
        %3496 = vrot.lane.b32.xlu0 %v584, 32
        %v3497 = vpop.permute.xlu0 %3496
        %3498 = vrot.lane.b32.xlu0 %v585, 32
        %v3499 = vpop.permute.xlu0 %3498
        %3500 = vrot.lane.b32.xlu0 %v586, 32
        %v3501 = vpop.permute.xlu0 %3500
        %3502 = vrot.lane.b32.xlu0 %v587, 32
        %v3503 = vpop.permute.xlu0 %3502
        %3504 = vrot.lane.b32.xlu0 %v588, 32
        %v3505 = vpop.permute.xlu0 %3504
        %3506 = vrot.lane.b32.xlu0 %v589, 32
        %v3507 = vpop.permute.xlu0 %3506
        %3508 = vrot.lane.b32.xlu0 %v590, 32
        %v3509 = vpop.permute.xlu0 %3508
        %3510 = vrot.lane.b32.xlu0 %v591, 32
        %v3511 = vpop.permute.xlu0 %3510
        %3512 = vrot.lane.b32.xlu0 %v592, 32
        %v3513 = vpop.permute.xlu0 %3512
        %3514 = vrot.lane.b32.xlu0 %v593, 32
        %v3515 = vpop.permute.xlu0 %3514
        %3516 = vrot.lane.b32.xlu0 %v606, 32
        %v3517 = vpop.permute.xlu0 %3516
        %3518 = vrot.lane.b32.xlu0 %v607, 32
        %v3519 = vpop.permute.xlu0 %3518
        %3520 = vrot.lane.b32.xlu0 %v608, 32
        %v3521 = vpop.permute.xlu0 %3520
        %3522 = vrot.lane.b32.xlu0 %v621, 32
        %v3523 = vpop.permute.xlu0 %3522
        %3524 = vrot.lane.b32.xlu0 %v622, 32
        %v3525 = vpop.permute.xlu0 %3524
        %3526 = vrot.lane.b32.xlu0 %v623, 32
        %v3527 = vpop.permute.xlu0 %3526
        %3528 = vrot.lane.b32.xlu0 %v636, 32
        %v3529 = vpop.permute.xlu0 %3528
        %3530 = vrot.lane.b32.xlu0 %v637, 32
        %v3531 = vpop.permute.xlu0 %3530
        %3532 = vrot.lane.b32.xlu0 %v638, 32
        %v3533 = vpop.permute.xlu0 %3532
        %3534 = vrot.lane.b32.xlu0 %v651, 32
        %v3535 = vpop.permute.xlu0 %3534
        %3536 = vrot.lane.b32.xlu0 %v652, 32
        %v3537 = vpop.permute.xlu0 %3536
        %3538 = vrot.lane.b32.xlu0 %v653, 32
        %v3539 = vpop.permute.xlu0 %3538
        %v3572 = vsel %vm2284, %v475, %v2781
        %v3573 = vsel %vm2284, %v476, %v2783
        %v3574 = vsel %vm2284, %v477, %v2785
        %v3575 = vsel %vm2284, %v478, %v2787
        %v3576 = vsel %vm2284, %v479, %v2789
        %v3577 = vsel %vm2284, %v480, %v2791
        %v3578 = vsel %vm2284, %v481, %v2793
        %v3579 = vsel %vm2284, %v482, %v2795
        %v3580 = vsel %vm2284, %v483, %v2797
        %v3581 = vsel %vm2284, %v484, %v2799
        %v3582 = vsel %vm2284, %v485, %v2801
        %v3583 = vsel %vm2284, %v486, %v2803
        %v3584 = vsel %vm2284, %v487, %v2805
        %v3585 = vsel %vm2284, %v488, %v2807
        %v3586 = vsel %vm2284, %v489, %v2809
        %v3587 = vsel %vm2284, %v490, %v2811
        %v3588 = vsel %vm2284, %v491, %v2813
        %v3589 = vsel %vm2284, %v492, %v2815
        %v3590 = vsel %vm2284, %v493, %v2817
        %v3591 = vsel %vm2284, %v494, %v2819
        %v3592 = vsel %vm2284, %v495, %v2821
        %v3593 = vsel %vm2284, %v496, %v2823
        %v3594 = vsel %vm2284, %v497, %v2825
        %v3595 = vsel %vm2284, %v597, %v2827
        %v3596 = vsel %vm2284, %v598, %v2829
        %v3597 = vsel %vm2284, %v599, %v2831
        %v3598 = vsel %vm2284, %v612, %v2833
        %v3599 = vsel %vm2284, %v613, %v2835
        %v3600 = vsel %vm2284, %v614, %v2837
        %v3601 = vsel %vm2284, %v627, %v2839
        %v3602 = vsel %vm2284, %v628, %v2841
        %v3603 = vsel %vm2284, %v629, %v2843
        %v3604 = vsel %vm384, %v3572, %v2880
        %v3605 = vsel %vm384, %v3573, %v2882
        %v3606 = vsel %vm384, %v3574, %v2884
        %v3607 = vsel %vm384, %v3575, %v2886
        %v3608 = vsel %vm384, %v3576, %v2888
        %v3609 = vsel %vm384, %v3577, %v2890
        %v3610 = vsel %vm384, %v3578, %v2892
        %v3611 = vsel %vm384, %v3579, %v2894
        %v3612 = vsel %vm384, %v3580, %v2896
        %v3613 = vsel %vm384, %v3581, %v2898
        %v3614 = vsel %vm384, %v3582, %v2900
        %v3615 = vsel %vm384, %v3583, %v2902
        %v3616 = vsel %vm384, %v3584, %v2904
        %v3617 = vsel %vm384, %v3585, %v2906
        %v3618 = vsel %vm384, %v3586, %v2908
        %v3619 = vsel %vm384, %v3587, %v2910
        %v3620 = vsel %vm384, %v3588, %v2912
        %v3621 = vsel %vm384, %v3589, %v2914
        %v3622 = vsel %vm384, %v3590, %v2916
        %v3623 = vsel %vm384, %v3591, %v2918
        %v3624 = vsel %vm384, %v3592, %v2920
        %v3625 = vsel %vm384, %v3593, %v2922
        %v3626 = vsel %vm384, %v3594, %v2924
        %v3627 = vsel %vm384, %v3595, %v2926
        %v3628 = vsel %vm384, %v3596, %v2928
        %v3629 = vsel %vm384, %v3597, %v2930
        %v3630 = vsel %vm384, %v3598, %v2932
        %v3631 = vsel %vm384, %v3599, %v2934
        %v3632 = vsel %vm384, %v3600, %v2936
        %v3633 = vsel %vm384, %v3601, %v2938
        %v3634 = vsel %vm384, %v3602, %v2940
        %v3635 = vsel %vm384, %v3603, %v2942
        %v3636 = vsel %vm2349, %v3604, %v2979
        %v3637 = vsel %vm2349, %v3605, %v2981
        %v3638 = vsel %vm2349, %v3606, %v2983
        %v3639 = vsel %vm2349, %v3607, %v2985
        %v3640 = vsel %vm2349, %v3608, %v2987
        %v3641 = vsel %vm2349, %v3609, %v2989
        %v3642 = vsel %vm2349, %v3610, %v2991
        %v3643 = vsel %vm2349, %v3611, %v2993
        %v3644 = vsel %vm2349, %v3612, %v2995
        %v3645 = vsel %vm2349, %v3613, %v2997
        %v3646 = vsel %vm2349, %v3614, %v2999
        %v3647 = vsel %vm2349, %v3615, %v3001
        %v3648 = vsel %vm2349, %v3616, %v3003
        %v3649 = vsel %vm2349, %v3617, %v3005
        %v3650 = vsel %vm2349, %v3618, %v3007
        %v3651 = vsel %vm2349, %v3619, %v3009
        %v3652 = vsel %vm2349, %v3620, %v3011
        %v3653 = vsel %vm2349, %v3621, %v3013
        %v3654 = vsel %vm2349, %v3622, %v3015
        %v3655 = vsel %vm2349, %v3623, %v3017
        %v3656 = vsel %vm2349, %v3624, %v3019
        %v3657 = vsel %vm2349, %v3625, %v3021
        %v3658 = vsel %vm2349, %v3626, %v3023
        %v3659 = vsel %vm2349, %v3627, %v3025
        %v3660 = vsel %vm2349, %v3628, %v3027
        %v3661 = vsel %vm2349, %v3629, %v3029
        %v3662 = vsel %vm2349, %v3630, %v3031
        %v3663 = vsel %vm2349, %v3631, %v3033
        %v3664 = vsel %vm2349, %v3632, %v3035
        %v3665 = vsel %vm2349, %v3633, %v3037
        %v3666 = vsel %vm2349, %v3634, %v3039
        %v3667 = vsel %vm2349, %v3635, %v3041
        %v3668 = vsel %vm413, %v3636, %v3078
        %v3669 = vsel %vm413, %v3637, %v3080
        %v3670 = vsel %vm413, %v3638, %v3082
        %v3671 = vsel %vm413, %v3639, %v3084
        %v3672 = vsel %vm413, %v3640, %v3086
        %v3673 = vsel %vm413, %v3641, %v3088
        %v3674 = vsel %vm413, %v3642, %v3090
        %v3675 = vsel %vm413, %v3643, %v3092
        %v3676 = vsel %vm413, %v3644, %v3094
        %v3677 = vsel %vm413, %v3645, %v3096
        %v3678 = vsel %vm413, %v3646, %v3098
        %v3679 = vsel %vm413, %v3647, %v3100
        %v3680 = vsel %vm413, %v3648, %v3102
        %v3681 = vsel %vm413, %v3649, %v3104
        %v3682 = vsel %vm413, %v3650, %v3106
        %v3683 = vsel %vm413, %v3651, %v3108
        %v3684 = vsel %vm413, %v3652, %v3110
        %v3685 = vsel %vm413, %v3653, %v3112
        %v3686 = vsel %vm413, %v3654, %v3114
        %v3687 = vsel %vm413, %v3655, %v3116
        %v3688 = vsel %vm413, %v3656, %v3118
        %v3689 = vsel %vm413, %v3657, %v3120
        %v3690 = vsel %vm413, %v3658, %v3122
        %v3691 = vsel %vm413, %v3659, %v3124
        %v3692 = vsel %vm413, %v3660, %v3126
        %v3693 = vsel %vm413, %v3661, %v3128
        %v3694 = vsel %vm413, %v3662, %v3130
        %v3695 = vsel %vm413, %v3663, %v3132
        %v3696 = vsel %vm413, %v3664, %v3134
        %v3697 = vsel %vm413, %v3665, %v3136
        %v3698 = vsel %vm413, %v3666, %v3138
        %v3699 = vsel %vm413, %v3667, %v3140
        %v3700 = vsel %vm2414, %v3668, %v3180
        %v3701 = vsel %vm2414, %v3669, %v3182
        %v3702 = vsel %vm2414, %v3670, %v3184
        %v3703 = vsel %vm2414, %v3671, %v3186
        %v3704 = vsel %vm2414, %v3672, %v3188
        %v3705 = vsel %vm2414, %v3673, %v3190
        %v3706 = vsel %vm2414, %v3674, %v3192
        %v3707 = vsel %vm2414, %v3675, %v3194
        %v3708 = vsel %vm2414, %v3676, %v3196
        %v3709 = vsel %vm2414, %v3677, %v3198
        %v3710 = vsel %vm2414, %v3678, %v3200
        %v3711 = vsel %vm2414, %v3679, %v3202
        %v3712 = vsel %vm2414, %v3680, %v3204
        %v3713 = vsel %vm2414, %v3681, %v3206
        %v3714 = vsel %vm2414, %v3682, %v3208
        %v3715 = vsel %vm2414, %v3683, %v3210
        %v3716 = vsel %vm2414, %v3684, %v3212
        %v3717 = vsel %vm2414, %v3685, %v3214
        %v3718 = vsel %vm2414, %v3686, %v3216
        %v3719 = vsel %vm2414, %v3687, %v3218
        %v3720 = vsel %vm2414, %v3688, %v3220
        %v3721 = vsel %vm2414, %v3689, %v3222
        %v3722 = vsel %vm2414, %v3690, %v3224
        %v3723 = vsel %vm2414, %v3691, %v3226
        %v3724 = vsel %vm2414, %v3692, %v3228
        %v3725 = vsel %vm2414, %v3693, %v3230
        %v3726 = vsel %vm2414, %v3694, %v3232
        %v3727 = vsel %vm2414, %v3695, %v3234
        %v3728 = vsel %vm2414, %v3696, %v3236
        %v3729 = vsel %vm2414, %v3697, %v3238
        %v3730 = vsel %vm2414, %v3698, %v3240
        %v3731 = vsel %vm2414, %v3699, %v3242
        %v3732 = vsel %vm2447, %v3700, %v3279
        %v3733 = vsel %vm2447, %v3701, %v3281
        %v3734 = vsel %vm2447, %v3702, %v3283
        %v3735 = vsel %vm2447, %v3703, %v3285
        %v3736 = vsel %vm2447, %v3704, %v3287
        %v3737 = vsel %vm2447, %v3705, %v3289
        %v3738 = vsel %vm2447, %v3706, %v3291
        %v3739 = vsel %vm2447, %v3707, %v3293
        %v3740 = vsel %vm2447, %v3708, %v3295
        %v3741 = vsel %vm2447, %v3709, %v3297
        %v3742 = vsel %vm2447, %v3710, %v3299
        %v3743 = vsel %vm2447, %v3711, %v3301
        %v3744 = vsel %vm2447, %v3712, %v3303
        %v3745 = vsel %vm2447, %v3713, %v3305
        %v3746 = vsel %vm2447, %v3714, %v3307
        %v3747 = vsel %vm2447, %v3715, %v3309
        %v3748 = vsel %vm2447, %v3716, %v3311
        %v3749 = vsel %vm2447, %v3717, %v3313
        %v3750 = vsel %vm2447, %v3718, %v3315
        %v3751 = vsel %vm2447, %v3719, %v3317
        %v3752 = vsel %vm2447, %v3720, %v3319
        %v3753 = vsel %vm2447, %v3721, %v3321
        %v3754 = vsel %vm2447, %v3722, %v3323
        %v3755 = vsel %vm2447, %v3723, %v3325
        %v3756 = vsel %vm2447, %v3724, %v3327
        %v3757 = vsel %vm2447, %v3725, %v3329
        %v3758 = vsel %vm2447, %v3726, %v3331
        %v3759 = vsel %vm2447, %v3727, %v3333
        %v3760 = vsel %vm2447, %v3728, %v3335
        %v3761 = vsel %vm2447, %v3729, %v3337
        %v3762 = vsel %vm2447, %v3730, %v3339
        %v3763 = vsel %vm2447, %v3731, %v3341
        %v3764 = vsel %vm2480, %v3732, %v3378
        %v3765 = vsel %vm2480, %v3733, %v3380
        %v3766 = vsel %vm2480, %v3734, %v3382
        %v3767 = vsel %vm2480, %v3735, %v3384
        %v3768 = vsel %vm2480, %v3736, %v3386
        %v3769 = vsel %vm2480, %v3737, %v3388
        %v3770 = vsel %vm2480, %v3738, %v3390
        %v3771 = vsel %vm2480, %v3739, %v3392
        %v3772 = vsel %vm2480, %v3740, %v3394
        %v3773 = vsel %vm2480, %v3741, %v3396
        %v3774 = vsel %vm2480, %v3742, %v3398
        %v3775 = vsel %vm2480, %v3743, %v3400
        %v3776 = vsel %vm2480, %v3744, %v3402
        %v3777 = vsel %vm2480, %v3745, %v3404
        %v3778 = vsel %vm2480, %v3746, %v3406
        %v3779 = vsel %vm2480, %v3747, %v3408
        %v3780 = vsel %vm2480, %v3748, %v3410
        %v3781 = vsel %vm2480, %v3749, %v3412
        %v3782 = vsel %vm2480, %v3750, %v3414
        %v3783 = vsel %vm2480, %v3751, %v3416
        %v3784 = vsel %vm2480, %v3752, %v3418
        %v3785 = vsel %vm2480, %v3753, %v3420
        %v3786 = vsel %vm2480, %v3754, %v3422
        %v3787 = vsel %vm2480, %v3755, %v3424
        %v3788 = vsel %vm2480, %v3756, %v3426
        %v3789 = vsel %vm2480, %v3757, %v3428
        %v3790 = vsel %vm2480, %v3758, %v3430
        %v3791 = vsel %vm2480, %v3759, %v3432
        %v3792 = vsel %vm2480, %v3760, %v3434
        %v3793 = vsel %vm2480, %v3761, %v3436
        %v3794 = vsel %vm2480, %v3762, %v3438
        %v3795 = vsel %vm2480, %v3763, %v3440
        %v3796 = vsel %vm2513, %v3764, %v3477
        %v3797 = vsel %vm2513, %v3765, %v3479
        %v3798 = vsel %vm2513, %v3766, %v3481
        %v3799 = vsel %vm2513, %v3767, %v3483
        %v3800 = vsel %vm2513, %v3768, %v3485
        %v3801 = vsel %vm2513, %v3769, %v3487
        %v3802 = vsel %vm2513, %v3770, %v3489
        %v3803 = vsel %vm2513, %v3771, %v3491
        %v3804 = vsel %vm2513, %v3772, %v3493
        %v3805 = vsel %vm2513, %v3773, %v3495
        %v3806 = vsel %vm2513, %v3774, %v3497
        %v3807 = vsel %vm2513, %v3775, %v3499
        %v3808 = vsel %vm2513, %v3776, %v3501
        %v3809 = vsel %vm2513, %v3777, %v3503
        %v3810 = vsel %vm2513, %v3778, %v3505
        %v3811 = vsel %vm2513, %v3779, %v3507
        %v3812 = vsel %vm2513, %v3780, %v3509
        %v3813 = vsel %vm2513, %v3781, %v3511
        %v3814 = vsel %vm2513, %v3782, %v3513
        %v3815 = vsel %vm2513, %v3783, %v3515
        %v3816 = vsel %vm2513, %v3784, %v3517
        %v3817 = vsel %vm2513, %v3785, %v3519
        %v3818 = vsel %vm2513, %v3786, %v3521
        %v3819 = vsel %vm2513, %v3787, %v3523
        %v3820 = vsel %vm2513, %v3788, %v3525
        %v3821 = vsel %vm2513, %v3789, %v3527
        %v3822 = vsel %vm2513, %v3790, %v3529
        %v3823 = vsel %vm2513, %v3791, %v3531
        %v3824 = vsel %vm2513, %v3792, %v3533
        %v3825 = vsel %vm2513, %v3793, %v3535
        %v3826 = vsel %vm2513, %v3794, %v3537
        %v3827 = vsel %vm2513, %v3795, %v3539
        %3860 = vrot.lane.b32.xlu0 %v3796, 64
        %v3861 = vpop.permute.xlu0 %3860
        %3862 = vrot.lane.b32.xlu0 %v3797, 64
        %v3863 = vpop.permute.xlu0 %3862
        %3864 = vrot.lane.b32.xlu0 %v3798, 64
        %v3865 = vpop.permute.xlu0 %3864
        %3866 = vrot.lane.b32.xlu0 %v3799, 64
        %v3867 = vpop.permute.xlu0 %3866
        %3868 = vrot.lane.b32.xlu0 %v3800, 64
        %v3869 = vpop.permute.xlu0 %3868
        %3870 = vrot.lane.b32.xlu0 %v3801, 64
        %v3871 = vpop.permute.xlu0 %3870
        %3872 = vrot.lane.b32.xlu0 %v3802, 64
        %v3873 = vpop.permute.xlu0 %3872
        %3874 = vrot.lane.b32.xlu0 %v3803, 64
        %v3875 = vpop.permute.xlu0 %3874
        %3876 = vrot.lane.b32.xlu0 %v3804, 64
        %v3877 = vpop.permute.xlu0 %3876
        %3878 = vrot.lane.b32.xlu0 %v3805, 64
        %v3879 = vpop.permute.xlu0 %3878
        %3880 = vrot.lane.b32.xlu0 %v3806, 64
        %v3881 = vpop.permute.xlu0 %3880
        %3882 = vrot.lane.b32.xlu0 %v3807, 64
        %v3883 = vpop.permute.xlu0 %3882
        %3884 = vrot.lane.b32.xlu0 %v3808, 64
        %v3885 = vpop.permute.xlu0 %3884
        %3886 = vrot.lane.b32.xlu0 %v3809, 64
        %v3887 = vpop.permute.xlu0 %3886
        %3888 = vrot.lane.b32.xlu0 %v3810, 64
        %v3889 = vpop.permute.xlu0 %3888
        %3890 = vrot.lane.b32.xlu0 %v3811, 64
        %v3891 = vpop.permute.xlu0 %3890
        %3892 = vrot.lane.b32.xlu0 %v3812, 64
        %v3893 = vpop.permute.xlu0 %3892
        %3894 = vrot.lane.b32.xlu0 %v3813, 64
        %v3895 = vpop.permute.xlu0 %3894
        %3896 = vrot.lane.b32.xlu0 %v3814, 64
        %v3897 = vpop.permute.xlu0 %3896
        %3898 = vrot.lane.b32.xlu0 %v3815, 64
        %v3899 = vpop.permute.xlu0 %3898
        %3900 = vrot.lane.b32.xlu0 %v3816, 64
        %v3901 = vpop.permute.xlu0 %3900
        %3902 = vrot.lane.b32.xlu0 %v3817, 64
        %v3903 = vpop.permute.xlu0 %3902
        %3904 = vrot.lane.b32.xlu0 %v3818, 64
        %v3905 = vpop.permute.xlu0 %3904
        %3906 = vrot.lane.b32.xlu0 %v3819, 64
        %v3907 = vpop.permute.xlu0 %3906
        %3908 = vrot.lane.b32.xlu0 %v3820, 64
        %v3909 = vpop.permute.xlu0 %3908
        %3910 = vrot.lane.b32.xlu0 %v3821, 64
        %v3911 = vpop.permute.xlu0 %3910
        %3912 = vrot.lane.b32.xlu0 %v3822, 64
        %v3913 = vpop.permute.xlu0 %3912
        %3914 = vrot.lane.b32.xlu0 %v3823, 64
        %v3915 = vpop.permute.xlu0 %3914
        %3916 = vrot.lane.b32.xlu0 %v3824, 64
        %v3917 = vpop.permute.xlu0 %3916
        %3918 = vrot.lane.b32.xlu0 %v3825, 64
        %v3919 = vpop.permute.xlu0 %3918
        %3920 = vrot.lane.b32.xlu0 %v3826, 64
        %v3921 = vpop.permute.xlu0 %3920
        %3922 = vrot.lane.b32.xlu0 %v3827, 64
        %v3923 = vpop.permute.xlu0 %3922
        %vm3956 = vcmask 523264
        %v3957 = vsel %vm3956, %v2745, %v3861
        %v3958 = vsel %vm3956, %v2746, %v3863
        %v3959 = vsel %vm3956, %v2747, %v3865
        %v3960 = vsel %vm3956, %v2748, %v3867
        %v3961 = vsel %vm3956, %v2749, %v3869
        %v3962 = vsel %vm3956, %v2750, %v3871
        %v3963 = vsel %vm3956, %v2751, %v3873
        %v3964 = vsel %vm3956, %v2752, %v3875
        %v3965 = vsel %vm3956, %v2753, %v3877
        %v3966 = vsel %vm3956, %v2754, %v3879
        %v3967 = vsel %vm3956, %v2755, %v3881
        %v3968 = vsel %vm3956, %v2756, %v3883
        %v3969 = vsel %vm3956, %v2757, %v3885
        %v3970 = vsel %vm3956, %v2758, %v3887
        %v3971 = vsel %vm3956, %v2759, %v3889
        %v3972 = vsel %vm3956, %v2760, %v3891
        %v3973 = vsel %vm3956, %v2761, %v3893
        %v3974 = vsel %vm3956, %v2762, %v3895
        %v3975 = vsel %vm3956, %v2763, %v3897
        %v3976 = vsel %vm3956, %v2764, %v3899
        %v3977 = vsel %vm3956, %v2765, %v3901
        %v3978 = vsel %vm3956, %v2766, %v3903
        %v3979 = vsel %vm3956, %v2767, %v3905
        %v3980 = vsel %vm3956, %v2768, %v3907
        %v3981 = vsel %vm3956, %v2769, %v3909
        %v3982 = vsel %vm3956, %v2770, %v3911
        %v3983 = vsel %vm3956, %v2771, %v3913
        %v3984 = vsel %vm3956, %v2772, %v3915
        %v3985 = vsel %vm3956, %v2773, %v3917
        %v3986 = vsel %vm3956, %v2774, %v3919
        %v3987 = vsel %vm3956, %v2775, %v3921
        %v3988 = vsel %vm3956, %v2776, %v3923
        %vm3989 = vcmask 818176
        %v3991 = vsel %vm3989, %v3957, 0
        %v3994 = vsel %vm3989, %v3958, 0
        %v3997 = vsel %vm3989, %v3959, 0
        %v4000 = vsel %vm3989, %v3960, 0
        %v4003 = vsel %vm3989, %v3961, 0
        %v4006 = vsel %vm3989, %v3962, 0
        %v4009 = vsel %vm3989, %v3963, 0
        %v4012 = vsel %vm3989, %v3964, 0
        %v4015 = vsel %vm3989, %v3965, 0
        %v4018 = vsel %vm3989, %v3966, 0
        %v4021 = vsel %vm3989, %v3967, 0
        %v4024 = vsel %vm3989, %v3968, 0
        %v4027 = vsel %vm3989, %v3969, 0
        %v4030 = vsel %vm3989, %v3970, 0
        %v4033 = vsel %vm3989, %v3971, 0
        %v4036 = vsel %vm3989, %v3972, 0
        %v4039 = vsel %vm3989, %v3973, 0
        %v4042 = vsel %vm3989, %v3974, 0
        %v4045 = vsel %vm3989, %v3975, 0
        %v4048 = vsel %vm3989, %v3976, 0
        %v4051 = vsel %vm3989, %v3977, 0
        %v4054 = vsel %vm3989, %v3978, 0
        %v4057 = vsel %vm3989, %v3979, 0
        %v4060 = vsel %vm3989, %v3980, 0
        %v4063 = vsel %vm3989, %v3981, 0
        %v4066 = vsel %vm3989, %v3982, 0
        %v4069 = vsel %vm3989, %v3983, 0
        %v4072 = vsel %vm3989, %v3984, 0
        %v4075 = vsel %vm3989, %v3985, 0
        %v4078 = vsel %vm3989, %v3986, 0
        %v4081 = vsel %vm3989, %v3987, 0
        %v4084 = vsel %vm3989, %v3988, 0
        %vm4086 = vcmask 1043456
        %v4088 = vsel %vm4086, %v433, 0
        %4090 = vmatpush.msra.mxu0 0.0
        %4091 = vmatpush.msra.mxu0 0.0
        %4092 = vmatpush.msra.mxu0 0.0
        %4093 = vmatpush.msra.mxu0 %v4088
        %4094 = vmatpush.msra.mxu0 %v432
        %4095 = vmatpush.msra.mxu0 %v431
        %4096 = vmatpush.msra.mxu0 %v430
        %4097 = vmatpush.msra.mxu0 %v429
        %4098 = vmatpush.msra.mxu0 %v428
        %4099 = vmatpush.msra.mxu0 %v427
        %4100 = vmatpush.msra.mxu0 %v426
        %4101 = vmatpush.msra.mxu0 %v425
        %4102 = vmatpush.msra.mxu0 %v424
        %4103 = vmatpush.msra.mxu0 %v423
        %4104 = vmatpush.msra.mxu0 %v422
        %4105 = vmatpush.msra.mxu0 %v421
        %4106 = vmatmul.f32.gmra.mxu0 %v3991
        %v4107 = vpop.f32.mrf.mxu0
        %v4108 = vadd.f32 0.0, %v4107
        %4109 = vmatmul.f32.gmra.mxu0 %v3994
        %v4110 = vpop.f32.mrf.mxu0
        %v4111 = vadd.f32 0.0, %v4110
        %4112 = vmatmul.f32.gmra.mxu0 %v3997
        %v4113 = vpop.f32.mrf.mxu0
        %v4114 = vadd.f32 0.0, %v4113
        %4115 = vmatmul.f32.gmra.mxu0 %v4000
        %v4116 = vpop.f32.mrf.mxu0
        %v4117 = vadd.f32 0.0, %v4116
        %4118 = vmatmul.f32.gmra.mxu0 %v4003
        %v4119 = vpop.f32.mrf.mxu0
        %v4120 = vadd.f32 0.0, %v4119
        %4121 = vmatmul.f32.gmra.mxu0 %v4006
        %v4122 = vpop.f32.mrf.mxu0
        %v4123 = vadd.f32 0.0, %v4122
        %4124 = vmatmul.f32.gmra.mxu0 %v4009
        %v4125 = vpop.f32.mrf.mxu0
        %v4126 = vadd.f32 0.0, %v4125
        %4127 = vmatmul.f32.gmra.mxu0 %v4012
        %v4128 = vpop.f32.mrf.mxu0
        %v4129 = vadd.f32 0.0, %v4128
        %4130 = vmatmul.f32.gmra.mxu0 %v4015
        %v4131 = vpop.f32.mrf.mxu0
        %v4132 = vadd.f32 0.0, %v4131
        %4133 = vmatmul.f32.gmra.mxu0 %v4018
        %v4134 = vpop.f32.mrf.mxu0
        %v4135 = vadd.f32 0.0, %v4134
        %4136 = vmatmul.f32.gmra.mxu0 %v4021
        %v4137 = vpop.f32.mrf.mxu0
        %v4138 = vadd.f32 0.0, %v4137
        %4139 = vmatmul.f32.gmra.mxu0 %v4024
        %v4140 = vpop.f32.mrf.mxu0
        %v4141 = vadd.f32 0.0, %v4140
        %4142 = vmatmul.f32.gmra.mxu0 %v4027
        %v4143 = vpop.f32.mrf.mxu0
        %v4144 = vadd.f32 0.0, %v4143
        %4145 = vmatmul.f32.gmra.mxu0 %v4030
        %v4146 = vpop.f32.mrf.mxu0
        %v4147 = vadd.f32 0.0, %v4146
        %4148 = vmatmul.f32.gmra.mxu0 %v4033
        %v4149 = vpop.f32.mrf.mxu0
        %v4150 = vadd.f32 0.0, %v4149
        %4151 = vmatmul.f32.gmra.mxu0 %v4036
        %v4152 = vpop.f32.mrf.mxu0
        %v4153 = vadd.f32 0.0, %v4152
        %4154 = vmatmul.f32.gmra.mxu0 %v4039
        %v4155 = vpop.f32.mrf.mxu0
        %v4156 = vadd.f32 0.0, %v4155
        %4157 = vmatmul.f32.gmra.mxu0 %v4042
        %v4158 = vpop.f32.mrf.mxu0
        %v4159 = vadd.f32 0.0, %v4158
        %4160 = vmatmul.f32.gmra.mxu0 %v4045
        %v4161 = vpop.f32.mrf.mxu0
        %v4162 = vadd.f32 0.0, %v4161
        %4163 = vmatmul.f32.gmra.mxu0 %v4048
        %v4164 = vpop.f32.mrf.mxu0
        %v4165 = vadd.f32 0.0, %v4164
        %4166 = vmatmul.f32.gmra.mxu0 %v4051
        %v4167 = vpop.f32.mrf.mxu0
        %v4168 = vadd.f32 0.0, %v4167
        %4169 = vmatmul.f32.gmra.mxu0 %v4054
        %v4170 = vpop.f32.mrf.mxu0
        %v4171 = vadd.f32 0.0, %v4170
        %4172 = vmatmul.f32.gmra.mxu0 %v4057
        %v4173 = vpop.f32.mrf.mxu0
        %v4174 = vadd.f32 0.0, %v4173
        %4175 = vmatmul.f32.gmra.mxu0 %v4060
        %v4176 = vpop.f32.mrf.mxu0
        %v4177 = vadd.f32 0.0, %v4176
        %4178 = vmatmul.f32.gmra.mxu0 %v4063
        %v4179 = vpop.f32.mrf.mxu0
        %v4180 = vadd.f32 0.0, %v4179
        %4181 = vmatmul.f32.gmra.mxu0 %v4066
        %v4182 = vpop.f32.mrf.mxu0
        %v4183 = vadd.f32 0.0, %v4182
        %4184 = vmatmul.f32.gmra.mxu0 %v4069
        %v4185 = vpop.f32.mrf.mxu0
        %v4186 = vadd.f32 0.0, %v4185
        %4187 = vmatmul.f32.gmra.mxu0 %v4072
        %v4188 = vpop.f32.mrf.mxu0
        %v4189 = vadd.f32 0.0, %v4188
        %4190 = vmatmul.f32.gmra.mxu0 %v4075
        %v4191 = vpop.f32.mrf.mxu0
        %v4192 = vadd.f32 0.0, %v4191
        %4193 = vmatmul.f32.gmra.mxu0 %v4078
        %v4194 = vpop.f32.mrf.mxu0
        %v4195 = vadd.f32 0.0, %v4194
        %4196 = vmatmul.f32.gmra.mxu0 %v4081
        %v4197 = vpop.f32.mrf.mxu0
        %v4198 = vadd.f32 0.0, %v4197
        %4199 = vmatmul.f32.gmra.mxu0 %v4084
        %v4200 = vpop.f32.mrf.mxu0
        %v4201 = vadd.f32 0.0, %v4200
        %4202 = vdwg.mxu0
        %4203 = vst.msk [vmem:[#allocation2] sm:$0xff] %vm384, %v4108
        %4204 = vst.msk [vmem:[#allocation2 + $0x8] sm:$0xff] %vm384, %v4111
        %4205 = vst.msk [vmem:[#allocation2 + $0x10] sm:$0xff] %vm384, %v4114
        %4206 = vst.msk [vmem:[#allocation2 + $0x18] sm:$0xff] %vm384, %v4117
        %4207 = vst.msk [vmem:[#allocation2 + $0x20] sm:$0xff] %vm384, %v4120
        %4208 = vst.msk [vmem:[#allocation2 + $0x28] sm:$0xff] %vm384, %v4123
        %4209 = vst.msk [vmem:[#allocation2 + $0x30] sm:$0xff] %vm384, %v4126
        %4210 = vst.msk [vmem:[#allocation2 + $0x38] sm:$0xff] %vm384, %v4129
        %4211 = vst.msk [vmem:[#allocation2 + $0x40] sm:$0xff] %vm384, %v4132
        %4212 = vst.msk [vmem:[#allocation2 + $0x48] sm:$0xff] %vm384, %v4135
        %4213 = vst.msk [vmem:[#allocation2 + $0x50] sm:$0xff] %vm384, %v4138
        %4214 = vst.msk [vmem:[#allocation2 + $0x58] sm:$0xff] %vm384, %v4141
        %4215 = vst.msk [vmem:[#allocation2 + $0x60] sm:$0xff] %vm384, %v4144
        %4216 = vst.msk [vmem:[#allocation2 + $0x68] sm:$0xff] %vm384, %v4147
        %4217 = vst.msk [vmem:[#allocation2 + $0x70] sm:$0xff] %vm384, %v4150
        %4218 = vst.msk [vmem:[#allocation2 + $0x78] sm:$0xff] %vm384, %v4153
        %4219 = vst.msk [vmem:[#allocation2 + $0x80] sm:$0xff] %vm384, %v4156
        %4220 = vst.msk [vmem:[#allocation2 + $0x88] sm:$0xff] %vm384, %v4159
        %4221 = vst.msk [vmem:[#allocation2 + $0x90] sm:$0xff] %vm384, %v4162
        %4222 = vst.msk [vmem:[#allocation2 + $0x98] sm:$0xff] %vm384, %v4165
        %4223 = vst.msk [vmem:[#allocation2 + $0xa0] sm:$0xff] %vm384, %v4168
        %4224 = vst.msk [vmem:[#allocation2 + $0xa8] sm:$0xff] %vm384, %v4171
        %4225 = vst.msk [vmem:[#allocation2 + $0xb0] sm:$0xff] %vm384, %v4174
        %4226 = vst.msk [vmem:[#allocation2 + $0xb8] sm:$0xff] %vm384, %v4177
        %4227 = vst.msk [vmem:[#allocation2 + $0xc0] sm:$0xff] %vm384, %v4180
        %4228 = vst.msk [vmem:[#allocation2 + $0xc8] sm:$0xff] %vm384, %v4183
        %4229 = vst.msk [vmem:[#allocation2 + $0xd0] sm:$0xff] %vm384, %v4186
        %4230 = vst.msk [vmem:[#allocation2 + $0xd8] sm:$0xff] %vm384, %v4189
        %4231 = vst.msk [vmem:[#allocation2 + $0xe0] sm:$0xff] %vm384, %v4192
        %4232 = vst.msk [vmem:[#allocation2 + $0xe8] sm:$0xff] %vm384, %v4195
        %4233 = vst.msk [vmem:[#allocation2 + $0xf0] sm:$0xff] %vm384, %v4198
        %4234 = vst.msk [vmem:[#allocation2 + $0xf8] sm:$0xff] %vm384, %v4201
        %v4235 = vld [vmem:[%s383 + $0x100] sm:$0xff]
        %v4236 = vld [vmem:[%s383 + $0x108] sm:$0xff]
        %v4237 = vld [vmem:[%s383 + $0x110] sm:$0xff]
        %v4238 = vld [vmem:[%s383 + $0x118] sm:$0xff]
        %v4239 = vld [vmem:[%s383 + $0x120] sm:$0xff]
        %v4240 = vld [vmem:[%s383 + $0x128] sm:$0xff]
        %v4241 = vld [vmem:[%s383 + $0x130] sm:$0xff]
        %v4242 = vld [vmem:[%s383 + $0x138] sm:$0xff]
        %v4243 = vld [vmem:[%s383 + $0x140] sm:$0xff]
        %v4244 = vld [vmem:[%s383 + $0x148] sm:$0xff]
        %v4245 = vld [vmem:[%s383 + $0x150] sm:$0xff]
        %v4246 = vld [vmem:[%s383 + $0x158] sm:$0xff]
        %v4247 = vld [vmem:[%s383 + $0x160] sm:$0xff]
        %v4248 = vld [vmem:[%s383 + $0x168] sm:$0xff]
        %v4249 = vld [vmem:[%s383 + $0x170] sm:$0xff]
        %v4250 = vld [vmem:[%s383 + $0x178] sm:$0xff]
        %v4251 = vld [vmem:[%s383 + $0x180] sm:$0xff]
        %v4252 = vld [vmem:[%s383 + $0x188] sm:$0xff]
        %v4253 = vld [vmem:[%s383 + $0x190] sm:$0xff]
        %v4254 = vld [vmem:[%s383 + $0x198] sm:$0xff]
        %v4255 = vld [vmem:[%s383 + $0x1a0] sm:$0xff]
        %v4256 = vld [vmem:[%s383 + $0x1a8] sm:$0xff]
        %v4257 = vld [vmem:[%s383 + $0x1b0] sm:$0xff]
        %v4258 = vld [vmem:[%s383 + $0x1b8] sm:$0xff]
        %v4259 = vld [vmem:[%s383 + $0x1c0] sm:$0xff]
        %v4260 = vld [vmem:[%s383 + $0x1c8] sm:$0xff]
        %v4261 = vld [vmem:[%s383 + $0x1d0] sm:$0xff]
        %v4262 = vld [vmem:[%s383 + $0x1d8] sm:$0xf]
        %v4263 = vld [vmem:[%s383 + $0x101] sm:$0xff]
        %v4264 = vld [vmem:[%s383 + $0x109] sm:$0xff]
        %v4265 = vld [vmem:[%s383 + $0x111] sm:$0xff]
        %v4266 = vld [vmem:[%s383 + $0x119] sm:$0xff]
        %v4267 = vld [vmem:[%s383 + $0x121] sm:$0xff]
        %v4268 = vld [vmem:[%s383 + $0x129] sm:$0xff]
        %v4269 = vld [vmem:[%s383 + $0x131] sm:$0xff]
        %v4270 = vld [vmem:[%s383 + $0x139] sm:$0xff]
        %v4271 = vld [vmem:[%s383 + $0x141] sm:$0xff]
        %v4272 = vld [vmem:[%s383 + $0x149] sm:$0xff]
        %v4273 = vld [vmem:[%s383 + $0x151] sm:$0xff]
        %v4274 = vld [vmem:[%s383 + $0x159] sm:$0xff]
        %v4275 = vld [vmem:[%s383 + $0x161] sm:$0xff]
        %v4276 = vld [vmem:[%s383 + $0x169] sm:$0xff]
        %v4277 = vld [vmem:[%s383 + $0x171] sm:$0xff]
        %v4278 = vld [vmem:[%s383 + $0x179] sm:$0xff]
        %v4279 = vld [vmem:[%s383 + $0x181] sm:$0xff]
        %v4280 = vld [vmem:[%s383 + $0x189] sm:$0xff]
        %v4281 = vld [vmem:[%s383 + $0x191] sm:$0xff]
        %v4282 = vld [vmem:[%s383 + $0x199] sm:$0xff]
        %v4283 = vld [vmem:[%s383 + $0x1a1] sm:$0xff]
        %v4284 = vld [vmem:[%s383 + $0x1a9] sm:$0xff]
        %v4285 = vld [vmem:[%s383 + $0x1b1] sm:$0xff]
        %v4286 = vld [vmem:[%s383 + $0x1b9] sm:$0xff]
        %v4287 = vld [vmem:[%s383 + $0x1c1] sm:$0xff]
        %v4288 = vld [vmem:[%s383 + $0x1c9] sm:$0xff]
        %v4289 = vld [vmem:[%s383 + $0x1d1] sm:$0xff]
        %v4290 = vld [vmem:[%s383 + $0x1d9] sm:$0xf]
        %v4291 = vld [vmem:[%s383 + $0x102] sm:$0xff]
        %v4292 = vld [vmem:[%s383 + $0x10a] sm:$0xff]
        %v4293 = vld [vmem:[%s383 + $0x112] sm:$0xff]
        %v4294 = vld [vmem:[%s383 + $0x11a] sm:$0xff]
        %v4295 = vld [vmem:[%s383 + $0x122] sm:$0xff]
        %v4296 = vld [vmem:[%s383 + $0x12a] sm:$0xff]
        %v4297 = vld [vmem:[%s383 + $0x132] sm:$0xff]
        %v4298 = vld [vmem:[%s383 + $0x13a] sm:$0xff]
        %v4299 = vld [vmem:[%s383 + $0x142] sm:$0xff]
        %v4300 = vld [vmem:[%s383 + $0x14a] sm:$0xff]
        %v4301 = vld [vmem:[%s383 + $0x152] sm:$0xff]
        %v4302 = vld [vmem:[%s383 + $0x15a] sm:$0xff]
        %v4303 = vld [vmem:[%s383 + $0x162] sm:$0xff]
        %v4304 = vld [vmem:[%s383 + $0x16a] sm:$0xff]
        %v4305 = vld [vmem:[%s383 + $0x172] sm:$0xff]
        %v4306 = vld [vmem:[%s383 + $0x17a] sm:$0xff]
        %v4307 = vld [vmem:[%s383 + $0x182] sm:$0xff]
        %v4308 = vld [vmem:[%s383 + $0x18a] sm:$0xff]
        %v4309 = vld [vmem:[%s383 + $0x192] sm:$0xff]
        %v4310 = vld [vmem:[%s383 + $0x19a] sm:$0xff]
        %v4311 = vld [vmem:[%s383 + $0x1a2] sm:$0xff]
        %v4312 = vld [vmem:[%s383 + $0x1aa] sm:$0xff]
        %v4313 = vld [vmem:[%s383 + $0x1b2] sm:$0xff]
        %v4314 = vld [vmem:[%s383 + $0x1ba] sm:$0xff]
        %v4315 = vld [vmem:[%s383 + $0x1c2] sm:$0xff]
        %v4316 = vld [vmem:[%s383 + $0x1ca] sm:$0xff]
        %v4317 = vld [vmem:[%s383 + $0x1d2] sm:$0xff]
        %v4318 = vld [vmem:[%s383 + $0x1da] sm:$0xf]
        %v4319 = vld [vmem:[%s383 + $0x103] sm:$0xff]
        %v4320 = vld [vmem:[%s383 + $0x10b] sm:$0xff]
        %v4321 = vld [vmem:[%s383 + $0x113] sm:$0xff]
        %v4322 = vld [vmem:[%s383 + $0x11b] sm:$0xff]
        %v4323 = vld [vmem:[%s383 + $0x123] sm:$0xff]
        %v4324 = vld [vmem:[%s383 + $0x12b] sm:$0xff]
        %v4325 = vld [vmem:[%s383 + $0x133] sm:$0xff]
        %v4326 = vld [vmem:[%s383 + $0x13b] sm:$0xff]
        %v4327 = vld [vmem:[%s383 + $0x143] sm:$0xff]
        %v4328 = vld [vmem:[%s383 + $0x14b] sm:$0xff]
        %v4329 = vld [vmem:[%s383 + $0x153] sm:$0xff]
        %v4330 = vld [vmem:[%s383 + $0x15b] sm:$0xff]
        %v4331 = vld [vmem:[%s383 + $0x163] sm:$0xff]
        %v4332 = vld [vmem:[%s383 + $0x16b] sm:$0xff]
        %v4333 = vld [vmem:[%s383 + $0x173] sm:$0xff]
        %v4334 = vld [vmem:[%s383 + $0x17b] sm:$0xff]
        %v4335 = vld [vmem:[%s383 + $0x183] sm:$0xff]
        %v4336 = vld [vmem:[%s383 + $0x18b] sm:$0xff]
        %v4337 = vld [vmem:[%s383 + $0x193] sm:$0xff]
        %v4338 = vld [vmem:[%s383 + $0x19b] sm:$0xff]
        %v4339 = vld [vmem:[%s383 + $0x1a3] sm:$0xff]
        %v4340 = vld [vmem:[%s383 + $0x1ab] sm:$0xff]
        %v4341 = vld [vmem:[%s383 + $0x1b3] sm:$0xff]
        %v4342 = vld [vmem:[%s383 + $0x1bb] sm:$0xff]
        %v4343 = vld [vmem:[%s383 + $0x1c3] sm:$0xff]
        %v4344 = vld [vmem:[%s383 + $0x1cb] sm:$0xff]
        %v4345 = vld [vmem:[%s383 + $0x1d3] sm:$0xff]
        %v4346 = vld [vmem:[%s383 + $0x1db] sm:$0xf]
        %v4347 = vld [vmem:[%s383 + $0x104] sm:$0xff]
        %v4348 = vld [vmem:[%s383 + $0x10c] sm:$0xff]
        %v4349 = vld [vmem:[%s383 + $0x114] sm:$0xff]
        %v4350 = vld [vmem:[%s383 + $0x11c] sm:$0xff]
        %v4351 = vld [vmem:[%s383 + $0x124] sm:$0xff]
        %v4352 = vld [vmem:[%s383 + $0x12c] sm:$0xff]
        %v4353 = vld [vmem:[%s383 + $0x134] sm:$0xff]
        %v4354 = vld [vmem:[%s383 + $0x13c] sm:$0xff]
        %v4355 = vld [vmem:[%s383 + $0x144] sm:$0xff]
        %v4356 = vld [vmem:[%s383 + $0x14c] sm:$0xff]
        %v4357 = vld [vmem:[%s383 + $0x154] sm:$0xff]
        %v4358 = vld [vmem:[%s383 + $0x15c] sm:$0xff]
        %v4359 = vld [vmem:[%s383 + $0x164] sm:$0xff]
        %v4360 = vld [vmem:[%s383 + $0x16c] sm:$0xff]
        %v4361 = vld [vmem:[%s383 + $0x174] sm:$0xff]
        %v4362 = vld [vmem:[%s383 + $0x17c] sm:$0xff]
        %v4363 = vld [vmem:[%s383 + $0x184] sm:$0xff]
        %v4364 = vld [vmem:[%s383 + $0x18c] sm:$0xff]
        %v4365 = vld [vmem:[%s383 + $0x194] sm:$0xff]
        %v4366 = vld [vmem:[%s383 + $0x19c] sm:$0xff]
        %v4367 = vld [vmem:[%s383 + $0x1a4] sm:$0xff]
        %v4368 = vld [vmem:[%s383 + $0x1ac] sm:$0xff]
        %v4369 = vld [vmem:[%s383 + $0x1b4] sm:$0xff]
        %v4370 = vld [vmem:[%s383 + $0x1bc] sm:$0xff]
        %v4371 = vld [vmem:[%s383 + $0x1c4] sm:$0xff]
        %v4372 = vld [vmem:[%s383 + $0x1cc] sm:$0xff]
        %v4373 = vld [vmem:[%s383 + $0x1d4] sm:$0xff]
        %v4374 = vld [vmem:[%s383 + $0x1dc] sm:$0xf]
        %v4375 = vld [vmem:[%s383 + $0x1d8] sm:$0xff]
        %v4376 = vld [vmem:[%s383 + $0x1e0] sm:$0xff]
        %v4377 = vld [vmem:[%s383 + $0x1e8] sm:$0xff]
        %v4378 = vld [vmem:[%s383 + $0x1f0] sm:$0xf]
        %v4379 = vld [vmem:[%s383 + $0x1d9] sm:$0xff]
        %v4380 = vld [vmem:[%s383 + $0x1e1] sm:$0xff]
        %v4381 = vld [vmem:[%s383 + $0x1e9] sm:$0xff]
        %v4382 = vld [vmem:[%s383 + $0x1f1] sm:$0xf]
        %v4383 = vld [vmem:[%s383 + $0x1da] sm:$0xff]
        %v4384 = vld [vmem:[%s383 + $0x1e2] sm:$0xff]
        %v4385 = vld [vmem:[%s383 + $0x1ea] sm:$0xff]
        %v4386 = vld [vmem:[%s383 + $0x1f2] sm:$0xf]
        %v4387 = vld [vmem:[%s383 + $0x1db] sm:$0xff]
        %v4388 = vld [vmem:[%s383 + $0x1e3] sm:$0xff]
        %v4389 = vld [vmem:[%s383 + $0x1eb] sm:$0xff]
        %v4390 = vld [vmem:[%s383 + $0x1f3] sm:$0xf]
        %v4391 = vld [vmem:[%s383 + $0x1dc] sm:$0xff]
        %v4392 = vld [vmem:[%s383 + $0x1e4] sm:$0xff]
        %v4393 = vld [vmem:[%s383 + $0x1ec] sm:$0xff]
        %v4394 = vld [vmem:[%s383 + $0x1f4] sm:$0xf]
        %v4395 = vld [vmem:[%s383 + $0x1f0] sm:$0xff]
        %v4396 = vld [vmem:[%s383 + $0x1f8] sm:$0xff]
        %v4397 = vld [vmem:[%s383 + $0x200] sm:$0xff]
        %v4398 = vld [vmem:[%s383 + $0x208] sm:$0xf]
        %v4399 = vld [vmem:[%s383 + $0x1f1] sm:$0xff]
        %v4400 = vld [vmem:[%s383 + $0x1f9] sm:$0xff]
        %v4401 = vld [vmem:[%s383 + $0x201] sm:$0xff]
        %v4402 = vld [vmem:[%s383 + $0x209] sm:$0xf]
        %v4403 = vld [vmem:[%s383 + $0x1f2] sm:$0xff]
        %v4404 = vld [vmem:[%s383 + $0x1fa] sm:$0xff]
        %v4405 = vld [vmem:[%s383 + $0x202] sm:$0xff]
        %v4406 = vld [vmem:[%s383 + $0x20a] sm:$0xf]
        %v4407 = vld [vmem:[%s383 + $0x1f3] sm:$0xff]
        %v4408 = vld [vmem:[%s383 + $0x1fb] sm:$0xff]
        %v4409 = vld [vmem:[%s383 + $0x203] sm:$0xff]
        %v4410 = vld [vmem:[%s383 + $0x20b] sm:$0xf]
        %v4411 = vld [vmem:[%s383 + $0x1f4] sm:$0xff]
        %v4412 = vld [vmem:[%s383 + $0x1fc] sm:$0xff]
        %v4413 = vld [vmem:[%s383 + $0x204] sm:$0xff]
        %v4414 = vld [vmem:[%s383 + $0x20c] sm:$0xf]
        %v4415 = vld [vmem:[%s383 + $0x208] sm:$0xff]
        %v4416 = vld [vmem:[%s383 + $0x210] sm:$0xff]
        %v4417 = vld [vmem:[%s383 + $0x218] sm:$0xff]
        %v4418 = vld [vmem:[%s383 + $0x220] sm:$0xf]
        %v4419 = vld [vmem:[%s383 + $0x209] sm:$0xff]
        %v4420 = vld [vmem:[%s383 + $0x211] sm:$0xff]
        %v4421 = vld [vmem:[%s383 + $0x219] sm:$0xff]
        %v4422 = vld [vmem:[%s383 + $0x221] sm:$0xf]
        %v4423 = vld [vmem:[%s383 + $0x20a] sm:$0xff]
        %v4424 = vld [vmem:[%s383 + $0x212] sm:$0xff]
        %v4425 = vld [vmem:[%s383 + $0x21a] sm:$0xff]
        %v4426 = vld [vmem:[%s383 + $0x222] sm:$0xf]
        %v4427 = vld [vmem:[%s383 + $0x20b] sm:$0xff]
        %v4428 = vld [vmem:[%s383 + $0x213] sm:$0xff]
        %v4429 = vld [vmem:[%s383 + $0x21b] sm:$0xff]
        %v4430 = vld [vmem:[%s383 + $0x223] sm:$0xf]
        %v4431 = vld [vmem:[%s383 + $0x20c] sm:$0xff]
        %v4432 = vld [vmem:[%s383 + $0x214] sm:$0xff]
        %v4433 = vld [vmem:[%s383 + $0x21c] sm:$0xff]
        %v4434 = vld [vmem:[%s383 + $0x224] sm:$0xf]
        %v4435 = vld [vmem:[%s383 + $0x220] sm:$0xff]
        %v4436 = vld [vmem:[%s383 + $0x228] sm:$0xff]
        %v4437 = vld [vmem:[%s383 + $0x230] sm:$0xff]
        %v4438 = vld [vmem:[%s383 + $0x238] sm:$0xf]
        %v4439 = vld [vmem:[%s383 + $0x221] sm:$0xff]
        %v4440 = vld [vmem:[%s383 + $0x229] sm:$0xff]
        %v4441 = vld [vmem:[%s383 + $0x231] sm:$0xff]
        %v4442 = vld [vmem:[%s383 + $0x239] sm:$0xf]
        %v4443 = vld [vmem:[%s383 + $0x222] sm:$0xff]
        %v4444 = vld [vmem:[%s383 + $0x22a] sm:$0xff]
        %v4445 = vld [vmem:[%s383 + $0x232] sm:$0xff]
        %v4446 = vld [vmem:[%s383 + $0x23a] sm:$0xf]
        %v4447 = vld [vmem:[%s383 + $0x223] sm:$0xff]
        %v4448 = vld [vmem:[%s383 + $0x22b] sm:$0xff]
        %v4449 = vld [vmem:[%s383 + $0x233] sm:$0xff]
        %v4450 = vld [vmem:[%s383 + $0x23b] sm:$0xf]
        %v4451 = vld [vmem:[%s383 + $0x224] sm:$0xff]
        %v4452 = vld [vmem:[%s383 + $0x22c] sm:$0xff]
        %v4453 = vld [vmem:[%s383 + $0x234] sm:$0xff]
        %v4454 = vld [vmem:[%s383 + $0x23c] sm:$0xf]
        %4483 = vrot.lane.b32.xlu0 %v4263, 4
        %v4484 = vpop.permute.xlu0 %4483
        %4485 = vrot.lane.b32.xlu0 %v4264, 4
        %v4486 = vpop.permute.xlu0 %4485
        %4487 = vrot.lane.b32.xlu0 %v4265, 4
        %v4488 = vpop.permute.xlu0 %4487
        %4489 = vrot.lane.b32.xlu0 %v4266, 4
        %v4490 = vpop.permute.xlu0 %4489
        %4491 = vrot.lane.b32.xlu0 %v4267, 4
        %v4492 = vpop.permute.xlu0 %4491
        %4493 = vrot.lane.b32.xlu0 %v4268, 4
        %v4494 = vpop.permute.xlu0 %4493
        %4495 = vrot.lane.b32.xlu0 %v4269, 4
        %v4496 = vpop.permute.xlu0 %4495
        %4497 = vrot.lane.b32.xlu0 %v4270, 4
        %v4498 = vpop.permute.xlu0 %4497
        %4499 = vrot.lane.b32.xlu0 %v4271, 4
        %v4500 = vpop.permute.xlu0 %4499
        %4501 = vrot.lane.b32.xlu0 %v4272, 4
        %v4502 = vpop.permute.xlu0 %4501
        %4503 = vrot.lane.b32.xlu0 %v4273, 4
        %v4504 = vpop.permute.xlu0 %4503
        %4505 = vrot.lane.b32.xlu0 %v4274, 4
        %v4506 = vpop.permute.xlu0 %4505
        %4507 = vrot.lane.b32.xlu0 %v4275, 4
        %v4508 = vpop.permute.xlu0 %4507
        %4509 = vrot.lane.b32.xlu0 %v4276, 4
        %v4510 = vpop.permute.xlu0 %4509
        %4511 = vrot.lane.b32.xlu0 %v4277, 4
        %v4512 = vpop.permute.xlu0 %4511
        %4513 = vrot.lane.b32.xlu0 %v4278, 4
        %v4514 = vpop.permute.xlu0 %4513
        %4515 = vrot.lane.b32.xlu0 %v4279, 4
        %v4516 = vpop.permute.xlu0 %4515
        %4517 = vrot.lane.b32.xlu0 %v4280, 4
        %v4518 = vpop.permute.xlu0 %4517
        %4519 = vrot.lane.b32.xlu0 %v4281, 4
        %v4520 = vpop.permute.xlu0 %4519
        %4521 = vrot.lane.b32.xlu0 %v4282, 4
        %v4522 = vpop.permute.xlu0 %4521
        %4523 = vrot.lane.b32.xlu0 %v4283, 4
        %v4524 = vpop.permute.xlu0 %4523
        %4525 = vrot.lane.b32.xlu0 %v4284, 4
        %v4526 = vpop.permute.xlu0 %4525
        %4527 = vrot.lane.b32.xlu0 %v4285, 4
        %v4528 = vpop.permute.xlu0 %4527
        %4529 = vrot.lane.b32.xlu0 %v4286, 4
        %v4530 = vpop.permute.xlu0 %4529
        %4531 = vrot.lane.b32.xlu0 %v4287, 4
        %v4532 = vpop.permute.xlu0 %4531
        %4533 = vrot.lane.b32.xlu0 %v4288, 4
        %v4534 = vpop.permute.xlu0 %4533
        %4535 = vrot.lane.b32.xlu0 %v4289, 4
        %v4536 = vpop.permute.xlu0 %4535
        %4537 = vrot.lane.b32.xlu0 %v4290, 4
        %v4538 = vpop.permute.xlu0 %4537
        %4595 = vrot.lane.b32.xlu0 %v4291, 8
        %v4596 = vpop.permute.xlu0 %4595
        %4597 = vrot.lane.b32.xlu0 %v4292, 8
        %v4598 = vpop.permute.xlu0 %4597
        %4599 = vrot.lane.b32.xlu0 %v4293, 8
        %v4600 = vpop.permute.xlu0 %4599
        %4601 = vrot.lane.b32.xlu0 %v4294, 8
        %v4602 = vpop.permute.xlu0 %4601
        %4603 = vrot.lane.b32.xlu0 %v4295, 8
        %v4604 = vpop.permute.xlu0 %4603
        %4605 = vrot.lane.b32.xlu0 %v4296, 8
        %v4606 = vpop.permute.xlu0 %4605
        %4607 = vrot.lane.b32.xlu0 %v4297, 8
        %v4608 = vpop.permute.xlu0 %4607
        %4609 = vrot.lane.b32.xlu0 %v4298, 8
        %v4610 = vpop.permute.xlu0 %4609
        %4611 = vrot.lane.b32.xlu0 %v4299, 8
        %v4612 = vpop.permute.xlu0 %4611
        %4613 = vrot.lane.b32.xlu0 %v4300, 8
        %v4614 = vpop.permute.xlu0 %4613
        %4615 = vrot.lane.b32.xlu0 %v4301, 8
        %v4616 = vpop.permute.xlu0 %4615
        %4617 = vrot.lane.b32.xlu0 %v4302, 8
        %v4618 = vpop.permute.xlu0 %4617
        %4619 = vrot.lane.b32.xlu0 %v4303, 8
        %v4620 = vpop.permute.xlu0 %4619
        %4621 = vrot.lane.b32.xlu0 %v4304, 8
        %v4622 = vpop.permute.xlu0 %4621
        %4623 = vrot.lane.b32.xlu0 %v4305, 8
        %v4624 = vpop.permute.xlu0 %4623
        %4625 = vrot.lane.b32.xlu0 %v4306, 8
        %v4626 = vpop.permute.xlu0 %4625
        %4627 = vrot.lane.b32.xlu0 %v4307, 8
        %v4628 = vpop.permute.xlu0 %4627
        %4629 = vrot.lane.b32.xlu0 %v4308, 8
        %v4630 = vpop.permute.xlu0 %4629
        %4631 = vrot.lane.b32.xlu0 %v4309, 8
        %v4632 = vpop.permute.xlu0 %4631
        %4633 = vrot.lane.b32.xlu0 %v4310, 8
        %v4634 = vpop.permute.xlu0 %4633
        %4635 = vrot.lane.b32.xlu0 %v4311, 8
        %v4636 = vpop.permute.xlu0 %4635
        %4637 = vrot.lane.b32.xlu0 %v4312, 8
        %v4638 = vpop.permute.xlu0 %4637
        %4639 = vrot.lane.b32.xlu0 %v4313, 8
        %v4640 = vpop.permute.xlu0 %4639
        %4641 = vrot.lane.b32.xlu0 %v4314, 8
        %v4642 = vpop.permute.xlu0 %4641
        %4643 = vrot.lane.b32.xlu0 %v4315, 8
        %v4644 = vpop.permute.xlu0 %4643
        %4645 = vrot.lane.b32.xlu0 %v4316, 8
        %v4646 = vpop.permute.xlu0 %4645
        %4647 = vrot.lane.b32.xlu0 %v4317, 8
        %v4648 = vpop.permute.xlu0 %4647
        %4649 = vrot.lane.b32.xlu0 %v4318, 8
        %v4650 = vpop.permute.xlu0 %4649
        %4707 = vrot.lane.b32.xlu0 %v4319, 12
        %v4708 = vpop.permute.xlu0 %4707
        %4709 = vrot.lane.b32.xlu0 %v4320, 12
        %v4710 = vpop.permute.xlu0 %4709
        %4711 = vrot.lane.b32.xlu0 %v4321, 12
        %v4712 = vpop.permute.xlu0 %4711
        %4713 = vrot.lane.b32.xlu0 %v4322, 12
        %v4714 = vpop.permute.xlu0 %4713
        %4715 = vrot.lane.b32.xlu0 %v4323, 12
        %v4716 = vpop.permute.xlu0 %4715
        %4717 = vrot.lane.b32.xlu0 %v4324, 12
        %v4718 = vpop.permute.xlu0 %4717
        %4719 = vrot.lane.b32.xlu0 %v4325, 12
        %v4720 = vpop.permute.xlu0 %4719
        %4721 = vrot.lane.b32.xlu0 %v4326, 12
        %v4722 = vpop.permute.xlu0 %4721
        %4723 = vrot.lane.b32.xlu0 %v4327, 12
        %v4724 = vpop.permute.xlu0 %4723
        %4725 = vrot.lane.b32.xlu0 %v4328, 12
        %v4726 = vpop.permute.xlu0 %4725
        %4727 = vrot.lane.b32.xlu0 %v4329, 12
        %v4728 = vpop.permute.xlu0 %4727
        %4729 = vrot.lane.b32.xlu0 %v4330, 12
        %v4730 = vpop.permute.xlu0 %4729
        %4731 = vrot.lane.b32.xlu0 %v4331, 12
        %v4732 = vpop.permute.xlu0 %4731
        %4733 = vrot.lane.b32.xlu0 %v4332, 12
        %v4734 = vpop.permute.xlu0 %4733
        %4735 = vrot.lane.b32.xlu0 %v4333, 12
        %v4736 = vpop.permute.xlu0 %4735
        %4737 = vrot.lane.b32.xlu0 %v4334, 12
        %v4738 = vpop.permute.xlu0 %4737
        %4739 = vrot.lane.b32.xlu0 %v4335, 12
        %v4740 = vpop.permute.xlu0 %4739
        %4741 = vrot.lane.b32.xlu0 %v4336, 12
        %v4742 = vpop.permute.xlu0 %4741
        %4743 = vrot.lane.b32.xlu0 %v4337, 12
        %v4744 = vpop.permute.xlu0 %4743
        %4745 = vrot.lane.b32.xlu0 %v4338, 12
        %v4746 = vpop.permute.xlu0 %4745
        %4747 = vrot.lane.b32.xlu0 %v4339, 12
        %v4748 = vpop.permute.xlu0 %4747
        %4749 = vrot.lane.b32.xlu0 %v4340, 12
        %v4750 = vpop.permute.xlu0 %4749
        %4751 = vrot.lane.b32.xlu0 %v4341, 12
        %v4752 = vpop.permute.xlu0 %4751
        %4753 = vrot.lane.b32.xlu0 %v4342, 12
        %v4754 = vpop.permute.xlu0 %4753
        %4755 = vrot.lane.b32.xlu0 %v4343, 12
        %v4756 = vpop.permute.xlu0 %4755
        %4757 = vrot.lane.b32.xlu0 %v4344, 12
        %v4758 = vpop.permute.xlu0 %4757
        %4759 = vrot.lane.b32.xlu0 %v4345, 12
        %v4760 = vpop.permute.xlu0 %4759
        %4761 = vrot.lane.b32.xlu0 %v4346, 12
        %v4762 = vpop.permute.xlu0 %4761
        %4819 = vrot.lane.b32.xlu0 %v4347, 16
        %v4820 = vpop.permute.xlu0 %4819
        %4821 = vrot.lane.b32.xlu0 %v4348, 16
        %v4822 = vpop.permute.xlu0 %4821
        %4823 = vrot.lane.b32.xlu0 %v4349, 16
        %v4824 = vpop.permute.xlu0 %4823
        %4825 = vrot.lane.b32.xlu0 %v4350, 16
        %v4826 = vpop.permute.xlu0 %4825
        %4827 = vrot.lane.b32.xlu0 %v4351, 16
        %v4828 = vpop.permute.xlu0 %4827
        %4829 = vrot.lane.b32.xlu0 %v4352, 16
        %v4830 = vpop.permute.xlu0 %4829
        %4831 = vrot.lane.b32.xlu0 %v4353, 16
        %v4832 = vpop.permute.xlu0 %4831
        %4833 = vrot.lane.b32.xlu0 %v4354, 16
        %v4834 = vpop.permute.xlu0 %4833
        %4835 = vrot.lane.b32.xlu0 %v4355, 16
        %v4836 = vpop.permute.xlu0 %4835
        %4837 = vrot.lane.b32.xlu0 %v4356, 16
        %v4838 = vpop.permute.xlu0 %4837
        %4839 = vrot.lane.b32.xlu0 %v4357, 16
        %v4840 = vpop.permute.xlu0 %4839
        %4841 = vrot.lane.b32.xlu0 %v4358, 16
        %v4842 = vpop.permute.xlu0 %4841
        %4843 = vrot.lane.b32.xlu0 %v4359, 16
        %v4844 = vpop.permute.xlu0 %4843
        %4845 = vrot.lane.b32.xlu0 %v4360, 16
        %v4846 = vpop.permute.xlu0 %4845
        %4847 = vrot.lane.b32.xlu0 %v4361, 16
        %v4848 = vpop.permute.xlu0 %4847
        %4849 = vrot.lane.b32.xlu0 %v4362, 16
        %v4850 = vpop.permute.xlu0 %4849
        %4851 = vrot.lane.b32.xlu0 %v4363, 16
        %v4852 = vpop.permute.xlu0 %4851
        %4853 = vrot.lane.b32.xlu0 %v4364, 16
        %v4854 = vpop.permute.xlu0 %4853
        %4855 = vrot.lane.b32.xlu0 %v4365, 16
        %v4856 = vpop.permute.xlu0 %4855
        %4857 = vrot.lane.b32.xlu0 %v4366, 16
        %v4858 = vpop.permute.xlu0 %4857
        %4859 = vrot.lane.b32.xlu0 %v4367, 16
        %v4860 = vpop.permute.xlu0 %4859
        %4861 = vrot.lane.b32.xlu0 %v4368, 16
        %v4862 = vpop.permute.xlu0 %4861
        %4863 = vrot.lane.b32.xlu0 %v4369, 16
        %v4864 = vpop.permute.xlu0 %4863
        %4865 = vrot.lane.b32.xlu0 %v4370, 16
        %v4866 = vpop.permute.xlu0 %4865
        %4867 = vrot.lane.b32.xlu0 %v4371, 16
        %v4868 = vpop.permute.xlu0 %4867
        %4869 = vrot.lane.b32.xlu0 %v4372, 16
        %v4870 = vpop.permute.xlu0 %4869
        %4871 = vrot.lane.b32.xlu0 %v4373, 16
        %v4872 = vpop.permute.xlu0 %4871
        %4873 = vrot.lane.b32.xlu0 %v4374, 16
        %v4874 = vpop.permute.xlu0 %4873
        %4931 = vrot.lane.b32.xlu0 %v4238, 20
        %v4932 = vpop.permute.xlu0 %4931
        %4933 = vrot.lane.b32.xlu0 %v4239, 20
        %v4934 = vpop.permute.xlu0 %4933
        %4935 = vrot.lane.b32.xlu0 %v4240, 20
        %v4936 = vpop.permute.xlu0 %4935
        %4937 = vrot.lane.b32.xlu0 %v4241, 20
        %v4938 = vpop.permute.xlu0 %4937
        %4939 = vrot.lane.b32.xlu0 %v4242, 20
        %v4940 = vpop.permute.xlu0 %4939
        %4941 = vrot.lane.b32.xlu0 %v4243, 20
        %v4942 = vpop.permute.xlu0 %4941
        %4943 = vrot.lane.b32.xlu0 %v4244, 20
        %v4944 = vpop.permute.xlu0 %4943
        %4945 = vrot.lane.b32.xlu0 %v4245, 20
        %v4946 = vpop.permute.xlu0 %4945
        %4947 = vrot.lane.b32.xlu0 %v4246, 20
        %v4948 = vpop.permute.xlu0 %4947
        %4949 = vrot.lane.b32.xlu0 %v4247, 20
        %v4950 = vpop.permute.xlu0 %4949
        %4951 = vrot.lane.b32.xlu0 %v4248, 20
        %v4952 = vpop.permute.xlu0 %4951
        %4953 = vrot.lane.b32.xlu0 %v4249, 20
        %v4954 = vpop.permute.xlu0 %4953
        %4955 = vrot.lane.b32.xlu0 %v4250, 20
        %v4956 = vpop.permute.xlu0 %4955
        %4957 = vrot.lane.b32.xlu0 %v4251, 20
        %v4958 = vpop.permute.xlu0 %4957
        %4959 = vrot.lane.b32.xlu0 %v4252, 20
        %v4960 = vpop.permute.xlu0 %4959
        %4961 = vrot.lane.b32.xlu0 %v4253, 20
        %v4962 = vpop.permute.xlu0 %4961
        %4963 = vrot.lane.b32.xlu0 %v4254, 20
        %v4964 = vpop.permute.xlu0 %4963
        %4965 = vrot.lane.b32.xlu0 %v4255, 20
        %v4966 = vpop.permute.xlu0 %4965
        %4967 = vrot.lane.b32.xlu0 %v4256, 20
        %v4968 = vpop.permute.xlu0 %4967
        %4969 = vrot.lane.b32.xlu0 %v4257, 20
        %v4970 = vpop.permute.xlu0 %4969
        %4971 = vrot.lane.b32.xlu0 %v4258, 20
        %v4972 = vpop.permute.xlu0 %4971
        %4973 = vrot.lane.b32.xlu0 %v4259, 20
        %v4974 = vpop.permute.xlu0 %4973
        %4975 = vrot.lane.b32.xlu0 %v4260, 20
        %v4976 = vpop.permute.xlu0 %4975
        %4977 = vrot.lane.b32.xlu0 %v4261, 20
        %v4978 = vpop.permute.xlu0 %4977
        %4979 = vrot.lane.b32.xlu0 %v4375, 20
        %v4980 = vpop.permute.xlu0 %4979
        %4981 = vrot.lane.b32.xlu0 %v4376, 20
        %v4982 = vpop.permute.xlu0 %4981
        %4983 = vrot.lane.b32.xlu0 %v4377, 20
        %v4984 = vpop.permute.xlu0 %4983
        %4985 = vrot.lane.b32.xlu0 %v4378, 20
        %v4986 = vpop.permute.xlu0 %4985
        %5019 = vrot.lane.b32.xlu0 %v4266, 24
        %v5020 = vpop.permute.xlu0 %5019
        %5021 = vrot.lane.b32.xlu0 %v4267, 24
        %v5022 = vpop.permute.xlu0 %5021
        %5023 = vrot.lane.b32.xlu0 %v4268, 24
        %v5024 = vpop.permute.xlu0 %5023
        %5025 = vrot.lane.b32.xlu0 %v4269, 24
        %v5026 = vpop.permute.xlu0 %5025
        %5027 = vrot.lane.b32.xlu0 %v4270, 24
        %v5028 = vpop.permute.xlu0 %5027
        %5029 = vrot.lane.b32.xlu0 %v4271, 24
        %v5030 = vpop.permute.xlu0 %5029
        %5031 = vrot.lane.b32.xlu0 %v4272, 24
        %v5032 = vpop.permute.xlu0 %5031
        %5033 = vrot.lane.b32.xlu0 %v4273, 24
        %v5034 = vpop.permute.xlu0 %5033
        %5035 = vrot.lane.b32.xlu0 %v4274, 24
        %v5036 = vpop.permute.xlu0 %5035
        %5037 = vrot.lane.b32.xlu0 %v4275, 24
        %v5038 = vpop.permute.xlu0 %5037
        %5039 = vrot.lane.b32.xlu0 %v4276, 24
        %v5040 = vpop.permute.xlu0 %5039
        %5041 = vrot.lane.b32.xlu0 %v4277, 24
        %v5042 = vpop.permute.xlu0 %5041
        %5043 = vrot.lane.b32.xlu0 %v4278, 24
        %v5044 = vpop.permute.xlu0 %5043
        %5045 = vrot.lane.b32.xlu0 %v4279, 24
        %v5046 = vpop.permute.xlu0 %5045
        %5047 = vrot.lane.b32.xlu0 %v4280, 24
        %v5048 = vpop.permute.xlu0 %5047
        %5049 = vrot.lane.b32.xlu0 %v4281, 24
        %v5050 = vpop.permute.xlu0 %5049
        %5051 = vrot.lane.b32.xlu0 %v4282, 24
        %v5052 = vpop.permute.xlu0 %5051
        %5053 = vrot.lane.b32.xlu0 %v4283, 24
        %v5054 = vpop.permute.xlu0 %5053
        %5055 = vrot.lane.b32.xlu0 %v4284, 24
        %v5056 = vpop.permute.xlu0 %5055
        %5057 = vrot.lane.b32.xlu0 %v4285, 24
        %v5058 = vpop.permute.xlu0 %5057
        %5059 = vrot.lane.b32.xlu0 %v4286, 24
        %v5060 = vpop.permute.xlu0 %5059
        %5061 = vrot.lane.b32.xlu0 %v4287, 24
        %v5062 = vpop.permute.xlu0 %5061
        %5063 = vrot.lane.b32.xlu0 %v4288, 24
        %v5064 = vpop.permute.xlu0 %5063
        %5065 = vrot.lane.b32.xlu0 %v4289, 24
        %v5066 = vpop.permute.xlu0 %5065
        %5067 = vrot.lane.b32.xlu0 %v4379, 24
        %v5068 = vpop.permute.xlu0 %5067
        %5069 = vrot.lane.b32.xlu0 %v4380, 24
        %v5070 = vpop.permute.xlu0 %5069
        %5071 = vrot.lane.b32.xlu0 %v4381, 24
        %v5072 = vpop.permute.xlu0 %5071
        %5073 = vrot.lane.b32.xlu0 %v4382, 24
        %v5074 = vpop.permute.xlu0 %5073
        %5107 = vrot.lane.b32.xlu0 %v4294, 28
        %v5108 = vpop.permute.xlu0 %5107
        %5109 = vrot.lane.b32.xlu0 %v4295, 28
        %v5110 = vpop.permute.xlu0 %5109
        %5111 = vrot.lane.b32.xlu0 %v4296, 28
        %v5112 = vpop.permute.xlu0 %5111
        %5113 = vrot.lane.b32.xlu0 %v4297, 28
        %v5114 = vpop.permute.xlu0 %5113
        %5115 = vrot.lane.b32.xlu0 %v4298, 28
        %v5116 = vpop.permute.xlu0 %5115
        %5117 = vrot.lane.b32.xlu0 %v4299, 28
        %v5118 = vpop.permute.xlu0 %5117
        %5119 = vrot.lane.b32.xlu0 %v4300, 28
        %v5120 = vpop.permute.xlu0 %5119
        %5121 = vrot.lane.b32.xlu0 %v4301, 28
        %v5122 = vpop.permute.xlu0 %5121
        %5123 = vrot.lane.b32.xlu0 %v4302, 28
        %v5124 = vpop.permute.xlu0 %5123
        %5125 = vrot.lane.b32.xlu0 %v4303, 28
        %v5126 = vpop.permute.xlu0 %5125
        %5127 = vrot.lane.b32.xlu0 %v4304, 28
        %v5128 = vpop.permute.xlu0 %5127
        %5129 = vrot.lane.b32.xlu0 %v4305, 28
        %v5130 = vpop.permute.xlu0 %5129
        %5131 = vrot.lane.b32.xlu0 %v4306, 28
        %v5132 = vpop.permute.xlu0 %5131
        %5133 = vrot.lane.b32.xlu0 %v4307, 28
        %v5134 = vpop.permute.xlu0 %5133
        %5135 = vrot.lane.b32.xlu0 %v4308, 28
        %v5136 = vpop.permute.xlu0 %5135
        %5137 = vrot.lane.b32.xlu0 %v4309, 28
        %v5138 = vpop.permute.xlu0 %5137
        %5139 = vrot.lane.b32.xlu0 %v4310, 28
        %v5140 = vpop.permute.xlu0 %5139
        %5141 = vrot.lane.b32.xlu0 %v4311, 28
        %v5142 = vpop.permute.xlu0 %5141
        %5143 = vrot.lane.b32.xlu0 %v4312, 28
        %v5144 = vpop.permute.xlu0 %5143
        %5145 = vrot.lane.b32.xlu0 %v4313, 28
        %v5146 = vpop.permute.xlu0 %5145
        %5147 = vrot.lane.b32.xlu0 %v4314, 28
        %v5148 = vpop.permute.xlu0 %5147
        %5149 = vrot.lane.b32.xlu0 %v4315, 28
        %v5150 = vpop.permute.xlu0 %5149
        %5151 = vrot.lane.b32.xlu0 %v4316, 28
        %v5152 = vpop.permute.xlu0 %5151
        %5153 = vrot.lane.b32.xlu0 %v4317, 28
        %v5154 = vpop.permute.xlu0 %5153
        %5155 = vrot.lane.b32.xlu0 %v4383, 28
        %v5156 = vpop.permute.xlu0 %5155
        %5157 = vrot.lane.b32.xlu0 %v4384, 28
        %v5158 = vpop.permute.xlu0 %5157
        %5159 = vrot.lane.b32.xlu0 %v4385, 28
        %v5160 = vpop.permute.xlu0 %5159
        %5161 = vrot.lane.b32.xlu0 %v4386, 28
        %v5162 = vpop.permute.xlu0 %5161
        %5195 = vrot.lane.b32.xlu0 %v4322, 32
        %v5196 = vpop.permute.xlu0 %5195
        %5197 = vrot.lane.b32.xlu0 %v4323, 32
        %v5198 = vpop.permute.xlu0 %5197
        %5199 = vrot.lane.b32.xlu0 %v4324, 32
        %v5200 = vpop.permute.xlu0 %5199
        %5201 = vrot.lane.b32.xlu0 %v4325, 32
        %v5202 = vpop.permute.xlu0 %5201
        %5203 = vrot.lane.b32.xlu0 %v4326, 32
        %v5204 = vpop.permute.xlu0 %5203
        %5205 = vrot.lane.b32.xlu0 %v4327, 32
        %v5206 = vpop.permute.xlu0 %5205
        %5207 = vrot.lane.b32.xlu0 %v4328, 32
        %v5208 = vpop.permute.xlu0 %5207
        %5209 = vrot.lane.b32.xlu0 %v4329, 32
        %v5210 = vpop.permute.xlu0 %5209
        %5211 = vrot.lane.b32.xlu0 %v4330, 32
        %v5212 = vpop.permute.xlu0 %5211
        %5213 = vrot.lane.b32.xlu0 %v4331, 32
        %v5214 = vpop.permute.xlu0 %5213
        %5215 = vrot.lane.b32.xlu0 %v4332, 32
        %v5216 = vpop.permute.xlu0 %5215
        %5217 = vrot.lane.b32.xlu0 %v4333, 32
        %v5218 = vpop.permute.xlu0 %5217
        %5219 = vrot.lane.b32.xlu0 %v4334, 32
        %v5220 = vpop.permute.xlu0 %5219
        %5221 = vrot.lane.b32.xlu0 %v4335, 32
        %v5222 = vpop.permute.xlu0 %5221
        %5223 = vrot.lane.b32.xlu0 %v4336, 32
        %v5224 = vpop.permute.xlu0 %5223
        %5225 = vrot.lane.b32.xlu0 %v4337, 32
        %v5226 = vpop.permute.xlu0 %5225
        %5227 = vrot.lane.b32.xlu0 %v4338, 32
        %v5228 = vpop.permute.xlu0 %5227
        %5229 = vrot.lane.b32.xlu0 %v4339, 32
        %v5230 = vpop.permute.xlu0 %5229
        %5231 = vrot.lane.b32.xlu0 %v4340, 32
        %v5232 = vpop.permute.xlu0 %5231
        %5233 = vrot.lane.b32.xlu0 %v4341, 32
        %v5234 = vpop.permute.xlu0 %5233
        %5235 = vrot.lane.b32.xlu0 %v4342, 32
        %v5236 = vpop.permute.xlu0 %5235
        %5237 = vrot.lane.b32.xlu0 %v4343, 32
        %v5238 = vpop.permute.xlu0 %5237
        %5239 = vrot.lane.b32.xlu0 %v4344, 32
        %v5240 = vpop.permute.xlu0 %5239
        %5241 = vrot.lane.b32.xlu0 %v4345, 32
        %v5242 = vpop.permute.xlu0 %5241
        %5243 = vrot.lane.b32.xlu0 %v4387, 32
        %v5244 = vpop.permute.xlu0 %5243
        %5245 = vrot.lane.b32.xlu0 %v4388, 32
        %v5246 = vpop.permute.xlu0 %5245
        %5247 = vrot.lane.b32.xlu0 %v4389, 32
        %v5248 = vpop.permute.xlu0 %5247
        %5249 = vrot.lane.b32.xlu0 %v4390, 32
        %v5250 = vpop.permute.xlu0 %5249
        %5283 = vrot.lane.b32.xlu0 %v4350, 36
        %v5284 = vpop.permute.xlu0 %5283
        %5285 = vrot.lane.b32.xlu0 %v4351, 36
        %v5286 = vpop.permute.xlu0 %5285
        %5287 = vrot.lane.b32.xlu0 %v4352, 36
        %v5288 = vpop.permute.xlu0 %5287
        %5289 = vrot.lane.b32.xlu0 %v4353, 36
        %v5290 = vpop.permute.xlu0 %5289
        %5291 = vrot.lane.b32.xlu0 %v4354, 36
        %v5292 = vpop.permute.xlu0 %5291
        %5293 = vrot.lane.b32.xlu0 %v4355, 36
        %v5294 = vpop.permute.xlu0 %5293
        %5295 = vrot.lane.b32.xlu0 %v4356, 36
        %v5296 = vpop.permute.xlu0 %5295
        %5297 = vrot.lane.b32.xlu0 %v4357, 36
        %v5298 = vpop.permute.xlu0 %5297
        %5299 = vrot.lane.b32.xlu0 %v4358, 36
        %v5300 = vpop.permute.xlu0 %5299
        %5301 = vrot.lane.b32.xlu0 %v4359, 36
        %v5302 = vpop.permute.xlu0 %5301
        %5303 = vrot.lane.b32.xlu0 %v4360, 36
        %v5304 = vpop.permute.xlu0 %5303
        %5305 = vrot.lane.b32.xlu0 %v4361, 36
        %v5306 = vpop.permute.xlu0 %5305
        %5307 = vrot.lane.b32.xlu0 %v4362, 36
        %v5308 = vpop.permute.xlu0 %5307
        %5309 = vrot.lane.b32.xlu0 %v4363, 36
        %v5310 = vpop.permute.xlu0 %5309
        %5311 = vrot.lane.b32.xlu0 %v4364, 36
        %v5312 = vpop.permute.xlu0 %5311
        %5313 = vrot.lane.b32.xlu0 %v4365, 36
        %v5314 = vpop.permute.xlu0 %5313
        %5315 = vrot.lane.b32.xlu0 %v4366, 36
        %v5316 = vpop.permute.xlu0 %5315
        %5317 = vrot.lane.b32.xlu0 %v4367, 36
        %v5318 = vpop.permute.xlu0 %5317
        %5319 = vrot.lane.b32.xlu0 %v4368, 36
        %v5320 = vpop.permute.xlu0 %5319
        %5321 = vrot.lane.b32.xlu0 %v4369, 36
        %v5322 = vpop.permute.xlu0 %5321
        %5323 = vrot.lane.b32.xlu0 %v4370, 36
        %v5324 = vpop.permute.xlu0 %5323
        %5325 = vrot.lane.b32.xlu0 %v4371, 36
        %v5326 = vpop.permute.xlu0 %5325
        %5327 = vrot.lane.b32.xlu0 %v4372, 36
        %v5328 = vpop.permute.xlu0 %5327
        %5329 = vrot.lane.b32.xlu0 %v4373, 36
        %v5330 = vpop.permute.xlu0 %5329
        %5331 = vrot.lane.b32.xlu0 %v4391, 36
        %v5332 = vpop.permute.xlu0 %5331
        %5333 = vrot.lane.b32.xlu0 %v4392, 36
        %v5334 = vpop.permute.xlu0 %5333
        %5335 = vrot.lane.b32.xlu0 %v4393, 36
        %v5336 = vpop.permute.xlu0 %5335
        %5337 = vrot.lane.b32.xlu0 %v4394, 36
        %v5338 = vpop.permute.xlu0 %5337
        %5371 = vrot.lane.b32.xlu0 %v4241, 40
        %v5372 = vpop.permute.xlu0 %5371
        %5373 = vrot.lane.b32.xlu0 %v4242, 40
        %v5374 = vpop.permute.xlu0 %5373
        %5375 = vrot.lane.b32.xlu0 %v4243, 40
        %v5376 = vpop.permute.xlu0 %5375
        %5377 = vrot.lane.b32.xlu0 %v4244, 40
        %v5378 = vpop.permute.xlu0 %5377
        %5379 = vrot.lane.b32.xlu0 %v4245, 40
        %v5380 = vpop.permute.xlu0 %5379
        %5381 = vrot.lane.b32.xlu0 %v4246, 40
        %v5382 = vpop.permute.xlu0 %5381
        %5383 = vrot.lane.b32.xlu0 %v4247, 40
        %v5384 = vpop.permute.xlu0 %5383
        %5385 = vrot.lane.b32.xlu0 %v4248, 40
        %v5386 = vpop.permute.xlu0 %5385
        %5387 = vrot.lane.b32.xlu0 %v4249, 40
        %v5388 = vpop.permute.xlu0 %5387
        %5389 = vrot.lane.b32.xlu0 %v4250, 40
        %v5390 = vpop.permute.xlu0 %5389
        %5391 = vrot.lane.b32.xlu0 %v4251, 40
        %v5392 = vpop.permute.xlu0 %5391
        %5393 = vrot.lane.b32.xlu0 %v4252, 40
        %v5394 = vpop.permute.xlu0 %5393
        %5395 = vrot.lane.b32.xlu0 %v4253, 40
        %v5396 = vpop.permute.xlu0 %5395
        %5397 = vrot.lane.b32.xlu0 %v4254, 40
        %v5398 = vpop.permute.xlu0 %5397
        %5399 = vrot.lane.b32.xlu0 %v4255, 40
        %v5400 = vpop.permute.xlu0 %5399
        %5401 = vrot.lane.b32.xlu0 %v4256, 40
        %v5402 = vpop.permute.xlu0 %5401
        %5403 = vrot.lane.b32.xlu0 %v4257, 40
        %v5404 = vpop.permute.xlu0 %5403
        %5405 = vrot.lane.b32.xlu0 %v4258, 40
        %v5406 = vpop.permute.xlu0 %5405
        %5407 = vrot.lane.b32.xlu0 %v4259, 40
        %v5408 = vpop.permute.xlu0 %5407
        %5409 = vrot.lane.b32.xlu0 %v4260, 40
        %v5410 = vpop.permute.xlu0 %5409
        %5411 = vrot.lane.b32.xlu0 %v4261, 40
        %v5412 = vpop.permute.xlu0 %5411
        %5413 = vrot.lane.b32.xlu0 %v4375, 40
        %v5414 = vpop.permute.xlu0 %5413
        %5415 = vrot.lane.b32.xlu0 %v4376, 40
        %v5416 = vpop.permute.xlu0 %5415
        %5417 = vrot.lane.b32.xlu0 %v4377, 40
        %v5418 = vpop.permute.xlu0 %5417
        %5419 = vrot.lane.b32.xlu0 %v4395, 40
        %v5420 = vpop.permute.xlu0 %5419
        %5421 = vrot.lane.b32.xlu0 %v4396, 40
        %v5422 = vpop.permute.xlu0 %5421
        %5423 = vrot.lane.b32.xlu0 %v4397, 40
        %v5424 = vpop.permute.xlu0 %5423
        %5425 = vrot.lane.b32.xlu0 %v4398, 40
        %v5426 = vpop.permute.xlu0 %5425
        %5459 = vrot.lane.b32.xlu0 %v4269, 44
        %v5460 = vpop.permute.xlu0 %5459
        %5461 = vrot.lane.b32.xlu0 %v4270, 44
        %v5462 = vpop.permute.xlu0 %5461
        %5463 = vrot.lane.b32.xlu0 %v4271, 44
        %v5464 = vpop.permute.xlu0 %5463
        %5465 = vrot.lane.b32.xlu0 %v4272, 44
        %v5466 = vpop.permute.xlu0 %5465
        %5467 = vrot.lane.b32.xlu0 %v4273, 44
        %v5468 = vpop.permute.xlu0 %5467
        %5469 = vrot.lane.b32.xlu0 %v4274, 44
        %v5470 = vpop.permute.xlu0 %5469
        %5471 = vrot.lane.b32.xlu0 %v4275, 44
        %v5472 = vpop.permute.xlu0 %5471
        %5473 = vrot.lane.b32.xlu0 %v4276, 44
        %v5474 = vpop.permute.xlu0 %5473
        %5475 = vrot.lane.b32.xlu0 %v4277, 44
        %v5476 = vpop.permute.xlu0 %5475
        %5477 = vrot.lane.b32.xlu0 %v4278, 44
        %v5478 = vpop.permute.xlu0 %5477
        %5479 = vrot.lane.b32.xlu0 %v4279, 44
        %v5480 = vpop.permute.xlu0 %5479
        %5481 = vrot.lane.b32.xlu0 %v4280, 44
        %v5482 = vpop.permute.xlu0 %5481
        %5483 = vrot.lane.b32.xlu0 %v4281, 44
        %v5484 = vpop.permute.xlu0 %5483
        %5485 = vrot.lane.b32.xlu0 %v4282, 44
        %v5486 = vpop.permute.xlu0 %5485
        %5487 = vrot.lane.b32.xlu0 %v4283, 44
        %v5488 = vpop.permute.xlu0 %5487
        %5489 = vrot.lane.b32.xlu0 %v4284, 44
        %v5490 = vpop.permute.xlu0 %5489
        %5491 = vrot.lane.b32.xlu0 %v4285, 44
        %v5492 = vpop.permute.xlu0 %5491
        %5493 = vrot.lane.b32.xlu0 %v4286, 44
        %v5494 = vpop.permute.xlu0 %5493
        %5495 = vrot.lane.b32.xlu0 %v4287, 44
        %v5496 = vpop.permute.xlu0 %5495
        %5497 = vrot.lane.b32.xlu0 %v4288, 44
        %v5498 = vpop.permute.xlu0 %5497
        %5499 = vrot.lane.b32.xlu0 %v4289, 44
        %v5500 = vpop.permute.xlu0 %5499
        %5501 = vrot.lane.b32.xlu0 %v4379, 44
        %v5502 = vpop.permute.xlu0 %5501
        %5503 = vrot.lane.b32.xlu0 %v4380, 44
        %v5504 = vpop.permute.xlu0 %5503
        %5505 = vrot.lane.b32.xlu0 %v4381, 44
        %v5506 = vpop.permute.xlu0 %5505
        %5507 = vrot.lane.b32.xlu0 %v4399, 44
        %v5508 = vpop.permute.xlu0 %5507
        %5509 = vrot.lane.b32.xlu0 %v4400, 44
        %v5510 = vpop.permute.xlu0 %5509
        %5511 = vrot.lane.b32.xlu0 %v4401, 44
        %v5512 = vpop.permute.xlu0 %5511
        %5513 = vrot.lane.b32.xlu0 %v4402, 44
        %v5514 = vpop.permute.xlu0 %5513
        %5547 = vrot.lane.b32.xlu0 %v4297, 48
        %v5548 = vpop.permute.xlu0 %5547
        %5549 = vrot.lane.b32.xlu0 %v4298, 48
        %v5550 = vpop.permute.xlu0 %5549
        %5551 = vrot.lane.b32.xlu0 %v4299, 48
        %v5552 = vpop.permute.xlu0 %5551
        %5553 = vrot.lane.b32.xlu0 %v4300, 48
        %v5554 = vpop.permute.xlu0 %5553
        %5555 = vrot.lane.b32.xlu0 %v4301, 48
        %v5556 = vpop.permute.xlu0 %5555
        %5557 = vrot.lane.b32.xlu0 %v4302, 48
        %v5558 = vpop.permute.xlu0 %5557
        %5559 = vrot.lane.b32.xlu0 %v4303, 48
        %v5560 = vpop.permute.xlu0 %5559
        %5561 = vrot.lane.b32.xlu0 %v4304, 48
        %v5562 = vpop.permute.xlu0 %5561
        %5563 = vrot.lane.b32.xlu0 %v4305, 48
        %v5564 = vpop.permute.xlu0 %5563
        %5565 = vrot.lane.b32.xlu0 %v4306, 48
        %v5566 = vpop.permute.xlu0 %5565
        %5567 = vrot.lane.b32.xlu0 %v4307, 48
        %v5568 = vpop.permute.xlu0 %5567
        %5569 = vrot.lane.b32.xlu0 %v4308, 48
        %v5570 = vpop.permute.xlu0 %5569
        %5571 = vrot.lane.b32.xlu0 %v4309, 48
        %v5572 = vpop.permute.xlu0 %5571
        %5573 = vrot.lane.b32.xlu0 %v4310, 48
        %v5574 = vpop.permute.xlu0 %5573
        %5575 = vrot.lane.b32.xlu0 %v4311, 48
        %v5576 = vpop.permute.xlu0 %5575
        %5577 = vrot.lane.b32.xlu0 %v4312, 48
        %v5578 = vpop.permute.xlu0 %5577
        %5579 = vrot.lane.b32.xlu0 %v4313, 48
        %v5580 = vpop.permute.xlu0 %5579
        %5581 = vrot.lane.b32.xlu0 %v4314, 48
        %v5582 = vpop.permute.xlu0 %5581
        %5583 = vrot.lane.b32.xlu0 %v4315, 48
        %v5584 = vpop.permute.xlu0 %5583
        %5585 = vrot.lane.b32.xlu0 %v4316, 48
        %v5586 = vpop.permute.xlu0 %5585
        %5587 = vrot.lane.b32.xlu0 %v4317, 48
        %v5588 = vpop.permute.xlu0 %5587
        %5589 = vrot.lane.b32.xlu0 %v4383, 48
        %v5590 = vpop.permute.xlu0 %5589
        %5591 = vrot.lane.b32.xlu0 %v4384, 48
        %v5592 = vpop.permute.xlu0 %5591
        %5593 = vrot.lane.b32.xlu0 %v4385, 48
        %v5594 = vpop.permute.xlu0 %5593
        %5595 = vrot.lane.b32.xlu0 %v4403, 48
        %v5596 = vpop.permute.xlu0 %5595
        %5597 = vrot.lane.b32.xlu0 %v4404, 48
        %v5598 = vpop.permute.xlu0 %5597
        %5599 = vrot.lane.b32.xlu0 %v4405, 48
        %v5600 = vpop.permute.xlu0 %5599
        %5601 = vrot.lane.b32.xlu0 %v4406, 48
        %v5602 = vpop.permute.xlu0 %5601
        %5635 = vrot.lane.b32.xlu0 %v4325, 52
        %v5636 = vpop.permute.xlu0 %5635
        %5637 = vrot.lane.b32.xlu0 %v4326, 52
        %v5638 = vpop.permute.xlu0 %5637
        %5639 = vrot.lane.b32.xlu0 %v4327, 52
        %v5640 = vpop.permute.xlu0 %5639
        %5641 = vrot.lane.b32.xlu0 %v4328, 52
        %v5642 = vpop.permute.xlu0 %5641
        %5643 = vrot.lane.b32.xlu0 %v4329, 52
        %v5644 = vpop.permute.xlu0 %5643
        %5645 = vrot.lane.b32.xlu0 %v4330, 52
        %v5646 = vpop.permute.xlu0 %5645
        %5647 = vrot.lane.b32.xlu0 %v4331, 52
        %v5648 = vpop.permute.xlu0 %5647
        %5649 = vrot.lane.b32.xlu0 %v4332, 52
        %v5650 = vpop.permute.xlu0 %5649
        %5651 = vrot.lane.b32.xlu0 %v4333, 52
        %v5652 = vpop.permute.xlu0 %5651
        %5653 = vrot.lane.b32.xlu0 %v4334, 52
        %v5654 = vpop.permute.xlu0 %5653
        %5655 = vrot.lane.b32.xlu0 %v4335, 52
        %v5656 = vpop.permute.xlu0 %5655
        %5657 = vrot.lane.b32.xlu0 %v4336, 52
        %v5658 = vpop.permute.xlu0 %5657
        %5659 = vrot.lane.b32.xlu0 %v4337, 52
        %v5660 = vpop.permute.xlu0 %5659
        %5661 = vrot.lane.b32.xlu0 %v4338, 52
        %v5662 = vpop.permute.xlu0 %5661
        %5663 = vrot.lane.b32.xlu0 %v4339, 52
        %v5664 = vpop.permute.xlu0 %5663
        %5665 = vrot.lane.b32.xlu0 %v4340, 52
        %v5666 = vpop.permute.xlu0 %5665
        %5667 = vrot.lane.b32.xlu0 %v4341, 52
        %v5668 = vpop.permute.xlu0 %5667
        %5669 = vrot.lane.b32.xlu0 %v4342, 52
        %v5670 = vpop.permute.xlu0 %5669
        %5671 = vrot.lane.b32.xlu0 %v4343, 52
        %v5672 = vpop.permute.xlu0 %5671
        %5673 = vrot.lane.b32.xlu0 %v4344, 52
        %v5674 = vpop.permute.xlu0 %5673
        %5675 = vrot.lane.b32.xlu0 %v4345, 52
        %v5676 = vpop.permute.xlu0 %5675
        %5677 = vrot.lane.b32.xlu0 %v4387, 52
        %v5678 = vpop.permute.xlu0 %5677
        %5679 = vrot.lane.b32.xlu0 %v4388, 52
        %v5680 = vpop.permute.xlu0 %5679
        %5681 = vrot.lane.b32.xlu0 %v4389, 52
        %v5682 = vpop.permute.xlu0 %5681
        %5683 = vrot.lane.b32.xlu0 %v4407, 52
        %v5684 = vpop.permute.xlu0 %5683
        %5685 = vrot.lane.b32.xlu0 %v4408, 52
        %v5686 = vpop.permute.xlu0 %5685
        %5687 = vrot.lane.b32.xlu0 %v4409, 52
        %v5688 = vpop.permute.xlu0 %5687
        %5689 = vrot.lane.b32.xlu0 %v4410, 52
        %v5690 = vpop.permute.xlu0 %5689
        %5723 = vrot.lane.b32.xlu0 %v4353, 56
        %v5724 = vpop.permute.xlu0 %5723
        %5725 = vrot.lane.b32.xlu0 %v4354, 56
        %v5726 = vpop.permute.xlu0 %5725
        %5727 = vrot.lane.b32.xlu0 %v4355, 56
        %v5728 = vpop.permute.xlu0 %5727
        %5729 = vrot.lane.b32.xlu0 %v4356, 56
        %v5730 = vpop.permute.xlu0 %5729
        %5731 = vrot.lane.b32.xlu0 %v4357, 56
        %v5732 = vpop.permute.xlu0 %5731
        %5733 = vrot.lane.b32.xlu0 %v4358, 56
        %v5734 = vpop.permute.xlu0 %5733
        %5735 = vrot.lane.b32.xlu0 %v4359, 56
        %v5736 = vpop.permute.xlu0 %5735
        %5737 = vrot.lane.b32.xlu0 %v4360, 56
        %v5738 = vpop.permute.xlu0 %5737
        %5739 = vrot.lane.b32.xlu0 %v4361, 56
        %v5740 = vpop.permute.xlu0 %5739
        %5741 = vrot.lane.b32.xlu0 %v4362, 56
        %v5742 = vpop.permute.xlu0 %5741
        %5743 = vrot.lane.b32.xlu0 %v4363, 56
        %v5744 = vpop.permute.xlu0 %5743
        %5745 = vrot.lane.b32.xlu0 %v4364, 56
        %v5746 = vpop.permute.xlu0 %5745
        %5747 = vrot.lane.b32.xlu0 %v4365, 56
        %v5748 = vpop.permute.xlu0 %5747
        %5749 = vrot.lane.b32.xlu0 %v4366, 56
        %v5750 = vpop.permute.xlu0 %5749
        %5751 = vrot.lane.b32.xlu0 %v4367, 56
        %v5752 = vpop.permute.xlu0 %5751
        %5753 = vrot.lane.b32.xlu0 %v4368, 56
        %v5754 = vpop.permute.xlu0 %5753
        %5755 = vrot.lane.b32.xlu0 %v4369, 56
        %v5756 = vpop.permute.xlu0 %5755
        %5757 = vrot.lane.b32.xlu0 %v4370, 56
        %v5758 = vpop.permute.xlu0 %5757
        %5759 = vrot.lane.b32.xlu0 %v4371, 56
        %v5760 = vpop.permute.xlu0 %5759
        %5761 = vrot.lane.b32.xlu0 %v4372, 56
        %v5762 = vpop.permute.xlu0 %5761
        %5763 = vrot.lane.b32.xlu0 %v4373, 56
        %v5764 = vpop.permute.xlu0 %5763
        %5765 = vrot.lane.b32.xlu0 %v4391, 56
        %v5766 = vpop.permute.xlu0 %5765
        %5767 = vrot.lane.b32.xlu0 %v4392, 56
        %v5768 = vpop.permute.xlu0 %5767
        %5769 = vrot.lane.b32.xlu0 %v4393, 56
        %v5770 = vpop.permute.xlu0 %5769
        %5771 = vrot.lane.b32.xlu0 %v4411, 56
        %v5772 = vpop.permute.xlu0 %5771
        %5773 = vrot.lane.b32.xlu0 %v4412, 56
        %v5774 = vpop.permute.xlu0 %5773
        %5775 = vrot.lane.b32.xlu0 %v4413, 56
        %v5776 = vpop.permute.xlu0 %5775
        %5777 = vrot.lane.b32.xlu0 %v4414, 56
        %v5778 = vpop.permute.xlu0 %5777
        %5811 = vrot.lane.b32.xlu0 %v4244, 60
        %v5812 = vpop.permute.xlu0 %5811
        %5813 = vrot.lane.b32.xlu0 %v4245, 60
        %v5814 = vpop.permute.xlu0 %5813
        %5815 = vrot.lane.b32.xlu0 %v4246, 60
        %v5816 = vpop.permute.xlu0 %5815
        %5817 = vrot.lane.b32.xlu0 %v4247, 60
        %v5818 = vpop.permute.xlu0 %5817
        %5819 = vrot.lane.b32.xlu0 %v4248, 60
        %v5820 = vpop.permute.xlu0 %5819
        %5821 = vrot.lane.b32.xlu0 %v4249, 60
        %v5822 = vpop.permute.xlu0 %5821
        %5823 = vrot.lane.b32.xlu0 %v4250, 60
        %v5824 = vpop.permute.xlu0 %5823
        %5825 = vrot.lane.b32.xlu0 %v4251, 60
        %v5826 = vpop.permute.xlu0 %5825
        %5827 = vrot.lane.b32.xlu0 %v4252, 60
        %v5828 = vpop.permute.xlu0 %5827
        %5829 = vrot.lane.b32.xlu0 %v4253, 60
        %v5830 = vpop.permute.xlu0 %5829
        %5831 = vrot.lane.b32.xlu0 %v4254, 60
        %v5832 = vpop.permute.xlu0 %5831
        %5833 = vrot.lane.b32.xlu0 %v4255, 60
        %v5834 = vpop.permute.xlu0 %5833
        %5835 = vrot.lane.b32.xlu0 %v4256, 60
        %v5836 = vpop.permute.xlu0 %5835
        %5837 = vrot.lane.b32.xlu0 %v4257, 60
        %v5838 = vpop.permute.xlu0 %5837
        %5839 = vrot.lane.b32.xlu0 %v4258, 60
        %v5840 = vpop.permute.xlu0 %5839
        %5841 = vrot.lane.b32.xlu0 %v4259, 60
        %v5842 = vpop.permute.xlu0 %5841
        %5843 = vrot.lane.b32.xlu0 %v4260, 60
        %v5844 = vpop.permute.xlu0 %5843
        %5845 = vrot.lane.b32.xlu0 %v4261, 60
        %v5846 = vpop.permute.xlu0 %5845
        %5847 = vrot.lane.b32.xlu0 %v4375, 60
        %v5848 = vpop.permute.xlu0 %5847
        %5849 = vrot.lane.b32.xlu0 %v4376, 60
        %v5850 = vpop.permute.xlu0 %5849
        %5851 = vrot.lane.b32.xlu0 %v4377, 60
        %v5852 = vpop.permute.xlu0 %5851
        %5853 = vrot.lane.b32.xlu0 %v4395, 60
        %v5854 = vpop.permute.xlu0 %5853
        %5855 = vrot.lane.b32.xlu0 %v4396, 60
        %v5856 = vpop.permute.xlu0 %5855
        %5857 = vrot.lane.b32.xlu0 %v4397, 60
        %v5858 = vpop.permute.xlu0 %5857
        %5859 = vrot.lane.b32.xlu0 %v4415, 60
        %v5860 = vpop.permute.xlu0 %5859
        %5861 = vrot.lane.b32.xlu0 %v4416, 60
        %v5862 = vpop.permute.xlu0 %5861
        %5863 = vrot.lane.b32.xlu0 %v4417, 60
        %v5864 = vpop.permute.xlu0 %5863
        %5865 = vrot.lane.b32.xlu0 %v4418, 60
        %v5866 = vpop.permute.xlu0 %5865
        %v5895 = vsel %vm2284, %v4235, %v4484
        %v5896 = vsel %vm2284, %v4236, %v4486
        %v5897 = vsel %vm2284, %v4237, %v4488
        %v5898 = vsel %vm2284, %v4238, %v4490
        %v5899 = vsel %vm2284, %v4239, %v4492
        %v5900 = vsel %vm2284, %v4240, %v4494
        %v5901 = vsel %vm2284, %v4241, %v4496
        %v5902 = vsel %vm2284, %v4242, %v4498
        %v5903 = vsel %vm2284, %v4243, %v4500
        %v5904 = vsel %vm2284, %v4244, %v4502
        %v5905 = vsel %vm2284, %v4245, %v4504
        %v5906 = vsel %vm2284, %v4246, %v4506
        %v5907 = vsel %vm2284, %v4247, %v4508
        %v5908 = vsel %vm2284, %v4248, %v4510
        %v5909 = vsel %vm2284, %v4249, %v4512
        %v5910 = vsel %vm2284, %v4250, %v4514
        %v5911 = vsel %vm2284, %v4251, %v4516
        %v5912 = vsel %vm2284, %v4252, %v4518
        %v5913 = vsel %vm2284, %v4253, %v4520
        %v5914 = vsel %vm2284, %v4254, %v4522
        %v5915 = vsel %vm2284, %v4255, %v4524
        %v5916 = vsel %vm2284, %v4256, %v4526
        %v5917 = vsel %vm2284, %v4257, %v4528
        %v5918 = vsel %vm2284, %v4258, %v4530
        %v5919 = vsel %vm2284, %v4259, %v4532
        %v5920 = vsel %vm2284, %v4260, %v4534
        %v5921 = vsel %vm2284, %v4261, %v4536
        %v5922 = vsel %vm2284, %v4262, %v4538
        %v5923 = vsel %vm384, %v5895, %v4596
        %v5924 = vsel %vm384, %v5896, %v4598
        %v5925 = vsel %vm384, %v5897, %v4600
        %v5926 = vsel %vm384, %v5898, %v4602
        %v5927 = vsel %vm384, %v5899, %v4604
        %v5928 = vsel %vm384, %v5900, %v4606
        %v5929 = vsel %vm384, %v5901, %v4608
        %v5930 = vsel %vm384, %v5902, %v4610
        %v5931 = vsel %vm384, %v5903, %v4612
        %v5932 = vsel %vm384, %v5904, %v4614
        %v5933 = vsel %vm384, %v5905, %v4616
        %v5934 = vsel %vm384, %v5906, %v4618
        %v5935 = vsel %vm384, %v5907, %v4620
        %v5936 = vsel %vm384, %v5908, %v4622
        %v5937 = vsel %vm384, %v5909, %v4624
        %v5938 = vsel %vm384, %v5910, %v4626
        %v5939 = vsel %vm384, %v5911, %v4628
        %v5940 = vsel %vm384, %v5912, %v4630
        %v5941 = vsel %vm384, %v5913, %v4632
        %v5942 = vsel %vm384, %v5914, %v4634
        %v5943 = vsel %vm384, %v5915, %v4636
        %v5944 = vsel %vm384, %v5916, %v4638
        %v5945 = vsel %vm384, %v5917, %v4640
        %v5946 = vsel %vm384, %v5918, %v4642
        %v5947 = vsel %vm384, %v5919, %v4644
        %v5948 = vsel %vm384, %v5920, %v4646
        %v5949 = vsel %vm384, %v5921, %v4648
        %v5950 = vsel %vm384, %v5922, %v4650
        %v5951 = vsel %vm2349, %v5923, %v4708
        %v5952 = vsel %vm2349, %v5924, %v4710
        %v5953 = vsel %vm2349, %v5925, %v4712
        %v5954 = vsel %vm2349, %v5926, %v4714
        %v5955 = vsel %vm2349, %v5927, %v4716
        %v5956 = vsel %vm2349, %v5928, %v4718
        %v5957 = vsel %vm2349, %v5929, %v4720
        %v5958 = vsel %vm2349, %v5930, %v4722
        %v5959 = vsel %vm2349, %v5931, %v4724
        %v5960 = vsel %vm2349, %v5932, %v4726
        %v5961 = vsel %vm2349, %v5933, %v4728
        %v5962 = vsel %vm2349, %v5934, %v4730
        %v5963 = vsel %vm2349, %v5935, %v4732
        %v5964 = vsel %vm2349, %v5936, %v4734
        %v5965 = vsel %vm2349, %v5937, %v4736
        %v5966 = vsel %vm2349, %v5938, %v4738
        %v5967 = vsel %vm2349, %v5939, %v4740
        %v5968 = vsel %vm2349, %v5940, %v4742
        %v5969 = vsel %vm2349, %v5941, %v4744
        %v5970 = vsel %vm2349, %v5942, %v4746
        %v5971 = vsel %vm2349, %v5943, %v4748
        %v5972 = vsel %vm2349, %v5944, %v4750
        %v5973 = vsel %vm2349, %v5945, %v4752
        %v5974 = vsel %vm2349, %v5946, %v4754
        %v5975 = vsel %vm2349, %v5947, %v4756
        %v5976 = vsel %vm2349, %v5948, %v4758
        %v5977 = vsel %vm2349, %v5949, %v4760
        %v5978 = vsel %vm2349, %v5950, %v4762
        %v5979 = vsel %vm413, %v5951, %v4820
        %v5980 = vsel %vm413, %v5952, %v4822
        %v5981 = vsel %vm413, %v5953, %v4824
        %v5982 = vsel %vm413, %v5954, %v4826
        %v5983 = vsel %vm413, %v5955, %v4828
        %v5984 = vsel %vm413, %v5956, %v4830
        %v5985 = vsel %vm413, %v5957, %v4832
        %v5986 = vsel %vm413, %v5958, %v4834
        %v5987 = vsel %vm413, %v5959, %v4836
        %v5988 = vsel %vm413, %v5960, %v4838
        %v5989 = vsel %vm413, %v5961, %v4840
        %v5990 = vsel %vm413, %v5962, %v4842
        %v5991 = vsel %vm413, %v5963, %v4844
        %v5992 = vsel %vm413, %v5964, %v4846
        %v5993 = vsel %vm413, %v5965, %v4848
        %v5994 = vsel %vm413, %v5966, %v4850
        %v5995 = vsel %vm413, %v5967, %v4852
        %v5996 = vsel %vm413, %v5968, %v4854
        %v5997 = vsel %vm413, %v5969, %v4856
        %v5998 = vsel %vm413, %v5970, %v4858
        %v5999 = vsel %vm413, %v5971, %v4860
        %v6000 = vsel %vm413, %v5972, %v4862
        %v6001 = vsel %vm413, %v5973, %v4864
        %v6002 = vsel %vm413, %v5974, %v4866
        %v6003 = vsel %vm413, %v5975, %v4868
        %v6004 = vsel %vm413, %v5976, %v4870
        %v6005 = vsel %vm413, %v5977, %v4872
        %v6006 = vsel %vm413, %v5978, %v4874
        %v6007 = vsel %vm2414, %v5979, %v4932
        %v6008 = vsel %vm2414, %v5980, %v4934
        %v6009 = vsel %vm2414, %v5981, %v4936
        %v6010 = vsel %vm2414, %v5982, %v4938
        %v6011 = vsel %vm2414, %v5983, %v4940
        %v6012 = vsel %vm2414, %v5984, %v4942
        %v6013 = vsel %vm2414, %v5985, %v4944
        %v6014 = vsel %vm2414, %v5986, %v4946
        %v6015 = vsel %vm2414, %v5987, %v4948
        %v6016 = vsel %vm2414, %v5988, %v4950
        %v6017 = vsel %vm2414, %v5989, %v4952
        %v6018 = vsel %vm2414, %v5990, %v4954
        %v6019 = vsel %vm2414, %v5991, %v4956
        %v6020 = vsel %vm2414, %v5992, %v4958
        %v6021 = vsel %vm2414, %v5993, %v4960
        %v6022 = vsel %vm2414, %v5994, %v4962
        %v6023 = vsel %vm2414, %v5995, %v4964
        %v6024 = vsel %vm2414, %v5996, %v4966
        %v6025 = vsel %vm2414, %v5997, %v4968
        %v6026 = vsel %vm2414, %v5998, %v4970
        %v6027 = vsel %vm2414, %v5999, %v4972
        %v6028 = vsel %vm2414, %v6000, %v4974
        %v6029 = vsel %vm2414, %v6001, %v4976
        %v6030 = vsel %vm2414, %v6002, %v4978
        %v6031 = vsel %vm2414, %v6003, %v4980
        %v6032 = vsel %vm2414, %v6004, %v4982
        %v6033 = vsel %vm2414, %v6005, %v4984
        %v6034 = vsel %vm2414, %v6006, %v4986
        %v6035 = vsel %vm2447, %v6007, %v5020
        %v6036 = vsel %vm2447, %v6008, %v5022
        %v6037 = vsel %vm2447, %v6009, %v5024
        %v6038 = vsel %vm2447, %v6010, %v5026
        %v6039 = vsel %vm2447, %v6011, %v5028
        %v6040 = vsel %vm2447, %v6012, %v5030
        %v6041 = vsel %vm2447, %v6013, %v5032
        %v6042 = vsel %vm2447, %v6014, %v5034
        %v6043 = vsel %vm2447, %v6015, %v5036
        %v6044 = vsel %vm2447, %v6016, %v5038
        %v6045 = vsel %vm2447, %v6017, %v5040
        %v6046 = vsel %vm2447, %v6018, %v5042
        %v6047 = vsel %vm2447, %v6019, %v5044
        %v6048 = vsel %vm2447, %v6020, %v5046
        %v6049 = vsel %vm2447, %v6021, %v5048
        %v6050 = vsel %vm2447, %v6022, %v5050
        %v6051 = vsel %vm2447, %v6023, %v5052
        %v6052 = vsel %vm2447, %v6024, %v5054
        %v6053 = vsel %vm2447, %v6025, %v5056
        %v6054 = vsel %vm2447, %v6026, %v5058
        %v6055 = vsel %vm2447, %v6027, %v5060
        %v6056 = vsel %vm2447, %v6028, %v5062
        %v6057 = vsel %vm2447, %v6029, %v5064
        %v6058 = vsel %vm2447, %v6030, %v5066
        %v6059 = vsel %vm2447, %v6031, %v5068
        %v6060 = vsel %vm2447, %v6032, %v5070
        %v6061 = vsel %vm2447, %v6033, %v5072
        %v6062 = vsel %vm2447, %v6034, %v5074
        %v6063 = vsel %vm2480, %v6035, %v5108
        %v6064 = vsel %vm2480, %v6036, %v5110
        %v6065 = vsel %vm2480, %v6037, %v5112
        %v6066 = vsel %vm2480, %v6038, %v5114
        %v6067 = vsel %vm2480, %v6039, %v5116
        %v6068 = vsel %vm2480, %v6040, %v5118
        %v6069 = vsel %vm2480, %v6041, %v5120
        %v6070 = vsel %vm2480, %v6042, %v5122
        %v6071 = vsel %vm2480, %v6043, %v5124
        %v6072 = vsel %vm2480, %v6044, %v5126
        %v6073 = vsel %vm2480, %v6045, %v5128
        %v6074 = vsel %vm2480, %v6046, %v5130
        %v6075 = vsel %vm2480, %v6047, %v5132
        %v6076 = vsel %vm2480, %v6048, %v5134
        %v6077 = vsel %vm2480, %v6049, %v5136
        %v6078 = vsel %vm2480, %v6050, %v5138
        %v6079 = vsel %vm2480, %v6051, %v5140
        %v6080 = vsel %vm2480, %v6052, %v5142
        %v6081 = vsel %vm2480, %v6053, %v5144
        %v6082 = vsel %vm2480, %v6054, %v5146
        %v6083 = vsel %vm2480, %v6055, %v5148
        %v6084 = vsel %vm2480, %v6056, %v5150
        %v6085 = vsel %vm2480, %v6057, %v5152
        %v6086 = vsel %vm2480, %v6058, %v5154
        %v6087 = vsel %vm2480, %v6059, %v5156
        %v6088 = vsel %vm2480, %v6060, %v5158
        %v6089 = vsel %vm2480, %v6061, %v5160
        %v6090 = vsel %vm2480, %v6062, %v5162
        %v6091 = vsel %vm2513, %v6063, %v5196
        %v6092 = vsel %vm2513, %v6064, %v5198
        %v6093 = vsel %vm2513, %v6065, %v5200
        %v6094 = vsel %vm2513, %v6066, %v5202
        %v6095 = vsel %vm2513, %v6067, %v5204
        %v6096 = vsel %vm2513, %v6068, %v5206
        %v6097 = vsel %vm2513, %v6069, %v5208
        %v6098 = vsel %vm2513, %v6070, %v5210
        %v6099 = vsel %vm2513, %v6071, %v5212
        %v6100 = vsel %vm2513, %v6072, %v5214
        %v6101 = vsel %vm2513, %v6073, %v5216
        %v6102 = vsel %vm2513, %v6074, %v5218
        %v6103 = vsel %vm2513, %v6075, %v5220
        %v6104 = vsel %vm2513, %v6076, %v5222
        %v6105 = vsel %vm2513, %v6077, %v5224
        %v6106 = vsel %vm2513, %v6078, %v5226
        %v6107 = vsel %vm2513, %v6079, %v5228
        %v6108 = vsel %vm2513, %v6080, %v5230
        %v6109 = vsel %vm2513, %v6081, %v5232
        %v6110 = vsel %vm2513, %v6082, %v5234
        %v6111 = vsel %vm2513, %v6083, %v5236
        %v6112 = vsel %vm2513, %v6084, %v5238
        %v6113 = vsel %vm2513, %v6085, %v5240
        %v6114 = vsel %vm2513, %v6086, %v5242
        %v6115 = vsel %vm2513, %v6087, %v5244
        %v6116 = vsel %vm2513, %v6088, %v5246
        %v6117 = vsel %vm2513, %v6089, %v5248
        %v6118 = vsel %vm2513, %v6090, %v5250
        %v6119 = vsel %vm2546, %v6091, %v5284
        %v6120 = vsel %vm2546, %v6092, %v5286
        %v6121 = vsel %vm2546, %v6093, %v5288
        %v6122 = vsel %vm2546, %v6094, %v5290
        %v6123 = vsel %vm2546, %v6095, %v5292
        %v6124 = vsel %vm2546, %v6096, %v5294
        %v6125 = vsel %vm2546, %v6097, %v5296
        %v6126 = vsel %vm2546, %v6098, %v5298
        %v6127 = vsel %vm2546, %v6099, %v5300
        %v6128 = vsel %vm2546, %v6100, %v5302
        %v6129 = vsel %vm2546, %v6101, %v5304
        %v6130 = vsel %vm2546, %v6102, %v5306
        %v6131 = vsel %vm2546, %v6103, %v5308
        %v6132 = vsel %vm2546, %v6104, %v5310
        %v6133 = vsel %vm2546, %v6105, %v5312
        %v6134 = vsel %vm2546, %v6106, %v5314
        %v6135 = vsel %vm2546, %v6107, %v5316
        %v6136 = vsel %vm2546, %v6108, %v5318
        %v6137 = vsel %vm2546, %v6109, %v5320
        %v6138 = vsel %vm2546, %v6110, %v5322
        %v6139 = vsel %vm2546, %v6111, %v5324
        %v6140 = vsel %vm2546, %v6112, %v5326
        %v6141 = vsel %vm2546, %v6113, %v5328
        %v6142 = vsel %vm2546, %v6114, %v5330
        %v6143 = vsel %vm2546, %v6115, %v5332
        %v6144 = vsel %vm2546, %v6116, %v5334
        %v6145 = vsel %vm2546, %v6117, %v5336
        %v6146 = vsel %vm2546, %v6118, %v5338
        %v6147 = vsel %vm2579, %v6119, %v5372
        %v6148 = vsel %vm2579, %v6120, %v5374
        %v6149 = vsel %vm2579, %v6121, %v5376
        %v6150 = vsel %vm2579, %v6122, %v5378
        %v6151 = vsel %vm2579, %v6123, %v5380
        %v6152 = vsel %vm2579, %v6124, %v5382
        %v6153 = vsel %vm2579, %v6125, %v5384
        %v6154 = vsel %vm2579, %v6126, %v5386
        %v6155 = vsel %vm2579, %v6127, %v5388
        %v6156 = vsel %vm2579, %v6128, %v5390
        %v6157 = vsel %vm2579, %v6129, %v5392
        %v6158 = vsel %vm2579, %v6130, %v5394
        %v6159 = vsel %vm2579, %v6131, %v5396
        %v6160 = vsel %vm2579, %v6132, %v5398
        %v6161 = vsel %vm2579, %v6133, %v5400
        %v6162 = vsel %vm2579, %v6134, %v5402
        %v6163 = vsel %vm2579, %v6135, %v5404
        %v6164 = vsel %vm2579, %v6136, %v5406
        %v6165 = vsel %vm2579, %v6137, %v5408
        %v6166 = vsel %vm2579, %v6138, %v5410
        %v6167 = vsel %vm2579, %v6139, %v5412
        %v6168 = vsel %vm2579, %v6140, %v5414
        %v6169 = vsel %vm2579, %v6141, %v5416
        %v6170 = vsel %vm2579, %v6142, %v5418
        %v6171 = vsel %vm2579, %v6143, %v5420
        %v6172 = vsel %vm2579, %v6144, %v5422
        %v6173 = vsel %vm2579, %v6145, %v5424
        %v6174 = vsel %vm2579, %v6146, %v5426
        %v6175 = vsel %vm2612, %v6147, %v5460
        %v6176 = vsel %vm2612, %v6148, %v5462
        %v6177 = vsel %vm2612, %v6149, %v5464
        %v6178 = vsel %vm2612, %v6150, %v5466
        %v6179 = vsel %vm2612, %v6151, %v5468
        %v6180 = vsel %vm2612, %v6152, %v5470
        %v6181 = vsel %vm2612, %v6153, %v5472
        %v6182 = vsel %vm2612, %v6154, %v5474
        %v6183 = vsel %vm2612, %v6155, %v5476
        %v6184 = vsel %vm2612, %v6156, %v5478
        %v6185 = vsel %vm2612, %v6157, %v5480
        %v6186 = vsel %vm2612, %v6158, %v5482
        %v6187 = vsel %vm2612, %v6159, %v5484
        %v6188 = vsel %vm2612, %v6160, %v5486
        %v6189 = vsel %vm2612, %v6161, %v5488
        %v6190 = vsel %vm2612, %v6162, %v5490
        %v6191 = vsel %vm2612, %v6163, %v5492
        %v6192 = vsel %vm2612, %v6164, %v5494
        %v6193 = vsel %vm2612, %v6165, %v5496
        %v6194 = vsel %vm2612, %v6166, %v5498
        %v6195 = vsel %vm2612, %v6167, %v5500
        %v6196 = vsel %vm2612, %v6168, %v5502
        %v6197 = vsel %vm2612, %v6169, %v5504
        %v6198 = vsel %vm2612, %v6170, %v5506
        %v6199 = vsel %vm2612, %v6171, %v5508
        %v6200 = vsel %vm2612, %v6172, %v5510
        %v6201 = vsel %vm2612, %v6173, %v5512
        %v6202 = vsel %vm2612, %v6174, %v5514
        %v6203 = vsel %vm2645, %v6175, %v5548
        %v6204 = vsel %vm2645, %v6176, %v5550
        %v6205 = vsel %vm2645, %v6177, %v5552
        %v6206 = vsel %vm2645, %v6178, %v5554
        %v6207 = vsel %vm2645, %v6179, %v5556
        %v6208 = vsel %vm2645, %v6180, %v5558
        %v6209 = vsel %vm2645, %v6181, %v5560
        %v6210 = vsel %vm2645, %v6182, %v5562
        %v6211 = vsel %vm2645, %v6183, %v5564
        %v6212 = vsel %vm2645, %v6184, %v5566
        %v6213 = vsel %vm2645, %v6185, %v5568
        %v6214 = vsel %vm2645, %v6186, %v5570
        %v6215 = vsel %vm2645, %v6187, %v5572
        %v6216 = vsel %vm2645, %v6188, %v5574
        %v6217 = vsel %vm2645, %v6189, %v5576
        %v6218 = vsel %vm2645, %v6190, %v5578
        %v6219 = vsel %vm2645, %v6191, %v5580
        %v6220 = vsel %vm2645, %v6192, %v5582
        %v6221 = vsel %vm2645, %v6193, %v5584
        %v6222 = vsel %vm2645, %v6194, %v5586
        %v6223 = vsel %vm2645, %v6195, %v5588
        %v6224 = vsel %vm2645, %v6196, %v5590
        %v6225 = vsel %vm2645, %v6197, %v5592
        %v6226 = vsel %vm2645, %v6198, %v5594
        %v6227 = vsel %vm2645, %v6199, %v5596
        %v6228 = vsel %vm2645, %v6200, %v5598
        %v6229 = vsel %vm2645, %v6201, %v5600
        %v6230 = vsel %vm2645, %v6202, %v5602
        %v6231 = vsel %vm2678, %v6203, %v5636
        %v6232 = vsel %vm2678, %v6204, %v5638
        %v6233 = vsel %vm2678, %v6205, %v5640
        %v6234 = vsel %vm2678, %v6206, %v5642
        %v6235 = vsel %vm2678, %v6207, %v5644
        %v6236 = vsel %vm2678, %v6208, %v5646
        %v6237 = vsel %vm2678, %v6209, %v5648
        %v6238 = vsel %vm2678, %v6210, %v5650
        %v6239 = vsel %vm2678, %v6211, %v5652
        %v6240 = vsel %vm2678, %v6212, %v5654
        %v6241 = vsel %vm2678, %v6213, %v5656
        %v6242 = vsel %vm2678, %v6214, %v5658
        %v6243 = vsel %vm2678, %v6215, %v5660
        %v6244 = vsel %vm2678, %v6216, %v5662
        %v6245 = vsel %vm2678, %v6217, %v5664
        %v6246 = vsel %vm2678, %v6218, %v5666
        %v6247 = vsel %vm2678, %v6219, %v5668
        %v6248 = vsel %vm2678, %v6220, %v5670
        %v6249 = vsel %vm2678, %v6221, %v5672
        %v6250 = vsel %vm2678, %v6222, %v5674
        %v6251 = vsel %vm2678, %v6223, %v5676
        %v6252 = vsel %vm2678, %v6224, %v5678
        %v6253 = vsel %vm2678, %v6225, %v5680
        %v6254 = vsel %vm2678, %v6226, %v5682
        %v6255 = vsel %vm2678, %v6227, %v5684
        %v6256 = vsel %vm2678, %v6228, %v5686
        %v6257 = vsel %vm2678, %v6229, %v5688
        %v6258 = vsel %vm2678, %v6230, %v5690
        %v6259 = vsel %vm2711, %v6231, %v5724
        %v6260 = vsel %vm2711, %v6232, %v5726
        %v6261 = vsel %vm2711, %v6233, %v5728
        %v6262 = vsel %vm2711, %v6234, %v5730
        %v6263 = vsel %vm2711, %v6235, %v5732
        %v6264 = vsel %vm2711, %v6236, %v5734
        %v6265 = vsel %vm2711, %v6237, %v5736
        %v6266 = vsel %vm2711, %v6238, %v5738
        %v6267 = vsel %vm2711, %v6239, %v5740
        %v6268 = vsel %vm2711, %v6240, %v5742
        %v6269 = vsel %vm2711, %v6241, %v5744
        %v6270 = vsel %vm2711, %v6242, %v5746
        %v6271 = vsel %vm2711, %v6243, %v5748
        %v6272 = vsel %vm2711, %v6244, %v5750
        %v6273 = vsel %vm2711, %v6245, %v5752
        %v6274 = vsel %vm2711, %v6246, %v5754
        %v6275 = vsel %vm2711, %v6247, %v5756
        %v6276 = vsel %vm2711, %v6248, %v5758
        %v6277 = vsel %vm2711, %v6249, %v5760
        %v6278 = vsel %vm2711, %v6250, %v5762
        %v6279 = vsel %vm2711, %v6251, %v5764
        %v6280 = vsel %vm2711, %v6252, %v5766
        %v6281 = vsel %vm2711, %v6253, %v5768
        %v6282 = vsel %vm2711, %v6254, %v5770
        %v6283 = vsel %vm2711, %v6255, %v5772
        %v6284 = vsel %vm2711, %v6256, %v5774
        %v6285 = vsel %vm2711, %v6257, %v5776
        %v6286 = vsel %vm2711, %v6258, %v5778
        %v6287 = vsel %vm2744, %v6259, %v5812
        %v6288 = vsel %vm2744, %v6260, %v5814
        %v6289 = vsel %vm2744, %v6261, %v5816
        %v6290 = vsel %vm2744, %v6262, %v5818
        %v6291 = vsel %vm2744, %v6263, %v5820
        %v6292 = vsel %vm2744, %v6264, %v5822
        %v6293 = vsel %vm2744, %v6265, %v5824
        %v6294 = vsel %vm2744, %v6266, %v5826
        %v6295 = vsel %vm2744, %v6267, %v5828
        %v6296 = vsel %vm2744, %v6268, %v5830
        %v6297 = vsel %vm2744, %v6269, %v5832
        %v6298 = vsel %vm2744, %v6270, %v5834
        %v6299 = vsel %vm2744, %v6271, %v5836
        %v6300 = vsel %vm2744, %v6272, %v5838
        %v6301 = vsel %vm2744, %v6273, %v5840
        %v6302 = vsel %vm2744, %v6274, %v5842
        %v6303 = vsel %vm2744, %v6275, %v5844
        %v6304 = vsel %vm2744, %v6276, %v5846
        %v6305 = vsel %vm2744, %v6277, %v5848
        %v6306 = vsel %vm2744, %v6278, %v5850
        %v6307 = vsel %vm2744, %v6279, %v5852
        %v6308 = vsel %vm2744, %v6280, %v5854
        %v6309 = vsel %vm2744, %v6281, %v5856
        %v6310 = vsel %vm2744, %v6282, %v5858
        %v6311 = vsel %vm2744, %v6283, %v5860
        %v6312 = vsel %vm2744, %v6284, %v5862
        %v6313 = vsel %vm2744, %v6285, %v5864
        %v6314 = vsel %vm2744, %v6286, %v5866
        %6319 = vrot.lane.b32.xlu0 %v4300, 4
        %v6320 = vpop.permute.xlu0 %6319
        %6321 = vrot.lane.b32.xlu0 %v4301, 4
        %v6322 = vpop.permute.xlu0 %6321
        %6323 = vrot.lane.b32.xlu0 %v4302, 4
        %v6324 = vpop.permute.xlu0 %6323
        %6325 = vrot.lane.b32.xlu0 %v4303, 4
        %v6326 = vpop.permute.xlu0 %6325
        %6327 = vrot.lane.b32.xlu0 %v4304, 4
        %v6328 = vpop.permute.xlu0 %6327
        %6329 = vrot.lane.b32.xlu0 %v4305, 4
        %v6330 = vpop.permute.xlu0 %6329
        %6331 = vrot.lane.b32.xlu0 %v4306, 4
        %v6332 = vpop.permute.xlu0 %6331
        %6333 = vrot.lane.b32.xlu0 %v4307, 4
        %v6334 = vpop.permute.xlu0 %6333
        %6335 = vrot.lane.b32.xlu0 %v4308, 4
        %v6336 = vpop.permute.xlu0 %6335
        %6337 = vrot.lane.b32.xlu0 %v4309, 4
        %v6338 = vpop.permute.xlu0 %6337
        %6339 = vrot.lane.b32.xlu0 %v4310, 4
        %v6340 = vpop.permute.xlu0 %6339
        %6341 = vrot.lane.b32.xlu0 %v4311, 4
        %v6342 = vpop.permute.xlu0 %6341
        %6343 = vrot.lane.b32.xlu0 %v4312, 4
        %v6344 = vpop.permute.xlu0 %6343
        %6345 = vrot.lane.b32.xlu0 %v4313, 4
        %v6346 = vpop.permute.xlu0 %6345
        %6347 = vrot.lane.b32.xlu0 %v4314, 4
        %v6348 = vpop.permute.xlu0 %6347
        %6349 = vrot.lane.b32.xlu0 %v4315, 4
        %v6350 = vpop.permute.xlu0 %6349
        %6351 = vrot.lane.b32.xlu0 %v4316, 4
        %v6352 = vpop.permute.xlu0 %6351
        %6353 = vrot.lane.b32.xlu0 %v4317, 4
        %v6354 = vpop.permute.xlu0 %6353
        %6355 = vrot.lane.b32.xlu0 %v4383, 4
        %v6356 = vpop.permute.xlu0 %6355
        %6357 = vrot.lane.b32.xlu0 %v4384, 4
        %v6358 = vpop.permute.xlu0 %6357
        %6359 = vrot.lane.b32.xlu0 %v4385, 4
        %v6360 = vpop.permute.xlu0 %6359
        %6361 = vrot.lane.b32.xlu0 %v4403, 4
        %v6362 = vpop.permute.xlu0 %6361
        %6363 = vrot.lane.b32.xlu0 %v4404, 4
        %v6364 = vpop.permute.xlu0 %6363
        %6365 = vrot.lane.b32.xlu0 %v4405, 4
        %v6366 = vpop.permute.xlu0 %6365
        %6367 = vrot.lane.b32.xlu0 %v4423, 4
        %v6368 = vpop.permute.xlu0 %6367
        %6369 = vrot.lane.b32.xlu0 %v4424, 4
        %v6370 = vpop.permute.xlu0 %6369
        %6371 = vrot.lane.b32.xlu0 %v4425, 4
        %v6372 = vpop.permute.xlu0 %6371
        %6373 = vrot.lane.b32.xlu0 %v4426, 4
        %v6374 = vpop.permute.xlu0 %6373
        %6407 = vrot.lane.b32.xlu0 %v4328, 8
        %v6408 = vpop.permute.xlu0 %6407
        %6409 = vrot.lane.b32.xlu0 %v4329, 8
        %v6410 = vpop.permute.xlu0 %6409
        %6411 = vrot.lane.b32.xlu0 %v4330, 8
        %v6412 = vpop.permute.xlu0 %6411
        %6413 = vrot.lane.b32.xlu0 %v4331, 8
        %v6414 = vpop.permute.xlu0 %6413
        %6415 = vrot.lane.b32.xlu0 %v4332, 8
        %v6416 = vpop.permute.xlu0 %6415
        %6417 = vrot.lane.b32.xlu0 %v4333, 8
        %v6418 = vpop.permute.xlu0 %6417
        %6419 = vrot.lane.b32.xlu0 %v4334, 8
        %v6420 = vpop.permute.xlu0 %6419
        %6421 = vrot.lane.b32.xlu0 %v4335, 8
        %v6422 = vpop.permute.xlu0 %6421
        %6423 = vrot.lane.b32.xlu0 %v4336, 8
        %v6424 = vpop.permute.xlu0 %6423
        %6425 = vrot.lane.b32.xlu0 %v4337, 8
        %v6426 = vpop.permute.xlu0 %6425
        %6427 = vrot.lane.b32.xlu0 %v4338, 8
        %v6428 = vpop.permute.xlu0 %6427
        %6429 = vrot.lane.b32.xlu0 %v4339, 8
        %v6430 = vpop.permute.xlu0 %6429
        %6431 = vrot.lane.b32.xlu0 %v4340, 8
        %v6432 = vpop.permute.xlu0 %6431
        %6433 = vrot.lane.b32.xlu0 %v4341, 8
        %v6434 = vpop.permute.xlu0 %6433
        %6435 = vrot.lane.b32.xlu0 %v4342, 8
        %v6436 = vpop.permute.xlu0 %6435
        %6437 = vrot.lane.b32.xlu0 %v4343, 8
        %v6438 = vpop.permute.xlu0 %6437
        %6439 = vrot.lane.b32.xlu0 %v4344, 8
        %v6440 = vpop.permute.xlu0 %6439
        %6441 = vrot.lane.b32.xlu0 %v4345, 8
        %v6442 = vpop.permute.xlu0 %6441
        %6443 = vrot.lane.b32.xlu0 %v4387, 8
        %v6444 = vpop.permute.xlu0 %6443
        %6445 = vrot.lane.b32.xlu0 %v4388, 8
        %v6446 = vpop.permute.xlu0 %6445
        %6447 = vrot.lane.b32.xlu0 %v4389, 8
        %v6448 = vpop.permute.xlu0 %6447
        %6449 = vrot.lane.b32.xlu0 %v4407, 8
        %v6450 = vpop.permute.xlu0 %6449
        %6451 = vrot.lane.b32.xlu0 %v4408, 8
        %v6452 = vpop.permute.xlu0 %6451
        %6453 = vrot.lane.b32.xlu0 %v4409, 8
        %v6454 = vpop.permute.xlu0 %6453
        %6455 = vrot.lane.b32.xlu0 %v4427, 8
        %v6456 = vpop.permute.xlu0 %6455
        %6457 = vrot.lane.b32.xlu0 %v4428, 8
        %v6458 = vpop.permute.xlu0 %6457
        %6459 = vrot.lane.b32.xlu0 %v4429, 8
        %v6460 = vpop.permute.xlu0 %6459
        %6461 = vrot.lane.b32.xlu0 %v4430, 8
        %v6462 = vpop.permute.xlu0 %6461
        %6495 = vrot.lane.b32.xlu0 %v4356, 12
        %v6496 = vpop.permute.xlu0 %6495
        %6497 = vrot.lane.b32.xlu0 %v4357, 12
        %v6498 = vpop.permute.xlu0 %6497
        %6499 = vrot.lane.b32.xlu0 %v4358, 12
        %v6500 = vpop.permute.xlu0 %6499
        %6501 = vrot.lane.b32.xlu0 %v4359, 12
        %v6502 = vpop.permute.xlu0 %6501
        %6503 = vrot.lane.b32.xlu0 %v4360, 12
        %v6504 = vpop.permute.xlu0 %6503
        %6505 = vrot.lane.b32.xlu0 %v4361, 12
        %v6506 = vpop.permute.xlu0 %6505
        %6507 = vrot.lane.b32.xlu0 %v4362, 12
        %v6508 = vpop.permute.xlu0 %6507
        %6509 = vrot.lane.b32.xlu0 %v4363, 12
        %v6510 = vpop.permute.xlu0 %6509
        %6511 = vrot.lane.b32.xlu0 %v4364, 12
        %v6512 = vpop.permute.xlu0 %6511
        %6513 = vrot.lane.b32.xlu0 %v4365, 12
        %v6514 = vpop.permute.xlu0 %6513
        %6515 = vrot.lane.b32.xlu0 %v4366, 12
        %v6516 = vpop.permute.xlu0 %6515
        %6517 = vrot.lane.b32.xlu0 %v4367, 12
        %v6518 = vpop.permute.xlu0 %6517
        %6519 = vrot.lane.b32.xlu0 %v4368, 12
        %v6520 = vpop.permute.xlu0 %6519
        %6521 = vrot.lane.b32.xlu0 %v4369, 12
        %v6522 = vpop.permute.xlu0 %6521
        %6523 = vrot.lane.b32.xlu0 %v4370, 12
        %v6524 = vpop.permute.xlu0 %6523
        %6525 = vrot.lane.b32.xlu0 %v4371, 12
        %v6526 = vpop.permute.xlu0 %6525
        %6527 = vrot.lane.b32.xlu0 %v4372, 12
        %v6528 = vpop.permute.xlu0 %6527
        %6529 = vrot.lane.b32.xlu0 %v4373, 12
        %v6530 = vpop.permute.xlu0 %6529
        %6531 = vrot.lane.b32.xlu0 %v4391, 12
        %v6532 = vpop.permute.xlu0 %6531
        %6533 = vrot.lane.b32.xlu0 %v4392, 12
        %v6534 = vpop.permute.xlu0 %6533
        %6535 = vrot.lane.b32.xlu0 %v4393, 12
        %v6536 = vpop.permute.xlu0 %6535
        %6537 = vrot.lane.b32.xlu0 %v4411, 12
        %v6538 = vpop.permute.xlu0 %6537
        %6539 = vrot.lane.b32.xlu0 %v4412, 12
        %v6540 = vpop.permute.xlu0 %6539
        %6541 = vrot.lane.b32.xlu0 %v4413, 12
        %v6542 = vpop.permute.xlu0 %6541
        %6543 = vrot.lane.b32.xlu0 %v4431, 12
        %v6544 = vpop.permute.xlu0 %6543
        %6545 = vrot.lane.b32.xlu0 %v4432, 12
        %v6546 = vpop.permute.xlu0 %6545
        %6547 = vrot.lane.b32.xlu0 %v4433, 12
        %v6548 = vpop.permute.xlu0 %6547
        %6549 = vrot.lane.b32.xlu0 %v4434, 12
        %v6550 = vpop.permute.xlu0 %6549
        %6583 = vrot.lane.b32.xlu0 %v4247, 16
        %v6584 = vpop.permute.xlu0 %6583
        %6585 = vrot.lane.b32.xlu0 %v4248, 16
        %v6586 = vpop.permute.xlu0 %6585
        %6587 = vrot.lane.b32.xlu0 %v4249, 16
        %v6588 = vpop.permute.xlu0 %6587
        %6589 = vrot.lane.b32.xlu0 %v4250, 16
        %v6590 = vpop.permute.xlu0 %6589
        %6591 = vrot.lane.b32.xlu0 %v4251, 16
        %v6592 = vpop.permute.xlu0 %6591
        %6593 = vrot.lane.b32.xlu0 %v4252, 16
        %v6594 = vpop.permute.xlu0 %6593
        %6595 = vrot.lane.b32.xlu0 %v4253, 16
        %v6596 = vpop.permute.xlu0 %6595
        %6597 = vrot.lane.b32.xlu0 %v4254, 16
        %v6598 = vpop.permute.xlu0 %6597
        %6599 = vrot.lane.b32.xlu0 %v4255, 16
        %v6600 = vpop.permute.xlu0 %6599
        %6601 = vrot.lane.b32.xlu0 %v4256, 16
        %v6602 = vpop.permute.xlu0 %6601
        %6603 = vrot.lane.b32.xlu0 %v4257, 16
        %v6604 = vpop.permute.xlu0 %6603
        %6605 = vrot.lane.b32.xlu0 %v4258, 16
        %v6606 = vpop.permute.xlu0 %6605
        %6607 = vrot.lane.b32.xlu0 %v4259, 16
        %v6608 = vpop.permute.xlu0 %6607
        %6609 = vrot.lane.b32.xlu0 %v4260, 16
        %v6610 = vpop.permute.xlu0 %6609
        %6611 = vrot.lane.b32.xlu0 %v4261, 16
        %v6612 = vpop.permute.xlu0 %6611
        %6613 = vrot.lane.b32.xlu0 %v4375, 16
        %v6614 = vpop.permute.xlu0 %6613
        %6615 = vrot.lane.b32.xlu0 %v4376, 16
        %v6616 = vpop.permute.xlu0 %6615
        %6617 = vrot.lane.b32.xlu0 %v4377, 16
        %v6618 = vpop.permute.xlu0 %6617
        %6619 = vrot.lane.b32.xlu0 %v4395, 16
        %v6620 = vpop.permute.xlu0 %6619
        %6621 = vrot.lane.b32.xlu0 %v4396, 16
        %v6622 = vpop.permute.xlu0 %6621
        %6623 = vrot.lane.b32.xlu0 %v4397, 16
        %v6624 = vpop.permute.xlu0 %6623
        %6625 = vrot.lane.b32.xlu0 %v4415, 16
        %v6626 = vpop.permute.xlu0 %6625
        %6627 = vrot.lane.b32.xlu0 %v4416, 16
        %v6628 = vpop.permute.xlu0 %6627
        %6629 = vrot.lane.b32.xlu0 %v4417, 16
        %v6630 = vpop.permute.xlu0 %6629
        %6631 = vrot.lane.b32.xlu0 %v4435, 16
        %v6632 = vpop.permute.xlu0 %6631
        %6633 = vrot.lane.b32.xlu0 %v4436, 16
        %v6634 = vpop.permute.xlu0 %6633
        %6635 = vrot.lane.b32.xlu0 %v4437, 16
        %v6636 = vpop.permute.xlu0 %6635
        %6637 = vrot.lane.b32.xlu0 %v4438, 16
        %v6638 = vpop.permute.xlu0 %6637
        %6674 = vrot.lane.b32.xlu0 %v4275, 20
        %v6675 = vpop.permute.xlu0 %6674
        %6676 = vrot.lane.b32.xlu0 %v4276, 20
        %v6677 = vpop.permute.xlu0 %6676
        %6678 = vrot.lane.b32.xlu0 %v4277, 20
        %v6679 = vpop.permute.xlu0 %6678
        %6680 = vrot.lane.b32.xlu0 %v4278, 20
        %v6681 = vpop.permute.xlu0 %6680
        %6682 = vrot.lane.b32.xlu0 %v4279, 20
        %v6683 = vpop.permute.xlu0 %6682
        %6684 = vrot.lane.b32.xlu0 %v4280, 20
        %v6685 = vpop.permute.xlu0 %6684
        %6686 = vrot.lane.b32.xlu0 %v4281, 20
        %v6687 = vpop.permute.xlu0 %6686
        %6688 = vrot.lane.b32.xlu0 %v4282, 20
        %v6689 = vpop.permute.xlu0 %6688
        %6690 = vrot.lane.b32.xlu0 %v4283, 20
        %v6691 = vpop.permute.xlu0 %6690
        %6692 = vrot.lane.b32.xlu0 %v4284, 20
        %v6693 = vpop.permute.xlu0 %6692
        %6694 = vrot.lane.b32.xlu0 %v4285, 20
        %v6695 = vpop.permute.xlu0 %6694
        %6696 = vrot.lane.b32.xlu0 %v4286, 20
        %v6697 = vpop.permute.xlu0 %6696
        %6698 = vrot.lane.b32.xlu0 %v4287, 20
        %v6699 = vpop.permute.xlu0 %6698
        %6700 = vrot.lane.b32.xlu0 %v4288, 20
        %v6701 = vpop.permute.xlu0 %6700
        %6702 = vrot.lane.b32.xlu0 %v4289, 20
        %v6703 = vpop.permute.xlu0 %6702
        %6704 = vrot.lane.b32.xlu0 %v4379, 20
        %v6705 = vpop.permute.xlu0 %6704
        %6706 = vrot.lane.b32.xlu0 %v4380, 20
        %v6707 = vpop.permute.xlu0 %6706
        %6708 = vrot.lane.b32.xlu0 %v4381, 20
        %v6709 = vpop.permute.xlu0 %6708
        %6710 = vrot.lane.b32.xlu0 %v4399, 20
        %v6711 = vpop.permute.xlu0 %6710
        %6712 = vrot.lane.b32.xlu0 %v4400, 20
        %v6713 = vpop.permute.xlu0 %6712
        %6714 = vrot.lane.b32.xlu0 %v4401, 20
        %v6715 = vpop.permute.xlu0 %6714
        %6716 = vrot.lane.b32.xlu0 %v4419, 20
        %v6717 = vpop.permute.xlu0 %6716
        %6718 = vrot.lane.b32.xlu0 %v4420, 20
        %v6719 = vpop.permute.xlu0 %6718
        %6720 = vrot.lane.b32.xlu0 %v4421, 20
        %v6721 = vpop.permute.xlu0 %6720
        %6722 = vrot.lane.b32.xlu0 %v4439, 20
        %v6723 = vpop.permute.xlu0 %6722
        %6724 = vrot.lane.b32.xlu0 %v4440, 20
        %v6725 = vpop.permute.xlu0 %6724
        %6726 = vrot.lane.b32.xlu0 %v4441, 20
        %v6727 = vpop.permute.xlu0 %6726
        %6728 = vrot.lane.b32.xlu0 %v4442, 20
        %v6729 = vpop.permute.xlu0 %6728
        %6762 = vrot.lane.b32.xlu0 %v4303, 24
        %v6763 = vpop.permute.xlu0 %6762
        %6764 = vrot.lane.b32.xlu0 %v4304, 24
        %v6765 = vpop.permute.xlu0 %6764
        %6766 = vrot.lane.b32.xlu0 %v4305, 24
        %v6767 = vpop.permute.xlu0 %6766
        %6768 = vrot.lane.b32.xlu0 %v4306, 24
        %v6769 = vpop.permute.xlu0 %6768
        %6770 = vrot.lane.b32.xlu0 %v4307, 24
        %v6771 = vpop.permute.xlu0 %6770
        %6772 = vrot.lane.b32.xlu0 %v4308, 24
        %v6773 = vpop.permute.xlu0 %6772
        %6774 = vrot.lane.b32.xlu0 %v4309, 24
        %v6775 = vpop.permute.xlu0 %6774
        %6776 = vrot.lane.b32.xlu0 %v4310, 24
        %v6777 = vpop.permute.xlu0 %6776
        %6778 = vrot.lane.b32.xlu0 %v4311, 24
        %v6779 = vpop.permute.xlu0 %6778
        %6780 = vrot.lane.b32.xlu0 %v4312, 24
        %v6781 = vpop.permute.xlu0 %6780
        %6782 = vrot.lane.b32.xlu0 %v4313, 24
        %v6783 = vpop.permute.xlu0 %6782
        %6784 = vrot.lane.b32.xlu0 %v4314, 24
        %v6785 = vpop.permute.xlu0 %6784
        %6786 = vrot.lane.b32.xlu0 %v4315, 24
        %v6787 = vpop.permute.xlu0 %6786
        %6788 = vrot.lane.b32.xlu0 %v4316, 24
        %v6789 = vpop.permute.xlu0 %6788
        %6790 = vrot.lane.b32.xlu0 %v4317, 24
        %v6791 = vpop.permute.xlu0 %6790
        %6792 = vrot.lane.b32.xlu0 %v4383, 24
        %v6793 = vpop.permute.xlu0 %6792
        %6794 = vrot.lane.b32.xlu0 %v4384, 24
        %v6795 = vpop.permute.xlu0 %6794
        %6796 = vrot.lane.b32.xlu0 %v4385, 24
        %v6797 = vpop.permute.xlu0 %6796
        %6798 = vrot.lane.b32.xlu0 %v4403, 24
        %v6799 = vpop.permute.xlu0 %6798
        %6800 = vrot.lane.b32.xlu0 %v4404, 24
        %v6801 = vpop.permute.xlu0 %6800
        %6802 = vrot.lane.b32.xlu0 %v4405, 24
        %v6803 = vpop.permute.xlu0 %6802
        %6804 = vrot.lane.b32.xlu0 %v4423, 24
        %v6805 = vpop.permute.xlu0 %6804
        %6806 = vrot.lane.b32.xlu0 %v4424, 24
        %v6807 = vpop.permute.xlu0 %6806
        %6808 = vrot.lane.b32.xlu0 %v4425, 24
        %v6809 = vpop.permute.xlu0 %6808
        %6810 = vrot.lane.b32.xlu0 %v4443, 24
        %v6811 = vpop.permute.xlu0 %6810
        %6812 = vrot.lane.b32.xlu0 %v4444, 24
        %v6813 = vpop.permute.xlu0 %6812
        %6814 = vrot.lane.b32.xlu0 %v4445, 24
        %v6815 = vpop.permute.xlu0 %6814
        %6816 = vrot.lane.b32.xlu0 %v4446, 24
        %v6817 = vpop.permute.xlu0 %6816
        %6850 = vrot.lane.b32.xlu0 %v4331, 28
        %v6851 = vpop.permute.xlu0 %6850
        %6852 = vrot.lane.b32.xlu0 %v4332, 28
        %v6853 = vpop.permute.xlu0 %6852
        %6854 = vrot.lane.b32.xlu0 %v4333, 28
        %v6855 = vpop.permute.xlu0 %6854
        %6856 = vrot.lane.b32.xlu0 %v4334, 28
        %v6857 = vpop.permute.xlu0 %6856
        %6858 = vrot.lane.b32.xlu0 %v4335, 28
        %v6859 = vpop.permute.xlu0 %6858
        %6860 = vrot.lane.b32.xlu0 %v4336, 28
        %v6861 = vpop.permute.xlu0 %6860
        %6862 = vrot.lane.b32.xlu0 %v4337, 28
        %v6863 = vpop.permute.xlu0 %6862
        %6864 = vrot.lane.b32.xlu0 %v4338, 28
        %v6865 = vpop.permute.xlu0 %6864
        %6866 = vrot.lane.b32.xlu0 %v4339, 28
        %v6867 = vpop.permute.xlu0 %6866
        %6868 = vrot.lane.b32.xlu0 %v4340, 28
        %v6869 = vpop.permute.xlu0 %6868
        %6870 = vrot.lane.b32.xlu0 %v4341, 28
        %v6871 = vpop.permute.xlu0 %6870
        %6872 = vrot.lane.b32.xlu0 %v4342, 28
        %v6873 = vpop.permute.xlu0 %6872
        %6874 = vrot.lane.b32.xlu0 %v4343, 28
        %v6875 = vpop.permute.xlu0 %6874
        %6876 = vrot.lane.b32.xlu0 %v4344, 28
        %v6877 = vpop.permute.xlu0 %6876
        %6878 = vrot.lane.b32.xlu0 %v4345, 28
        %v6879 = vpop.permute.xlu0 %6878
        %6880 = vrot.lane.b32.xlu0 %v4387, 28
        %v6881 = vpop.permute.xlu0 %6880
        %6882 = vrot.lane.b32.xlu0 %v4388, 28
        %v6883 = vpop.permute.xlu0 %6882
        %6884 = vrot.lane.b32.xlu0 %v4389, 28
        %v6885 = vpop.permute.xlu0 %6884
        %6886 = vrot.lane.b32.xlu0 %v4407, 28
        %v6887 = vpop.permute.xlu0 %6886
        %6888 = vrot.lane.b32.xlu0 %v4408, 28
        %v6889 = vpop.permute.xlu0 %6888
        %6890 = vrot.lane.b32.xlu0 %v4409, 28
        %v6891 = vpop.permute.xlu0 %6890
        %6892 = vrot.lane.b32.xlu0 %v4427, 28
        %v6893 = vpop.permute.xlu0 %6892
        %6894 = vrot.lane.b32.xlu0 %v4428, 28
        %v6895 = vpop.permute.xlu0 %6894
        %6896 = vrot.lane.b32.xlu0 %v4429, 28
        %v6897 = vpop.permute.xlu0 %6896
        %6898 = vrot.lane.b32.xlu0 %v4447, 28
        %v6899 = vpop.permute.xlu0 %6898
        %6900 = vrot.lane.b32.xlu0 %v4448, 28
        %v6901 = vpop.permute.xlu0 %6900
        %6902 = vrot.lane.b32.xlu0 %v4449, 28
        %v6903 = vpop.permute.xlu0 %6902
        %6904 = vrot.lane.b32.xlu0 %v4450, 28
        %v6905 = vpop.permute.xlu0 %6904
        %6938 = vrot.lane.b32.xlu0 %v4359, 32
        %v6939 = vpop.permute.xlu0 %6938
        %6940 = vrot.lane.b32.xlu0 %v4360, 32
        %v6941 = vpop.permute.xlu0 %6940
        %6942 = vrot.lane.b32.xlu0 %v4361, 32
        %v6943 = vpop.permute.xlu0 %6942
        %6944 = vrot.lane.b32.xlu0 %v4362, 32
        %v6945 = vpop.permute.xlu0 %6944
        %6946 = vrot.lane.b32.xlu0 %v4363, 32
        %v6947 = vpop.permute.xlu0 %6946
        %6948 = vrot.lane.b32.xlu0 %v4364, 32
        %v6949 = vpop.permute.xlu0 %6948
        %6950 = vrot.lane.b32.xlu0 %v4365, 32
        %v6951 = vpop.permute.xlu0 %6950
        %6952 = vrot.lane.b32.xlu0 %v4366, 32
        %v6953 = vpop.permute.xlu0 %6952
        %6954 = vrot.lane.b32.xlu0 %v4367, 32
        %v6955 = vpop.permute.xlu0 %6954
        %6956 = vrot.lane.b32.xlu0 %v4368, 32
        %v6957 = vpop.permute.xlu0 %6956
        %6958 = vrot.lane.b32.xlu0 %v4369, 32
        %v6959 = vpop.permute.xlu0 %6958
        %6960 = vrot.lane.b32.xlu0 %v4370, 32
        %v6961 = vpop.permute.xlu0 %6960
        %6962 = vrot.lane.b32.xlu0 %v4371, 32
        %v6963 = vpop.permute.xlu0 %6962
        %6964 = vrot.lane.b32.xlu0 %v4372, 32
        %v6965 = vpop.permute.xlu0 %6964
        %6966 = vrot.lane.b32.xlu0 %v4373, 32
        %v6967 = vpop.permute.xlu0 %6966
        %6968 = vrot.lane.b32.xlu0 %v4391, 32
        %v6969 = vpop.permute.xlu0 %6968
        %6970 = vrot.lane.b32.xlu0 %v4392, 32
        %v6971 = vpop.permute.xlu0 %6970
        %6972 = vrot.lane.b32.xlu0 %v4393, 32
        %v6973 = vpop.permute.xlu0 %6972
        %6974 = vrot.lane.b32.xlu0 %v4411, 32
        %v6975 = vpop.permute.xlu0 %6974
        %6976 = vrot.lane.b32.xlu0 %v4412, 32
        %v6977 = vpop.permute.xlu0 %6976
        %6978 = vrot.lane.b32.xlu0 %v4413, 32
        %v6979 = vpop.permute.xlu0 %6978
        %6980 = vrot.lane.b32.xlu0 %v4431, 32
        %v6981 = vpop.permute.xlu0 %6980
        %6982 = vrot.lane.b32.xlu0 %v4432, 32
        %v6983 = vpop.permute.xlu0 %6982
        %6984 = vrot.lane.b32.xlu0 %v4433, 32
        %v6985 = vpop.permute.xlu0 %6984
        %6986 = vrot.lane.b32.xlu0 %v4451, 32
        %v6987 = vpop.permute.xlu0 %6986
        %6988 = vrot.lane.b32.xlu0 %v4452, 32
        %v6989 = vpop.permute.xlu0 %6988
        %6990 = vrot.lane.b32.xlu0 %v4453, 32
        %v6991 = vpop.permute.xlu0 %6990
        %6992 = vrot.lane.b32.xlu0 %v4454, 32
        %v6993 = vpop.permute.xlu0 %6992
        %v7022 = vsel %vm2284, %v4272, %v6320
        %v7023 = vsel %vm2284, %v4273, %v6322
        %v7024 = vsel %vm2284, %v4274, %v6324
        %v7025 = vsel %vm2284, %v4275, %v6326
        %v7026 = vsel %vm2284, %v4276, %v6328
        %v7027 = vsel %vm2284, %v4277, %v6330
        %v7028 = vsel %vm2284, %v4278, %v6332
        %v7029 = vsel %vm2284, %v4279, %v6334
        %v7030 = vsel %vm2284, %v4280, %v6336
        %v7031 = vsel %vm2284, %v4281, %v6338
        %v7032 = vsel %vm2284, %v4282, %v6340
        %v7033 = vsel %vm2284, %v4283, %v6342
        %v7034 = vsel %vm2284, %v4284, %v6344
        %v7035 = vsel %vm2284, %v4285, %v6346
        %v7036 = vsel %vm2284, %v4286, %v6348
        %v7037 = vsel %vm2284, %v4287, %v6350
        %v7038 = vsel %vm2284, %v4288, %v6352
        %v7039 = vsel %vm2284, %v4289, %v6354
        %v7040 = vsel %vm2284, %v4379, %v6356
        %v7041 = vsel %vm2284, %v4380, %v6358
        %v7042 = vsel %vm2284, %v4381, %v6360
        %v7043 = vsel %vm2284, %v4399, %v6362
        %v7044 = vsel %vm2284, %v4400, %v6364
        %v7045 = vsel %vm2284, %v4401, %v6366
        %v7046 = vsel %vm2284, %v4419, %v6368
        %v7047 = vsel %vm2284, %v4420, %v6370
        %v7048 = vsel %vm2284, %v4421, %v6372
        %v7049 = vsel %vm2284, %v4422, %v6374
        %v7050 = vsel %vm384, %v7022, %v6408
        %v7051 = vsel %vm384, %v7023, %v6410
        %v7052 = vsel %vm384, %v7024, %v6412
        %v7053 = vsel %vm384, %v7025, %v6414
        %v7054 = vsel %vm384, %v7026, %v6416
        %v7055 = vsel %vm384, %v7027, %v6418
        %v7056 = vsel %vm384, %v7028, %v6420
        %v7057 = vsel %vm384, %v7029, %v6422
        %v7058 = vsel %vm384, %v7030, %v6424
        %v7059 = vsel %vm384, %v7031, %v6426
        %v7060 = vsel %vm384, %v7032, %v6428
        %v7061 = vsel %vm384, %v7033, %v6430
        %v7062 = vsel %vm384, %v7034, %v6432
        %v7063 = vsel %vm384, %v7035, %v6434
        %v7064 = vsel %vm384, %v7036, %v6436
        %v7065 = vsel %vm384, %v7037, %v6438
        %v7066 = vsel %vm384, %v7038, %v6440
        %v7067 = vsel %vm384, %v7039, %v6442
        %v7068 = vsel %vm384, %v7040, %v6444
        %v7069 = vsel %vm384, %v7041, %v6446
        %v7070 = vsel %vm384, %v7042, %v6448
        %v7071 = vsel %vm384, %v7043, %v6450
        %v7072 = vsel %vm384, %v7044, %v6452
        %v7073 = vsel %vm384, %v7045, %v6454
        %v7074 = vsel %vm384, %v7046, %v6456
        %v7075 = vsel %vm384, %v7047, %v6458
        %v7076 = vsel %vm384, %v7048, %v6460
        %v7077 = vsel %vm384, %v7049, %v6462
        %v7078 = vsel %vm2349, %v7050, %v6496
        %v7079 = vsel %vm2349, %v7051, %v6498
        %v7080 = vsel %vm2349, %v7052, %v6500
        %v7081 = vsel %vm2349, %v7053, %v6502
        %v7082 = vsel %vm2349, %v7054, %v6504
        %v7083 = vsel %vm2349, %v7055, %v6506
        %v7084 = vsel %vm2349, %v7056, %v6508
        %v7085 = vsel %vm2349, %v7057, %v6510
        %v7086 = vsel %vm2349, %v7058, %v6512
        %v7087 = vsel %vm2349, %v7059, %v6514
        %v7088 = vsel %vm2349, %v7060, %v6516
        %v7089 = vsel %vm2349, %v7061, %v6518
        %v7090 = vsel %vm2349, %v7062, %v6520
        %v7091 = vsel %vm2349, %v7063, %v6522
        %v7092 = vsel %vm2349, %v7064, %v6524
        %v7093 = vsel %vm2349, %v7065, %v6526
        %v7094 = vsel %vm2349, %v7066, %v6528
        %v7095 = vsel %vm2349, %v7067, %v6530
        %v7096 = vsel %vm2349, %v7068, %v6532
        %v7097 = vsel %vm2349, %v7069, %v6534
        %v7098 = vsel %vm2349, %v7070, %v6536
        %v7099 = vsel %vm2349, %v7071, %v6538
        %v7100 = vsel %vm2349, %v7072, %v6540
        %v7101 = vsel %vm2349, %v7073, %v6542
        %v7102 = vsel %vm2349, %v7074, %v6544
        %v7103 = vsel %vm2349, %v7075, %v6546
        %v7104 = vsel %vm2349, %v7076, %v6548
        %v7105 = vsel %vm2349, %v7077, %v6550
        %v7106 = vsel %vm413, %v7078, %v6584
        %v7107 = vsel %vm413, %v7079, %v6586
        %v7108 = vsel %vm413, %v7080, %v6588
        %v7109 = vsel %vm413, %v7081, %v6590
        %v7110 = vsel %vm413, %v7082, %v6592
        %v7111 = vsel %vm413, %v7083, %v6594
        %v7112 = vsel %vm413, %v7084, %v6596
        %v7113 = vsel %vm413, %v7085, %v6598
        %v7114 = vsel %vm413, %v7086, %v6600
        %v7115 = vsel %vm413, %v7087, %v6602
        %v7116 = vsel %vm413, %v7088, %v6604
        %v7117 = vsel %vm413, %v7089, %v6606
        %v7118 = vsel %vm413, %v7090, %v6608
        %v7119 = vsel %vm413, %v7091, %v6610
        %v7120 = vsel %vm413, %v7092, %v6612
        %v7121 = vsel %vm413, %v7093, %v6614
        %v7122 = vsel %vm413, %v7094, %v6616
        %v7123 = vsel %vm413, %v7095, %v6618
        %v7124 = vsel %vm413, %v7096, %v6620
        %v7125 = vsel %vm413, %v7097, %v6622
        %v7126 = vsel %vm413, %v7098, %v6624
        %v7127 = vsel %vm413, %v7099, %v6626
        %v7128 = vsel %vm413, %v7100, %v6628
        %v7129 = vsel %vm413, %v7101, %v6630
        %v7130 = vsel %vm413, %v7102, %v6632
        %v7131 = vsel %vm413, %v7103, %v6634
        %v7132 = vsel %vm413, %v7104, %v6636
        %v7133 = vsel %vm413, %v7105, %v6638
        %v7134 = vsel %vm2414, %v7106, %v6675
        %v7135 = vsel %vm2414, %v7107, %v6677
        %v7136 = vsel %vm2414, %v7108, %v6679
        %v7137 = vsel %vm2414, %v7109, %v6681
        %v7138 = vsel %vm2414, %v7110, %v6683
        %v7139 = vsel %vm2414, %v7111, %v6685
        %v7140 = vsel %vm2414, %v7112, %v6687
        %v7141 = vsel %vm2414, %v7113, %v6689
        %v7142 = vsel %vm2414, %v7114, %v6691
        %v7143 = vsel %vm2414, %v7115, %v6693
        %v7144 = vsel %vm2414, %v7116, %v6695
        %v7145 = vsel %vm2414, %v7117, %v6697
        %v7146 = vsel %vm2414, %v7118, %v6699
        %v7147 = vsel %vm2414, %v7119, %v6701
        %v7148 = vsel %vm2414, %v7120, %v6703
        %v7149 = vsel %vm2414, %v7121, %v6705
        %v7150 = vsel %vm2414, %v7122, %v6707
        %v7151 = vsel %vm2414, %v7123, %v6709
        %v7152 = vsel %vm2414, %v7124, %v6711
        %v7153 = vsel %vm2414, %v7125, %v6713
        %v7154 = vsel %vm2414, %v7126, %v6715
        %v7155 = vsel %vm2414, %v7127, %v6717
        %v7156 = vsel %vm2414, %v7128, %v6719
        %v7157 = vsel %vm2414, %v7129, %v6721
        %v7158 = vsel %vm2414, %v7130, %v6723
        %v7159 = vsel %vm2414, %v7131, %v6725
        %v7160 = vsel %vm2414, %v7132, %v6727
        %v7161 = vsel %vm2414, %v7133, %v6729
        %v7162 = vsel %vm2447, %v7134, %v6763
        %v7163 = vsel %vm2447, %v7135, %v6765
        %v7164 = vsel %vm2447, %v7136, %v6767
        %v7165 = vsel %vm2447, %v7137, %v6769
        %v7166 = vsel %vm2447, %v7138, %v6771
        %v7167 = vsel %vm2447, %v7139, %v6773
        %v7168 = vsel %vm2447, %v7140, %v6775
        %v7169 = vsel %vm2447, %v7141, %v6777
        %v7170 = vsel %vm2447, %v7142, %v6779
        %v7171 = vsel %vm2447, %v7143, %v6781
        %v7172 = vsel %vm2447, %v7144, %v6783
        %v7173 = vsel %vm2447, %v7145, %v6785
        %v7174 = vsel %vm2447, %v7146, %v6787
        %v7175 = vsel %vm2447, %v7147, %v6789
        %v7176 = vsel %vm2447, %v7148, %v6791
        %v7177 = vsel %vm2447, %v7149, %v6793
        %v7178 = vsel %vm2447, %v7150, %v6795
        %v7179 = vsel %vm2447, %v7151, %v6797
        %v7180 = vsel %vm2447, %v7152, %v6799
        %v7181 = vsel %vm2447, %v7153, %v6801
        %v7182 = vsel %vm2447, %v7154, %v6803
        %v7183 = vsel %vm2447, %v7155, %v6805
        %v7184 = vsel %vm2447, %v7156, %v6807
        %v7185 = vsel %vm2447, %v7157, %v6809
        %v7186 = vsel %vm2447, %v7158, %v6811
        %v7187 = vsel %vm2447, %v7159, %v6813
        %v7188 = vsel %vm2447, %v7160, %v6815
        %v7189 = vsel %vm2447, %v7161, %v6817
        %v7190 = vsel %vm2480, %v7162, %v6851
        %v7191 = vsel %vm2480, %v7163, %v6853
        %v7192 = vsel %vm2480, %v7164, %v6855
        %v7193 = vsel %vm2480, %v7165, %v6857
        %v7194 = vsel %vm2480, %v7166, %v6859
        %v7195 = vsel %vm2480, %v7167, %v6861
        %v7196 = vsel %vm2480, %v7168, %v6863
        %v7197 = vsel %vm2480, %v7169, %v6865
        %v7198 = vsel %vm2480, %v7170, %v6867
        %v7199 = vsel %vm2480, %v7171, %v6869
        %v7200 = vsel %vm2480, %v7172, %v6871
        %v7201 = vsel %vm2480, %v7173, %v6873
        %v7202 = vsel %vm2480, %v7174, %v6875
        %v7203 = vsel %vm2480, %v7175, %v6877
        %v7204 = vsel %vm2480, %v7176, %v6879
        %v7205 = vsel %vm2480, %v7177, %v6881
        %v7206 = vsel %vm2480, %v7178, %v6883
        %v7207 = vsel %vm2480, %v7179, %v6885
        %v7208 = vsel %vm2480, %v7180, %v6887
        %v7209 = vsel %vm2480, %v7181, %v6889
        %v7210 = vsel %vm2480, %v7182, %v6891
        %v7211 = vsel %vm2480, %v7183, %v6893
        %v7212 = vsel %vm2480, %v7184, %v6895
        %v7213 = vsel %vm2480, %v7185, %v6897
        %v7214 = vsel %vm2480, %v7186, %v6899
        %v7215 = vsel %vm2480, %v7187, %v6901
        %v7216 = vsel %vm2480, %v7188, %v6903
        %v7217 = vsel %vm2480, %v7189, %v6905
        %v7218 = vsel %vm2513, %v7190, %v6939
        %v7219 = vsel %vm2513, %v7191, %v6941
        %v7220 = vsel %vm2513, %v7192, %v6943
        %v7221 = vsel %vm2513, %v7193, %v6945
        %v7222 = vsel %vm2513, %v7194, %v6947
        %v7223 = vsel %vm2513, %v7195, %v6949
        %v7224 = vsel %vm2513, %v7196, %v6951
        %v7225 = vsel %vm2513, %v7197, %v6953
        %v7226 = vsel %vm2513, %v7198, %v6955
        %v7227 = vsel %vm2513, %v7199, %v6957
        %v7228 = vsel %vm2513, %v7200, %v6959
        %v7229 = vsel %vm2513, %v7201, %v6961
        %v7230 = vsel %vm2513, %v7202, %v6963
        %v7231 = vsel %vm2513, %v7203, %v6965
        %v7232 = vsel %vm2513, %v7204, %v6967
        %v7233 = vsel %vm2513, %v7205, %v6969
        %v7234 = vsel %vm2513, %v7206, %v6971
        %v7235 = vsel %vm2513, %v7207, %v6973
        %v7236 = vsel %vm2513, %v7208, %v6975
        %v7237 = vsel %vm2513, %v7209, %v6977
        %v7238 = vsel %vm2513, %v7210, %v6979
        %v7239 = vsel %vm2513, %v7211, %v6981
        %v7240 = vsel %vm2513, %v7212, %v6983
        %v7241 = vsel %vm2513, %v7213, %v6985
        %v7242 = vsel %vm2513, %v7214, %v6987
        %v7243 = vsel %vm2513, %v7215, %v6989
        %v7244 = vsel %vm2513, %v7216, %v6991
        %v7245 = vsel %vm2513, %v7217, %v6993
        %7274 = vrot.lane.b32.xlu0 %v7218, 64
        %v7275 = vpop.permute.xlu0 %7274
        %7276 = vrot.lane.b32.xlu0 %v7219, 64
        %v7277 = vpop.permute.xlu0 %7276
        %7278 = vrot.lane.b32.xlu0 %v7220, 64
        %v7279 = vpop.permute.xlu0 %7278
        %7280 = vrot.lane.b32.xlu0 %v7221, 64
        %v7281 = vpop.permute.xlu0 %7280
        %7282 = vrot.lane.b32.xlu0 %v7222, 64
        %v7283 = vpop.permute.xlu0 %7282
        %7284 = vrot.lane.b32.xlu0 %v7223, 64
        %v7285 = vpop.permute.xlu0 %7284
        %7286 = vrot.lane.b32.xlu0 %v7224, 64
        %v7287 = vpop.permute.xlu0 %7286
        %7288 = vrot.lane.b32.xlu0 %v7225, 64
        %v7289 = vpop.permute.xlu0 %7288
        %7290 = vrot.lane.b32.xlu0 %v7226, 64
        %v7291 = vpop.permute.xlu0 %7290
        %7292 = vrot.lane.b32.xlu0 %v7227, 64
        %v7293 = vpop.permute.xlu0 %7292
        %7294 = vrot.lane.b32.xlu0 %v7228, 64
        %v7295 = vpop.permute.xlu0 %7294
        %7296 = vrot.lane.b32.xlu0 %v7229, 64
        %v7297 = vpop.permute.xlu0 %7296
        %7298 = vrot.lane.b32.xlu0 %v7230, 64
        %v7299 = vpop.permute.xlu0 %7298
        %7300 = vrot.lane.b32.xlu0 %v7231, 64
        %v7301 = vpop.permute.xlu0 %7300
        %7302 = vrot.lane.b32.xlu0 %v7232, 64
        %v7303 = vpop.permute.xlu0 %7302
        %7304 = vrot.lane.b32.xlu0 %v7233, 64
        %v7305 = vpop.permute.xlu0 %7304
        %7306 = vrot.lane.b32.xlu0 %v7234, 64
        %v7307 = vpop.permute.xlu0 %7306
        %7308 = vrot.lane.b32.xlu0 %v7235, 64
        %v7309 = vpop.permute.xlu0 %7308
        %7310 = vrot.lane.b32.xlu0 %v7236, 64
        %v7311 = vpop.permute.xlu0 %7310
        %7312 = vrot.lane.b32.xlu0 %v7237, 64
        %v7313 = vpop.permute.xlu0 %7312
        %7314 = vrot.lane.b32.xlu0 %v7238, 64
        %v7315 = vpop.permute.xlu0 %7314
        %7316 = vrot.lane.b32.xlu0 %v7239, 64
        %v7317 = vpop.permute.xlu0 %7316
        %7318 = vrot.lane.b32.xlu0 %v7240, 64
        %v7319 = vpop.permute.xlu0 %7318
        %7320 = vrot.lane.b32.xlu0 %v7241, 64
        %v7321 = vpop.permute.xlu0 %7320
        %7322 = vrot.lane.b32.xlu0 %v7242, 64
        %v7323 = vpop.permute.xlu0 %7322
        %7324 = vrot.lane.b32.xlu0 %v7243, 64
        %v7325 = vpop.permute.xlu0 %7324
        %7326 = vrot.lane.b32.xlu0 %v7244, 64
        %v7327 = vpop.permute.xlu0 %7326
        %7328 = vrot.lane.b32.xlu0 %v7245, 64
        %v7329 = vpop.permute.xlu0 %7328
        %v7358 = vsel %vm3956, %v6287, %v7275
        %v7359 = vsel %vm3956, %v6288, %v7277
        %v7360 = vsel %vm3956, %v6289, %v7279
        %v7361 = vsel %vm3956, %v6290, %v7281
        %v7362 = vsel %vm3956, %v6291, %v7283
        %v7363 = vsel %vm3956, %v6292, %v7285
        %v7364 = vsel %vm3956, %v6293, %v7287
        %v7365 = vsel %vm3956, %v6294, %v7289
        %v7366 = vsel %vm3956, %v6295, %v7291
        %v7367 = vsel %vm3956, %v6296, %v7293
        %v7368 = vsel %vm3956, %v6297, %v7295
        %v7369 = vsel %vm3956, %v6298, %v7297
        %v7370 = vsel %vm3956, %v6299, %v7299
        %v7371 = vsel %vm3956, %v6300, %v7301
        %v7372 = vsel %vm3956, %v6301, %v7303
        %v7373 = vsel %vm3956, %v6302, %v7305
        %v7374 = vsel %vm3956, %v6303, %v7307
        %v7375 = vsel %vm3956, %v6304, %v7309
        %v7376 = vsel %vm3956, %v6305, %v7311
        %v7377 = vsel %vm3956, %v6306, %v7313
        %v7378 = vsel %vm3956, %v6307, %v7315
        %v7379 = vsel %vm3956, %v6308, %v7317
        %v7380 = vsel %vm3956, %v6309, %v7319
        %v7381 = vsel %vm3956, %v6310, %v7321
        %v7382 = vsel %vm3956, %v6311, %v7323
        %v7383 = vsel %vm3956, %v6312, %v7325
        %v7384 = vsel %vm3956, %v6313, %v7327
        %v7385 = vsel %vm3956, %v6314, %v7329
        %v7387 = vsel %vm3989, %v7358, 0
        %v7390 = vsel %vm3989, %v7359, 0
        %v7393 = vsel %vm3989, %v7360, 0
        %v7396 = vsel %vm3989, %v7361, 0
        %v7399 = vsel %vm3989, %v7362, 0
        %v7402 = vsel %vm3989, %v7363, 0
        %v7405 = vsel %vm3989, %v7364, 0
        %v7408 = vsel %vm3989, %v7365, 0
        %v7411 = vsel %vm3989, %v7366, 0
        %v7414 = vsel %vm3989, %v7367, 0
        %v7417 = vsel %vm3989, %v7368, 0
        %v7420 = vsel %vm3989, %v7369, 0
        %v7423 = vsel %vm3989, %v7370, 0
        %v7426 = vsel %vm3989, %v7371, 0
        %v7429 = vsel %vm3989, %v7372, 0
        %v7432 = vsel %vm3989, %v7373, 0
        %v7435 = vsel %vm3989, %v7374, 0
        %v7438 = vsel %vm3989, %v7375, 0
        %v7441 = vsel %vm3989, %v7376, 0
        %v7444 = vsel %vm3989, %v7377, 0
        %v7447 = vsel %vm3989, %v7378, 0
        %v7450 = vsel %vm3989, %v7379, 0
        %v7453 = vsel %vm3989, %v7380, 0
        %v7456 = vsel %vm3989, %v7381, 0
        %v7459 = vsel %vm3989, %v7382, 0
        %v7462 = vsel %vm3989, %v7383, 0
        %v7465 = vsel %vm3989, %v7384, 0
        %v7468 = vsel %vm3989, %v7385, 0
        %7470 = vmatpush.msra.mxu0 0.0
        %7471 = vmatpush.msra.mxu0 0.0
        %7472 = vmatpush.msra.mxu0 0.0
        %7473 = vmatpush.msra.mxu0 %v4088
        %7474 = vmatpush.msra.mxu0 %v432
        %7475 = vmatpush.msra.mxu0 %v431
        %7476 = vmatpush.msra.mxu0 %v430
        %7477 = vmatpush.msra.mxu0 %v429
        %7478 = vmatpush.msra.mxu0 %v428
        %7479 = vmatpush.msra.mxu0 %v427
        %7480 = vmatpush.msra.mxu0 %v426
        %7481 = vmatpush.msra.mxu0 %v425
        %7482 = vmatpush.msra.mxu0 %v424
        %7483 = vmatpush.msra.mxu0 %v423
        %7484 = vmatpush.msra.mxu0 %v422
        %7485 = vmatpush.msra.mxu0 %v421
        %7486 = vmatmul.f32.gmra.mxu0 %v7387
        %v7487 = vpop.f32.mrf.mxu0
        %v7488 = vadd.f32 0.0, %v7487
        %7489 = vmatmul.f32.gmra.mxu0 %v7390
        %v7490 = vpop.f32.mrf.mxu0
        %v7491 = vadd.f32 0.0, %v7490
        %7492 = vmatmul.f32.gmra.mxu0 %v7393
        %v7493 = vpop.f32.mrf.mxu0
        %v7494 = vadd.f32 0.0, %v7493
        %7495 = vmatmul.f32.gmra.mxu0 %v7396
        %v7496 = vpop.f32.mrf.mxu0
        %v7497 = vadd.f32 0.0, %v7496
        %7498 = vmatmul.f32.gmra.mxu0 %v7399
        %v7499 = vpop.f32.mrf.mxu0
        %v7500 = vadd.f32 0.0, %v7499
        %7501 = vmatmul.f32.gmra.mxu0 %v7402
        %v7502 = vpop.f32.mrf.mxu0
        %v7503 = vadd.f32 0.0, %v7502
        %7504 = vmatmul.f32.gmra.mxu0 %v7405
        %v7505 = vpop.f32.mrf.mxu0
        %v7506 = vadd.f32 0.0, %v7505
        %7507 = vmatmul.f32.gmra.mxu0 %v7408
        %v7508 = vpop.f32.mrf.mxu0
        %v7509 = vadd.f32 0.0, %v7508
        %7510 = vmatmul.f32.gmra.mxu0 %v7411
        %v7511 = vpop.f32.mrf.mxu0
        %v7512 = vadd.f32 0.0, %v7511
        %7513 = vmatmul.f32.gmra.mxu0 %v7414
        %v7514 = vpop.f32.mrf.mxu0
        %v7515 = vadd.f32 0.0, %v7514
        %7516 = vmatmul.f32.gmra.mxu0 %v7417
        %v7517 = vpop.f32.mrf.mxu0
        %v7518 = vadd.f32 0.0, %v7517
        %7519 = vmatmul.f32.gmra.mxu0 %v7420
        %v7520 = vpop.f32.mrf.mxu0
        %v7521 = vadd.f32 0.0, %v7520
        %7522 = vmatmul.f32.gmra.mxu0 %v7423
        %v7523 = vpop.f32.mrf.mxu0
        %v7524 = vadd.f32 0.0, %v7523
        %7525 = vmatmul.f32.gmra.mxu0 %v7426
        %v7526 = vpop.f32.mrf.mxu0
        %v7527 = vadd.f32 0.0, %v7526
        %7528 = vmatmul.f32.gmra.mxu0 %v7429
        %v7529 = vpop.f32.mrf.mxu0
        %v7530 = vadd.f32 0.0, %v7529
        %7531 = vmatmul.f32.gmra.mxu0 %v7432
        %v7532 = vpop.f32.mrf.mxu0
        %v7533 = vadd.f32 0.0, %v7532
        %7534 = vmatmul.f32.gmra.mxu0 %v7435
        %v7535 = vpop.f32.mrf.mxu0
        %v7536 = vadd.f32 0.0, %v7535
        %7537 = vmatmul.f32.gmra.mxu0 %v7438
        %v7538 = vpop.f32.mrf.mxu0
        %v7539 = vadd.f32 0.0, %v7538
        %7540 = vmatmul.f32.gmra.mxu0 %v7441
        %v7541 = vpop.f32.mrf.mxu0
        %v7542 = vadd.f32 0.0, %v7541
        %7543 = vmatmul.f32.gmra.mxu0 %v7444
        %v7544 = vpop.f32.mrf.mxu0
        %v7545 = vadd.f32 0.0, %v7544
        %7546 = vmatmul.f32.gmra.mxu0 %v7447
        %v7547 = vpop.f32.mrf.mxu0
        %v7548 = vadd.f32 0.0, %v7547
        %7549 = vmatmul.f32.gmra.mxu0 %v7450
        %v7550 = vpop.f32.mrf.mxu0
        %v7551 = vadd.f32 0.0, %v7550
        %7552 = vmatmul.f32.gmra.mxu0 %v7453
        %v7553 = vpop.f32.mrf.mxu0
        %v7554 = vadd.f32 0.0, %v7553
        %7555 = vmatmul.f32.gmra.mxu0 %v7456
        %v7556 = vpop.f32.mrf.mxu0
        %v7557 = vadd.f32 0.0, %v7556
        %7558 = vmatmul.f32.gmra.mxu0 %v7459
        %v7559 = vpop.f32.mrf.mxu0
        %v7560 = vadd.f32 0.0, %v7559
        %7561 = vmatmul.f32.gmra.mxu0 %v7462
        %v7562 = vpop.f32.mrf.mxu0
        %v7563 = vadd.f32 0.0, %v7562
        %7564 = vmatmul.f32.gmra.mxu0 %v7465
        %v7565 = vpop.f32.mrf.mxu0
        %v7566 = vadd.f32 0.0, %v7565
        %7567 = vmatmul.f32.gmra.mxu0 %v7468
        %v7568 = vpop.f32.mrf.mxu0
        %v7569 = vadd.f32 0.0, %v7568
        %7570 = vdwg.mxu0
        %7571 = vst.msk [vmem:[#allocation2 + $0x100] sm:$0xff] %vm384, %v7488
        %7572 = vst.msk [vmem:[#allocation2 + $0x108] sm:$0xff] %vm384, %v7491
        %7573 = vst.msk [vmem:[#allocation2 + $0x110] sm:$0xff] %vm384, %v7494
        %7574 = vst.msk [vmem:[#allocation2 + $0x118] sm:$0xff] %vm384, %v7497
        %7575 = vst.msk [vmem:[#allocation2 + $0x120] sm:$0xff] %vm384, %v7500
        %7576 = vst.msk [vmem:[#allocation2 + $0x128] sm:$0xff] %vm384, %v7503
        %7577 = vst.msk [vmem:[#allocation2 + $0x130] sm:$0xff] %vm384, %v7506
        %7578 = vst.msk [vmem:[#allocation2 + $0x138] sm:$0xff] %vm384, %v7509
        %7579 = vst.msk [vmem:[#allocation2 + $0x140] sm:$0xff] %vm384, %v7512
        %7580 = vst.msk [vmem:[#allocation2 + $0x148] sm:$0xff] %vm384, %v7515
        %7581 = vst.msk [vmem:[#allocation2 + $0x150] sm:$0xff] %vm384, %v7518
        %7582 = vst.msk [vmem:[#allocation2 + $0x158] sm:$0xff] %vm384, %v7521
        %7583 = vst.msk [vmem:[#allocation2 + $0x160] sm:$0xff] %vm384, %v7524
        %7584 = vst.msk [vmem:[#allocation2 + $0x168] sm:$0xff] %vm384, %v7527
        %7585 = vst.msk [vmem:[#allocation2 + $0x170] sm:$0xff] %vm384, %v7530
        %7586 = vst.msk [vmem:[#allocation2 + $0x178] sm:$0xff] %vm384, %v7533
        %7587 = vst.msk [vmem:[#allocation2 + $0x180] sm:$0xff] %vm384, %v7536
        %7588 = vst.msk [vmem:[#allocation2 + $0x188] sm:$0xff] %vm384, %v7539
        %7589 = vst.msk [vmem:[#allocation2 + $0x190] sm:$0xff] %vm384, %v7542
        %7590 = vst.msk [vmem:[#allocation2 + $0x198] sm:$0xff] %vm384, %v7545
        %7591 = vst.msk [vmem:[#allocation2 + $0x1a0] sm:$0xff] %vm384, %v7548
        %7592 = vst.msk [vmem:[#allocation2 + $0x1a8] sm:$0xff] %vm384, %v7551
        %7593 = vst.msk [vmem:[#allocation2 + $0x1b0] sm:$0xff] %vm384, %v7554
        %7594 = vst.msk [vmem:[#allocation2 + $0x1b8] sm:$0xff] %vm384, %v7557
        %7595 = vst.msk [vmem:[#allocation2 + $0x1c0] sm:$0xff] %vm384, %v7560
        %7596 = vst.msk [vmem:[#allocation2 + $0x1c8] sm:$0xff] %vm384, %v7563
        %7597 = vst.msk [vmem:[#allocation2 + $0x1d0] sm:$0xff] %vm384, %v7566
        %vm7598 = vcmask 60416
        %7599 = vst.msk [vmem:[#allocation2 + $0x1d8] sm:$0xf] %vm7598, %v7569
        %v7600 = vld [vmem:[#allocation2] ss:$2 sm:$0xff]
        %s7601 = scalar_lea.vmem [#allocation2], 16
        %v7602 = vld [vmem:[%s7601] ss:$2 sm:$0x3]
        %s7603 = scalar_lea.vmem [#allocation2], 1
        %v7604 = vld [vmem:[%s7603] ss:$2 sm:$0xff]
        %s7605 = scalar_lea.vmem [#allocation2], 17
        %v7606 = vld [vmem:[%s7605] ss:$2 sm:$0x3]
        %s7607 = scalar_lea.vmem [#allocation2], 24
        %v7608 = vld [vmem:[%s7607] ss:$2 sm:$0xff]
        %s7609 = scalar_lea.vmem [#allocation2], 40
        %v7610 = vld [vmem:[%s7609] ss:$2 sm:$0x3]
        %s7611 = scalar_lea.vmem [#allocation2], 25
        %v7612 = vld [vmem:[%s7611] ss:$2 sm:$0xff]
        %s7613 = scalar_lea.vmem [#allocation2], 41
        %v7614 = vld [vmem:[%s7613] ss:$2 sm:$0x3]
        %v7615 = vmax.f32 %v7600, %v7604
        %v7616 = vmax.f32 %v7602, %v7606
        %v7617 = vmax.f32 %v7608, %v7612
        %v7618 = vmax.f32 %v7610, %v7614
        %v7619 = vmax.f32 %v7615, %v7617
        %v7620 = vmax.f32 %v7616, %v7618
        %v7621 = vld [vmem:[%s2] sm:$0x1]
        %v7623 = vperm.slane %v7621, 0
        %v7625 = vadd.f32 %v7619, %v7623
        %v7626 = vadd.f32 %v7620, %v7623
        %v7627 = vmax.f32 %v7625, 0.0
        %v7628 = vmax.f32 %v7626, 0.0
        %7629 = vst.msk [vmem:[#allocation3 + $0x22] sm:$0xff] %vm384, %v7627
        %vm7630 = vcmask 58368
        %7631 = vst.msk [vmem:[#allocation3 + $0x2a] sm:$0x3] %vm7630, %v7628
        %s7632 = scalar_lea.vmem [#allocation2], 48
        %v7633 = vld [vmem:[%s7632] ss:$2 sm:$0xff]
        %s7634 = scalar_lea.vmem [#allocation2], 64
        %v7635 = vld [vmem:[%s7634] ss:$2 sm:$0x3]
        %s7636 = scalar_lea.vmem [#allocation2], 49
        %v7637 = vld [vmem:[%s7636] ss:$2 sm:$0xff]
        %s7638 = scalar_lea.vmem [#allocation2], 65
        %v7639 = vld [vmem:[%s7638] ss:$2 sm:$0x3]
        %s7640 = scalar_lea.vmem [#allocation2], 72
        %v7641 = vld [vmem:[%s7640] ss:$2 sm:$0xff]
        %s7642 = scalar_lea.vmem [#allocation2], 88
        %v7643 = vld [vmem:[%s7642] ss:$2 sm:$0x3]
        %s7644 = scalar_lea.vmem [#allocation2], 73
        %v7645 = vld [vmem:[%s7644] ss:$2 sm:$0xff]
        %s7646 = scalar_lea.vmem [#allocation2], 89
        %v7647 = vld [vmem:[%s7646] ss:$2 sm:$0x3]
        %v7648 = vmax.f32 %v7633, %v7637
        %v7649 = vmax.f32 %v7635, %v7639
        %v7650 = vmax.f32 %v7641, %v7645
        %v7651 = vmax.f32 %v7643, %v7647
        %v7652 = vmax.f32 %v7648, %v7650
        %v7653 = vmax.f32 %v7649, %v7651
        %v7654 = vld [vmem:[%s2] sm:$0x1]
        %v7656 = vperm.slane %v7654, 0
        %v7658 = vadd.f32 %v7652, %v7656
        %v7659 = vadd.f32 %v7653, %v7656
        %v7660 = vmax.f32 %v7658, 0.0
        %v7661 = vmax.f32 %v7659, 0.0
        %7662 = vst.msk [vmem:[#allocation3 + $0x32] sm:$0xff] %vm384, %v7660
        %7663 = vst.msk [vmem:[#allocation3 + $0x3a] sm:$0x3] %vm7630, %v7661
        %s7664 = scalar_lea.vmem [#allocation2], 96
        %v7665 = vld [vmem:[%s7664] ss:$2 sm:$0xff]
        %s7666 = scalar_lea.vmem [#allocation2], 112
        %v7667 = vld [vmem:[%s7666] ss:$2 sm:$0x3]
        %s7668 = scalar_lea.vmem [#allocation2], 97
        %v7669 = vld [vmem:[%s7668] ss:$2 sm:$0xff]
        %s7670 = scalar_lea.vmem [#allocation2], 113
        %v7671 = vld [vmem:[%s7670] ss:$2 sm:$0x3]
        %s7672 = scalar_lea.vmem [#allocation2], 120
        %v7673 = vld [vmem:[%s7672] ss:$2 sm:$0xff]
        %s7674 = scalar_lea.vmem [#allocation2], 136
        %v7675 = vld [vmem:[%s7674] ss:$2 sm:$0x3]
        %s7676 = scalar_lea.vmem [#allocation2], 121
        %v7677 = vld [vmem:[%s7676] ss:$2 sm:$0xff]
        %s7678 = scalar_lea.vmem [#allocation2], 137
        %v7679 = vld [vmem:[%s7678] ss:$2 sm:$0x3]
        %v7680 = vmax.f32 %v7665, %v7669
        %v7681 = vmax.f32 %v7667, %v7671
        %v7682 = vmax.f32 %v7673, %v7677
        %v7683 = vmax.f32 %v7675, %v7679
        %v7684 = vmax.f32 %v7680, %v7682
        %v7685 = vmax.f32 %v7681, %v7683
        %v7686 = vld [vmem:[%s2] sm:$0x1]
        %v7688 = vperm.slane %v7686, 0
        %v7690 = vadd.f32 %v7684, %v7688
        %v7691 = vadd.f32 %v7685, %v7688
        %v7692 = vmax.f32 %v7690, 0.0
        %v7693 = vmax.f32 %v7691, 0.0
        %7694 = vst.msk [vmem:[#allocation3 + $0x42] sm:$0xff] %vm384, %v7692
        %7695 = vst.msk [vmem:[#allocation3 + $0x4a] sm:$0x3] %vm7630, %v7693
        %s7696 = scalar_lea.vmem [#allocation2], 144
        %v7697 = vld [vmem:[%s7696] ss:$2 sm:$0xff]
        %s7698 = scalar_lea.vmem [#allocation2], 160
        %v7699 = vld [vmem:[%s7698] ss:$2 sm:$0x3]
        %s7700 = scalar_lea.vmem [#allocation2], 145
        %v7701 = vld [vmem:[%s7700] ss:$2 sm:$0xff]
        %s7702 = scalar_lea.vmem [#allocation2], 161
        %v7703 = vld [vmem:[%s7702] ss:$2 sm:$0x3]
        %s7704 = scalar_lea.vmem [#allocation2], 168
        %v7705 = vld [vmem:[%s7704] ss:$2 sm:$0xff]
        %s7706 = scalar_lea.vmem [#allocation2], 184
        %v7707 = vld [vmem:[%s7706] ss:$2 sm:$0x3]
        %s7708 = scalar_lea.vmem [#allocation2], 169
        %v7709 = vld [vmem:[%s7708] ss:$2 sm:$0xff]
        %s7710 = scalar_lea.vmem [#allocation2], 185
        %v7711 = vld [vmem:[%s7710] ss:$2 sm:$0x3]
        %v7712 = vmax.f32 %v7697, %v7701
        %v7713 = vmax.f32 %v7699, %v7703
        %v7714 = vmax.f32 %v7705, %v7709
        %v7715 = vmax.f32 %v7707, %v7711
        %v7716 = vmax.f32 %v7712, %v7714
        %v7717 = vmax.f32 %v7713, %v7715
        %v7718 = vld [vmem:[%s2] sm:$0x1]
        %v7720 = vperm.slane %v7718, 0
        %v7722 = vadd.f32 %v7716, %v7720
        %v7723 = vadd.f32 %v7717, %v7720
        %v7724 = vmax.f32 %v7722, 0.0
        %v7725 = vmax.f32 %v7723, 0.0
        %7726 = vst.msk [vmem:[#allocation3 + $0x52] sm:$0xff] %vm384, %v7724
        %7727 = vst.msk [vmem:[#allocation3 + $0x5a] sm:$0x3] %vm7630, %v7725
        %s7728 = scalar_lea.vmem [#allocation2], 192
        %v7729 = vld [vmem:[%s7728] ss:$2 sm:$0xff]
        %s7730 = scalar_lea.vmem [#allocation2], 208
        %v7731 = vld [vmem:[%s7730] ss:$2 sm:$0x3]
        %s7732 = scalar_lea.vmem [#allocation2], 193
        %v7733 = vld [vmem:[%s7732] ss:$2 sm:$0xff]
        %s7734 = scalar_lea.vmem [#allocation2], 209
        %v7735 = vld [vmem:[%s7734] ss:$2 sm:$0x3]
        %s7736 = scalar_lea.vmem [#allocation2], 216
        %v7737 = vld [vmem:[%s7736] ss:$2 sm:$0xff]
        %s7738 = scalar_lea.vmem [#allocation2], 232
        %v7739 = vld [vmem:[%s7738] ss:$2 sm:$0x3]
        %s7740 = scalar_lea.vmem [#allocation2], 217
        %v7741 = vld [vmem:[%s7740] ss:$2 sm:$0xff]
        %s7742 = scalar_lea.vmem [#allocation2], 233
        %v7743 = vld [vmem:[%s7742] ss:$2 sm:$0x3]
        %v7744 = vmax.f32 %v7729, %v7733
        %v7745 = vmax.f32 %v7731, %v7735
        %v7746 = vmax.f32 %v7737, %v7741
        %v7747 = vmax.f32 %v7739, %v7743
        %v7748 = vmax.f32 %v7744, %v7746
        %v7749 = vmax.f32 %v7745, %v7747
        %v7750 = vld [vmem:[%s2] sm:$0x1]
        %v7752 = vperm.slane %v7750, 0
        %v7754 = vadd.f32 %v7748, %v7752
        %v7755 = vadd.f32 %v7749, %v7752
        %v7756 = vmax.f32 %v7754, 0.0
        %v7757 = vmax.f32 %v7755, 0.0
        %7758 = vst.msk [vmem:[#allocation3 + $0x62] sm:$0xff] %vm384, %v7756
        %7759 = vst.msk [vmem:[#allocation3 + $0x6a] sm:$0x3] %vm7630, %v7757
        %s7760 = scalar_lea.vmem [#allocation2], 240
        %v7761 = vld [vmem:[%s7760] ss:$2 sm:$0xff]
        %s7762 = scalar_lea.vmem [#allocation2], 256
        %v7763 = vld [vmem:[%s7762] ss:$2 sm:$0x3]
        %s7764 = scalar_lea.vmem [#allocation2], 241
        %v7765 = vld [vmem:[%s7764] ss:$2 sm:$0xff]
        %s7766 = scalar_lea.vmem [#allocation2], 257
        %v7767 = vld [vmem:[%s7766] ss:$2 sm:$0x3]
        %s7768 = scalar_lea.vmem [#allocation2], 264
        %v7769 = vld [vmem:[%s7768] ss:$2 sm:$0xff]
        %s7770 = scalar_lea.vmem [#allocation2], 280
        %v7771 = vld [vmem:[%s7770] ss:$2 sm:$0x3]
        %s7772 = scalar_lea.vmem [#allocation2], 265
        %v7773 = vld [vmem:[%s7772] ss:$2 sm:$0xff]
        %s7774 = scalar_lea.vmem [#allocation2], 281
        %v7775 = vld [vmem:[%s7774] ss:$2 sm:$0x3]
        %v7776 = vmax.f32 %v7761, %v7765
        %v7777 = vmax.f32 %v7763, %v7767
        %v7778 = vmax.f32 %v7769, %v7773
        %v7779 = vmax.f32 %v7771, %v7775
        %v7780 = vmax.f32 %v7776, %v7778
        %v7781 = vmax.f32 %v7777, %v7779
        %v7782 = vld [vmem:[%s2] sm:$0x1]
        %v7784 = vperm.slane %v7782, 0
        %v7786 = vadd.f32 %v7780, %v7784
        %v7787 = vadd.f32 %v7781, %v7784
        %v7788 = vmax.f32 %v7786, 0.0
        %v7789 = vmax.f32 %v7787, 0.0
        %7790 = vst.msk [vmem:[#allocation3 + $0x72] sm:$0xff] %vm384, %v7788
        %7791 = vst.msk [vmem:[#allocation3 + $0x7a] sm:$0x3] %vm7630, %v7789
        %s7792 = scalar_lea.vmem [#allocation2], 288
        %v7793 = vld [vmem:[%s7792] ss:$2 sm:$0xff]
        %s7794 = scalar_lea.vmem [#allocation2], 304
        %v7795 = vld [vmem:[%s7794] ss:$2 sm:$0x3]
        %s7796 = scalar_lea.vmem [#allocation2], 289
        %v7797 = vld [vmem:[%s7796] ss:$2 sm:$0xff]
        %s7798 = scalar_lea.vmem [#allocation2], 305
        %v7799 = vld [vmem:[%s7798] ss:$2 sm:$0x3]
        %s7800 = scalar_lea.vmem [#allocation2], 312
        %v7801 = vld [vmem:[%s7800] ss:$2 sm:$0xff]
        %s7802 = scalar_lea.vmem [#allocation2], 328
        %v7803 = vld [vmem:[%s7802] ss:$2 sm:$0x3]
        %s7804 = scalar_lea.vmem [#allocation2], 313
        %v7805 = vld [vmem:[%s7804] ss:$2 sm:$0xff]
        %s7806 = scalar_lea.vmem [#allocation2], 329
        %v7807 = vld [vmem:[%s7806] ss:$2 sm:$0x3]
        %v7808 = vmax.f32 %v7793, %v7797
        %v7809 = vmax.f32 %v7795, %v7799
        %v7810 = vmax.f32 %v7801, %v7805
        %v7811 = vmax.f32 %v7803, %v7807
        %v7812 = vmax.f32 %v7808, %v7810
        %v7813 = vmax.f32 %v7809, %v7811
        %v7814 = vld [vmem:[%s2] sm:$0x1]
        %v7816 = vperm.slane %v7814, 0
        %v7818 = vadd.f32 %v7812, %v7816
        %v7819 = vadd.f32 %v7813, %v7816
        %v7820 = vmax.f32 %v7818, 0.0
        %v7821 = vmax.f32 %v7819, 0.0
        %7822 = vst.msk [vmem:[#allocation3 + $0x82] sm:$0xff] %vm384, %v7820
        %7823 = vst.msk [vmem:[#allocation3 + $0x8a] sm:$0x3] %vm7630, %v7821
        %s7824 = scalar_lea.vmem [#allocation2], 336
        %v7825 = vld [vmem:[%s7824] ss:$2 sm:$0xff]
        %s7826 = scalar_lea.vmem [#allocation2], 352
        %v7827 = vld [vmem:[%s7826] ss:$2 sm:$0x3]
        %s7828 = scalar_lea.vmem [#allocation2], 337
        %v7829 = vld [vmem:[%s7828] ss:$2 sm:$0xff]
        %s7830 = scalar_lea.vmem [#allocation2], 353
        %v7831 = vld [vmem:[%s7830] ss:$2 sm:$0x3]
        %s7832 = scalar_lea.vmem [#allocation2], 360
        %v7833 = vld [vmem:[%s7832] ss:$2 sm:$0xff]
        %s7834 = scalar_lea.vmem [#allocation2], 376
        %v7835 = vld [vmem:[%s7834] ss:$2 sm:$0x3]
        %s7836 = scalar_lea.vmem [#allocation2], 361
        %v7837 = vld [vmem:[%s7836] ss:$2 sm:$0xff]
        %s7838 = scalar_lea.vmem [#allocation2], 377
        %v7839 = vld [vmem:[%s7838] ss:$2 sm:$0x3]
        %v7840 = vmax.f32 %v7825, %v7829
        %v7841 = vmax.f32 %v7827, %v7831
        %v7842 = vmax.f32 %v7833, %v7837
        %v7843 = vmax.f32 %v7835, %v7839
        %v7844 = vmax.f32 %v7840, %v7842
        %v7845 = vmax.f32 %v7841, %v7843
        %v7846 = vld [vmem:[%s2] sm:$0x1]
        %v7848 = vperm.slane %v7846, 0
        %v7850 = vadd.f32 %v7844, %v7848
        %v7851 = vadd.f32 %v7845, %v7848
        %v7852 = vmax.f32 %v7850, 0.0
        %v7853 = vmax.f32 %v7851, 0.0
        %7854 = vst.msk [vmem:[#allocation3 + $0x92] sm:$0xff] %vm384, %v7852
        %7855 = vst.msk [vmem:[#allocation3 + $0x9a] sm:$0x3] %vm7630, %v7853
        %s7856 = scalar_lea.vmem [#allocation2], 384
        %v7857 = vld [vmem:[%s7856] ss:$2 sm:$0xff]
        %s7858 = scalar_lea.vmem [#allocation2], 400
        %v7859 = vld [vmem:[%s7858] ss:$2 sm:$0x3]
        %s7860 = scalar_lea.vmem [#allocation2], 385
        %v7861 = vld [vmem:[%s7860] ss:$2 sm:$0xff]
        %s7862 = scalar_lea.vmem [#allocation2], 401
        %v7863 = vld [vmem:[%s7862] ss:$2 sm:$0x3]
        %s7864 = scalar_lea.vmem [#allocation2], 408
        %v7865 = vld [vmem:[%s7864] ss:$2 sm:$0xff]
        %s7866 = scalar_lea.vmem [#allocation2], 424
        %v7867 = vld [vmem:[%s7866] ss:$2 sm:$0x3]
        %s7868 = scalar_lea.vmem [#allocation2], 409
        %v7869 = vld [vmem:[%s7868] ss:$2 sm:$0xff]
        %s7870 = scalar_lea.vmem [#allocation2], 425
        %v7871 = vld [vmem:[%s7870] ss:$2 sm:$0x3]
        %v7872 = vmax.f32 %v7857, %v7861
        %v7873 = vmax.f32 %v7859, %v7863
        %v7874 = vmax.f32 %v7865, %v7869
        %v7875 = vmax.f32 %v7867, %v7871
        %v7876 = vmax.f32 %v7872, %v7874
        %v7877 = vmax.f32 %v7873, %v7875
        %v7878 = vld [vmem:[%s2] sm:$0x1]
        %v7880 = vperm.slane %v7878, 0
        %v7882 = vadd.f32 %v7876, %v7880
        %v7883 = vadd.f32 %v7877, %v7880
        %v7884 = vmax.f32 %v7882, 0.0
        %v7885 = vmax.f32 %v7883, 0.0
        %7886 = vst.msk [vmem:[#allocation3 + $0xa2] sm:$0xff] %vm384, %v7884
        %7887 = vst.msk [vmem:[#allocation3 + $0xaa] sm:$0x3] %vm7630, %v7885
        %s7888 = scalar_lea.vmem [#allocation2], 432
        %v7889 = vld [vmem:[%s7888] ss:$2 sm:$0xff]
        %s7890 = scalar_lea.vmem [#allocation2], 448
        %v7891 = vld [vmem:[%s7890] ss:$2 sm:$0x3]
        %s7892 = scalar_lea.vmem [#allocation2], 433
        %v7893 = vld [vmem:[%s7892] ss:$2 sm:$0xff]
        %s7894 = scalar_lea.vmem [#allocation2], 449
        %v7895 = vld [vmem:[%s7894] ss:$2 sm:$0x3]
        %s7896 = scalar_lea.vmem [#allocation2], 456
        %v7897 = vld [vmem:[%s7896] ss:$2 sm:$0xff]
        %s7898 = scalar_lea.vmem [#allocation2], 472
        %v7899 = vld [vmem:[%s7898] ss:$2 sm:$0x3]
        %s7900 = scalar_lea.vmem [#allocation2], 457
        %v7901 = vld [vmem:[%s7900] ss:$2 sm:$0xff]
        %s7902 = scalar_lea.vmem [#allocation2], 473
        %v7903 = vld [vmem:[%s7902] ss:$2 sm:$0x3]
        %v7904 = vmax.f32 %v7889, %v7893
        %v7905 = vmax.f32 %v7891, %v7895
        %v7906 = vmax.f32 %v7897, %v7901
        %v7907 = vmax.f32 %v7899, %v7903
        %v7908 = vmax.f32 %v7904, %v7906
        %v7909 = vmax.f32 %v7905, %v7907
        %v7910 = vld [vmem:[%s2] sm:$0x1]
        %v7912 = vperm.slane %v7910, 0
        %v7914 = vadd.f32 %v7908, %v7912
        %v7915 = vadd.f32 %v7909, %v7912
        %v7916 = vmax.f32 %v7914, 0.0
        %v7917 = vmax.f32 %v7915, 0.0
        %7918 = vst.msk [vmem:[#allocation3 + $0xb2] sm:$0xff] %vm384, %v7916
        %7919 = vst.msk [vmem:[#allocation3 + $0xba] sm:$0x3] %vm7630, %v7917
        %v7920 = vld [vmem:[%s3] sm:$0xff]
        %v7921 = vld [vmem:[%s3 + $0x8] sm:$0xff]
        %v7922 = vld [vmem:[%s3 + $0x10] sm:$0xff]
        %v7923 = vld [vmem:[%s3 + $0x18] sm:$0xff]
        %v7924 = vld [vmem:[%s3 + $0x20] sm:$0xff]
        %v7925 = vld [vmem:[%s3 + $0x28] sm:$0xff]
        %v7926 = vld [vmem:[%s3 + $0x30] sm:$0xff]
        %v7927 = vld [vmem:[%s3 + $0x38] sm:$0xff]
        %v7928 = vld [vmem:[%s3 + $0x40] sm:$0xff]
        %v7929 = vld [vmem:[%s3 + $0x48] sm:$0xff]
        %v7930 = vld [vmem:[%s3 + $0x50] sm:$0xff]
        %v7931 = vld [vmem:[%s3 + $0x58] sm:$0xff]
        %v7932 = vld [vmem:[%s3 + $0x60] sm:$0xff]
        %v7933 = vld [vmem:[%s3 + $0x68] sm:$0xff]
        %v7934 = vld [vmem:[%s3 + $0x70] sm:$0xff]
        %v7935 = vld [vmem:[%s3 + $0x78] sm:$0xff]
        %v7936 = vld [vmem:[%s3 + $0x80] sm:$0xff]
        %v7937 = vld [vmem:[%s3 + $0x88] sm:$0xff]
        %v7938 = vld [vmem:[%s3 + $0x90] sm:$0xff]
        %v7939 = vld [vmem:[%s3 + $0x98] sm:$0xff]
        %v7940 = vld [vmem:[%s3 + $0xa0] sm:$0xff]
        %v7941 = vld [vmem:[%s3 + $0xa8] sm:$0xff]
        %v7942 = vld [vmem:[%s3 + $0xb0] sm:$0xff]
        %v7943 = vld [vmem:[%s3 + $0xb8] sm:$0xff]
        %v7944 = vld [vmem:[%s3 + $0xc0] sm:$0xff]
        %v7945 = vld [vmem:[#allocation3] sm:$0xff]
        %v7946 = vld [vmem:[#allocation3 + $0x8] sm:$0xff]
        %v7947 = vld [vmem:[#allocation3 + $0x10] sm:$0xff]
        %v7948 = vld [vmem:[#allocation3 + $0x18] sm:$0xff]
        %v7949 = vld [vmem:[#allocation3 + $0x20] sm:$0xff]
        %v7950 = vld [vmem:[#allocation3 + $0x28] sm:$0xff]
        %v7951 = vld [vmem:[#allocation3 + $0x30] sm:$0xff]
        %v7952 = vld [vmem:[#allocation3 + $0x38] sm:$0xff]
        %v7953 = vld [vmem:[#allocation3 + $0x40] sm:$0xff]
        %v7954 = vld [vmem:[#allocation3 + $0x48] sm:$0xff]
        %v7955 = vld [vmem:[#allocation3 + $0x50] sm:$0xff]
        %v7956 = vld [vmem:[#allocation3 + $0x58] sm:$0xff]
        %v7957 = vld [vmem:[#allocation3 + $0x60] sm:$0xff]
        %v7958 = vld [vmem:[#allocation3 + $0x68] sm:$0xff]
        %v7959 = vld [vmem:[#allocation3 + $0x70] sm:$0xff]
        %v7960 = vld [vmem:[#allocation3 + $0x78] sm:$0xff]
        %v7961 = vld [vmem:[#allocation3 + $0x80] sm:$0xff]
        %v7962 = vld [vmem:[#allocation3 + $0x88] sm:$0xff]
        %v7963 = vld [vmem:[#allocation3 + $0x90] sm:$0xff]
        %v7964 = vld [vmem:[#allocation3 + $0x98] sm:$0xf]
        %v7965 = vld [vmem:[#allocation3 + $0x1] sm:$0xff]
        %v7966 = vld [vmem:[#allocation3 + $0x9] sm:$0xff]
        %v7967 = vld [vmem:[#allocation3 + $0x11] sm:$0xff]
        %v7968 = vld [vmem:[#allocation3 + $0x19] sm:$0xff]
        %v7969 = vld [vmem:[#allocation3 + $0x21] sm:$0xff]
        %v7970 = vld [vmem:[#allocation3 + $0x29] sm:$0xff]
        %v7971 = vld [vmem:[#allocation3 + $0x31] sm:$0xff]
        %v7972 = vld [vmem:[#allocation3 + $0x39] sm:$0xff]
        %v7973 = vld [vmem:[#allocation3 + $0x41] sm:$0xff]
        %v7974 = vld [vmem:[#allocation3 + $0x49] sm:$0xff]
        %v7975 = vld [vmem:[#allocation3 + $0x51] sm:$0xff]
        %v7976 = vld [vmem:[#allocation3 + $0x59] sm:$0xff]
        %v7977 = vld [vmem:[#allocation3 + $0x61] sm:$0xff]
        %v7978 = vld [vmem:[#allocation3 + $0x69] sm:$0xff]
        %v7979 = vld [vmem:[#allocation3 + $0x71] sm:$0xff]
        %v7980 = vld [vmem:[#allocation3 + $0x79] sm:$0xff]
        %v7981 = vld [vmem:[#allocation3 + $0x81] sm:$0xff]
        %v7982 = vld [vmem:[#allocation3 + $0x89] sm:$0xff]
        %v7983 = vld [vmem:[#allocation3 + $0x91] sm:$0xff]
        %v7984 = vld [vmem:[#allocation3 + $0x99] sm:$0xf]
        %v7985 = vld [vmem:[#allocation3 + $0x2] sm:$0xff]
        %v7986 = vld [vmem:[#allocation3 + $0xa] sm:$0xff]
        %v7987 = vld [vmem:[#allocation3 + $0x12] sm:$0xff]
        %v7988 = vld [vmem:[#allocation3 + $0x1a] sm:$0xff]
        %v7989 = vld [vmem:[#allocation3 + $0x22] sm:$0xff]
        %v7990 = vld [vmem:[#allocation3 + $0x2a] sm:$0xff]
        %v7991 = vld [vmem:[#allocation3 + $0x32] sm:$0xff]
        %v7992 = vld [vmem:[#allocation3 + $0x3a] sm:$0xff]
        %v7993 = vld [vmem:[#allocation3 + $0x42] sm:$0xff]
        %v7994 = vld [vmem:[#allocation3 + $0x4a] sm:$0xff]
        %v7995 = vld [vmem:[#allocation3 + $0x52] sm:$0xff]
        %v7996 = vld [vmem:[#allocation3 + $0x5a] sm:$0xff]
        %v7997 = vld [vmem:[#allocation3 + $0x62] sm:$0xff]
        %v7998 = vld [vmem:[#allocation3 + $0x6a] sm:$0xff]
        %v7999 = vld [vmem:[#allocation3 + $0x72] sm:$0xff]
        %v8000 = vld [vmem:[#allocation3 + $0x7a] sm:$0xff]
        %v8001 = vld [vmem:[#allocation3 + $0x82] sm:$0xff]
        %v8002 = vld [vmem:[#allocation3 + $0x8a] sm:$0xff]
        %v8003 = vld [vmem:[#allocation3 + $0x92] sm:$0xff]
        %v8004 = vld [vmem:[#allocation3 + $0x9a] sm:$0xf]
        %v8005 = vld [vmem:[#allocation3 + $0x3] sm:$0xff]
        %v8006 = vld [vmem:[#allocation3 + $0xb] sm:$0xff]
        %v8007 = vld [vmem:[#allocation3 + $0x13] sm:$0xff]
        %v8008 = vld [vmem:[#allocation3 + $0x1b] sm:$0xff]
        %v8009 = vld [vmem:[#allocation3 + $0x23] sm:$0xff]
        %v8010 = vld [vmem:[#allocation3 + $0x2b] sm:$0xff]
        %v8011 = vld [vmem:[#allocation3 + $0x33] sm:$0xff]
        %v8012 = vld [vmem:[#allocation3 + $0x3b] sm:$0xff]
        %v8013 = vld [vmem:[#allocation3 + $0x43] sm:$0xff]
        %v8014 = vld [vmem:[#allocation3 + $0x4b] sm:$0xff]
        %v8015 = vld [vmem:[#allocation3 + $0x53] sm:$0xff]
        %v8016 = vld [vmem:[#allocation3 + $0x5b] sm:$0xff]
        %v8017 = vld [vmem:[#allocation3 + $0x63] sm:$0xff]
        %v8018 = vld [vmem:[#allocation3 + $0x6b] sm:$0xff]
        %v8019 = vld [vmem:[#allocation3 + $0x73] sm:$0xff]
        %v8020 = vld [vmem:[#allocation3 + $0x7b] sm:$0xff]
        %v8021 = vld [vmem:[#allocation3 + $0x83] sm:$0xff]
        %v8022 = vld [vmem:[#allocation3 + $0x8b] sm:$0xff]
        %v8023 = vld [vmem:[#allocation3 + $0x93] sm:$0xff]
        %v8024 = vld [vmem:[#allocation3 + $0x9b] sm:$0xf]
        %v8025 = vld [vmem:[#allocation3 + $0x4] sm:$0xff]
        %v8026 = vld [vmem:[#allocation3 + $0xc] sm:$0xff]
        %v8027 = vld [vmem:[#allocation3 + $0x14] sm:$0xff]
        %v8028 = vld [vmem:[#allocation3 + $0x1c] sm:$0xff]
        %v8029 = vld [vmem:[#allocation3 + $0x24] sm:$0xff]
        %v8030 = vld [vmem:[#allocation3 + $0x2c] sm:$0xff]
        %v8031 = vld [vmem:[#allocation3 + $0x34] sm:$0xff]
        %v8032 = vld [vmem:[#allocation3 + $0x3c] sm:$0xff]
        %v8033 = vld [vmem:[#allocation3 + $0x44] sm:$0xff]
        %v8034 = vld [vmem:[#allocation3 + $0x4c] sm:$0xff]
        %v8035 = vld [vmem:[#allocation3 + $0x54] sm:$0xff]
        %v8036 = vld [vmem:[#allocation3 + $0x5c] sm:$0xff]
        %v8037 = vld [vmem:[#allocation3 + $0x64] sm:$0xff]
        %v8038 = vld [vmem:[#allocation3 + $0x6c] sm:$0xff]
        %v8039 = vld [vmem:[#allocation3 + $0x74] sm:$0xff]
        %v8040 = vld [vmem:[#allocation3 + $0x7c] sm:$0xff]
        %v8041 = vld [vmem:[#allocation3 + $0x84] sm:$0xff]
        %v8042 = vld [vmem:[#allocation3 + $0x8c] sm:$0xff]
        %v8043 = vld [vmem:[#allocation3 + $0x94] sm:$0xff]
        %v8044 = vld [vmem:[#allocation3 + $0x9c] sm:$0xf]
        %v8045 = vld [vmem:[#allocation3 + $0x98] sm:$0xff]
        %v8046 = vld [vmem:[#allocation3 + $0xa0] sm:$0xff]
        %v8047 = vld [vmem:[#allocation3 + $0xa8] sm:$0xf]
        %v8048 = vld [vmem:[#allocation3 + $0x99] sm:$0xff]
        %v8049 = vld [vmem:[#allocation3 + $0xa1] sm:$0xff]
        %v8050 = vld [vmem:[#allocation3 + $0xa9] sm:$0xf]
        %v8051 = vld [vmem:[#allocation3 + $0x9a] sm:$0xff]
        %v8052 = vld [vmem:[#allocation3 + $0xa2] sm:$0xff]
        %v8053 = vld [vmem:[#allocation3 + $0xaa] sm:$0xf]
        %v8054 = vld [vmem:[#allocation3 + $0x9b] sm:$0xff]
        %v8055 = vld [vmem:[#allocation3 + $0xa3] sm:$0xff]
        %v8056 = vld [vmem:[#allocation3 + $0xab] sm:$0xf]
        %v8057 = vld [vmem:[#allocation3 + $0x9c] sm:$0xff]
        %v8058 = vld [vmem:[#allocation3 + $0xa4] sm:$0xff]
        %v8059 = vld [vmem:[#allocation3 + $0xac] sm:$0xf]
        %v8060 = vld [vmem:[#allocation3 + $0xa8] sm:$0xff]
        %v8061 = vld [vmem:[#allocation3 + $0xb0] sm:$0xff]
        %v8062 = vld [vmem:[#allocation3 + $0xb8] sm:$0xf]
        %v8063 = vld [vmem:[#allocation3 + $0xa9] sm:$0xff]
        %v8064 = vld [vmem:[#allocation3 + $0xb1] sm:$0xff]
        %v8065 = vld [vmem:[#allocation3 + $0xb9] sm:$0xf]
        %v8066 = vld [vmem:[#allocation3 + $0xaa] sm:$0xff]
        %v8067 = vld [vmem:[#allocation3 + $0xb2] sm:$0xff]
        %v8068 = vld [vmem:[#allocation3 + $0xba] sm:$0xf]
        %v8069 = vld [vmem:[#allocation3 + $0xab] sm:$0xff]
        %v8070 = vld [vmem:[#allocation3 + $0xb3] sm:$0xff]
        %v8071 = vld [vmem:[#allocation3 + $0xbb] sm:$0xf]
        %v8072 = vld [vmem:[#allocation3 + $0xac] sm:$0xff]
        %v8073 = vld [vmem:[#allocation3 + $0xb4] sm:$0xff]
        %v8074 = vld [vmem:[#allocation3 + $0xbc] sm:$0xf]
        %v8075 = vld [vmem:[#allocation3 + $0xb8] sm:$0xff]
        %v8076 = vld [vmem:[#allocation3 + $0xc0] sm:$0xff]
        %v8077 = vld [vmem:[#allocation3 + $0xc8] sm:$0xf]
        %v8078 = vld [vmem:[#allocation3 + $0xb9] sm:$0xff]
        %v8079 = vld [vmem:[#allocation3 + $0xc1] sm:$0xff]
        %v8080 = vld [vmem:[#allocation3 + $0xc9] sm:$0xf]
        %v8081 = vld [vmem:[#allocation3 + $0xba] sm:$0xff]
        %v8082 = vld [vmem:[#allocation3 + $0xc2] sm:$0xff]
        %v8083 = vld [vmem:[#allocation3 + $0xca] sm:$0xf]
        %v8084 = vld [vmem:[#allocation3 + $0xbb] sm:$0xff]
        %v8085 = vld [vmem:[#allocation3 + $0xc3] sm:$0xff]
        %v8086 = vld [vmem:[#allocation3 + $0xcb] sm:$0xf]
        %v8087 = vld [vmem:[#allocation3 + $0xbc] sm:$0xff]
        %v8088 = vld [vmem:[#allocation3 + $0xc4] sm:$0xff]
        %v8089 = vld [vmem:[#allocation3 + $0xcc] sm:$0xf]
        %v8090 = vld [vmem:[#allocation3 + $0xc8] sm:$0xff]
        %v8091 = vld [vmem:[#allocation3 + $0xd0] sm:$0xff]
        %v8092 = vld [vmem:[#allocation3 + $0xd8] sm:$0xf]
        %v8093 = vld [vmem:[#allocation3 + $0xc9] sm:$0xff]
        %v8094 = vld [vmem:[#allocation3 + $0xd1] sm:$0xff]
        %v8095 = vld [vmem:[#allocation3 + $0xd9] sm:$0xf]
        %v8096 = vld [vmem:[#allocation3 + $0xca] sm:$0xff]
        %v8097 = vld [vmem:[#allocation3 + $0xd2] sm:$0xff]
        %v8098 = vld [vmem:[#allocation3 + $0xda] sm:$0xf]
        %v8099 = vld [vmem:[#allocation3 + $0xcb] sm:$0xff]
        %v8100 = vld [vmem:[#allocation3 + $0xd3] sm:$0xff]
        %v8101 = vld [vmem:[#allocation3 + $0xdb] sm:$0xf]
        %v8102 = vld [vmem:[#allocation3 + $0xcc] sm:$0xff]
        %v8103 = vld [vmem:[#allocation3 + $0xd4] sm:$0xff]
        %v8104 = vld [vmem:[#allocation3 + $0xdc] sm:$0xf]
        %8125 = vrot.lane.b32.xlu0 %v7965, 8
        %v8126 = vpop.permute.xlu0 %8125
        %8127 = vrot.lane.b32.xlu0 %v7966, 8
        %v8128 = vpop.permute.xlu0 %8127
        %8129 = vrot.lane.b32.xlu0 %v7967, 8
        %v8130 = vpop.permute.xlu0 %8129
        %8131 = vrot.lane.b32.xlu0 %v7968, 8
        %v8132 = vpop.permute.xlu0 %8131
        %8133 = vrot.lane.b32.xlu0 %v7969, 8
        %v8134 = vpop.permute.xlu0 %8133
        %8135 = vrot.lane.b32.xlu0 %v7970, 8
        %v8136 = vpop.permute.xlu0 %8135
        %8137 = vrot.lane.b32.xlu0 %v7971, 8
        %v8138 = vpop.permute.xlu0 %8137
        %8139 = vrot.lane.b32.xlu0 %v7972, 8
        %v8140 = vpop.permute.xlu0 %8139
        %8141 = vrot.lane.b32.xlu0 %v7973, 8
        %v8142 = vpop.permute.xlu0 %8141
        %8143 = vrot.lane.b32.xlu0 %v7974, 8
        %v8144 = vpop.permute.xlu0 %8143
        %8145 = vrot.lane.b32.xlu0 %v7975, 8
        %v8146 = vpop.permute.xlu0 %8145
        %8147 = vrot.lane.b32.xlu0 %v7976, 8
        %v8148 = vpop.permute.xlu0 %8147
        %8149 = vrot.lane.b32.xlu0 %v7977, 8
        %v8150 = vpop.permute.xlu0 %8149
        %8151 = vrot.lane.b32.xlu0 %v7978, 8
        %v8152 = vpop.permute.xlu0 %8151
        %8153 = vrot.lane.b32.xlu0 %v7979, 8
        %v8154 = vpop.permute.xlu0 %8153
        %8155 = vrot.lane.b32.xlu0 %v7980, 8
        %v8156 = vpop.permute.xlu0 %8155
        %8157 = vrot.lane.b32.xlu0 %v7981, 8
        %v8158 = vpop.permute.xlu0 %8157
        %8159 = vrot.lane.b32.xlu0 %v7982, 8
        %v8160 = vpop.permute.xlu0 %8159
        %8161 = vrot.lane.b32.xlu0 %v7983, 8
        %v8162 = vpop.permute.xlu0 %8161
        %8163 = vrot.lane.b32.xlu0 %v7984, 8
        %v8164 = vpop.permute.xlu0 %8163
        %8205 = vrot.lane.b32.xlu0 %v7985, 16
        %v8206 = vpop.permute.xlu0 %8205
        %8207 = vrot.lane.b32.xlu0 %v7986, 16
        %v8208 = vpop.permute.xlu0 %8207
        %8209 = vrot.lane.b32.xlu0 %v7987, 16
        %v8210 = vpop.permute.xlu0 %8209
        %8211 = vrot.lane.b32.xlu0 %v7988, 16
        %v8212 = vpop.permute.xlu0 %8211
        %8213 = vrot.lane.b32.xlu0 %v7989, 16
        %v8214 = vpop.permute.xlu0 %8213
        %8215 = vrot.lane.b32.xlu0 %v7990, 16
        %v8216 = vpop.permute.xlu0 %8215
        %8217 = vrot.lane.b32.xlu0 %v7991, 16
        %v8218 = vpop.permute.xlu0 %8217
        %8219 = vrot.lane.b32.xlu0 %v7992, 16
        %v8220 = vpop.permute.xlu0 %8219
        %8221 = vrot.lane.b32.xlu0 %v7993, 16
        %v8222 = vpop.permute.xlu0 %8221
        %8223 = vrot.lane.b32.xlu0 %v7994, 16
        %v8224 = vpop.permute.xlu0 %8223
        %8225 = vrot.lane.b32.xlu0 %v7995, 16
        %v8226 = vpop.permute.xlu0 %8225
        %8227 = vrot.lane.b32.xlu0 %v7996, 16
        %v8228 = vpop.permute.xlu0 %8227
        %8229 = vrot.lane.b32.xlu0 %v7997, 16
        %v8230 = vpop.permute.xlu0 %8229
        %8231 = vrot.lane.b32.xlu0 %v7998, 16
        %v8232 = vpop.permute.xlu0 %8231
        %8233 = vrot.lane.b32.xlu0 %v7999, 16
        %v8234 = vpop.permute.xlu0 %8233
        %8235 = vrot.lane.b32.xlu0 %v8000, 16
        %v8236 = vpop.permute.xlu0 %8235
        %8237 = vrot.lane.b32.xlu0 %v8001, 16
        %v8238 = vpop.permute.xlu0 %8237
        %8239 = vrot.lane.b32.xlu0 %v8002, 16
        %v8240 = vpop.permute.xlu0 %8239
        %8241 = vrot.lane.b32.xlu0 %v8003, 16
        %v8242 = vpop.permute.xlu0 %8241
        %8243 = vrot.lane.b32.xlu0 %v8004, 16
        %v8244 = vpop.permute.xlu0 %8243
        %8285 = vrot.lane.b32.xlu0 %v8005, 24
        %v8286 = vpop.permute.xlu0 %8285
        %8287 = vrot.lane.b32.xlu0 %v8006, 24
        %v8288 = vpop.permute.xlu0 %8287
        %8289 = vrot.lane.b32.xlu0 %v8007, 24
        %v8290 = vpop.permute.xlu0 %8289
        %8291 = vrot.lane.b32.xlu0 %v8008, 24
        %v8292 = vpop.permute.xlu0 %8291
        %8293 = vrot.lane.b32.xlu0 %v8009, 24
        %v8294 = vpop.permute.xlu0 %8293
        %8295 = vrot.lane.b32.xlu0 %v8010, 24
        %v8296 = vpop.permute.xlu0 %8295
        %8297 = vrot.lane.b32.xlu0 %v8011, 24
        %v8298 = vpop.permute.xlu0 %8297
        %8299 = vrot.lane.b32.xlu0 %v8012, 24
        %v8300 = vpop.permute.xlu0 %8299
        %8301 = vrot.lane.b32.xlu0 %v8013, 24
        %v8302 = vpop.permute.xlu0 %8301
        %8303 = vrot.lane.b32.xlu0 %v8014, 24
        %v8304 = vpop.permute.xlu0 %8303
        %8305 = vrot.lane.b32.xlu0 %v8015, 24
        %v8306 = vpop.permute.xlu0 %8305
        %8307 = vrot.lane.b32.xlu0 %v8016, 24
        %v8308 = vpop.permute.xlu0 %8307
        %8309 = vrot.lane.b32.xlu0 %v8017, 24
        %v8310 = vpop.permute.xlu0 %8309
        %8311 = vrot.lane.b32.xlu0 %v8018, 24
        %v8312 = vpop.permute.xlu0 %8311
        %8313 = vrot.lane.b32.xlu0 %v8019, 24
        %v8314 = vpop.permute.xlu0 %8313
        %8315 = vrot.lane.b32.xlu0 %v8020, 24
        %v8316 = vpop.permute.xlu0 %8315
        %8317 = vrot.lane.b32.xlu0 %v8021, 24
        %v8318 = vpop.permute.xlu0 %8317
        %8319 = vrot.lane.b32.xlu0 %v8022, 24
        %v8320 = vpop.permute.xlu0 %8319
        %8321 = vrot.lane.b32.xlu0 %v8023, 24
        %v8322 = vpop.permute.xlu0 %8321
        %8323 = vrot.lane.b32.xlu0 %v8024, 24
        %v8324 = vpop.permute.xlu0 %8323
        %8365 = vrot.lane.b32.xlu0 %v8025, 32
        %v8366 = vpop.permute.xlu0 %8365
        %8367 = vrot.lane.b32.xlu0 %v8026, 32
        %v8368 = vpop.permute.xlu0 %8367
        %8369 = vrot.lane.b32.xlu0 %v8027, 32
        %v8370 = vpop.permute.xlu0 %8369
        %8371 = vrot.lane.b32.xlu0 %v8028, 32
        %v8372 = vpop.permute.xlu0 %8371
        %8373 = vrot.lane.b32.xlu0 %v8029, 32
        %v8374 = vpop.permute.xlu0 %8373
        %8375 = vrot.lane.b32.xlu0 %v8030, 32
        %v8376 = vpop.permute.xlu0 %8375
        %8377 = vrot.lane.b32.xlu0 %v8031, 32
        %v8378 = vpop.permute.xlu0 %8377
        %8379 = vrot.lane.b32.xlu0 %v8032, 32
        %v8380 = vpop.permute.xlu0 %8379
        %8381 = vrot.lane.b32.xlu0 %v8033, 32
        %v8382 = vpop.permute.xlu0 %8381
        %8383 = vrot.lane.b32.xlu0 %v8034, 32
        %v8384 = vpop.permute.xlu0 %8383
        %8385 = vrot.lane.b32.xlu0 %v8035, 32
        %v8386 = vpop.permute.xlu0 %8385
        %8387 = vrot.lane.b32.xlu0 %v8036, 32
        %v8388 = vpop.permute.xlu0 %8387
        %8389 = vrot.lane.b32.xlu0 %v8037, 32
        %v8390 = vpop.permute.xlu0 %8389
        %8391 = vrot.lane.b32.xlu0 %v8038, 32
        %v8392 = vpop.permute.xlu0 %8391
        %8393 = vrot.lane.b32.xlu0 %v8039, 32
        %v8394 = vpop.permute.xlu0 %8393
        %8395 = vrot.lane.b32.xlu0 %v8040, 32
        %v8396 = vpop.permute.xlu0 %8395
        %8397 = vrot.lane.b32.xlu0 %v8041, 32
        %v8398 = vpop.permute.xlu0 %8397
        %8399 = vrot.lane.b32.xlu0 %v8042, 32
        %v8400 = vpop.permute.xlu0 %8399
        %8401 = vrot.lane.b32.xlu0 %v8043, 32
        %v8402 = vpop.permute.xlu0 %8401
        %8403 = vrot.lane.b32.xlu0 %v8044, 32
        %v8404 = vpop.permute.xlu0 %8403
        %8445 = vrot.lane.b32.xlu0 %v7947, 40
        %v8446 = vpop.permute.xlu0 %8445
        %8447 = vrot.lane.b32.xlu0 %v7948, 40
        %v8448 = vpop.permute.xlu0 %8447
        %8449 = vrot.lane.b32.xlu0 %v7949, 40
        %v8450 = vpop.permute.xlu0 %8449
        %8451 = vrot.lane.b32.xlu0 %v7950, 40
        %v8452 = vpop.permute.xlu0 %8451
        %8453 = vrot.lane.b32.xlu0 %v7951, 40
        %v8454 = vpop.permute.xlu0 %8453
        %8455 = vrot.lane.b32.xlu0 %v7952, 40
        %v8456 = vpop.permute.xlu0 %8455
        %8457 = vrot.lane.b32.xlu0 %v7953, 40
        %v8458 = vpop.permute.xlu0 %8457
        %8459 = vrot.lane.b32.xlu0 %v7954, 40
        %v8460 = vpop.permute.xlu0 %8459
        %8461 = vrot.lane.b32.xlu0 %v7955, 40
        %v8462 = vpop.permute.xlu0 %8461
        %8463 = vrot.lane.b32.xlu0 %v7956, 40
        %v8464 = vpop.permute.xlu0 %8463
        %8465 = vrot.lane.b32.xlu0 %v7957, 40
        %v8466 = vpop.permute.xlu0 %8465
        %8467 = vrot.lane.b32.xlu0 %v7958, 40
        %v8468 = vpop.permute.xlu0 %8467
        %8469 = vrot.lane.b32.xlu0 %v7959, 40
        %v8470 = vpop.permute.xlu0 %8469
        %8471 = vrot.lane.b32.xlu0 %v7960, 40
        %v8472 = vpop.permute.xlu0 %8471
        %8473 = vrot.lane.b32.xlu0 %v7961, 40
        %v8474 = vpop.permute.xlu0 %8473
        %8475 = vrot.lane.b32.xlu0 %v7962, 40
        %v8476 = vpop.permute.xlu0 %8475
        %8477 = vrot.lane.b32.xlu0 %v7963, 40
        %v8478 = vpop.permute.xlu0 %8477
        %8479 = vrot.lane.b32.xlu0 %v8045, 40
        %v8480 = vpop.permute.xlu0 %8479
        %8481 = vrot.lane.b32.xlu0 %v8046, 40
        %v8482 = vpop.permute.xlu0 %8481
        %8483 = vrot.lane.b32.xlu0 %v8047, 40
        %v8484 = vpop.permute.xlu0 %8483
        %8508 = vrot.lane.b32.xlu0 %v7967, 48
        %v8509 = vpop.permute.xlu0 %8508
        %8510 = vrot.lane.b32.xlu0 %v7968, 48
        %v8511 = vpop.permute.xlu0 %8510
        %8512 = vrot.lane.b32.xlu0 %v7969, 48
        %v8513 = vpop.permute.xlu0 %8512
        %8514 = vrot.lane.b32.xlu0 %v7970, 48
        %v8515 = vpop.permute.xlu0 %8514
        %8516 = vrot.lane.b32.xlu0 %v7971, 48
        %v8517 = vpop.permute.xlu0 %8516
        %8518 = vrot.lane.b32.xlu0 %v7972, 48
        %v8519 = vpop.permute.xlu0 %8518
        %8520 = vrot.lane.b32.xlu0 %v7973, 48
        %v8521 = vpop.permute.xlu0 %8520
        %8522 = vrot.lane.b32.xlu0 %v7974, 48
        %v8523 = vpop.permute.xlu0 %8522
        %8524 = vrot.lane.b32.xlu0 %v7975, 48
        %v8525 = vpop.permute.xlu0 %8524
        %8526 = vrot.lane.b32.xlu0 %v7976, 48
        %v8527 = vpop.permute.xlu0 %8526
        %8528 = vrot.lane.b32.xlu0 %v7977, 48
        %v8529 = vpop.permute.xlu0 %8528
        %8530 = vrot.lane.b32.xlu0 %v7978, 48
        %v8531 = vpop.permute.xlu0 %8530
        %8532 = vrot.lane.b32.xlu0 %v7979, 48
        %v8533 = vpop.permute.xlu0 %8532
        %8534 = vrot.lane.b32.xlu0 %v7980, 48
        %v8535 = vpop.permute.xlu0 %8534
        %8536 = vrot.lane.b32.xlu0 %v7981, 48
        %v8537 = vpop.permute.xlu0 %8536
        %8538 = vrot.lane.b32.xlu0 %v7982, 48
        %v8539 = vpop.permute.xlu0 %8538
        %8540 = vrot.lane.b32.xlu0 %v7983, 48
        %v8541 = vpop.permute.xlu0 %8540
        %8542 = vrot.lane.b32.xlu0 %v8048, 48
        %v8543 = vpop.permute.xlu0 %8542
        %8544 = vrot.lane.b32.xlu0 %v8049, 48
        %v8545 = vpop.permute.xlu0 %8544
        %8546 = vrot.lane.b32.xlu0 %v8050, 48
        %v8547 = vpop.permute.xlu0 %8546
        %8571 = vrot.lane.b32.xlu0 %v7987, 56
        %v8572 = vpop.permute.xlu0 %8571
        %8573 = vrot.lane.b32.xlu0 %v7988, 56
        %v8574 = vpop.permute.xlu0 %8573
        %8575 = vrot.lane.b32.xlu0 %v7989, 56
        %v8576 = vpop.permute.xlu0 %8575
        %8577 = vrot.lane.b32.xlu0 %v7990, 56
        %v8578 = vpop.permute.xlu0 %8577
        %8579 = vrot.lane.b32.xlu0 %v7991, 56
        %v8580 = vpop.permute.xlu0 %8579
        %8581 = vrot.lane.b32.xlu0 %v7992, 56
        %v8582 = vpop.permute.xlu0 %8581
        %8583 = vrot.lane.b32.xlu0 %v7993, 56
        %v8584 = vpop.permute.xlu0 %8583
        %8585 = vrot.lane.b32.xlu0 %v7994, 56
        %v8586 = vpop.permute.xlu0 %8585
        %8587 = vrot.lane.b32.xlu0 %v7995, 56
        %v8588 = vpop.permute.xlu0 %8587
        %8589 = vrot.lane.b32.xlu0 %v7996, 56
        %v8590 = vpop.permute.xlu0 %8589
        %8591 = vrot.lane.b32.xlu0 %v7997, 56
        %v8592 = vpop.permute.xlu0 %8591
        %8593 = vrot.lane.b32.xlu0 %v7998, 56
        %v8594 = vpop.permute.xlu0 %8593
        %8595 = vrot.lane.b32.xlu0 %v7999, 56
        %v8596 = vpop.permute.xlu0 %8595
        %8597 = vrot.lane.b32.xlu0 %v8000, 56
        %v8598 = vpop.permute.xlu0 %8597
        %8599 = vrot.lane.b32.xlu0 %v8001, 56
        %v8600 = vpop.permute.xlu0 %8599
        %8601 = vrot.lane.b32.xlu0 %v8002, 56
        %v8602 = vpop.permute.xlu0 %8601
        %8603 = vrot.lane.b32.xlu0 %v8003, 56
        %v8604 = vpop.permute.xlu0 %8603
        %8605 = vrot.lane.b32.xlu0 %v8051, 56
        %v8606 = vpop.permute.xlu0 %8605
        %8607 = vrot.lane.b32.xlu0 %v8052, 56
        %v8608 = vpop.permute.xlu0 %8607
        %8609 = vrot.lane.b32.xlu0 %v8053, 56
        %v8610 = vpop.permute.xlu0 %8609
        %8634 = vrot.lane.b32.xlu0 %v8007, 64
        %v8635 = vpop.permute.xlu0 %8634
        %8636 = vrot.lane.b32.xlu0 %v8008, 64
        %v8637 = vpop.permute.xlu0 %8636
        %8638 = vrot.lane.b32.xlu0 %v8009, 64
        %v8639 = vpop.permute.xlu0 %8638
        %8640 = vrot.lane.b32.xlu0 %v8010, 64
        %v8641 = vpop.permute.xlu0 %8640
        %8642 = vrot.lane.b32.xlu0 %v8011, 64
        %v8643 = vpop.permute.xlu0 %8642
        %8644 = vrot.lane.b32.xlu0 %v8012, 64
        %v8645 = vpop.permute.xlu0 %8644
        %8646 = vrot.lane.b32.xlu0 %v8013, 64
        %v8647 = vpop.permute.xlu0 %8646
        %8648 = vrot.lane.b32.xlu0 %v8014, 64
        %v8649 = vpop.permute.xlu0 %8648
        %8650 = vrot.lane.b32.xlu0 %v8015, 64
        %v8651 = vpop.permute.xlu0 %8650
        %8652 = vrot.lane.b32.xlu0 %v8016, 64
        %v8653 = vpop.permute.xlu0 %8652
        %8654 = vrot.lane.b32.xlu0 %v8017, 64
        %v8655 = vpop.permute.xlu0 %8654
        %8656 = vrot.lane.b32.xlu0 %v8018, 64
        %v8657 = vpop.permute.xlu0 %8656
        %8658 = vrot.lane.b32.xlu0 %v8019, 64
        %v8659 = vpop.permute.xlu0 %8658
        %8660 = vrot.lane.b32.xlu0 %v8020, 64
        %v8661 = vpop.permute.xlu0 %8660
        %8662 = vrot.lane.b32.xlu0 %v8021, 64
        %v8663 = vpop.permute.xlu0 %8662
        %8664 = vrot.lane.b32.xlu0 %v8022, 64
        %v8665 = vpop.permute.xlu0 %8664
        %8666 = vrot.lane.b32.xlu0 %v8023, 64
        %v8667 = vpop.permute.xlu0 %8666
        %8668 = vrot.lane.b32.xlu0 %v8054, 64
        %v8669 = vpop.permute.xlu0 %8668
        %8670 = vrot.lane.b32.xlu0 %v8055, 64
        %v8671 = vpop.permute.xlu0 %8670
        %8672 = vrot.lane.b32.xlu0 %v8056, 64
        %v8673 = vpop.permute.xlu0 %8672
        %8697 = vrot.lane.b32.xlu0 %v8027, 72
        %v8698 = vpop.permute.xlu0 %8697
        %8699 = vrot.lane.b32.xlu0 %v8028, 72
        %v8700 = vpop.permute.xlu0 %8699
        %8701 = vrot.lane.b32.xlu0 %v8029, 72
        %v8702 = vpop.permute.xlu0 %8701
        %8703 = vrot.lane.b32.xlu0 %v8030, 72
        %v8704 = vpop.permute.xlu0 %8703
        %8705 = vrot.lane.b32.xlu0 %v8031, 72
        %v8706 = vpop.permute.xlu0 %8705
        %8707 = vrot.lane.b32.xlu0 %v8032, 72
        %v8708 = vpop.permute.xlu0 %8707
        %8709 = vrot.lane.b32.xlu0 %v8033, 72
        %v8710 = vpop.permute.xlu0 %8709
        %8711 = vrot.lane.b32.xlu0 %v8034, 72
        %v8712 = vpop.permute.xlu0 %8711
        %8713 = vrot.lane.b32.xlu0 %v8035, 72
        %v8714 = vpop.permute.xlu0 %8713
        %8715 = vrot.lane.b32.xlu0 %v8036, 72
        %v8716 = vpop.permute.xlu0 %8715
        %8717 = vrot.lane.b32.xlu0 %v8037, 72
        %v8718 = vpop.permute.xlu0 %8717
        %8719 = vrot.lane.b32.xlu0 %v8038, 72
        %v8720 = vpop.permute.xlu0 %8719
        %8721 = vrot.lane.b32.xlu0 %v8039, 72
        %v8722 = vpop.permute.xlu0 %8721
        %8723 = vrot.lane.b32.xlu0 %v8040, 72
        %v8724 = vpop.permute.xlu0 %8723
        %8725 = vrot.lane.b32.xlu0 %v8041, 72
        %v8726 = vpop.permute.xlu0 %8725
        %8727 = vrot.lane.b32.xlu0 %v8042, 72
        %v8728 = vpop.permute.xlu0 %8727
        %8729 = vrot.lane.b32.xlu0 %v8043, 72
        %v8730 = vpop.permute.xlu0 %8729
        %8731 = vrot.lane.b32.xlu0 %v8057, 72
        %v8732 = vpop.permute.xlu0 %8731
        %8733 = vrot.lane.b32.xlu0 %v8058, 72
        %v8734 = vpop.permute.xlu0 %8733
        %8735 = vrot.lane.b32.xlu0 %v8059, 72
        %v8736 = vpop.permute.xlu0 %8735
        %8760 = vrot.lane.b32.xlu0 %v7949, 80
        %v8761 = vpop.permute.xlu0 %8760
        %8762 = vrot.lane.b32.xlu0 %v7950, 80
        %v8763 = vpop.permute.xlu0 %8762
        %8764 = vrot.lane.b32.xlu0 %v7951, 80
        %v8765 = vpop.permute.xlu0 %8764
        %8766 = vrot.lane.b32.xlu0 %v7952, 80
        %v8767 = vpop.permute.xlu0 %8766
        %8768 = vrot.lane.b32.xlu0 %v7953, 80
        %v8769 = vpop.permute.xlu0 %8768
        %8770 = vrot.lane.b32.xlu0 %v7954, 80
        %v8771 = vpop.permute.xlu0 %8770
        %8772 = vrot.lane.b32.xlu0 %v7955, 80
        %v8773 = vpop.permute.xlu0 %8772
        %8774 = vrot.lane.b32.xlu0 %v7956, 80
        %v8775 = vpop.permute.xlu0 %8774
        %8776 = vrot.lane.b32.xlu0 %v7957, 80
        %v8777 = vpop.permute.xlu0 %8776
        %8778 = vrot.lane.b32.xlu0 %v7958, 80
        %v8779 = vpop.permute.xlu0 %8778
        %8780 = vrot.lane.b32.xlu0 %v7959, 80
        %v8781 = vpop.permute.xlu0 %8780
        %8782 = vrot.lane.b32.xlu0 %v7960, 80
        %v8783 = vpop.permute.xlu0 %8782
        %8784 = vrot.lane.b32.xlu0 %v7961, 80
        %v8785 = vpop.permute.xlu0 %8784
        %8786 = vrot.lane.b32.xlu0 %v7962, 80
        %v8787 = vpop.permute.xlu0 %8786
        %8788 = vrot.lane.b32.xlu0 %v7963, 80
        %v8789 = vpop.permute.xlu0 %8788
        %8790 = vrot.lane.b32.xlu0 %v8045, 80
        %v8791 = vpop.permute.xlu0 %8790
        %8792 = vrot.lane.b32.xlu0 %v8046, 80
        %v8793 = vpop.permute.xlu0 %8792
        %8794 = vrot.lane.b32.xlu0 %v8060, 80
        %v8795 = vpop.permute.xlu0 %8794
        %8796 = vrot.lane.b32.xlu0 %v8061, 80
        %v8797 = vpop.permute.xlu0 %8796
        %8798 = vrot.lane.b32.xlu0 %v8062, 80
        %v8799 = vpop.permute.xlu0 %8798
        %8823 = vrot.lane.b32.xlu0 %v7969, 88
        %v8824 = vpop.permute.xlu0 %8823
        %8825 = vrot.lane.b32.xlu0 %v7970, 88
        %v8826 = vpop.permute.xlu0 %8825
        %8827 = vrot.lane.b32.xlu0 %v7971, 88
        %v8828 = vpop.permute.xlu0 %8827
        %8829 = vrot.lane.b32.xlu0 %v7972, 88
        %v8830 = vpop.permute.xlu0 %8829
        %8831 = vrot.lane.b32.xlu0 %v7973, 88
        %v8832 = vpop.permute.xlu0 %8831
        %8833 = vrot.lane.b32.xlu0 %v7974, 88
        %v8834 = vpop.permute.xlu0 %8833
        %8835 = vrot.lane.b32.xlu0 %v7975, 88
        %v8836 = vpop.permute.xlu0 %8835
        %8837 = vrot.lane.b32.xlu0 %v7976, 88
        %v8838 = vpop.permute.xlu0 %8837
        %8839 = vrot.lane.b32.xlu0 %v7977, 88
        %v8840 = vpop.permute.xlu0 %8839
        %8841 = vrot.lane.b32.xlu0 %v7978, 88
        %v8842 = vpop.permute.xlu0 %8841
        %8843 = vrot.lane.b32.xlu0 %v7979, 88
        %v8844 = vpop.permute.xlu0 %8843
        %8845 = vrot.lane.b32.xlu0 %v7980, 88
        %v8846 = vpop.permute.xlu0 %8845
        %8847 = vrot.lane.b32.xlu0 %v7981, 88
        %v8848 = vpop.permute.xlu0 %8847
        %8849 = vrot.lane.b32.xlu0 %v7982, 88
        %v8850 = vpop.permute.xlu0 %8849
        %8851 = vrot.lane.b32.xlu0 %v7983, 88
        %v8852 = vpop.permute.xlu0 %8851
        %8853 = vrot.lane.b32.xlu0 %v8048, 88
        %v8854 = vpop.permute.xlu0 %8853
        %8855 = vrot.lane.b32.xlu0 %v8049, 88
        %v8856 = vpop.permute.xlu0 %8855
        %8857 = vrot.lane.b32.xlu0 %v8063, 88
        %v8858 = vpop.permute.xlu0 %8857
        %8859 = vrot.lane.b32.xlu0 %v8064, 88
        %v8860 = vpop.permute.xlu0 %8859
        %8861 = vrot.lane.b32.xlu0 %v8065, 88
        %v8862 = vpop.permute.xlu0 %8861
        %8886 = vrot.lane.b32.xlu0 %v7989, 96
        %v8887 = vpop.permute.xlu0 %8886
        %8888 = vrot.lane.b32.xlu0 %v7990, 96
        %v8889 = vpop.permute.xlu0 %8888
        %8890 = vrot.lane.b32.xlu0 %v7991, 96
        %v8891 = vpop.permute.xlu0 %8890
        %8892 = vrot.lane.b32.xlu0 %v7992, 96
        %v8893 = vpop.permute.xlu0 %8892
        %8894 = vrot.lane.b32.xlu0 %v7993, 96
        %v8895 = vpop.permute.xlu0 %8894
        %8896 = vrot.lane.b32.xlu0 %v7994, 96
        %v8897 = vpop.permute.xlu0 %8896
        %8898 = vrot.lane.b32.xlu0 %v7995, 96
        %v8899 = vpop.permute.xlu0 %8898
        %8900 = vrot.lane.b32.xlu0 %v7996, 96
        %v8901 = vpop.permute.xlu0 %8900
        %8902 = vrot.lane.b32.xlu0 %v7997, 96
        %v8903 = vpop.permute.xlu0 %8902
        %8904 = vrot.lane.b32.xlu0 %v7998, 96
        %v8905 = vpop.permute.xlu0 %8904
        %8906 = vrot.lane.b32.xlu0 %v7999, 96
        %v8907 = vpop.permute.xlu0 %8906
        %8908 = vrot.lane.b32.xlu0 %v8000, 96
        %v8909 = vpop.permute.xlu0 %8908
        %8910 = vrot.lane.b32.xlu0 %v8001, 96
        %v8911 = vpop.permute.xlu0 %8910
        %8912 = vrot.lane.b32.xlu0 %v8002, 96
        %v8913 = vpop.permute.xlu0 %8912
        %8914 = vrot.lane.b32.xlu0 %v8003, 96
        %v8915 = vpop.permute.xlu0 %8914
        %8916 = vrot.lane.b32.xlu0 %v8051, 96
        %v8917 = vpop.permute.xlu0 %8916
        %8918 = vrot.lane.b32.xlu0 %v8052, 96
        %v8919 = vpop.permute.xlu0 %8918
        %8920 = vrot.lane.b32.xlu0 %v8066, 96
        %v8921 = vpop.permute.xlu0 %8920
        %8922 = vrot.lane.b32.xlu0 %v8067, 96
        %v8923 = vpop.permute.xlu0 %8922
        %8924 = vrot.lane.b32.xlu0 %v8068, 96
        %v8925 = vpop.permute.xlu0 %8924
        %8949 = vrot.lane.b32.xlu0 %v8009, 104
        %v8950 = vpop.permute.xlu0 %8949
        %8951 = vrot.lane.b32.xlu0 %v8010, 104
        %v8952 = vpop.permute.xlu0 %8951
        %8953 = vrot.lane.b32.xlu0 %v8011, 104
        %v8954 = vpop.permute.xlu0 %8953
        %8955 = vrot.lane.b32.xlu0 %v8012, 104
        %v8956 = vpop.permute.xlu0 %8955
        %8957 = vrot.lane.b32.xlu0 %v8013, 104
        %v8958 = vpop.permute.xlu0 %8957
        %8959 = vrot.lane.b32.xlu0 %v8014, 104
        %v8960 = vpop.permute.xlu0 %8959
        %8961 = vrot.lane.b32.xlu0 %v8015, 104
        %v8962 = vpop.permute.xlu0 %8961
        %8963 = vrot.lane.b32.xlu0 %v8016, 104
        %v8964 = vpop.permute.xlu0 %8963
        %8965 = vrot.lane.b32.xlu0 %v8017, 104
        %v8966 = vpop.permute.xlu0 %8965
        %8967 = vrot.lane.b32.xlu0 %v8018, 104
        %v8968 = vpop.permute.xlu0 %8967
        %8969 = vrot.lane.b32.xlu0 %v8019, 104
        %v8970 = vpop.permute.xlu0 %8969
        %8971 = vrot.lane.b32.xlu0 %v8020, 104
        %v8972 = vpop.permute.xlu0 %8971
        %8973 = vrot.lane.b32.xlu0 %v8021, 104
        %v8974 = vpop.permute.xlu0 %8973
        %8975 = vrot.lane.b32.xlu0 %v8022, 104
        %v8976 = vpop.permute.xlu0 %8975
        %8977 = vrot.lane.b32.xlu0 %v8023, 104
        %v8978 = vpop.permute.xlu0 %8977
        %8979 = vrot.lane.b32.xlu0 %v8054, 104
        %v8980 = vpop.permute.xlu0 %8979
        %8981 = vrot.lane.b32.xlu0 %v8055, 104
        %v8982 = vpop.permute.xlu0 %8981
        %8983 = vrot.lane.b32.xlu0 %v8069, 104
        %v8984 = vpop.permute.xlu0 %8983
        %8985 = vrot.lane.b32.xlu0 %v8070, 104
        %v8986 = vpop.permute.xlu0 %8985
        %8987 = vrot.lane.b32.xlu0 %v8071, 104
        %v8988 = vpop.permute.xlu0 %8987
        %9012 = vrot.lane.b32.xlu0 %v8029, 112
        %v9013 = vpop.permute.xlu0 %9012
        %9014 = vrot.lane.b32.xlu0 %v8030, 112
        %v9015 = vpop.permute.xlu0 %9014
        %9016 = vrot.lane.b32.xlu0 %v8031, 112
        %v9017 = vpop.permute.xlu0 %9016
        %9018 = vrot.lane.b32.xlu0 %v8032, 112
        %v9019 = vpop.permute.xlu0 %9018
        %9020 = vrot.lane.b32.xlu0 %v8033, 112
        %v9021 = vpop.permute.xlu0 %9020
        %9022 = vrot.lane.b32.xlu0 %v8034, 112
        %v9023 = vpop.permute.xlu0 %9022
        %9024 = vrot.lane.b32.xlu0 %v8035, 112
        %v9025 = vpop.permute.xlu0 %9024
        %9026 = vrot.lane.b32.xlu0 %v8036, 112
        %v9027 = vpop.permute.xlu0 %9026
        %9028 = vrot.lane.b32.xlu0 %v8037, 112
        %v9029 = vpop.permute.xlu0 %9028
        %9030 = vrot.lane.b32.xlu0 %v8038, 112
        %v9031 = vpop.permute.xlu0 %9030
        %9032 = vrot.lane.b32.xlu0 %v8039, 112
        %v9033 = vpop.permute.xlu0 %9032
        %9034 = vrot.lane.b32.xlu0 %v8040, 112
        %v9035 = vpop.permute.xlu0 %9034
        %9036 = vrot.lane.b32.xlu0 %v8041, 112
        %v9037 = vpop.permute.xlu0 %9036
        %9038 = vrot.lane.b32.xlu0 %v8042, 112
        %v9039 = vpop.permute.xlu0 %9038
        %9040 = vrot.lane.b32.xlu0 %v8043, 112
        %v9041 = vpop.permute.xlu0 %9040
        %9042 = vrot.lane.b32.xlu0 %v8057, 112
        %v9043 = vpop.permute.xlu0 %9042
        %9044 = vrot.lane.b32.xlu0 %v8058, 112
        %v9045 = vpop.permute.xlu0 %9044
        %9046 = vrot.lane.b32.xlu0 %v8072, 112
        %v9047 = vpop.permute.xlu0 %9046
        %9048 = vrot.lane.b32.xlu0 %v8073, 112
        %v9049 = vpop.permute.xlu0 %9048
        %9050 = vrot.lane.b32.xlu0 %v8074, 112
        %v9051 = vpop.permute.xlu0 %9050
        %9075 = vrot.lane.b32.xlu0 %v7951, 120
        %v9076 = vpop.permute.xlu0 %9075
        %9077 = vrot.lane.b32.xlu0 %v7952, 120
        %v9078 = vpop.permute.xlu0 %9077
        %9079 = vrot.lane.b32.xlu0 %v7953, 120
        %v9080 = vpop.permute.xlu0 %9079
        %9081 = vrot.lane.b32.xlu0 %v7954, 120
        %v9082 = vpop.permute.xlu0 %9081
        %9083 = vrot.lane.b32.xlu0 %v7955, 120
        %v9084 = vpop.permute.xlu0 %9083
        %9085 = vrot.lane.b32.xlu0 %v7956, 120
        %v9086 = vpop.permute.xlu0 %9085
        %9087 = vrot.lane.b32.xlu0 %v7957, 120
        %v9088 = vpop.permute.xlu0 %9087
        %9089 = vrot.lane.b32.xlu0 %v7958, 120
        %v9090 = vpop.permute.xlu0 %9089
        %9091 = vrot.lane.b32.xlu0 %v7959, 120
        %v9092 = vpop.permute.xlu0 %9091
        %9093 = vrot.lane.b32.xlu0 %v7960, 120
        %v9094 = vpop.permute.xlu0 %9093
        %9095 = vrot.lane.b32.xlu0 %v7961, 120
        %v9096 = vpop.permute.xlu0 %9095
        %9097 = vrot.lane.b32.xlu0 %v7962, 120
        %v9098 = vpop.permute.xlu0 %9097
        %9099 = vrot.lane.b32.xlu0 %v7963, 120
        %v9100 = vpop.permute.xlu0 %9099
        %9101 = vrot.lane.b32.xlu0 %v8045, 120
        %v9102 = vpop.permute.xlu0 %9101
        %9103 = vrot.lane.b32.xlu0 %v8046, 120
        %v9104 = vpop.permute.xlu0 %9103
        %9105 = vrot.lane.b32.xlu0 %v8060, 120
        %v9106 = vpop.permute.xlu0 %9105
        %9107 = vrot.lane.b32.xlu0 %v8061, 120
        %v9108 = vpop.permute.xlu0 %9107
        %9109 = vrot.lane.b32.xlu0 %v8075, 120
        %v9110 = vpop.permute.xlu0 %9109
        %9111 = vrot.lane.b32.xlu0 %v8076, 120
        %v9112 = vpop.permute.xlu0 %9111
        %9113 = vrot.lane.b32.xlu0 %v8077, 120
        %v9114 = vpop.permute.xlu0 %9113
        %v9135 = vsel %vm384, %v7945, %v8126
        %v9136 = vsel %vm384, %v7946, %v8128
        %v9137 = vsel %vm384, %v7947, %v8130
        %v9138 = vsel %vm384, %v7948, %v8132
        %v9139 = vsel %vm384, %v7949, %v8134
        %v9140 = vsel %vm384, %v7950, %v8136
        %v9141 = vsel %vm384, %v7951, %v8138
        %v9142 = vsel %vm384, %v7952, %v8140
        %v9143 = vsel %vm384, %v7953, %v8142
        %v9144 = vsel %vm384, %v7954, %v8144
        %v9145 = vsel %vm384, %v7955, %v8146
        %v9146 = vsel %vm384, %v7956, %v8148
        %v9147 = vsel %vm384, %v7957, %v8150
        %v9148 = vsel %vm384, %v7958, %v8152
        %v9149 = vsel %vm384, %v7959, %v8154
        %v9150 = vsel %vm384, %v7960, %v8156
        %v9151 = vsel %vm384, %v7961, %v8158
        %v9152 = vsel %vm384, %v7962, %v8160
        %v9153 = vsel %vm384, %v7963, %v8162
        %v9154 = vsel %vm384, %v7964, %v8164
        %v9155 = vsel %vm413, %v9135, %v8206
        %v9156 = vsel %vm413, %v9136, %v8208
        %v9157 = vsel %vm413, %v9137, %v8210
        %v9158 = vsel %vm413, %v9138, %v8212
        %v9159 = vsel %vm413, %v9139, %v8214
        %v9160 = vsel %vm413, %v9140, %v8216
        %v9161 = vsel %vm413, %v9141, %v8218
        %v9162 = vsel %vm413, %v9142, %v8220
        %v9163 = vsel %vm413, %v9143, %v8222
        %v9164 = vsel %vm413, %v9144, %v8224
        %v9165 = vsel %vm413, %v9145, %v8226
        %v9166 = vsel %vm413, %v9146, %v8228
        %v9167 = vsel %vm413, %v9147, %v8230
        %v9168 = vsel %vm413, %v9148, %v8232
        %v9169 = vsel %vm413, %v9149, %v8234
        %v9170 = vsel %vm413, %v9150, %v8236
        %v9171 = vsel %vm413, %v9151, %v8238
        %v9172 = vsel %vm413, %v9152, %v8240
        %v9173 = vsel %vm413, %v9153, %v8242
        %v9174 = vsel %vm413, %v9154, %v8244
        %v9175 = vsel %vm2447, %v9155, %v8286
        %v9176 = vsel %vm2447, %v9156, %v8288
        %v9177 = vsel %vm2447, %v9157, %v8290
        %v9178 = vsel %vm2447, %v9158, %v8292
        %v9179 = vsel %vm2447, %v9159, %v8294
        %v9180 = vsel %vm2447, %v9160, %v8296
        %v9181 = vsel %vm2447, %v9161, %v8298
        %v9182 = vsel %vm2447, %v9162, %v8300
        %v9183 = vsel %vm2447, %v9163, %v8302
        %v9184 = vsel %vm2447, %v9164, %v8304
        %v9185 = vsel %vm2447, %v9165, %v8306
        %v9186 = vsel %vm2447, %v9166, %v8308
        %v9187 = vsel %vm2447, %v9167, %v8310
        %v9188 = vsel %vm2447, %v9168, %v8312
        %v9189 = vsel %vm2447, %v9169, %v8314
        %v9190 = vsel %vm2447, %v9170, %v8316
        %v9191 = vsel %vm2447, %v9171, %v8318
        %v9192 = vsel %vm2447, %v9172, %v8320
        %v9193 = vsel %vm2447, %v9173, %v8322
        %v9194 = vsel %vm2447, %v9174, %v8324
        %v9195 = vsel %vm2513, %v9175, %v8366
        %v9196 = vsel %vm2513, %v9176, %v8368
        %v9197 = vsel %vm2513, %v9177, %v8370
        %v9198 = vsel %vm2513, %v9178, %v8372
        %v9199 = vsel %vm2513, %v9179, %v8374
        %v9200 = vsel %vm2513, %v9180, %v8376
        %v9201 = vsel %vm2513, %v9181, %v8378
        %v9202 = vsel %vm2513, %v9182, %v8380
        %v9203 = vsel %vm2513, %v9183, %v8382
        %v9204 = vsel %vm2513, %v9184, %v8384
        %v9205 = vsel %vm2513, %v9185, %v8386
        %v9206 = vsel %vm2513, %v9186, %v8388
        %v9207 = vsel %vm2513, %v9187, %v8390
        %v9208 = vsel %vm2513, %v9188, %v8392
        %v9209 = vsel %vm2513, %v9189, %v8394
        %v9210 = vsel %vm2513, %v9190, %v8396
        %v9211 = vsel %vm2513, %v9191, %v8398
        %v9212 = vsel %vm2513, %v9192, %v8400
        %v9213 = vsel %vm2513, %v9193, %v8402
        %v9214 = vsel %vm2513, %v9194, %v8404
        %v9215 = vsel %vm2579, %v9195, %v8446
        %v9216 = vsel %vm2579, %v9196, %v8448
        %v9217 = vsel %vm2579, %v9197, %v8450
        %v9218 = vsel %vm2579, %v9198, %v8452
        %v9219 = vsel %vm2579, %v9199, %v8454
        %v9220 = vsel %vm2579, %v9200, %v8456
        %v9221 = vsel %vm2579, %v9201, %v8458
        %v9222 = vsel %vm2579, %v9202, %v8460
        %v9223 = vsel %vm2579, %v9203, %v8462
        %v9224 = vsel %vm2579, %v9204, %v8464
        %v9225 = vsel %vm2579, %v9205, %v8466
        %v9226 = vsel %vm2579, %v9206, %v8468
        %v9227 = vsel %vm2579, %v9207, %v8470
        %v9228 = vsel %vm2579, %v9208, %v8472
        %v9229 = vsel %vm2579, %v9209, %v8474
        %v9230 = vsel %vm2579, %v9210, %v8476
        %v9231 = vsel %vm2579, %v9211, %v8478
        %v9232 = vsel %vm2579, %v9212, %v8480
        %v9233 = vsel %vm2579, %v9213, %v8482
        %v9234 = vsel %vm2579, %v9214, %v8484
        %v9235 = vsel %vm2645, %v9215, %v8509
        %v9236 = vsel %vm2645, %v9216, %v8511
        %v9237 = vsel %vm2645, %v9217, %v8513
        %v9238 = vsel %vm2645, %v9218, %v8515
        %v9239 = vsel %vm2645, %v9219, %v8517
        %v9240 = vsel %vm2645, %v9220, %v8519
        %v9241 = vsel %vm2645, %v9221, %v8521
        %v9242 = vsel %vm2645, %v9222, %v8523
        %v9243 = vsel %vm2645, %v9223, %v8525
        %v9244 = vsel %vm2645, %v9224, %v8527
        %v9245 = vsel %vm2645, %v9225, %v8529
        %v9246 = vsel %vm2645, %v9226, %v8531
        %v9247 = vsel %vm2645, %v9227, %v8533
        %v9248 = vsel %vm2645, %v9228, %v8535
        %v9249 = vsel %vm2645, %v9229, %v8537
        %v9250 = vsel %vm2645, %v9230, %v8539
        %v9251 = vsel %vm2645, %v9231, %v8541
        %v9252 = vsel %vm2645, %v9232, %v8543
        %v9253 = vsel %vm2645, %v9233, %v8545
        %v9254 = vsel %vm2645, %v9234, %v8547
        %v9255 = vsel %vm2711, %v9235, %v8572
        %v9256 = vsel %vm2711, %v9236, %v8574
        %v9257 = vsel %vm2711, %v9237, %v8576
        %v9258 = vsel %vm2711, %v9238, %v8578
        %v9259 = vsel %vm2711, %v9239, %v8580
        %v9260 = vsel %vm2711, %v9240, %v8582
        %v9261 = vsel %vm2711, %v9241, %v8584
        %v9262 = vsel %vm2711, %v9242, %v8586
        %v9263 = vsel %vm2711, %v9243, %v8588
        %v9264 = vsel %vm2711, %v9244, %v8590
        %v9265 = vsel %vm2711, %v9245, %v8592
        %v9266 = vsel %vm2711, %v9246, %v8594
        %v9267 = vsel %vm2711, %v9247, %v8596
        %v9268 = vsel %vm2711, %v9248, %v8598
        %v9269 = vsel %vm2711, %v9249, %v8600
        %v9270 = vsel %vm2711, %v9250, %v8602
        %v9271 = vsel %vm2711, %v9251, %v8604
        %v9272 = vsel %vm2711, %v9252, %v8606
        %v9273 = vsel %vm2711, %v9253, %v8608
        %v9274 = vsel %vm2711, %v9254, %v8610
        %v9275 = vsel %vm3956, %v9255, %v8635
        %v9276 = vsel %vm3956, %v9256, %v8637
        %v9277 = vsel %vm3956, %v9257, %v8639
        %v9278 = vsel %vm3956, %v9258, %v8641
        %v9279 = vsel %vm3956, %v9259, %v8643
        %v9280 = vsel %vm3956, %v9260, %v8645
        %v9281 = vsel %vm3956, %v9261, %v8647
        %v9282 = vsel %vm3956, %v9262, %v8649
        %v9283 = vsel %vm3956, %v9263, %v8651
        %v9284 = vsel %vm3956, %v9264, %v8653
        %v9285 = vsel %vm3956, %v9265, %v8655
        %v9286 = vsel %vm3956, %v9266, %v8657
        %v9287 = vsel %vm3956, %v9267, %v8659
        %v9288 = vsel %vm3956, %v9268, %v8661
        %v9289 = vsel %vm3956, %v9269, %v8663
        %v9290 = vsel %vm3956, %v9270, %v8665
        %v9291 = vsel %vm3956, %v9271, %v8667
        %v9292 = vsel %vm3956, %v9272, %v8669
        %v9293 = vsel %vm3956, %v9273, %v8671
        %v9294 = vsel %vm3956, %v9274, %v8673
        %vm9295 = vcmask 588800
        %v9296 = vsel %vm9295, %v9275, %v8698
        %v9297 = vsel %vm9295, %v9276, %v8700
        %v9298 = vsel %vm9295, %v9277, %v8702
        %v9299 = vsel %vm9295, %v9278, %v8704
        %v9300 = vsel %vm9295, %v9279, %v8706
        %v9301 = vsel %vm9295, %v9280, %v8708
        %v9302 = vsel %vm9295, %v9281, %v8710
        %v9303 = vsel %vm9295, %v9282, %v8712
        %v9304 = vsel %vm9295, %v9283, %v8714
        %v9305 = vsel %vm9295, %v9284, %v8716
        %v9306 = vsel %vm9295, %v9285, %v8718
        %v9307 = vsel %vm9295, %v9286, %v8720
        %v9308 = vsel %vm9295, %v9287, %v8722
        %v9309 = vsel %vm9295, %v9288, %v8724
        %v9310 = vsel %vm9295, %v9289, %v8726
        %v9311 = vsel %vm9295, %v9290, %v8728
        %v9312 = vsel %vm9295, %v9291, %v8730
        %v9313 = vsel %vm9295, %v9292, %v8732
        %v9314 = vsel %vm9295, %v9293, %v8734
        %v9315 = vsel %vm9295, %v9294, %v8736
        %vm9316 = vcmask 654336
        %v9317 = vsel %vm9316, %v9296, %v8761
        %v9318 = vsel %vm9316, %v9297, %v8763
        %v9319 = vsel %vm9316, %v9298, %v8765
        %v9320 = vsel %vm9316, %v9299, %v8767
        %v9321 = vsel %vm9316, %v9300, %v8769
        %v9322 = vsel %vm9316, %v9301, %v8771
        %v9323 = vsel %vm9316, %v9302, %v8773
        %v9324 = vsel %vm9316, %v9303, %v8775
        %v9325 = vsel %vm9316, %v9304, %v8777
        %v9326 = vsel %vm9316, %v9305, %v8779
        %v9327 = vsel %vm9316, %v9306, %v8781
        %v9328 = vsel %vm9316, %v9307, %v8783
        %v9329 = vsel %vm9316, %v9308, %v8785
        %v9330 = vsel %vm9316, %v9309, %v8787
        %v9331 = vsel %vm9316, %v9310, %v8789
        %v9332 = vsel %vm9316, %v9311, %v8791
        %v9333 = vsel %vm9316, %v9312, %v8793
        %v9334 = vsel %vm9316, %v9313, %v8795
        %v9335 = vsel %vm9316, %v9314, %v8797
        %v9336 = vsel %vm9316, %v9315, %v8799
        %vm9337 = vcmask 719872
        %v9338 = vsel %vm9337, %v9317, %v8824
        %v9339 = vsel %vm9337, %v9318, %v8826
        %v9340 = vsel %vm9337, %v9319, %v8828
        %v9341 = vsel %vm9337, %v9320, %v8830
        %v9342 = vsel %vm9337, %v9321, %v8832
        %v9343 = vsel %vm9337, %v9322, %v8834
        %v9344 = vsel %vm9337, %v9323, %v8836
        %v9345 = vsel %vm9337, %v9324, %v8838
        %v9346 = vsel %vm9337, %v9325, %v8840
        %v9347 = vsel %vm9337, %v9326, %v8842
        %v9348 = vsel %vm9337, %v9327, %v8844
        %v9349 = vsel %vm9337, %v9328, %v8846
        %v9350 = vsel %vm9337, %v9329, %v8848
        %v9351 = vsel %vm9337, %v9330, %v8850
        %v9352 = vsel %vm9337, %v9331, %v8852
        %v9353 = vsel %vm9337, %v9332, %v8854
        %v9354 = vsel %vm9337, %v9333, %v8856
        %v9355 = vsel %vm9337, %v9334, %v8858
        %v9356 = vsel %vm9337, %v9335, %v8860
        %v9357 = vsel %vm9337, %v9336, %v8862
        %vm9358 = vcmask 785408
        %v9359 = vsel %vm9358, %v9338, %v8887
        %v9360 = vsel %vm9358, %v9339, %v8889
        %v9361 = vsel %vm9358, %v9340, %v8891
        %v9362 = vsel %vm9358, %v9341, %v8893
        %v9363 = vsel %vm9358, %v9342, %v8895
        %v9364 = vsel %vm9358, %v9343, %v8897
        %v9365 = vsel %vm9358, %v9344, %v8899
        %v9366 = vsel %vm9358, %v9345, %v8901
        %v9367 = vsel %vm9358, %v9346, %v8903
        %v9368 = vsel %vm9358, %v9347, %v8905
        %v9369 = vsel %vm9358, %v9348, %v8907
        %v9370 = vsel %vm9358, %v9349, %v8909
        %v9371 = vsel %vm9358, %v9350, %v8911
        %v9372 = vsel %vm9358, %v9351, %v8913
        %v9373 = vsel %vm9358, %v9352, %v8915
        %v9374 = vsel %vm9358, %v9353, %v8917
        %v9375 = vsel %vm9358, %v9354, %v8919
        %v9376 = vsel %vm9358, %v9355, %v8921
        %v9377 = vsel %vm9358, %v9356, %v8923
        %v9378 = vsel %vm9358, %v9357, %v8925
        %vm9379 = vcmask 850944
        %v9380 = vsel %vm9379, %v9359, %v8950
        %v9381 = vsel %vm9379, %v9360, %v8952
        %v9382 = vsel %vm9379, %v9361, %v8954
        %v9383 = vsel %vm9379, %v9362, %v8956
        %v9384 = vsel %vm9379, %v9363, %v8958
        %v9385 = vsel %vm9379, %v9364, %v8960
        %v9386 = vsel %vm9379, %v9365, %v8962
        %v9387 = vsel %vm9379, %v9366, %v8964
        %v9388 = vsel %vm9379, %v9367, %v8966
        %v9389 = vsel %vm9379, %v9368, %v8968
        %v9390 = vsel %vm9379, %v9369, %v8970
        %v9391 = vsel %vm9379, %v9370, %v8972
        %v9392 = vsel %vm9379, %v9371, %v8974
        %v9393 = vsel %vm9379, %v9372, %v8976
        %v9394 = vsel %vm9379, %v9373, %v8978
        %v9395 = vsel %vm9379, %v9374, %v8980
        %v9396 = vsel %vm9379, %v9375, %v8982
        %v9397 = vsel %vm9379, %v9376, %v8984
        %v9398 = vsel %vm9379, %v9377, %v8986
        %v9399 = vsel %vm9379, %v9378, %v8988
        %vm9400 = vcmask 916480
        %v9401 = vsel %vm9400, %v9380, %v9013
        %v9402 = vsel %vm9400, %v9381, %v9015
        %v9403 = vsel %vm9400, %v9382, %v9017
        %v9404 = vsel %vm9400, %v9383, %v9019
        %v9405 = vsel %vm9400, %v9384, %v9021
        %v9406 = vsel %vm9400, %v9385, %v9023
        %v9407 = vsel %vm9400, %v9386, %v9025
        %v9408 = vsel %vm9400, %v9387, %v9027
        %v9409 = vsel %vm9400, %v9388, %v9029
        %v9410 = vsel %vm9400, %v9389, %v9031
        %v9411 = vsel %vm9400, %v9390, %v9033
        %v9412 = vsel %vm9400, %v9391, %v9035
        %v9413 = vsel %vm9400, %v9392, %v9037
        %v9414 = vsel %vm9400, %v9393, %v9039
        %v9415 = vsel %vm9400, %v9394, %v9041
        %v9416 = vsel %vm9400, %v9395, %v9043
        %v9417 = vsel %vm9400, %v9396, %v9045
        %v9418 = vsel %vm9400, %v9397, %v9047
        %v9419 = vsel %vm9400, %v9398, %v9049
        %v9420 = vsel %vm9400, %v9399, %v9051
        %vm9421 = vcmask 982016
        %v9422 = vsel %vm9421, %v9401, %v9076
        %v9423 = vsel %vm9421, %v9402, %v9078
        %v9424 = vsel %vm9421, %v9403, %v9080
        %v9425 = vsel %vm9421, %v9404, %v9082
        %v9426 = vsel %vm9421, %v9405, %v9084
        %v9427 = vsel %vm9421, %v9406, %v9086
        %v9428 = vsel %vm9421, %v9407, %v9088
        %v9429 = vsel %vm9421, %v9408, %v9090
        %v9430 = vsel %vm9421, %v9409, %v9092
        %v9431 = vsel %vm9421, %v9410, %v9094
        %v9432 = vsel %vm9421, %v9411, %v9096
        %v9433 = vsel %vm9421, %v9412, %v9098
        %v9434 = vsel %vm9421, %v9413, %v9100
        %v9435 = vsel %vm9421, %v9414, %v9102
        %v9436 = vsel %vm9421, %v9415, %v9104
        %v9437 = vsel %vm9421, %v9416, %v9106
        %v9438 = vsel %vm9421, %v9417, %v9108
        %v9439 = vsel %vm9421, %v9418, %v9110
        %v9440 = vsel %vm9421, %v9419, %v9112
        %v9441 = vsel %vm9421, %v9420, %v9114
        %9445 = vrot.lane.b32.xlu0 %v7991, 8
        %v9446 = vpop.permute.xlu0 %9445
        %9447 = vrot.lane.b32.xlu0 %v7992, 8
        %v9448 = vpop.permute.xlu0 %9447
        %9449 = vrot.lane.b32.xlu0 %v7993, 8
        %v9450 = vpop.permute.xlu0 %9449
        %9451 = vrot.lane.b32.xlu0 %v7994, 8
        %v9452 = vpop.permute.xlu0 %9451
        %9453 = vrot.lane.b32.xlu0 %v7995, 8
        %v9454 = vpop.permute.xlu0 %9453
        %9455 = vrot.lane.b32.xlu0 %v7996, 8
        %v9456 = vpop.permute.xlu0 %9455
        %9457 = vrot.lane.b32.xlu0 %v7997, 8
        %v9458 = vpop.permute.xlu0 %9457
        %9459 = vrot.lane.b32.xlu0 %v7998, 8
        %v9460 = vpop.permute.xlu0 %9459
        %9461 = vrot.lane.b32.xlu0 %v7999, 8
        %v9462 = vpop.permute.xlu0 %9461
        %9463 = vrot.lane.b32.xlu0 %v8000, 8
        %v9464 = vpop.permute.xlu0 %9463
        %9465 = vrot.lane.b32.xlu0 %v8001, 8
        %v9466 = vpop.permute.xlu0 %9465
        %9467 = vrot.lane.b32.xlu0 %v8002, 8
        %v9468 = vpop.permute.xlu0 %9467
        %9469 = vrot.lane.b32.xlu0 %v8003, 8
        %v9470 = vpop.permute.xlu0 %9469
        %9471 = vrot.lane.b32.xlu0 %v8051, 8
        %v9472 = vpop.permute.xlu0 %9471
        %9473 = vrot.lane.b32.xlu0 %v8052, 8
        %v9474 = vpop.permute.xlu0 %9473
        %9475 = vrot.lane.b32.xlu0 %v8066, 8
        %v9476 = vpop.permute.xlu0 %9475
        %9477 = vrot.lane.b32.xlu0 %v8067, 8
        %v9478 = vpop.permute.xlu0 %9477
        %9479 = vrot.lane.b32.xlu0 %v8081, 8
        %v9480 = vpop.permute.xlu0 %9479
        %9481 = vrot.lane.b32.xlu0 %v8082, 8
        %v9482 = vpop.permute.xlu0 %9481
        %9483 = vrot.lane.b32.xlu0 %v8083, 8
        %v9484 = vpop.permute.xlu0 %9483
        %9508 = vrot.lane.b32.xlu0 %v8011, 16
        %v9509 = vpop.permute.xlu0 %9508
        %9510 = vrot.lane.b32.xlu0 %v8012, 16
        %v9511 = vpop.permute.xlu0 %9510
        %9512 = vrot.lane.b32.xlu0 %v8013, 16
        %v9513 = vpop.permute.xlu0 %9512
        %9514 = vrot.lane.b32.xlu0 %v8014, 16
        %v9515 = vpop.permute.xlu0 %9514
        %9516 = vrot.lane.b32.xlu0 %v8015, 16
        %v9517 = vpop.permute.xlu0 %9516
        %9518 = vrot.lane.b32.xlu0 %v8016, 16
        %v9519 = vpop.permute.xlu0 %9518
        %9520 = vrot.lane.b32.xlu0 %v8017, 16
        %v9521 = vpop.permute.xlu0 %9520
        %9522 = vrot.lane.b32.xlu0 %v8018, 16
        %v9523 = vpop.permute.xlu0 %9522
        %9524 = vrot.lane.b32.xlu0 %v8019, 16
        %v9525 = vpop.permute.xlu0 %9524
        %9526 = vrot.lane.b32.xlu0 %v8020, 16
        %v9527 = vpop.permute.xlu0 %9526
        %9528 = vrot.lane.b32.xlu0 %v8021, 16
        %v9529 = vpop.permute.xlu0 %9528
        %9530 = vrot.lane.b32.xlu0 %v8022, 16
        %v9531 = vpop.permute.xlu0 %9530
        %9532 = vrot.lane.b32.xlu0 %v8023, 16
        %v9533 = vpop.permute.xlu0 %9532
        %9534 = vrot.lane.b32.xlu0 %v8054, 16
        %v9535 = vpop.permute.xlu0 %9534
        %9536 = vrot.lane.b32.xlu0 %v8055, 16
        %v9537 = vpop.permute.xlu0 %9536
        %9538 = vrot.lane.b32.xlu0 %v8069, 16
        %v9539 = vpop.permute.xlu0 %9538
        %9540 = vrot.lane.b32.xlu0 %v8070, 16
        %v9541 = vpop.permute.xlu0 %9540
        %9542 = vrot.lane.b32.xlu0 %v8084, 16
        %v9543 = vpop.permute.xlu0 %9542
        %9544 = vrot.lane.b32.xlu0 %v8085, 16
        %v9545 = vpop.permute.xlu0 %9544
        %9546 = vrot.lane.b32.xlu0 %v8086, 16
        %v9547 = vpop.permute.xlu0 %9546
        %9571 = vrot.lane.b32.xlu0 %v8031, 24
        %v9572 = vpop.permute.xlu0 %9571
        %9573 = vrot.lane.b32.xlu0 %v8032, 24
        %v9574 = vpop.permute.xlu0 %9573
        %9575 = vrot.lane.b32.xlu0 %v8033, 24
        %v9576 = vpop.permute.xlu0 %9575
        %9577 = vrot.lane.b32.xlu0 %v8034, 24
        %v9578 = vpop.permute.xlu0 %9577
        %9579 = vrot.lane.b32.xlu0 %v8035, 24
        %v9580 = vpop.permute.xlu0 %9579
        %9581 = vrot.lane.b32.xlu0 %v8036, 24
        %v9582 = vpop.permute.xlu0 %9581
        %9583 = vrot.lane.b32.xlu0 %v8037, 24
        %v9584 = vpop.permute.xlu0 %9583
        %9585 = vrot.lane.b32.xlu0 %v8038, 24
        %v9586 = vpop.permute.xlu0 %9585
        %9587 = vrot.lane.b32.xlu0 %v8039, 24
        %v9588 = vpop.permute.xlu0 %9587
        %9589 = vrot.lane.b32.xlu0 %v8040, 24
        %v9590 = vpop.permute.xlu0 %9589
        %9591 = vrot.lane.b32.xlu0 %v8041, 24
        %v9592 = vpop.permute.xlu0 %9591
        %9593 = vrot.lane.b32.xlu0 %v8042, 24
        %v9594 = vpop.permute.xlu0 %9593
        %9595 = vrot.lane.b32.xlu0 %v8043, 24
        %v9596 = vpop.permute.xlu0 %9595
        %9597 = vrot.lane.b32.xlu0 %v8057, 24
        %v9598 = vpop.permute.xlu0 %9597
        %9599 = vrot.lane.b32.xlu0 %v8058, 24
        %v9600 = vpop.permute.xlu0 %9599
        %9601 = vrot.lane.b32.xlu0 %v8072, 24
        %v9602 = vpop.permute.xlu0 %9601
        %9603 = vrot.lane.b32.xlu0 %v8073, 24
        %v9604 = vpop.permute.xlu0 %9603
        %9605 = vrot.lane.b32.xlu0 %v8087, 24
        %v9606 = vpop.permute.xlu0 %9605
        %9607 = vrot.lane.b32.xlu0 %v8088, 24
        %v9608 = vpop.permute.xlu0 %9607
        %9609 = vrot.lane.b32.xlu0 %v8089, 24
        %v9610 = vpop.permute.xlu0 %9609
        %9634 = vrot.lane.b32.xlu0 %v7953, 32
        %v9635 = vpop.permute.xlu0 %9634
        %9636 = vrot.lane.b32.xlu0 %v7954, 32
        %v9637 = vpop.permute.xlu0 %9636
        %9638 = vrot.lane.b32.xlu0 %v7955, 32
        %v9639 = vpop.permute.xlu0 %9638
        %9640 = vrot.lane.b32.xlu0 %v7956, 32
        %v9641 = vpop.permute.xlu0 %9640
        %9642 = vrot.lane.b32.xlu0 %v7957, 32
        %v9643 = vpop.permute.xlu0 %9642
        %9644 = vrot.lane.b32.xlu0 %v7958, 32
        %v9645 = vpop.permute.xlu0 %9644
        %9646 = vrot.lane.b32.xlu0 %v7959, 32
        %v9647 = vpop.permute.xlu0 %9646
        %9648 = vrot.lane.b32.xlu0 %v7960, 32
        %v9649 = vpop.permute.xlu0 %9648
        %9650 = vrot.lane.b32.xlu0 %v7961, 32
        %v9651 = vpop.permute.xlu0 %9650
        %9652 = vrot.lane.b32.xlu0 %v7962, 32
        %v9653 = vpop.permute.xlu0 %9652
        %9654 = vrot.lane.b32.xlu0 %v7963, 32
        %v9655 = vpop.permute.xlu0 %9654
        %9656 = vrot.lane.b32.xlu0 %v8045, 32
        %v9657 = vpop.permute.xlu0 %9656
        %9658 = vrot.lane.b32.xlu0 %v8046, 32
        %v9659 = vpop.permute.xlu0 %9658
        %9660 = vrot.lane.b32.xlu0 %v8060, 32
        %v9661 = vpop.permute.xlu0 %9660
        %9662 = vrot.lane.b32.xlu0 %v8061, 32
        %v9663 = vpop.permute.xlu0 %9662
        %9664 = vrot.lane.b32.xlu0 %v8075, 32
        %v9665 = vpop.permute.xlu0 %9664
        %9666 = vrot.lane.b32.xlu0 %v8076, 32
        %v9667 = vpop.permute.xlu0 %9666
        %9668 = vrot.lane.b32.xlu0 %v8090, 32
        %v9669 = vpop.permute.xlu0 %9668
        %9670 = vrot.lane.b32.xlu0 %v8091, 32
        %v9671 = vpop.permute.xlu0 %9670
        %9672 = vrot.lane.b32.xlu0 %v8092, 32
        %v9673 = vpop.permute.xlu0 %9672
        %9699 = vrot.lane.b32.xlu0 %v7973, 40
        %v9700 = vpop.permute.xlu0 %9699
        %9701 = vrot.lane.b32.xlu0 %v7974, 40
        %v9702 = vpop.permute.xlu0 %9701
        %9703 = vrot.lane.b32.xlu0 %v7975, 40
        %v9704 = vpop.permute.xlu0 %9703
        %9705 = vrot.lane.b32.xlu0 %v7976, 40
        %v9706 = vpop.permute.xlu0 %9705
        %9707 = vrot.lane.b32.xlu0 %v7977, 40
        %v9708 = vpop.permute.xlu0 %9707
        %9709 = vrot.lane.b32.xlu0 %v7978, 40
        %v9710 = vpop.permute.xlu0 %9709
        %9711 = vrot.lane.b32.xlu0 %v7979, 40
        %v9712 = vpop.permute.xlu0 %9711
        %9713 = vrot.lane.b32.xlu0 %v7980, 40
        %v9714 = vpop.permute.xlu0 %9713
        %9715 = vrot.lane.b32.xlu0 %v7981, 40
        %v9716 = vpop.permute.xlu0 %9715
        %9717 = vrot.lane.b32.xlu0 %v7982, 40
        %v9718 = vpop.permute.xlu0 %9717
        %9719 = vrot.lane.b32.xlu0 %v7983, 40
        %v9720 = vpop.permute.xlu0 %9719
        %9721 = vrot.lane.b32.xlu0 %v8048, 40
        %v9722 = vpop.permute.xlu0 %9721
        %9723 = vrot.lane.b32.xlu0 %v8049, 40
        %v9724 = vpop.permute.xlu0 %9723
        %9725 = vrot.lane.b32.xlu0 %v8063, 40
        %v9726 = vpop.permute.xlu0 %9725
        %9727 = vrot.lane.b32.xlu0 %v8064, 40
        %v9728 = vpop.permute.xlu0 %9727
        %9729 = vrot.lane.b32.xlu0 %v8078, 40
        %v9730 = vpop.permute.xlu0 %9729
        %9731 = vrot.lane.b32.xlu0 %v8079, 40
        %v9732 = vpop.permute.xlu0 %9731
        %9733 = vrot.lane.b32.xlu0 %v8093, 40
        %v9734 = vpop.permute.xlu0 %9733
        %9735 = vrot.lane.b32.xlu0 %v8094, 40
        %v9736 = vpop.permute.xlu0 %9735
        %9737 = vrot.lane.b32.xlu0 %v8095, 40
        %v9738 = vpop.permute.xlu0 %9737
        %9762 = vrot.lane.b32.xlu0 %v7993, 48
        %v9763 = vpop.permute.xlu0 %9762
        %9764 = vrot.lane.b32.xlu0 %v7994, 48
        %v9765 = vpop.permute.xlu0 %9764
        %9766 = vrot.lane.b32.xlu0 %v7995, 48
        %v9767 = vpop.permute.xlu0 %9766
        %9768 = vrot.lane.b32.xlu0 %v7996, 48
        %v9769 = vpop.permute.xlu0 %9768
        %9770 = vrot.lane.b32.xlu0 %v7997, 48
        %v9771 = vpop.permute.xlu0 %9770
        %9772 = vrot.lane.b32.xlu0 %v7998, 48
        %v9773 = vpop.permute.xlu0 %9772
        %9774 = vrot.lane.b32.xlu0 %v7999, 48
        %v9775 = vpop.permute.xlu0 %9774
        %9776 = vrot.lane.b32.xlu0 %v8000, 48
        %v9777 = vpop.permute.xlu0 %9776
        %9778 = vrot.lane.b32.xlu0 %v8001, 48
        %v9779 = vpop.permute.xlu0 %9778
        %9780 = vrot.lane.b32.xlu0 %v8002, 48
        %v9781 = vpop.permute.xlu0 %9780
        %9782 = vrot.lane.b32.xlu0 %v8003, 48
        %v9783 = vpop.permute.xlu0 %9782
        %9784 = vrot.lane.b32.xlu0 %v8051, 48
        %v9785 = vpop.permute.xlu0 %9784
        %9786 = vrot.lane.b32.xlu0 %v8052, 48
        %v9787 = vpop.permute.xlu0 %9786
        %9788 = vrot.lane.b32.xlu0 %v8066, 48
        %v9789 = vpop.permute.xlu0 %9788
        %9790 = vrot.lane.b32.xlu0 %v8067, 48
        %v9791 = vpop.permute.xlu0 %9790
        %9792 = vrot.lane.b32.xlu0 %v8081, 48
        %v9793 = vpop.permute.xlu0 %9792
        %9794 = vrot.lane.b32.xlu0 %v8082, 48
        %v9795 = vpop.permute.xlu0 %9794
        %9796 = vrot.lane.b32.xlu0 %v8096, 48
        %v9797 = vpop.permute.xlu0 %9796
        %9798 = vrot.lane.b32.xlu0 %v8097, 48
        %v9799 = vpop.permute.xlu0 %9798
        %9800 = vrot.lane.b32.xlu0 %v8098, 48
        %v9801 = vpop.permute.xlu0 %9800
        %9825 = vrot.lane.b32.xlu0 %v8013, 56
        %v9826 = vpop.permute.xlu0 %9825
        %9827 = vrot.lane.b32.xlu0 %v8014, 56
        %v9828 = vpop.permute.xlu0 %9827
        %9829 = vrot.lane.b32.xlu0 %v8015, 56
        %v9830 = vpop.permute.xlu0 %9829
        %9831 = vrot.lane.b32.xlu0 %v8016, 56
        %v9832 = vpop.permute.xlu0 %9831
        %9833 = vrot.lane.b32.xlu0 %v8017, 56
        %v9834 = vpop.permute.xlu0 %9833
        %9835 = vrot.lane.b32.xlu0 %v8018, 56
        %v9836 = vpop.permute.xlu0 %9835
        %9837 = vrot.lane.b32.xlu0 %v8019, 56
        %v9838 = vpop.permute.xlu0 %9837
        %9839 = vrot.lane.b32.xlu0 %v8020, 56
        %v9840 = vpop.permute.xlu0 %9839
        %9841 = vrot.lane.b32.xlu0 %v8021, 56
        %v9842 = vpop.permute.xlu0 %9841
        %9843 = vrot.lane.b32.xlu0 %v8022, 56
        %v9844 = vpop.permute.xlu0 %9843
        %9845 = vrot.lane.b32.xlu0 %v8023, 56
        %v9846 = vpop.permute.xlu0 %9845
        %9847 = vrot.lane.b32.xlu0 %v8054, 56
        %v9848 = vpop.permute.xlu0 %9847
        %9849 = vrot.lane.b32.xlu0 %v8055, 56
        %v9850 = vpop.permute.xlu0 %9849
        %9851 = vrot.lane.b32.xlu0 %v8069, 56
        %v9852 = vpop.permute.xlu0 %9851
        %9853 = vrot.lane.b32.xlu0 %v8070, 56
        %v9854 = vpop.permute.xlu0 %9853
        %9855 = vrot.lane.b32.xlu0 %v8084, 56
        %v9856 = vpop.permute.xlu0 %9855
        %9857 = vrot.lane.b32.xlu0 %v8085, 56
        %v9858 = vpop.permute.xlu0 %9857
        %9859 = vrot.lane.b32.xlu0 %v8099, 56
        %v9860 = vpop.permute.xlu0 %9859
        %9861 = vrot.lane.b32.xlu0 %v8100, 56
        %v9862 = vpop.permute.xlu0 %9861
        %9863 = vrot.lane.b32.xlu0 %v8101, 56
        %v9864 = vpop.permute.xlu0 %9863
        %9888 = vrot.lane.b32.xlu0 %v8033, 64
        %v9889 = vpop.permute.xlu0 %9888
        %9890 = vrot.lane.b32.xlu0 %v8034, 64
        %v9891 = vpop.permute.xlu0 %9890
        %9892 = vrot.lane.b32.xlu0 %v8035, 64
        %v9893 = vpop.permute.xlu0 %9892
        %9894 = vrot.lane.b32.xlu0 %v8036, 64
        %v9895 = vpop.permute.xlu0 %9894
        %9896 = vrot.lane.b32.xlu0 %v8037, 64
        %v9897 = vpop.permute.xlu0 %9896
        %9898 = vrot.lane.b32.xlu0 %v8038, 64
        %v9899 = vpop.permute.xlu0 %9898
        %9900 = vrot.lane.b32.xlu0 %v8039, 64
        %v9901 = vpop.permute.xlu0 %9900
        %9902 = vrot.lane.b32.xlu0 %v8040, 64
        %v9903 = vpop.permute.xlu0 %9902
        %9904 = vrot.lane.b32.xlu0 %v8041, 64
        %v9905 = vpop.permute.xlu0 %9904
        %9906 = vrot.lane.b32.xlu0 %v8042, 64
        %v9907 = vpop.permute.xlu0 %9906
        %9908 = vrot.lane.b32.xlu0 %v8043, 64
        %v9909 = vpop.permute.xlu0 %9908
        %9910 = vrot.lane.b32.xlu0 %v8057, 64
        %v9911 = vpop.permute.xlu0 %9910
        %9912 = vrot.lane.b32.xlu0 %v8058, 64
        %v9913 = vpop.permute.xlu0 %9912
        %9914 = vrot.lane.b32.xlu0 %v8072, 64
        %v9915 = vpop.permute.xlu0 %9914
        %9916 = vrot.lane.b32.xlu0 %v8073, 64
        %v9917 = vpop.permute.xlu0 %9916
        %9918 = vrot.lane.b32.xlu0 %v8087, 64
        %v9919 = vpop.permute.xlu0 %9918
        %9920 = vrot.lane.b32.xlu0 %v8088, 64
        %v9921 = vpop.permute.xlu0 %9920
        %9922 = vrot.lane.b32.xlu0 %v8102, 64
        %v9923 = vpop.permute.xlu0 %9922
        %9924 = vrot.lane.b32.xlu0 %v8103, 64
        %v9925 = vpop.permute.xlu0 %9924
        %9926 = vrot.lane.b32.xlu0 %v8104, 64
        %v9927 = vpop.permute.xlu0 %9926
        %v9948 = vsel %vm384, %v7971, %v9446
        %v9949 = vsel %vm384, %v7972, %v9448
        %v9950 = vsel %vm384, %v7973, %v9450
        %v9951 = vsel %vm384, %v7974, %v9452
        %v9952 = vsel %vm384, %v7975, %v9454
        %v9953 = vsel %vm384, %v7976, %v9456
        %v9954 = vsel %vm384, %v7977, %v9458
        %v9955 = vsel %vm384, %v7978, %v9460
        %v9956 = vsel %vm384, %v7979, %v9462
        %v9957 = vsel %vm384, %v7980, %v9464
        %v9958 = vsel %vm384, %v7981, %v9466
        %v9959 = vsel %vm384, %v7982, %v9468
        %v9960 = vsel %vm384, %v7983, %v9470
        %v9961 = vsel %vm384, %v8048, %v9472
        %v9962 = vsel %vm384, %v8049, %v9474
        %v9963 = vsel %vm384, %v8063, %v9476
        %v9964 = vsel %vm384, %v8064, %v9478
        %v9965 = vsel %vm384, %v8078, %v9480
        %v9966 = vsel %vm384, %v8079, %v9482
        %v9967 = vsel %vm384, %v8080, %v9484
        %v9968 = vsel %vm413, %v9948, %v9509
        %v9969 = vsel %vm413, %v9949, %v9511
        %v9970 = vsel %vm413, %v9950, %v9513
        %v9971 = vsel %vm413, %v9951, %v9515
        %v9972 = vsel %vm413, %v9952, %v9517
        %v9973 = vsel %vm413, %v9953, %v9519
        %v9974 = vsel %vm413, %v9954, %v9521
        %v9975 = vsel %vm413, %v9955, %v9523
        %v9976 = vsel %vm413, %v9956, %v9525
        %v9977 = vsel %vm413, %v9957, %v9527
        %v9978 = vsel %vm413, %v9958, %v9529
        %v9979 = vsel %vm413, %v9959, %v9531
        %v9980 = vsel %vm413, %v9960, %v9533
        %v9981 = vsel %vm413, %v9961, %v9535
        %v9982 = vsel %vm413, %v9962, %v9537
        %v9983 = vsel %vm413, %v9963, %v9539
        %v9984 = vsel %vm413, %v9964, %v9541
        %v9985 = vsel %vm413, %v9965, %v9543
        %v9986 = vsel %vm413, %v9966, %v9545
        %v9987 = vsel %vm413, %v9967, %v9547
        %v9988 = vsel %vm2447, %v9968, %v9572
        %v9989 = vsel %vm2447, %v9969, %v9574
        %v9990 = vsel %vm2447, %v9970, %v9576
        %v9991 = vsel %vm2447, %v9971, %v9578
        %v9992 = vsel %vm2447, %v9972, %v9580
        %v9993 = vsel %vm2447, %v9973, %v9582
        %v9994 = vsel %vm2447, %v9974, %v9584
        %v9995 = vsel %vm2447, %v9975, %v9586
        %v9996 = vsel %vm2447, %v9976, %v9588
        %v9997 = vsel %vm2447, %v9977, %v9590
        %v9998 = vsel %vm2447, %v9978, %v9592
        %v9999 = vsel %vm2447, %v9979, %v9594
        %v10000 = vsel %vm2447, %v9980, %v9596
        %v10001 = vsel %vm2447, %v9981, %v9598
        %v10002 = vsel %vm2447, %v9982, %v9600
        %v10003 = vsel %vm2447, %v9983, %v9602
        %v10004 = vsel %vm2447, %v9984, %v9604
        %v10005 = vsel %vm2447, %v9985, %v9606
        %v10006 = vsel %vm2447, %v9986, %v9608
        %v10007 = vsel %vm2447, %v9987, %v9610
        %v10008 = vsel %vm2513, %v9988, %v9635
        %v10009 = vsel %vm2513, %v9989, %v9637
        %v10010 = vsel %vm2513, %v9990, %v9639
        %v10011 = vsel %vm2513, %v9991, %v9641
        %v10012 = vsel %vm2513, %v9992, %v9643
        %v10013 = vsel %vm2513, %v9993, %v9645
        %v10014 = vsel %vm2513, %v9994, %v9647
        %v10015 = vsel %vm2513, %v9995, %v9649
        %v10016 = vsel %vm2513, %v9996, %v9651
        %v10017 = vsel %vm2513, %v9997, %v9653
        %v10018 = vsel %vm2513, %v9998, %v9655
        %v10019 = vsel %vm2513, %v9999, %v9657
        %v10020 = vsel %vm2513, %v10000, %v9659
        %v10021 = vsel %vm2513, %v10001, %v9661
        %v10022 = vsel %vm2513, %v10002, %v9663
        %v10023 = vsel %vm2513, %v10003, %v9665
        %v10024 = vsel %vm2513, %v10004, %v9667
        %v10025 = vsel %vm2513, %v10005, %v9669
        %v10026 = vsel %vm2513, %v10006, %v9671
        %v10027 = vsel %vm2513, %v10007, %v9673
        %v10028 = vsel %vm2579, %v10008, %v9700
        %v10029 = vsel %vm2579, %v10009, %v9702
        %v10030 = vsel %vm2579, %v10010, %v9704
        %v10031 = vsel %vm2579, %v10011, %v9706
        %v10032 = vsel %vm2579, %v10012, %v9708
        %v10033 = vsel %vm2579, %v10013, %v9710
        %v10034 = vsel %vm2579, %v10014, %v9712
        %v10035 = vsel %vm2579, %v10015, %v9714
        %v10036 = vsel %vm2579, %v10016, %v9716
        %v10037 = vsel %vm2579, %v10017, %v9718
        %v10038 = vsel %vm2579, %v10018, %v9720
        %v10039 = vsel %vm2579, %v10019, %v9722
        %v10040 = vsel %vm2579, %v10020, %v9724
        %v10041 = vsel %vm2579, %v10021, %v9726
        %v10042 = vsel %vm2579, %v10022, %v9728
        %v10043 = vsel %vm2579, %v10023, %v9730
        %v10044 = vsel %vm2579, %v10024, %v9732
        %v10045 = vsel %vm2579, %v10025, %v9734
        %v10046 = vsel %vm2579, %v10026, %v9736
        %v10047 = vsel %vm2579, %v10027, %v9738
        %v10048 = vsel %vm2645, %v10028, %v9763
        %v10049 = vsel %vm2645, %v10029, %v9765
        %v10050 = vsel %vm2645, %v10030, %v9767
        %v10051 = vsel %vm2645, %v10031, %v9769
        %v10052 = vsel %vm2645, %v10032, %v9771
        %v10053 = vsel %vm2645, %v10033, %v9773
        %v10054 = vsel %vm2645, %v10034, %v9775
        %v10055 = vsel %vm2645, %v10035, %v9777
        %v10056 = vsel %vm2645, %v10036, %v9779
        %v10057 = vsel %vm2645, %v10037, %v9781
        %v10058 = vsel %vm2645, %v10038, %v9783
        %v10059 = vsel %vm2645, %v10039, %v9785
        %v10060 = vsel %vm2645, %v10040, %v9787
        %v10061 = vsel %vm2645, %v10041, %v9789
        %v10062 = vsel %vm2645, %v10042, %v9791
        %v10063 = vsel %vm2645, %v10043, %v9793
        %v10064 = vsel %vm2645, %v10044, %v9795
        %v10065 = vsel %vm2645, %v10045, %v9797
        %v10066 = vsel %vm2645, %v10046, %v9799
        %v10067 = vsel %vm2645, %v10047, %v9801
        %v10068 = vsel %vm2711, %v10048, %v9826
        %v10069 = vsel %vm2711, %v10049, %v9828
        %v10070 = vsel %vm2711, %v10050, %v9830
        %v10071 = vsel %vm2711, %v10051, %v9832
        %v10072 = vsel %vm2711, %v10052, %v9834
        %v10073 = vsel %vm2711, %v10053, %v9836
        %v10074 = vsel %vm2711, %v10054, %v9838
        %v10075 = vsel %vm2711, %v10055, %v9840
        %v10076 = vsel %vm2711, %v10056, %v9842
        %v10077 = vsel %vm2711, %v10057, %v9844
        %v10078 = vsel %vm2711, %v10058, %v9846
        %v10079 = vsel %vm2711, %v10059, %v9848
        %v10080 = vsel %vm2711, %v10060, %v9850
        %v10081 = vsel %vm2711, %v10061, %v9852
        %v10082 = vsel %vm2711, %v10062, %v9854
        %v10083 = vsel %vm2711, %v10063, %v9856
        %v10084 = vsel %vm2711, %v10064, %v9858
        %v10085 = vsel %vm2711, %v10065, %v9860
        %v10086 = vsel %vm2711, %v10066, %v9862
        %v10087 = vsel %vm2711, %v10067, %v9864
        %v10088 = vsel %vm3956, %v10068, %v9889
        %v10089 = vsel %vm3956, %v10069, %v9891
        %v10090 = vsel %vm3956, %v10070, %v9893
        %v10091 = vsel %vm3956, %v10071, %v9895
        %v10092 = vsel %vm3956, %v10072, %v9897
        %v10093 = vsel %vm3956, %v10073, %v9899
        %v10094 = vsel %vm3956, %v10074, %v9901
        %v10095 = vsel %vm3956, %v10075, %v9903
        %v10096 = vsel %vm3956, %v10076, %v9905
        %v10097 = vsel %vm3956, %v10077, %v9907
        %v10098 = vsel %vm3956, %v10078, %v9909
        %v10099 = vsel %vm3956, %v10079, %v9911
        %v10100 = vsel %vm3956, %v10080, %v9913
        %v10101 = vsel %vm3956, %v10081, %v9915
        %v10102 = vsel %vm3956, %v10082, %v9917
        %v10103 = vsel %vm3956, %v10083, %v9919
        %v10104 = vsel %vm3956, %v10084, %v9921
        %v10105 = vsel %vm3956, %v10085, %v9923
        %v10106 = vsel %vm3956, %v10086, %v9925
        %v10107 = vsel %vm3956, %v10087, %v9927
        %v10109 = vsel %vm9295, %v10088, 0
        %v10112 = vsel %vm9295, %v10089, 0
        %v10115 = vsel %vm9295, %v10090, 0
        %v10118 = vsel %vm9295, %v10091, 0
        %v10121 = vsel %vm9295, %v10092, 0
        %v10124 = vsel %vm9295, %v10093, 0
        %v10127 = vsel %vm9295, %v10094, 0
        %v10130 = vsel %vm9295, %v10095, 0
        %v10133 = vsel %vm9295, %v10096, 0
        %v10136 = vsel %vm9295, %v10097, 0
        %v10139 = vsel %vm9295, %v10098, 0
        %v10142 = vsel %vm9295, %v10099, 0
        %v10145 = vsel %vm9295, %v10100, 0
        %v10148 = vsel %vm9295, %v10101, 0
        %v10151 = vsel %vm9295, %v10102, 0
        %v10154 = vsel %vm9295, %v10103, 0
        %v10157 = vsel %vm9295, %v10104, 0
        %v10160 = vsel %vm9295, %v10105, 0
        %v10163 = vsel %vm9295, %v10106, 0
        %v10166 = vsel %vm9295, %v10107, 0
        %10168 = vmatpush.msra.mxu0 %v7935
        %10169 = vmatpush.msra.mxu0 %v7934
        %10170 = vmatpush.msra.mxu0 %v7933
        %10171 = vmatpush.msra.mxu0 %v7932
        %10172 = vmatpush.msra.mxu0 %v7931
        %10173 = vmatpush.msra.mxu0 %v7930
        %10174 = vmatpush.msra.mxu0 %v7929
        %10175 = vmatpush.msra.mxu0 %v7928
        %10176 = vmatpush.msra.mxu0 %v7927
        %10177 = vmatpush.msra.mxu0 %v7926
        %10178 = vmatpush.msra.mxu0 %v7925
        %10179 = vmatpush.msra.mxu0 %v7924
        %10180 = vmatpush.msra.mxu0 %v7923
        %10181 = vmatpush.msra.mxu0 %v7922
        %10182 = vmatpush.msra.mxu0 %v7921
        %10183 = vmatpush.msra.mxu0 %v7920
        %10184 = vmatmul.f32.gmra.mxu0 %v9422
        %v10185 = vpop.f32.mrf.mxu0
        %v10186 = vadd.f32 0.0, %v10185
        %10187 = vmatmul.f32.gmra.mxu0 %v9423
        %v10188 = vpop.f32.mrf.mxu0
        %v10189 = vadd.f32 0.0, %v10188
        %10190 = vmatmul.f32.gmra.mxu0 %v9424
        %v10191 = vpop.f32.mrf.mxu0
        %v10192 = vadd.f32 0.0, %v10191
        %10193 = vmatmul.f32.gmra.mxu0 %v9425
        %v10194 = vpop.f32.mrf.mxu0
        %v10195 = vadd.f32 0.0, %v10194
        %10196 = vmatmul.f32.gmra.mxu0 %v9426
        %v10197 = vpop.f32.mrf.mxu0
        %v10198 = vadd.f32 0.0, %v10197
        %10199 = vmatmul.f32.gmra.mxu0 %v9427
        %v10200 = vpop.f32.mrf.mxu0
        %v10201 = vadd.f32 0.0, %v10200
        %10202 = vmatmul.f32.gmra.mxu0 %v9428
        %v10203 = vpop.f32.mrf.mxu0
        %v10204 = vadd.f32 0.0, %v10203
        %10205 = vmatmul.f32.gmra.mxu0 %v9429
        %v10206 = vpop.f32.mrf.mxu0
        %v10207 = vadd.f32 0.0, %v10206
        %10208 = vmatmul.f32.gmra.mxu0 %v9430
        %v10209 = vpop.f32.mrf.mxu0
        %v10210 = vadd.f32 0.0, %v10209
        %10211 = vmatmul.f32.gmra.mxu0 %v9431
        %v10212 = vpop.f32.mrf.mxu0
        %v10213 = vadd.f32 0.0, %v10212
        %10214 = vmatmul.f32.gmra.mxu0 %v9432
        %v10215 = vpop.f32.mrf.mxu0
        %v10216 = vadd.f32 0.0, %v10215
        %10217 = vmatmul.f32.gmra.mxu0 %v9433
        %v10218 = vpop.f32.mrf.mxu0
        %v10219 = vadd.f32 0.0, %v10218
        %10220 = vmatmul.f32.gmra.mxu0 %v9434
        %v10221 = vpop.f32.mrf.mxu0
        %v10222 = vadd.f32 0.0, %v10221
        %10223 = vmatmul.f32.gmra.mxu0 %v9435
        %v10224 = vpop.f32.mrf.mxu0
        %v10225 = vadd.f32 0.0, %v10224
        %10226 = vmatmul.f32.gmra.mxu0 %v9436
        %v10227 = vpop.f32.mrf.mxu0
        %v10228 = vadd.f32 0.0, %v10227
        %10229 = vmatmul.f32.gmra.mxu0 %v9437
        %v10230 = vpop.f32.mrf.mxu0
        %v10231 = vadd.f32 0.0, %v10230
        %10232 = vmatmul.f32.gmra.mxu0 %v9438
        %v10233 = vpop.f32.mrf.mxu0
        %v10234 = vadd.f32 0.0, %v10233
        %10235 = vmatmul.f32.gmra.mxu0 %v9439
        %v10236 = vpop.f32.mrf.mxu0
        %v10237 = vadd.f32 0.0, %v10236
        %10238 = vmatmul.f32.gmra.mxu0 %v9440
        %v10239 = vpop.f32.mrf.mxu0
        %v10240 = vadd.f32 0.0, %v10239
        %10241 = vmatmul.f32.gmra.mxu0 %v9441
        %v10242 = vpop.f32.mrf.mxu0
        %v10243 = vadd.f32 0.0, %v10242
        %10244 = vdwg.mxu0
        %10245 = vmatpush.msra.mxu0 0.0
        %10246 = vmatpush.msra.mxu0 0.0
        %10247 = vmatpush.msra.mxu0 0.0
        %10248 = vmatpush.msra.mxu0 0.0
        %10249 = vmatpush.msra.mxu0 0.0
        %10250 = vmatpush.msra.mxu0 0.0
        %10251 = vmatpush.msra.mxu0 0.0
        %10252 = vmatpush.msra.mxu0 %v7944
        %10253 = vmatpush.msra.mxu0 %v7943
        %10254 = vmatpush.msra.mxu0 %v7942
        %10255 = vmatpush.msra.mxu0 %v7941
        %10256 = vmatpush.msra.mxu0 %v7940
        %10257 = vmatpush.msra.mxu0 %v7939
        %10258 = vmatpush.msra.mxu0 %v7938
        %10259 = vmatpush.msra.mxu0 %v7937
        %10260 = vmatpush.msra.mxu0 %v7936
        %10261 = vmatmul.f32.gmra.mxu0 %v10109
        %v10262 = vpop.f32.mrf.mxu0
        %v10263 = vadd.f32 %v10186, %v10262
        %10264 = vmatmul.f32.gmra.mxu0 %v10112
        %v10265 = vpop.f32.mrf.mxu0
        %v10266 = vadd.f32 %v10189, %v10265
        %10267 = vmatmul.f32.gmra.mxu0 %v10115
        %v10268 = vpop.f32.mrf.mxu0
        %v10269 = vadd.f32 %v10192, %v10268
        %10270 = vmatmul.f32.gmra.mxu0 %v10118
        %v10271 = vpop.f32.mrf.mxu0
        %v10272 = vadd.f32 %v10195, %v10271
        %10273 = vmatmul.f32.gmra.mxu0 %v10121
        %v10274 = vpop.f32.mrf.mxu0
        %v10275 = vadd.f32 %v10198, %v10274
        %10276 = vmatmul.f32.gmra.mxu0 %v10124
        %v10277 = vpop.f32.mrf.mxu0
        %v10278 = vadd.f32 %v10201, %v10277
        %10279 = vmatmul.f32.gmra.mxu0 %v10127
        %v10280 = vpop.f32.mrf.mxu0
        %v10281 = vadd.f32 %v10204, %v10280
        %10282 = vmatmul.f32.gmra.mxu0 %v10130
        %v10283 = vpop.f32.mrf.mxu0
        %v10284 = vadd.f32 %v10207, %v10283
        %10285 = vmatmul.f32.gmra.mxu0 %v10133
        %v10286 = vpop.f32.mrf.mxu0
        %v10287 = vadd.f32 %v10210, %v10286
        %10288 = vmatmul.f32.gmra.mxu0 %v10136
        %v10289 = vpop.f32.mrf.mxu0
        %v10290 = vadd.f32 %v10213, %v10289
        %10291 = vmatmul.f32.gmra.mxu0 %v10139
        %v10292 = vpop.f32.mrf.mxu0
        %v10293 = vadd.f32 %v10216, %v10292
        %10294 = vmatmul.f32.gmra.mxu0 %v10142
        %v10295 = vpop.f32.mrf.mxu0
        %v10296 = vadd.f32 %v10219, %v10295
        %10297 = vmatmul.f32.gmra.mxu0 %v10145
        %v10298 = vpop.f32.mrf.mxu0
        %v10299 = vadd.f32 %v10222, %v10298
        %10300 = vmatmul.f32.gmra.mxu0 %v10148
        %v10301 = vpop.f32.mrf.mxu0
        %v10302 = vadd.f32 %v10225, %v10301
        %10303 = vmatmul.f32.gmra.mxu0 %v10151
        %v10304 = vpop.f32.mrf.mxu0
        %v10305 = vadd.f32 %v10228, %v10304
        %10306 = vmatmul.f32.gmra.mxu0 %v10154
        %v10307 = vpop.f32.mrf.mxu0
        %v10308 = vadd.f32 %v10231, %v10307
        %10309 = vmatmul.f32.gmra.mxu0 %v10157
        %v10310 = vpop.f32.mrf.mxu0
        %v10311 = vadd.f32 %v10234, %v10310
        %10312 = vmatmul.f32.gmra.mxu0 %v10160
        %v10313 = vpop.f32.mrf.mxu0
        %v10314 = vadd.f32 %v10237, %v10313
        %10315 = vmatmul.f32.gmra.mxu0 %v10163
        %v10316 = vpop.f32.mrf.mxu0
        %v10317 = vadd.f32 %v10240, %v10316
        %10318 = vmatmul.f32.gmra.mxu0 %v10166
        %v10319 = vpop.f32.mrf.mxu0
        %v10320 = vadd.f32 %v10243, %v10319
        %10321 = vdwg.mxu0
        %10322 = vst.msk [vmem:[#allocation4] sm:$0xff] %vm413, %v10263
        %10323 = vst.msk [vmem:[#allocation4 + $0x8] sm:$0xff] %vm413, %v10266
        %10324 = vst.msk [vmem:[#allocation4 + $0x10] sm:$0xff] %vm413, %v10269
        %10325 = vst.msk [vmem:[#allocation4 + $0x18] sm:$0xff] %vm413, %v10272
        %10326 = vst.msk [vmem:[#allocation4 + $0x20] sm:$0xff] %vm413, %v10275
        %10327 = vst.msk [vmem:[#allocation4 + $0x28] sm:$0xff] %vm413, %v10278
        %10328 = vst.msk [vmem:[#allocation4 + $0x30] sm:$0xff] %vm413, %v10281
        %10329 = vst.msk [vmem:[#allocation4 + $0x38] sm:$0xff] %vm413, %v10284
        %10330 = vst.msk [vmem:[#allocation4 + $0x40] sm:$0xff] %vm413, %v10287
        %10331 = vst.msk [vmem:[#allocation4 + $0x48] sm:$0xff] %vm413, %v10290
        %10332 = vst.msk [vmem:[#allocation4 + $0x50] sm:$0xff] %vm413, %v10293
        %10333 = vst.msk [vmem:[#allocation4 + $0x58] sm:$0xff] %vm413, %v10296
        %10334 = vst.msk [vmem:[#allocation4 + $0x60] sm:$0xff] %vm413, %v10299
        %10335 = vst.msk [vmem:[#allocation4 + $0x68] sm:$0xff] %vm413, %v10302
        %10336 = vst.msk [vmem:[#allocation4 + $0x70] sm:$0xff] %vm413, %v10305
        %10337 = vst.msk [vmem:[#allocation4 + $0x78] sm:$0xff] %vm413, %v10308
        %10338 = vst.msk [vmem:[#allocation4 + $0x80] sm:$0xff] %vm413, %v10311
        %10339 = vst.msk [vmem:[#allocation4 + $0x88] sm:$0xff] %vm413, %v10314
        %10340 = vst.msk [vmem:[#allocation4 + $0x90] sm:$0xff] %vm413, %v10317
        %vm10341 = vcmask 125952
        %10342 = vst.msk [vmem:[#allocation4 + $0x98] sm:$0xf] %vm10341, %v10320
        %v10343 = vld [vmem:[#allocation4] ss:$2 sm:$0x1f]
        %s10344 = scalar_lea.vmem [#allocation4], 1
        %v10345 = vld [vmem:[%s10344] ss:$2 sm:$0x1f]
        %s10346 = scalar_lea.vmem [#allocation4], 16
        %v10347 = vld [vmem:[%s10346] ss:$2 sm:$0x1f]
        %s10348 = scalar_lea.vmem [#allocation4], 17
        %v10349 = vld [vmem:[%s10348] ss:$2 sm:$0x1f]
        %v10350 = vmax.f32 %v10343, %v10345
        %v10351 = vmax.f32 %v10347, %v10349
        %v10352 = vmax.f32 %v10350, %v10351
        %v10353 = vld [vmem:[%s4] sm:$0x1]
        %v10355 = vperm.slane %v10353, 0
        %v10357 = vadd.f32 %v10352, %v10355
        %v10358 = vmax.f32 %v10357, 0.0
        %vm10359 = vcmask 126976
        %10360 = vst.msk [vmem:[#allocation5 + $0x9] sm:$0x1f] %vm10359, %v10358
        %s10361 = scalar_lea.vmem [#allocation4], 32
        %v10362 = vld [vmem:[%s10361] ss:$2 sm:$0x1f]
        %s10363 = scalar_lea.vmem [#allocation4], 33
        %v10364 = vld [vmem:[%s10363] ss:$2 sm:$0x1f]
        %s10365 = scalar_lea.vmem [#allocation4], 48
        %v10366 = vld [vmem:[%s10365] ss:$2 sm:$0x1f]
        %s10367 = scalar_lea.vmem [#allocation4], 49
        %v10368 = vld [vmem:[%s10367] ss:$2 sm:$0x1f]
        %v10369 = vmax.f32 %v10362, %v10364
        %v10370 = vmax.f32 %v10366, %v10368
        %v10371 = vmax.f32 %v10369, %v10370
        %v10372 = vld [vmem:[%s4] sm:$0x1]
        %v10374 = vperm.slane %v10372, 0
        %v10376 = vadd.f32 %v10371, %v10374
        %v10377 = vmax.f32 %v10376, 0.0
        %10378 = vst.msk [vmem:[#allocation5 + $0x11] sm:$0x1f] %vm10359, %v10377
        %s10379 = scalar_lea.vmem [#allocation4], 64
        %v10380 = vld [vmem:[%s10379] ss:$2 sm:$0x1f]
        %s10381 = scalar_lea.vmem [#allocation4], 65
        %v10382 = vld [vmem:[%s10381] ss:$2 sm:$0x1f]
        %s10383 = scalar_lea.vmem [#allocation4], 80
        %v10384 = vld [vmem:[%s10383] ss:$2 sm:$0x1f]
        %s10385 = scalar_lea.vmem [#allocation4], 81
        %v10386 = vld [vmem:[%s10385] ss:$2 sm:$0x1f]
        %v10387 = vmax.f32 %v10380, %v10382
        %v10388 = vmax.f32 %v10384, %v10386
        %v10389 = vmax.f32 %v10387, %v10388
        %v10390 = vld [vmem:[%s4] sm:$0x1]
        %v10392 = vperm.slane %v10390, 0
        %v10394 = vadd.f32 %v10389, %v10392
        %v10395 = vmax.f32 %v10394, 0.0
        %10396 = vst.msk [vmem:[#allocation5 + $0x19] sm:$0x1f] %vm10359, %v10395
        %s10397 = scalar_lea.vmem [#allocation4], 96
        %v10398 = vld [vmem:[%s10397] ss:$2 sm:$0x1f]
        %s10399 = scalar_lea.vmem [#allocation4], 97
        %v10400 = vld [vmem:[%s10399] ss:$2 sm:$0x1f]
        %s10401 = scalar_lea.vmem [#allocation4], 112
        %v10402 = vld [vmem:[%s10401] ss:$2 sm:$0x1f]
        %s10403 = scalar_lea.vmem [#allocation4], 113
        %v10404 = vld [vmem:[%s10403] ss:$2 sm:$0x1f]
        %v10405 = vmax.f32 %v10398, %v10400
        %v10406 = vmax.f32 %v10402, %v10404
        %v10407 = vmax.f32 %v10405, %v10406
        %v10408 = vld [vmem:[%s4] sm:$0x1]
        %v10410 = vperm.slane %v10408, 0
        %v10412 = vadd.f32 %v10407, %v10410
        %v10413 = vmax.f32 %v10412, 0.0
        %10414 = vst.msk [vmem:[#allocation5 + $0x21] sm:$0x1f] %vm10359, %v10413
        %s10415 = scalar_lea.vmem [#allocation4], 128
        %v10416 = vld [vmem:[%s10415] ss:$2 sm:$0x1f]
        %s10417 = scalar_lea.vmem [#allocation4], 129
        %v10418 = vld [vmem:[%s10417] ss:$2 sm:$0x1f]
        %s10419 = scalar_lea.vmem [#allocation4], 144
        %v10420 = vld [vmem:[%s10419] ss:$2 sm:$0x1f]
        %s10421 = scalar_lea.vmem [#allocation4], 145
        %v10422 = vld [vmem:[%s10421] ss:$2 sm:$0x1f]
        %v10423 = vmax.f32 %v10416, %v10418
        %v10424 = vmax.f32 %v10420, %v10422
        %v10425 = vmax.f32 %v10423, %v10424
        %v10426 = vld [vmem:[%s4] sm:$0x1]
        %v10428 = vperm.slane %v10426, 0
        %v10430 = vadd.f32 %v10425, %v10428
        %v10431 = vmax.f32 %v10430, 0.0
        %10432 = vst.msk [vmem:[#allocation5 + $0x29] sm:$0x1f] %vm10359, %v10431
        %v10433 = vld [vmem:[%s5] sm:$0xff]
        %v10434 = vld [vmem:[%s5 + $0x8] sm:$0xff]
        %v10435 = vld [vmem:[%s5 + $0x10] sm:$0xff]
        %v10436 = vld [vmem:[%s5 + $0x18] sm:$0xff]
        %v10437 = vld [vmem:[%s5 + $0x20] sm:$0xff]
        %v10438 = vld [vmem:[%s5 + $0x28] sm:$0xff]
        %v10439 = vld [vmem:[%s5 + $0x30] sm:$0xff]
        %v10440 = vld [vmem:[%s5 + $0x38] sm:$0xff]
        %v10441 = vld [vmem:[%s5 + $0x40] sm:$0xff]
        %v10442 = vld [vmem:[%s5 + $0x48] sm:$0xff]
        %v10443 = vld [vmem:[%s5 + $0x50] sm:$0xff]
        %v10444 = vld [vmem:[%s5 + $0x58] sm:$0xff]
        %v10445 = vld [vmem:[%s5 + $0x60] sm:$0xff]
        %v10446 = vld [vmem:[%s5 + $0x68] sm:$0xff]
        %v10447 = vld [vmem:[%s5 + $0x70] sm:$0xff]
        %v10448 = vld [vmem:[%s5 + $0x78] sm:$0xff]
        %v10449 = vld [vmem:[%s5 + $0x80] sm:$0xff]
        %v10450 = vld [vmem:[%s5 + $0x88] sm:$0xff]
        %v10451 = vld [vmem:[#allocation5] sm:$0xff]
        %v10452 = vld [vmem:[#allocation5 + $0x8] sm:$0xff]
        %v10453 = vld [vmem:[#allocation5 + $0x10] sm:$0xff]
        %v10454 = vld [vmem:[#allocation5 + $0x18] sm:$0xff]
        %v10455 = vld [vmem:[#allocation5 + $0x20] sm:$0x3f]
        %v10456 = vld [vmem:[#allocation5 + $0x1] sm:$0xff]
        %v10457 = vld [vmem:[#allocation5 + $0x9] sm:$0xff]
        %v10458 = vld [vmem:[#allocation5 + $0x11] sm:$0xff]
        %v10459 = vld [vmem:[#allocation5 + $0x19] sm:$0xff]
        %v10460 = vld [vmem:[#allocation5 + $0x21] sm:$0x3f]
        %v10461 = vld [vmem:[#allocation5 + $0x2] sm:$0xff]
        %v10462 = vld [vmem:[#allocation5 + $0xa] sm:$0xff]
        %v10463 = vld [vmem:[#allocation5 + $0x12] sm:$0xff]
        %v10464 = vld [vmem:[#allocation5 + $0x1a] sm:$0xff]
        %v10465 = vld [vmem:[#allocation5 + $0x22] sm:$0x3f]
        %v10466 = vld [vmem:[#allocation5 + $0x20] sm:$0xff]
        %v10467 = vld [vmem:[#allocation5 + $0x28] sm:$0x3f]
        %v10468 = vld [vmem:[#allocation5 + $0x21] sm:$0xff]
        %v10469 = vld [vmem:[#allocation5 + $0x29] sm:$0x3f]
        %v10470 = vld [vmem:[#allocation5 + $0x22] sm:$0xff]
        %v10471 = vld [vmem:[#allocation5 + $0x2a] sm:$0x3f]
        %v10472 = vld [vmem:[#allocation5 + $0x28] sm:$0xff]
        %v10473 = vld [vmem:[#allocation5 + $0x30] sm:$0x3f]
        %v10474 = vld [vmem:[#allocation5 + $0x29] sm:$0xff]
        %v10475 = vld [vmem:[#allocation5 + $0x31] sm:$0x3f]
        %v10476 = vld [vmem:[#allocation5 + $0x2a] sm:$0xff]
        %v10477 = vld [vmem:[#allocation5 + $0x32] sm:$0x3f]
        %10483 = vrot.lane.b32.xlu0 %v10456, 16
        %v10484 = vpop.permute.xlu0 %10483
        %10485 = vrot.lane.b32.xlu0 %v10457, 16
        %v10486 = vpop.permute.xlu0 %10485
        %10487 = vrot.lane.b32.xlu0 %v10458, 16
        %v10488 = vpop.permute.xlu0 %10487
        %10489 = vrot.lane.b32.xlu0 %v10459, 16
        %v10490 = vpop.permute.xlu0 %10489
        %10491 = vrot.lane.b32.xlu0 %v10460, 16
        %v10492 = vpop.permute.xlu0 %10491
        %10503 = vrot.lane.b32.xlu0 %v10461, 32
        %v10504 = vpop.permute.xlu0 %10503
        %10505 = vrot.lane.b32.xlu0 %v10462, 32
        %v10506 = vpop.permute.xlu0 %10505
        %10507 = vrot.lane.b32.xlu0 %v10463, 32
        %v10508 = vpop.permute.xlu0 %10507
        %10509 = vrot.lane.b32.xlu0 %v10464, 32
        %v10510 = vpop.permute.xlu0 %10509
        %10511 = vrot.lane.b32.xlu0 %v10465, 32
        %v10512 = vpop.permute.xlu0 %10511
        %10523 = vrot.lane.b32.xlu0 %v10452, 48
        %v10524 = vpop.permute.xlu0 %10523
        %10525 = vrot.lane.b32.xlu0 %v10453, 48
        %v10526 = vpop.permute.xlu0 %10525
        %10527 = vrot.lane.b32.xlu0 %v10454, 48
        %v10528 = vpop.permute.xlu0 %10527
        %10529 = vrot.lane.b32.xlu0 %v10466, 48
        %v10530 = vpop.permute.xlu0 %10529
        %10531 = vrot.lane.b32.xlu0 %v10467, 48
        %v10532 = vpop.permute.xlu0 %10531
        %10540 = vrot.lane.b32.xlu0 %v10457, 64
        %v10541 = vpop.permute.xlu0 %10540
        %10542 = vrot.lane.b32.xlu0 %v10458, 64
        %v10543 = vpop.permute.xlu0 %10542
        %10544 = vrot.lane.b32.xlu0 %v10459, 64
        %v10545 = vpop.permute.xlu0 %10544
        %10546 = vrot.lane.b32.xlu0 %v10468, 64
        %v10547 = vpop.permute.xlu0 %10546
        %10548 = vrot.lane.b32.xlu0 %v10469, 64
        %v10549 = vpop.permute.xlu0 %10548
        %10557 = vrot.lane.b32.xlu0 %v10462, 80
        %v10558 = vpop.permute.xlu0 %10557
        %10559 = vrot.lane.b32.xlu0 %v10463, 80
        %v10560 = vpop.permute.xlu0 %10559
        %10561 = vrot.lane.b32.xlu0 %v10464, 80
        %v10562 = vpop.permute.xlu0 %10561
        %10563 = vrot.lane.b32.xlu0 %v10470, 80
        %v10564 = vpop.permute.xlu0 %10563
        %10565 = vrot.lane.b32.xlu0 %v10471, 80
        %v10566 = vpop.permute.xlu0 %10565
        %10574 = vrot.lane.b32.xlu0 %v10453, 96
        %v10575 = vpop.permute.xlu0 %10574
        %10576 = vrot.lane.b32.xlu0 %v10454, 96
        %v10577 = vpop.permute.xlu0 %10576
        %10578 = vrot.lane.b32.xlu0 %v10466, 96
        %v10579 = vpop.permute.xlu0 %10578
        %10580 = vrot.lane.b32.xlu0 %v10472, 96
        %v10581 = vpop.permute.xlu0 %10580
        %10582 = vrot.lane.b32.xlu0 %v10473, 96
        %v10583 = vpop.permute.xlu0 %10582
        %10591 = vrot.lane.b32.xlu0 %v10458, 112
        %v10592 = vpop.permute.xlu0 %10591
        %10593 = vrot.lane.b32.xlu0 %v10459, 112
        %v10594 = vpop.permute.xlu0 %10593
        %10595 = vrot.lane.b32.xlu0 %v10468, 112
        %v10596 = vpop.permute.xlu0 %10595
        %10597 = vrot.lane.b32.xlu0 %v10474, 112
        %v10598 = vpop.permute.xlu0 %10597
        %10599 = vrot.lane.b32.xlu0 %v10475, 112
        %v10600 = vpop.permute.xlu0 %10599
        %v10606 = vsel %vm413, %v10451, %v10484
        %v10607 = vsel %vm413, %v10452, %v10486
        %v10608 = vsel %vm413, %v10453, %v10488
        %v10609 = vsel %vm413, %v10454, %v10490
        %v10610 = vsel %vm413, %v10455, %v10492
        %v10611 = vsel %vm2513, %v10606, %v10504
        %v10612 = vsel %vm2513, %v10607, %v10506
        %v10613 = vsel %vm2513, %v10608, %v10508
        %v10614 = vsel %vm2513, %v10609, %v10510
        %v10615 = vsel %vm2513, %v10610, %v10512
        %v10616 = vsel %vm2645, %v10611, %v10524
        %v10617 = vsel %vm2645, %v10612, %v10526
        %v10618 = vsel %vm2645, %v10613, %v10528
        %v10619 = vsel %vm2645, %v10614, %v10530
        %v10620 = vsel %vm2645, %v10615, %v10532
        %v10621 = vsel %vm3956, %v10616, %v10541
        %v10622 = vsel %vm3956, %v10617, %v10543
        %v10623 = vsel %vm3956, %v10618, %v10545
        %v10624 = vsel %vm3956, %v10619, %v10547
        %v10625 = vsel %vm3956, %v10620, %v10549
        %v10626 = vsel %vm9316, %v10621, %v10558
        %v10627 = vsel %vm9316, %v10622, %v10560
        %v10628 = vsel %vm9316, %v10623, %v10562
        %v10629 = vsel %vm9316, %v10624, %v10564
        %v10630 = vsel %vm9316, %v10625, %v10566
        %v10631 = vsel %vm9358, %v10626, %v10575
        %v10632 = vsel %vm9358, %v10627, %v10577
        %v10633 = vsel %vm9358, %v10628, %v10579
        %v10634 = vsel %vm9358, %v10629, %v10581
        %v10635 = vsel %vm9358, %v10630, %v10583
        %v10636 = vsel %vm9400, %v10631, %v10592
        %v10637 = vsel %vm9400, %v10632, %v10594
        %v10638 = vsel %vm9400, %v10633, %v10596
        %v10639 = vsel %vm9400, %v10634, %v10598
        %v10640 = vsel %vm9400, %v10635, %v10600
        %v10641 = vsel %vm413, %v10463, 0
        %v10643 = vsel %vm413, %v10464, 0
        %v10645 = vsel %vm413, %v10470, 0
        %v10648 = vsel %vm413, %v10476, 0
        %v10651 = vsel %vm413, %v10477, 0
        %10653 = vmatpush.msra.mxu0 %v10448
        %10654 = vmatpush.msra.mxu0 %v10447
        %10655 = vmatpush.msra.mxu0 %v10446
        %10656 = vmatpush.msra.mxu0 %v10445
        %10657 = vmatpush.msra.mxu0 %v10444
        %10658 = vmatpush.msra.mxu0 %v10443
        %10659 = vmatpush.msra.mxu0 %v10442
        %10660 = vmatpush.msra.mxu0 %v10441
        %10661 = vmatpush.msra.mxu0 %v10440
        %10662 = vmatpush.msra.mxu0 %v10439
        %10663 = vmatpush.msra.mxu0 %v10438
        %10664 = vmatpush.msra.mxu0 %v10437
        %10665 = vmatpush.msra.mxu0 %v10436
        %10666 = vmatpush.msra.mxu0 %v10435
        %10667 = vmatpush.msra.mxu0 %v10434
        %10668 = vmatpush.msra.mxu0 %v10433
        %10669 = vmatmul.f32.gmra.mxu0 %v10636
        %v10670 = vpop.f32.mrf.mxu0
        %v10671 = vadd.f32 0.0, %v10670
        %10672 = vmatmul.f32.gmra.mxu0 %v10637
        %v10673 = vpop.f32.mrf.mxu0
        %v10674 = vadd.f32 0.0, %v10673
        %10675 = vmatmul.f32.gmra.mxu0 %v10638
        %v10676 = vpop.f32.mrf.mxu0
        %v10677 = vadd.f32 0.0, %v10676
        %10678 = vmatmul.f32.gmra.mxu0 %v10639
        %v10679 = vpop.f32.mrf.mxu0
        %v10680 = vadd.f32 0.0, %v10679
        %10681 = vmatmul.f32.gmra.mxu0 %v10640
        %v10682 = vpop.f32.mrf.mxu0
        %v10683 = vadd.f32 0.0, %v10682
        %10684 = vdwg.mxu0
        %10685 = vmatpush.msra.mxu0 0.0
        %10686 = vmatpush.msra.mxu0 0.0
        %10687 = vmatpush.msra.mxu0 0.0
        %10688 = vmatpush.msra.mxu0 0.0
        %10689 = vmatpush.msra.mxu0 0.0
        %10690 = vmatpush.msra.mxu0 0.0
        %10691 = vmatpush.msra.mxu0 0.0
        %10692 = vmatpush.msra.mxu0 0.0
        %10693 = vmatpush.msra.mxu0 0.0
        %10694 = vmatpush.msra.mxu0 0.0
        %10695 = vmatpush.msra.mxu0 0.0
        %10696 = vmatpush.msra.mxu0 0.0
        %10697 = vmatpush.msra.mxu0 0.0
        %10698 = vmatpush.msra.mxu0 0.0
        %10699 = vmatpush.msra.mxu0 %v10450
        %10700 = vmatpush.msra.mxu0 %v10449
        %10701 = vmatmul.f32.gmra.mxu0 %v10641
        %v10702 = vpop.f32.mrf.mxu0
        %v10703 = vadd.f32 %v10671, %v10702
        %10704 = vmatmul.f32.gmra.mxu0 %v10643
        %v10705 = vpop.f32.mrf.mxu0
        %v10706 = vadd.f32 %v10674, %v10705
        %10707 = vmatmul.f32.gmra.mxu0 %v10645
        %v10708 = vpop.f32.mrf.mxu0
        %v10709 = vadd.f32 %v10677, %v10708
        %10710 = vmatmul.f32.gmra.mxu0 %v10648
        %v10711 = vpop.f32.mrf.mxu0
        %v10712 = vadd.f32 %v10680, %v10711
        %10713 = vmatmul.f32.gmra.mxu0 %v10651
        %v10714 = vpop.f32.mrf.mxu0
        %v10715 = vadd.f32 %v10683, %v10714
        %10716 = vdwg.mxu0
        %10717 = vst.msk [vmem:[#allocation6] sm:$0xff] %vm2513, %v10703
        %10718 = vst.msk [vmem:[#allocation6 + $0x8] sm:$0xff] %vm2513, %v10706
        %10719 = vst.msk [vmem:[#allocation6 + $0x10] sm:$0xff] %vm2513, %v10709
        %10720 = vst.msk [vmem:[#allocation6 + $0x18] sm:$0xff] %vm2513, %v10712
        %vm10721 = vcmask 259072
        %10722 = vst.msk [vmem:[#allocation6 + $0x20] sm:$0x3f] %vm10721, %v10715
        %v10723 = vld [vmem:[#allocation6] ss:$2 sm:$0x3]
        %s10724 = scalar_lea.vmem [#allocation6], 1
        %v10725 = vld [vmem:[%s10724] ss:$2 sm:$0x3]
        %s10726 = scalar_lea.vmem [#allocation6], 8
        %v10727 = vld [vmem:[%s10726] ss:$2 sm:$0x3]
        %s10728 = scalar_lea.vmem [#allocation6], 9
        %v10729 = vld [vmem:[%s10728] ss:$2 sm:$0x3]
        %v10730 = vmax.f32 %v10723, %v10725
        %v10731 = vmax.f32 %v10727, %v10729
        %v10732 = vmax.f32 %v10730, %v10731
        %v10733 = vld [vmem:[%s6] sm:$0x1]
        %v10735 = vperm.slane %v10733, 0
        %v10737 = vadd.f32 %v10732, %v10735
        %v10738 = vmax.f32 %v10737, 0.0
        %s10739 = scalar_lea.vmem [#allocation6], 16
        %v10740 = vld [vmem:[%s10739] ss:$2 sm:$0x3]
        %s10741 = scalar_lea.vmem [#allocation6], 17
        %v10742 = vld [vmem:[%s10741] ss:$2 sm:$0x3]
        %s10743 = scalar_lea.vmem [#allocation6], 24
        %v10744 = vld [vmem:[%s10743] ss:$2 sm:$0x3]
        %s10745 = scalar_lea.vmem [#allocation6], 25
        %v10746 = vld [vmem:[%s10745] ss:$2 sm:$0x3]
        %v10747 = vmax.f32 %v10740, %v10742
        %v10748 = vmax.f32 %v10744, %v10746
        %v10749 = vmax.f32 %v10747, %v10748
        %v10750 = vadd.f32 %v10749, %v10735
        %v10751 = vmax.f32 %v10750, 0.0
        %v10753 = vrot.slane %v10738, 1
        %10754 = vrot.lane.b32.xlu0 %v10753, 32
        %v10755 = vpop.permute.xlu0 %10754
        %10758 = vrot.lane.b32.xlu0 %v10751, 64
        %v10759 = vpop.permute.xlu0 %10758
        %v10761 = vrot.slane %v10751, 1
        %10762 = vrot.lane.b32.xlu0 %v10761, 96
        %v10763 = vpop.permute.xlu0 %10762
        %v10765 = vsel %vm2513, %v10738, %v10755
        %v10766 = vsel %vm3956, %v10765, %v10759
        %v10767 = vsel %vm9358, %v10766, %v10763
        %v10768 = vld [vmem:[%s7] sm:$0xff]
        %v10769 = vld [vmem:[%s7 + $0x8] sm:$0xff]
        %v10770 = vld [vmem:[%s7 + $0x10] sm:$0xff]
        %v10771 = vld [vmem:[%s7 + $0x18] sm:$0xff]
        %v10772 = vld [vmem:[%s7 + $0x20] sm:$0xff]
        %v10773 = vld [vmem:[%s7 + $0x28] sm:$0xff]
        %v10774 = vld [vmem:[%s7 + $0x30] sm:$0xff]
        %v10775 = vld [vmem:[%s7 + $0x38] sm:$0xff]
        %v10776 = vld [vmem:[%s7 + $0x40] sm:$0xff]
        %v10777 = vld [vmem:[%s7 + $0x48] sm:$0xff]
        %v10778 = vld [vmem:[%s7 + $0x50] sm:$0xff]
        %v10779 = vld [vmem:[%s7 + $0x58] sm:$0xff]
        %v10780 = vld [vmem:[%s7 + $0x60] sm:$0xff]
        %v10781 = vld [vmem:[%s7 + $0x68] sm:$0xff]
        %v10782 = vld [vmem:[%s7 + $0x70] sm:$0xff]
        %v10783 = vld [vmem:[%s7 + $0x78] sm:$0xff]
        %v10784 = vld [vmem:[%s8] sm:$0x1]
        %10785 = vmatpush.msra.mxu0 %v10783
        %10786 = vmatpush.msra.mxu0 %v10782
        %10787 = vmatpush.msra.mxu0 %v10781
        %10788 = vmatpush.msra.mxu0 %v10780
        %10789 = vmatpush.msra.mxu0 %v10779
        %10790 = vmatpush.msra.mxu0 %v10778
        %10791 = vmatpush.msra.mxu0 %v10777
        %10792 = vmatpush.msra.mxu0 %v10776
        %10793 = vmatpush.msra.mxu0 %v10775
        %10794 = vmatpush.msra.mxu0 %v10774
        %10795 = vmatpush.msra.mxu0 %v10773
        %10796 = vmatpush.msra.mxu0 %v10772
        %10797 = vmatpush.msra.mxu0 %v10771
        %10798 = vmatpush.msra.mxu0 %v10770
        %10799 = vmatpush.msra.mxu0 %v10769
        %10800 = vmatpush.msra.mxu0 %v10768
        %10801 = vmatmul.f32.gmra.mxu0 %v10767
        %v10802 = vpop.f32.mrf.mxu0
        %v10803 = vadd.f32 %v10784, %v10802
        %10804 = vdwg.mxu0
        %v10805 = vmax.f32 %v10803, 0.0
        %v10806 = vld [vmem:[%s9] sm:$0xff]
        %v10807 = vld [vmem:[%s9 + $0x8] sm:$0xff]
        %v10808 = vld [vmem:[%s9 + $0x10] sm:$0xff]
        %v10809 = vld [vmem:[%s9 + $0x18] sm:$0xff]
        %v10810 = vld [vmem:[%s9 + $0x20] sm:$0xff]
        %v10811 = vld [vmem:[%s9 + $0x28] sm:$0xff]
        %v10812 = vld [vmem:[%s9 + $0x30] sm:$0xff]
        %v10813 = vld [vmem:[%s9 + $0x38] sm:$0xff]
        %v10814 = vld [vmem:[%s9 + $0x40] sm:$0xff]
        %v10815 = vld [vmem:[%s9 + $0x48] sm:$0xff]
        %v10816 = vld [vmem:[%s9 + $0x50] sm:$0xff]
        %v10817 = vld [vmem:[%s9 + $0x58] sm:$0xff]
        %v10818 = vld [vmem:[%s9 + $0x60] sm:$0xff]
        %v10819 = vld [vmem:[%s9 + $0x68] sm:$0xff]
        %v10820 = vld [vmem:[%s9 + $0x70] sm:$0xff]
        %v10821 = vld [vmem:[%s9 + $0x78] sm:$0xff]
        %v10822 = vld [vmem:[%s10] sm:$0x1]
        %10823 = vmatpush.msra.mxu0 %v10821
        %10824 = vmatpush.msra.mxu0 %v10820
        %10825 = vmatpush.msra.mxu0 %v10819
        %10826 = vmatpush.msra.mxu0 %v10818
        %10827 = vmatpush.msra.mxu0 %v10817
        %10828 = vmatpush.msra.mxu0 %v10816
        %10829 = vmatpush.msra.mxu0 %v10815
        %10830 = vmatpush.msra.mxu0 %v10814
        %10831 = vmatpush.msra.mxu0 %v10813
        %10832 = vmatpush.msra.mxu0 %v10812
        %10833 = vmatpush.msra.mxu0 %v10811
        %10834 = vmatpush.msra.mxu0 %v10810
        %10835 = vmatpush.msra.mxu0 %v10809
        %10836 = vmatpush.msra.mxu0 %v10808
        %10837 = vmatpush.msra.mxu0 %v10807
        %10838 = vmatpush.msra.mxu0 %v10806
        %10839 = vmatmul.f32.gmra.mxu0 %v10805
        %v10840 = vpop.f32.mrf.mxu0
        %v10841 = vadd.f32 %v10822, %v10840
        %10842 = vdwg.mxu0
        %vm10843 = vcmask 73728
        %10844 = vst.msk [vmem:[%s378] sm:$0x1] %vm10843, %v10841
        %s10845 = sand.u32 %s269, 1
        %s10846 = scalar_lea.sflag [#allocation8], %s10845
        %s10847 = sand.u32 %s269, 1
        %s10848 = scalar_lea.vmem [#allocation7], %s10847
        // Predicated region
        $region65: #{digit_classifier_forward.1} parent=63 // pred_check
          %p10849 = pneg %p279
        $region66: #{digit_classifier_forward.1} parent=63 // pred_check_branch
          %10851 = sbr.rel (%p10849) target = $region68
        $region67: #{digit_classifier_forward.1} parent=63 // pred_region
          %10853 = vsyncadd %s10846, 0
          %s10854 = scalar_lea.hbm %s11, %s25
          %s10856 = sshll.u32 %s10848, 4
          %s10857 = int_to_ptr.vmem [resolvable:$true] %s10856
          %s10858 = sshll.u32 %s10854, 4
          %s10859 = int_to_ptr.hbm [resolvable:$true] %s10858
          %10861 = dma.vmem_to_hbm [thread:$0]  %s10857, 16, %s10859, %s10846
        $region68: #{digit_classifier_forward.1} parent=63 // pred_fallthru
          _
      $region64: #{digit_classifier_forward.1} parent=5 // pred_fallthru
        _
      %p10862 = scmp.le.s32.totalorder 2, %s20
      // Predicated region
      $region69: #{digit_classifier_forward.1} parent=5 // pred_check
        %p10863 = pneg %p10862
      $region70: #{digit_classifier_forward.1} parent=5 // pred_check_branch
        %10865 = sbr.rel (%p10863) target = $region72
      $region71: #{digit_classifier_forward.1} parent=5 // pred_region
        %s10866 = ssub.s32 %s20, 2
        // Predicated region
        $region73: #{digit_classifier_forward.1} parent=71 // pred_check
          %p10867 = pneg %p285
        $region74: #{digit_classifier_forward.1} parent=71 // pred_check_branch
          %10869 = sbr.rel (%p10867) target = $region76
        $region75: #{digit_classifier_forward.1} parent=71 // pred_region
          %s10870 = sand.u32 %s270, 1
          %s10871 = scalar_lea.sflag [#allocation8], %s10870
          %s10872 = sand.u32 %s270, 1
          %s10873 = scalar_lea.vmem [#allocation7], %s10872
          %10875 = dma.done %s10871, 16
        $region76: #{digit_classifier_forward.1} parent=71 // pred_fallthru
          _
      $region72: #{digit_classifier_forward.1} parent=5 // pred_fallthru
        _
    $region6: #{digit_classifier_forward.1} parent=1 // loop_footer
      %s24 = sadd.s32 1, %s20
    $region7: #{digit_classifier_forward.1} parent=1 // loop_footer_branch
      %19 = sbr.rel target = $region3
    $region8: #{digit_classifier_forward.1} parent=1 // loop_exit
      _
    %10876 = vsyncpa [#allocation8], 1
    %s10877 = scalar_lea.sflag [#allocation8], 1
    %10878 = vsyncpa %s10877, 1

</llo_original>
